<compile_context>
chip_gen: v7x
topology: tpu7x:2x2x1
jax: 0.10.0
libtpu: 0.0.40
codegen_flags: <defaults>
</compile_context>

<pallas_src>
import functools

import jax
import jax.numpy as jnp
from jax import lax
from jax.experimental import pallas as pl
from jax.experimental.pallas import tpu as pltpu

EPS = 1e-5                        # nn.BatchNorm2d default eps
LANE = 128                        # TPU lane width
DEFAULT_TILE_ROWS = 1024          # amortizes per-grid-step overhead at real shapes
# Scoped VMEM budget. NOTE(v7x): physical VMEM is 64 MiB per TC -- keep tiles
# (2x double-buffered x/w/y blocks) well under this when growing tile_rows.
VMEM_LIMIT_BYTES = 48 * 1024 * 1024


# ----------------------------------------------------------------------------
# Matmul stage: (optional fused input BN+ReLU) -> MXU matmul -> per-tile stats
# ----------------------------------------------------------------------------
def _matmul_stats_kernel(fuse_input_bn, real_rows, tile_rows, *refs):
    if fuse_input_bn:
        x_ref, w_ref, scale_ref, shift_ref, y_ref, sum_ref, sq_ref = refs
    else:
        x_ref, w_ref, y_ref, sum_ref, sq_ref = refs

    x = x_ref[...]
    if fuse_input_bn:
        # Fused producer-BN apply + ReLU on the loaded tile (saves one full
        # activation write+read per stage vs. a separate elementwise pass).
        xa = jnp.maximum(x.astype(jnp.float32) * scale_ref[...] + shift_ref[...], 0.0)
        if real_rows is not None:
            # Padded rows are zero pre-BN but relu(shift) post-BN: mask them so
            # they contribute neither to the matmul output nor to the stats.
            row = (lax.broadcasted_iota(jnp.int32, xa.shape, 0)
                   + pl.program_id(0) * tile_rows)
            xa = jnp.where(row < real_rows, xa, 0.0)
        x = xa.astype(jnp.bfloat16)

    y = jnp.dot(x, w_ref[...], preferred_element_type=jnp.float32)
    y_ref[...] = y.astype(y_ref.dtype)
    # Per-tile partial statistics, kept as (8, C) so the cross-sublane reduce
    # happens once on the tiny glue-side partials (row axis stays "parallel").
    p = y.reshape(-1, 8, y.shape[-1])
    sum_ref[0] = jnp.sum(p, axis=0)
    sq_ref[0] = jnp.sum(p * p, axis=0)


def matmul_bn_stats_stage(x2d, w2d, *, scale=None, shift=None, real_rows=None,
                          tile_rows=DEFAULT_TILE_ROWS):
    """x2d: [rows_p, K] bf16, w2d: [K, C] bf16, optional (1,K) f32 scale/shift."""
    rows_p, k = x2d.shape
    cout = w2d.shape[1]
    assert rows_p % tile_rows == 0 and tile_rows % 8 == 0
    assert k % LANE == 0 and cout % LANE == 0
    ntiles = rows_p // tile_rows
    fuse = scale is not None
    if real_rows is not None and real_rows >= rows_p:
        real_rows = None                                    # no padded rows -> no mask

    args = [x2d.astype(jnp.bfloat16), w2d.astype(jnp.bfloat16)]
    # TODO(synk): at deep ResNet stages on v7x, consider pl.Buffered(1) on the
    # constant-index weight spec to reclaim one weight-sized VMEM buffer.
    in_specs = [pl.BlockSpec((tile_rows, k), lambda i: (i, 0)),
                pl.BlockSpec((k, cout), lambda i: (0, 0))]
    if fuse:
        args += [scale, shift]
        in_specs += [pl.BlockSpec((1, k), lambda i: (0, 0)),
                     pl.BlockSpec((1, k), lambda i: (0, 0))]

    y, psum, psq = pl.pallas_call(
        functools.partial(_matmul_stats_kernel, fuse, real_rows, tile_rows),
        out_shape=(jax.ShapeDtypeStruct((rows_p, cout), jnp.bfloat16),
                   jax.ShapeDtypeStruct((ntiles, 8, cout), jnp.float32),
                   jax.ShapeDtypeStruct((ntiles, 8, cout), jnp.float32)),
        grid_spec=pltpu.PrefetchScalarGridSpec(
            num_scalar_prefetch=0,
            grid=(ntiles,),
            in_specs=in_specs,
            out_specs=[pl.BlockSpec((tile_rows, cout), lambda i: (i, 0)),
                       pl.BlockSpec((1, 8, cout), lambda i: (i, 0, 0)),
                       pl.BlockSpec((1, 8, cout), lambda i: (i, 0, 0))]),
        compiler_params=pltpu.CompilerParams(
            dimension_semantics=("parallel",),              # no carried state: shard TCs
            vmem_limit_bytes=VMEM_LIMIT_BYTES),
    )(*args)
    return y, psum, psq


# ----------------------------------------------------------------------------
# 3x3 conv stage: fused BN1-apply+ReLU, 9 accumulated matmuls, BN2 stats
# ----------------------------------------------------------------------------
def _conv3x3_bn_stats_kernel(h, w, xpad_ref, w_ref, mask_ref, scale_ref, shift_ref,
                             y_ref, sum_ref, sq_ref):
    # xpad_ref: (1, h+2, w+2, Cin) bf16 raw conv1 output with a zero spatial halo.
    # mask_ref: (h+2, w+2, Cin) f32; 1 in the interior, 0 on the halo. The conv's
    #           zero-padding applies to the post-BN activation, and BN(0) != 0,
    #           so the halo must be re-zeroed after the fused BN+ReLU.
    cin = xpad_ref.shape[-1]
    cout = y_ref.shape[-1]
    scale = jnp.broadcast_to(scale_ref[...].reshape(1, 1, cin), (h, w, cin))
    shift = jnp.broadcast_to(shift_ref[...].reshape(1, 1, cin), (h, w, cin))

    acc = jnp.zeros((h * w, cout), jnp.float32)
    t = 0
    for dh in range(3):
        for dw in range(3):
            raw = xpad_ref[0, pl.ds(dh, h), pl.ds(dw, w), :].astype(jnp.float32)
            act = jnp.maximum(raw * scale + shift, 0.0)
            act = act * mask_ref[pl.ds(dh, h), pl.ds(dw, w), :]
            win = act.astype(jnp.bfloat16).reshape(h * w, cin)
            acc = acc + jnp.dot(win, w_ref[t], preferred_element_type=jnp.float32)
            t += 1

    y_ref[0] = acc.astype(y_ref.dtype)
    p = acc.reshape(-1, 8, cout)
    sum_ref[0] = jnp.sum(p, axis=0)
    sq_ref[0] = jnp.sum(p * p, axis=0)


def conv3x3_bn_stats_stage(xpad_nhwc, w_taps, mask, scale, shift):
    """xpad_nhwc: (N, H+2, W+2, Cin) bf16; w_taps: (9, Cin, Cout) bf16."""
    n, hp2, wp2, c = xpad_nhwc.shape
    h, w = hp2 - 2, wp2 - 2
    cout = w_taps.shape[-1]
    assert (h * w) % 8 == 0, "spatial size must be a multiple of 8"  # TODO(synk): pad H*W
    assert c % LANE == 0 and cout % LANE == 0

    y2, psum, psq = pl.pallas_call(
        functools.partial(_conv3x3_bn_stats_kernel, h, w),
        out_shape=(jax.ShapeDtypeStruct((n, h * w, cout), jnp.bfloat16),
                   jax.ShapeDtypeStruct((n, 8, cout), jnp.float32),
                   jax.ShapeDtypeStruct((n, 8, cout), jnp.float32)),
        grid_spec=pltpu.PrefetchScalarGridSpec(
            num_scalar_prefetch=0,
            grid=(n,),                                       # one image per grid step
            in_specs=[pl.BlockSpec((1, hp2, wp2, c), lambda i: (i, 0, 0, 0)),
                      pl.BlockSpec((9, c, cout), lambda i: (0, 0, 0)),
                      pl.BlockSpec((hp2, wp2, c), lambda i: (0, 0, 0)),
                      pl.BlockSpec((1, c), lambda i: (0, 0)),
                      pl.BlockSpec((1, c), lambda i: (0, 0))],
            out_specs=[pl.BlockSpec((1, h * w, cout), lambda i: (i, 0, 0)),
                       pl.BlockSpec((1, 8, cout), lambda i: (i, 0, 0)),
                       pl.BlockSpec((1, 8, cout), lambda i: (i, 0, 0))]),
        compiler_params=pltpu.CompilerParams(
            dimension_semantics=("parallel",),
            vmem_limit_bytes=VMEM_LIMIT_BYTES),
    )(xpad_nhwc, w_taps, mask, scale, shift)
    return y2, psum, psq


# ----------------------------------------------------------------------------
# Final elementwise pass: BN3 apply + residual add + ReLU
# ----------------------------------------------------------------------------
def _bn_apply_kernel(add_identity, relu, *refs):
    if add_identity:
        y_ref, scale_ref, shift_ref, id_ref, o_ref = refs
    else:
        y_ref, scale_ref, shift_ref, o_ref = refs
        id_ref = None
    y = y_ref[...].astype(jnp.float32) * scale_ref[...] + shift_ref[...]
    if add_identity:
        y = y + id_ref[...].astype(jnp.float32)
    if relu:
        y = jnp.maximum(y, 0.0)
    o_ref[...] = y.astype(o_ref.dtype)


def bn_apply_stage(y, scale, shift, *, identity=None, relu=True,
                   out_dtype=jnp.bfloat16, tile_rows=DEFAULT_TILE_ROWS):
    rows_p, c = y.shape
    assert rows_p % tile_rows == 0 and c % LANE == 0
    ntiles = rows_p // tile_rows
    args = [y, scale, shift]
    in_specs = [pl.BlockSpec((tile_rows, c), lambda i: (i, 0)),
                pl.BlockSpec((1, c), lambda i: (0, 0)),
                pl.BlockSpec((1, c), lambda i: (0, 0))]
    if identity is not None:
        args.append(identity)
        in_specs.append(pl.BlockSpec((tile_rows, c), lambda i: (i, 0)))
    return pl.pallas_call(
        functools.partial(_bn_apply_kernel, identity is not None, relu),
        out_shape=jax.ShapeDtypeStruct((rows_p, c), out_dtype),
        grid_spec=pltpu.PrefetchScalarGridSpec(
            num_scalar_prefetch=0, grid=(ntiles,),
            in_specs=in_specs,
            out_specs=pl.BlockSpec((tile_rows, c), lambda i: (i, 0))),
        compiler_params=pltpu.CompilerParams(
            dimension_semantics=("parallel",),
            vmem_limit_bytes=VMEM_LIMIT_BYTES),
    )(*args)


# ----------------------------------------------------------------------------
# Glue: padding helpers, BN folding, parameter setup, forward pass
# ----------------------------------------------------------------------------
def _round_up(v, m):
    return (v + m - 1) // m * m


def _pad_axis(a, axis, target):
    pad = target - a.shape[axis]
    if pad <= 0:
        return a
    widths = [(0, 0)] * a.ndim
    widths[axis] = (0, pad)
    return jnp.pad(a, widths)


def _fold_bn(psum, psq, count, gamma, beta):
    """Fold training-mode BN into per-channel (scale, shift) from partial sums."""
    s = jnp.sum(psum, axis=(0, 1))
    q = jnp.sum(psq, axis=(0, 1))
    mean = s / count
    # Single-pass variance; clamp against f32 cancellation.
    # TODO(synk): switch to a per-tile (count, mean, M2) Welford merge if accuracy
    # at very large row counts becomes an issue.
    var = jnp.maximum(q / count - mean * mean, 0.0)
    scale = gamma.astype(jnp.float32) * lax.rsqrt(var + EPS)
    shift = beta.astype(jnp.float32) - mean * scale
    return scale.reshape(1, -1), shift.reshape(1, -1)


def im2col_3x3(x_nhwc, stride):
    """Used by the f32 reference only: [N,H,W,C] -> ([N*Ho*Wo, 9*C], (Ho, Wo))."""
    n, h, w, c = x_nhwc.shape
    sh, sw = stride
    ho = (h + 2 - 3) // sh + 1
    wo = (w + 2 - 3) // sw + 1
    xp = jnp.pad(x_nhwc, ((0, 0), (1, 1), (1, 1), (0, 0)))
    taps = [xp[:, dh:dh + sh * ho:sh, dw:dw + sw * wo:sw, :]
            for dh in range(3) for dw in range(3)]
    cols = jnp.concatenate(taps, axis=-1)
    return cols.reshape(n * ho * wo, 9 * c), (ho, wo)


def resblock_forward_pallas(x_nchw, params, stride=(1, 1),
                            tile_rows=DEFAULT_TILE_ROWS):
    assert stride == (1, 1), "residual=None skip path requires stride=(1,1)"
    # TODO(synk): when chained with other blocks keep activations NHWC/bf16
    # end-to-end and hoist these transposes/casts to the model boundary.
    x = jnp.transpose(x_nchw, (0, 2, 3, 1)).astype(jnp.bfloat16)    # NCHW -> NHWC, bf16 once
    n, h, w, cin = x.shape
    inter = params["w1"].shape[1]
    cout = params["w3"].shape[1]
    assert cin == cout, "residual=None requires in_channels == 4*inter_channels"

    # Lane-dense channel padding (done once on weights/BN params, bf16 weights).
    cin_p, inter_p, cout_p = (_round_up(c, LANE) for c in (cin, inter, cout))
    w1 = _pad_axis(_pad_axis(params["w1"], 0, cin_p), 1, inter_p).astype(jnp.bfloat16)
    w2 = _pad_axis(_pad_axis(params["w2"], 2, inter_p), 3, inter_p)       # [kh,kw,Cin,Cout]
    w2 = w2.reshape(9, inter_p, inter_p).astype(jnp.bfloat16)
    w3 = _pad_axis(_pad_axis(params["w3"], 0, inter_p), 1, cout_p).astype(jnp.bfloat16)
    g1, be1 = _pad_axis(params["g1"], 0, inter_p), _pad_axis(params["beta1"], 0, inter_p)
    g2, be2 = _pad_axis(params["g2"], 0, inter_p), _pad_axis(params["beta2"], 0, inter_p)
    g3, be3 = _pad_axis(params["g3"], 0, cout_p), _pad_axis(params["beta3"], 0, cout_p)
    # NOTE: conv biases (b1/b2/b3) intentionally unused: train-mode BN cancels them.

    rows = n * h * w
    tr = min(tile_rows, _round_up(rows, 8))
    rows_p = _round_up(rows, tr)
    # x2d is both the stage-1 input and the residual identity (cin == cout).
    x2d = _pad_axis(_pad_axis(x.reshape(rows, cin), 1, cin_p), 0, rows_p)

    # ---- stage 1: conv1 (1x1) matmul + BN1 partial stats ----------------------
    y1_raw, s1, q1 = matmul_bn_stats_stage(x2d, w1, tile_rows=tr)
    scale1, shift1 = _fold_bn(s1, q1, rows, g1, be1)

    # ---- stage 2: in-kernel 3x3 conv with fused BN1-apply+ReLU + BN2 stats ----
    y1_img = y1_raw[:rows].reshape(n, h, w, inter_p)
    y1_pad = jnp.pad(y1_img, ((0, 0), (1, 1), (1, 1), (0, 0)))              # bf16 halo
    border = jnp.pad(jnp.ones((h, w, inter_p), jnp.float32),
                     ((1, 1), (1, 1), (0, 0)))                              # interior mask
    y2_raw, s2, q2 = conv3x3_bn_stats_stage(y1_pad, w2, border, scale1, shift1)
    scale2, shift2 = _fold_bn(s2, q2, rows, g2, be2)

    # ---- stage 3: conv3 (1x1) matmul with fused BN2-apply+ReLU + BN3 stats ----
    y2_flat = _pad_axis(y2_raw.reshape(rows, inter_p), 0, rows_p)
    y3_raw, s3, q3 = matmul_bn_stats_stage(y2_flat, w3, scale=scale2, shift=shift2,
                                           real_rows=rows, tile_rows=tr)
    scale3, shift3 = _fold_bn(s3, q3, rows, g3, be3)

    # ---- final: BN3 apply + residual add + ReLU (bf16 store, upcast at exit) --
    out2d = bn_apply_stage(y3_raw, scale3, shift3, identity=x2d, relu=True,
                           out_dtype=jnp.bfloat16, tile_rows=tr)
    out = out2d[:rows, :cout].reshape(n, h, w, cout)
    return jnp.transpose(out, (0, 3, 1, 2)).astype(jnp.float32)             # NHWC -> NCHW


# Pure-JAX f32 reference with true module semantics (keeps the conv biases).
def resblock_forward_ref(x_nchw, params, stride=(1, 1)):
    x = jnp.transpose(x_nchw, (0, 2, 3, 1)).astype(jnp.float32)
    n, h, w, cin = x.shape
    identity = x.reshape(-1, cin)

    def conv_bn(x2d, w2d, b, gamma, beta, relu=True, identity=None):
        y = jnp.dot(x2d, w2d, preferred_element_type=jnp.float32) + b.reshape(1, -1)
        mean = jnp.mean(y, axis=0, keepdims=True)
        var = jnp.mean((y - mean) ** 2, axis=0, keepdims=True)
        y = (y - mean) * lax.rsqrt(var + EPS) * gamma.reshape(1, -1) + beta.reshape(1, -1)
        if identity is not None:
            y = y + identity
        return jnp.maximum(y, 0.0) if relu else y

    inter = params["w1"].shape[1]
    y = conv_bn(x.reshape(-1, cin), params["w1"], params["b1"], params["g1"], params["beta1"])
    cols, (ho, wo) = im2col_3x3(y.reshape(n, h, w, inter), stride)
    y = conv_bn(cols, params["w2"].reshape(9 * inter, inter), params["b2"],
                params["g2"], params["beta2"])
    y = conv_bn(y, params["w3"], params["b3"], params["g3"], params["beta3"],
                identity=identity)
    cout = y.shape[1]
    return jnp.transpose(y.reshape(n, ho, wo, cout), (0, 3, 1, 2))


def init_params(key, in_channels, inter_channels):
    exp = 4
    ks = jax.random.split(key, 6)
    w1 = 0.1 * jax.random.normal(ks[0], (inter_channels, in_channels, 1, 1), jnp.float32)
    b1 = 0.1 * jax.random.normal(ks[1], (inter_channels,), jnp.float32)
    w2 = 0.1 * jax.random.normal(ks[2], (inter_channels, inter_channels, 3, 3), jnp.float32)
    b2 = 0.1 * jax.random.normal(ks[3], (inter_channels,), jnp.float32)
    w3 = 0.1 * jax.random.normal(ks[4], (inter_channels * exp, inter_channels, 1, 1), jnp.float32)
    b3 = 0.1 * jax.random.normal(ks[5], (inter_channels * exp,), jnp.float32)
    return {
        "w1": jnp.transpose(w1[:, :, 0, 0], (1, 0)),        # [Cin, Cout]
        "b1": b1,
        "w2": jnp.transpose(w2, (2, 3, 1, 0)),              # [kh, kw, Cin, Cout]
        "b2": b2,
        "w3": jnp.transpose(w3[:, :, 0, 0], (1, 0)),        # [Cin, 4*inter]
        "b3": b3,
        # BatchNorm affine params at PyTorch defaults (weight=1, bias=0).
        "g1": jnp.ones((inter_channels,), jnp.float32),
        "beta1": jnp.zeros((inter_channels,), jnp.float32),
        "g2": jnp.ones((inter_channels,), jnp.float32),
        "beta2": jnp.zeros((inter_channels,), jnp.float32),
        "g3": jnp.ones((inter_channels * exp,), jnp.float32),
        "beta3": jnp.zeros((inter_channels * exp,), jnp.float32),
    }


if __name__ == "__main__":
    key = jax.random.PRNGKey(0)
    k_x, k_p = jax.random.split(key)

    # Real ResNet-50 stage-2 channel counts (inter padded 64->128 for lane density);
    # in_channels == 4 * inter_channels so the residual=None skip path is valid.
    in_channels, inter_channels = 256, 64
    n, h, w = 2, 16, 16
    x = jax.random.normal(k_x, (n, in_channels, h, w), jnp.float32)   # NCHW like PyTorch
    params = init_params(k_p, in_channels, inter_channels)

    ref = resblock_forward_ref(x, params, stride=(1, 1))

    # tile_rows=256: rows divide exactly (2 tiles).  tile_rows=192: exercises the
    # padded-row + in-kernel row-masking path (3 tiles, 576 padded rows).
    for tr in (256, 192):
        fwd = jax.jit(lambda inp, tr=tr: resblock_forward_pallas(
            inp, params, stride=(1, 1), tile_rows=tr))
        out = jax.block_until_ready(fwd(x))
        assert out.shape == (n, in_channels, h, w), out.shape
        assert bool(jnp.all(jnp.isfinite(out)))
        max_err = float(jnp.max(jnp.abs(out - ref)))
        assert bool(jnp.allclose(out, ref, atol=1e-1, rtol=1e-1)), \
            f"tile_rows={tr} max_err={max_err}"
    print("KERNEL_OK")
</pallas_src>

<mosaic_0001>
module attributes {stable_mosaic.version = 11 : i64} {
  func.func @_matmul_stats_kernel(%arg0: i32, %arg1: memref<256x256xbf16, #tpu.memory_space<vmem>>, %arg2: memref<256x128xbf16, #tpu.memory_space<vmem>>, %arg3: memref<256x128xbf16, #tpu.memory_space<vmem>>, %arg4: memref<1x8x128xf32, #tpu.memory_space<vmem>>, %arg5: memref<1x8x128xf32, #tpu.memory_space<vmem>>) attributes {dimension_semantics = [#tpu.dimension_semantics<parallel>], iteration_bounds = array<i64: 2>, scalar_prefetch = 0 : i64, scratch_operands = 0 : i64, tpu.core_type = #tpu.core_type<tc>, window_params = [{transform_indices = @transform_0, window_bounds = array<i64: 256, 256>}, {pipeline_mode = #tpu.pipeline_mode<synchronous>, transform_indices = @transform_1, window_bounds = array<i64: 256, 128>}, {transform_indices = @transform_2, window_bounds = array<i64: 256, 128>}, {transform_indices = @transform_3, window_bounds = array<i64: 1, 8, 128>}, {transform_indices = @transform_4, window_bounds = array<i64: 1, 8, 128>}]} {
    %c0 = arith.constant 0 : index
    %c0_0 = arith.constant 0 : index
    %0 = vector.load %arg1[%c0, %c0_0] : memref<256x256xbf16, #tpu.memory_space<vmem>>, vector<256x256xbf16>
    %c0_1 = arith.constant 0 : index
    %c0_2 = arith.constant 0 : index
    %1 = vector.load %arg2[%c0_1, %c0_2] : memref<256x128xbf16, #tpu.memory_space<vmem>>, vector<256x128xbf16>
    %cst = arith.constant dense<0.000000e+00> : vector<256x128xf32>
    %2 = tpu.matmul %0, %1, %cst {dimension_numbers = #tpu.dot_dimension_numbers<[1], [0], [0], [1], [0, 0, 1, 1], [], []>} : vector<256x256xbf16>, vector<256x128xbf16>, vector<256x128xf32> -> vector<256x128xf32>
    %3 = arith.truncf %2 : vector<256x128xf32> to vector<256x128xbf16>
    %c0_3 = arith.constant 0 : index
    %c0_4 = arith.constant 0 : index
    %4 = vector.load %arg3[%c0_3, %c0_4] : memref<256x128xbf16, #tpu.memory_space<vmem>>, vector<256x128xbf16>
    tpu.vector_store %arg3[%c0_3, %c0_4], %3 {strides = array<i32>} : memref<256x128xbf16, #tpu.memory_space<vmem>>, vector<256x128xbf16>,
    %5 = vector.shape_cast %2 : vector<256x128xf32> to vector<32x8x128xf32>
    %cst_5 = arith.constant dense<0.000000e+00> : vector<8x128xf32>
    %6 = vector.multi_reduction <add>, %5, %cst_5 [0] : vector<32x8x128xf32> to vector<8x128xf32>
    %c0_6 = arith.constant 0 : index
    %c0_7 = arith.constant 0 : index
    %c0_8 = arith.constant 0 : index
    %7 = vector.load %arg4[%c0_6, %c0_7, %c0_8] : memref<1x8x128xf32, #tpu.memory_space<vmem>>, vector<1x8x128xf32>
    %8 = vector.shape_cast %7 : vector<1x8x128xf32> to vector<8x128xf32>
    %9 = vector.shape_cast %6 : vector<8x128xf32> to vector<1x8x128xf32>
    tpu.vector_store %arg4[%c0_6, %c0_7, %c0_8], %9 {strides = array<i32>} : memref<1x8x128xf32, #tpu.memory_space<vmem>>, vector<1x8x128xf32>,
    %10 = arith.mulf %5, %5 : vector<32x8x128xf32>
    %cst_9 = arith.constant dense<0.000000e+00> : vector<8x128xf32>
    %11 = vector.multi_reduction <add>, %10, %cst_9 [0] : vector<32x8x128xf32> to vector<8x128xf32>
    %c0_10 = arith.constant 0 : index
    %c0_11 = arith.constant 0 : index
    %c0_12 = arith.constant 0 : index
    %12 = vector.load %arg5[%c0_10, %c0_11, %c0_12] : memref<1x8x128xf32, #tpu.memory_space<vmem>>, vector<1x8x128xf32>
    %13 = vector.shape_cast %12 : vector<1x8x128xf32> to vector<8x128xf32>
    %14 = vector.shape_cast %11 : vector<8x128xf32> to vector<1x8x128xf32>
    tpu.vector_store %arg5[%c0_10, %c0_11, %c0_12], %14 {strides = array<i32>} : memref<1x8x128xf32, #tpu.memory_space<vmem>>, vector<1x8x128xf32>,
    return
  }
  func.func @transform_0(%arg0: i32) -> (i32, i32) {
    %c0_i32 = arith.constant 0 : i32
    %c0_i32_0 = arith.constant 0 : i32
    return %arg0, %c0_i32 : i32, i32
  }
  func.func @transform_1(%arg0: i32) -> (i32, i32) {
    %c0_i32 = arith.constant 0 : i32
    %c0_i32_0 = arith.constant 0 : i32
    %c0_i32_1 = arith.constant 0 : i32
    return %c0_i32, %c0_i32_0 : i32, i32
  }
  func.func @transform_2(%arg0: i32) -> (i32, i32) {
    %c0_i32 = arith.constant 0 : i32
    %c0_i32_0 = arith.constant 0 : i32
    return %arg0, %c0_i32 : i32, i32
  }
  func.func @transform_3(%arg0: i32) -> (i32, i32, i32) {
    %c0_i32 = arith.constant 0 : i32
    %c0_i32_0 = arith.constant 0 : i32
    %c0_i32_1 = arith.constant 0 : i32
    return %arg0, %c0_i32, %c0_i32_0 : i32, i32, i32
  }
  func.func @transform_4(%arg0: i32) -> (i32, i32, i32) {
    %c0_i32 = arith.constant 0 : i32
    %c0_i32_0 = arith.constant 0 : i32
    %c0_i32_1 = arith.constant 0 : i32
    return %arg0, %c0_i32, %c0_i32_0 : i32, i32, i32
  }
}

module attributes {stable_mosaic.version = 11 : i64} {
  func.func @_matmul_stats_kernel(%arg0: i32, %arg1: memref<256x128xbf16, #tpu.memory_space<vmem>>, %arg2: memref<128x256xbf16, #tpu.memory_space<vmem>>, %arg3: memref<1x128xf32, #tpu.memory_space<vmem>>, %arg4: memref<1x128xf32, #tpu.memory_space<vmem>>, %arg5: memref<256x256xbf16, #tpu.memory_space<vmem>>, %arg6: memref<1x8x256xf32, #tpu.memory_space<vmem>>, %arg7: memref<1x8x256xf32, #tpu.memory_space<vmem>>) attributes {dimension_semantics = [#tpu.dimension_semantics<parallel>], iteration_bounds = array<i64: 2>, scalar_prefetch = 0 : i64, scratch_operands = 0 : i64, tpu.core_type = #tpu.core_type<tc>, window_params = [{transform_indices = @transform_0, window_bounds = array<i64: 256, 128>}, {pipeline_mode = #tpu.pipeline_mode<synchronous>, transform_indices = @transform_1, window_bounds = array<i64: 128, 256>}, {pipeline_mode = #tpu.pipeline_mode<synchronous>, transform_indices = @transform_2, window_bounds = array<i64: 1, 128>}, {pipeline_mode = #tpu.pipeline_mode<synchronous>, transform_indices = @transform_3, window_bounds = array<i64: 1, 128>}, {transform_indices = @transform_4, window_bounds = array<i64: 256, 256>}, {transform_indices = @transform_5, window_bounds = array<i64: 1, 8, 256>}, {transform_indices = @transform_6, window_bounds = array<i64: 1, 8, 256>}]} {
    %c0 = arith.constant 0 : index
    %c0_0 = arith.constant 0 : index
    %0 = vector.load %arg1[%c0, %c0_0] : memref<256x128xbf16, #tpu.memory_space<vmem>>, vector<256x128xbf16>
    %1 = arith.extf %0 : vector<256x128xbf16> to vector<256x128xf32>
    %c0_1 = arith.constant 0 : index
    %c0_2 = arith.constant 0 : index
    %2 = vector.load %arg3[%c0_1, %c0_2] : memref<1x128xf32, #tpu.memory_space<vmem>>, vector<1x128xf32>
    %3 = vector.broadcast %2 : vector<1x128xf32> to vector<256x128xf32>
    %4 = arith.mulf %1, %3 : vector<256x128xf32>
    %c0_3 = arith.constant 0 : index
    %c0_4 = arith.constant 0 : index
    %5 = vector.load %arg4[%c0_3, %c0_4] : memref<1x128xf32, #tpu.memory_space<vmem>>, vector<1x128xf32>
    %6 = vector.broadcast %5 : vector<1x128xf32> to vector<256x128xf32>
    %7 = arith.addf %4, %6 : vector<256x128xf32>
    %cst = arith.constant 0.000000e+00 : f32
    %8 = vector.broadcast %cst : f32 to vector<256x128xf32>
    %9 = arith.maximumf %7, %8 : vector<256x128xf32>
    %10 = arith.truncf %9 : vector<256x128xf32> to vector<256x128xbf16>
    %c0_5 = arith.constant 0 : index
    %c0_6 = arith.constant 0 : index
    %11 = vector.load %arg2[%c0_5, %c0_6] : memref<128x256xbf16, #tpu.memory_space<vmem>>, vector<128x256xbf16>
    %cst_7 = arith.constant dense<0.000000e+00> : vector<256x256xf32>
    %12 = tpu.matmul %10, %11, %cst_7 {dimension_numbers = #tpu.dot_dimension_numbers<[1], [0], [0], [1], [0, 0, 1, 1], [], []>} : vector<256x128xbf16>, vector<128x256xbf16>, vector<256x256xf32> -> vector<256x256xf32>
    %13 = arith.truncf %12 : vector<256x256xf32> to vector<256x256xbf16>
    %c0_8 = arith.constant 0 : index
    %c0_9 = arith.constant 0 : index
    %14 = vector.load %arg5[%c0_8, %c0_9] : memref<256x256xbf16, #tpu.memory_space<vmem>>, vector<256x256xbf16>
    tpu.vector_store %arg5[%c0_8, %c0_9], %13 {strides = array<i32>} : memref<256x256xbf16, #tpu.memory_space<vmem>>, vector<256x256xbf16>,
    %15 = vector.shape_cast %12 : vector<256x256xf32> to vector<32x8x256xf32>
    %cst_10 = arith.constant dense<0.000000e+00> : vector<8x256xf32>
    %16 = vector.multi_reduction <add>, %15, %cst_10 [0] : vector<32x8x256xf32> to vector<8x256xf32>
    %c0_11 = arith.constant 0 : index
    %c0_12 = arith.constant 0 : index
    %c0_13 = arith.constant 0 : index
    %17 = vector.load %arg6[%c0_11, %c0_12, %c0_13] : memref<1x8x256xf32, #tpu.memory_space<vmem>>, vector<1x8x256xf32>
    %18 = vector.shape_cast %17 : vector<1x8x256xf32> to vector<8x256xf32>
    %19 = vector.shape_cast %16 : vector<8x256xf32> to vector<1x8x256xf32>
    tpu.vector_store %arg6[%c0_11, %c0_12, %c0_13], %19 {strides = array<i32>} : memref<1x8x256xf32, #tpu.memory_space<vmem>>, vector<1x8x256xf32>,
    %20 = arith.mulf %15, %15 : vector<32x8x256xf32>
    %cst_14 = arith.constant dense<0.000000e+00> : vector<8x256xf32>
    %21 = vector.multi_reduction <add>, %20, %cst_14 [0] : vector<32x8x256xf32> to vector<8x256xf32>
    %c0_15 = arith.constant 0 : index
    %c0_16 = arith.constant 0 : index
    %c0_17 = arith.constant 0 : index
    %22 = vector.load %arg7[%c0_15, %c0_16, %c0_17] : memref<1x8x256xf32, #tpu.memory_space<vmem>>, vector<1x8x256xf32>
    %23 = vector.shape_cast %22 : vector<1x8x256xf32> to vector<8x256xf32>
    %24 = vector.shape_cast %21 : vector<8x256xf32> to vector<1x8x256xf32>
    tpu.vector_store %arg7[%c0_15, %c0_16, %c0_17], %24 {strides = array<i32>} : memref<1x8x256xf32, #tpu.memory_space<vmem>>, vector<1x8x256xf32>,
    return
  }
  func.func @transform_0(%arg0: i32) -> (i32, i32) {
    %c0_i32 = arith.constant 0 : i32
    %c0_i32_0 = arith.constant 0 : i32
    return %arg0, %c0_i32 : i32, i32
  }
  func.func @transform_1(%arg0: i32) -> (i32, i32) {
    %c0_i32 = arith.constant 0 : i32
    %c0_i32_0 = arith.constant 0 : i32
    %c0_i32_1 = arith.constant 0 : i32
    return %c0_i32, %c0_i32_0 : i32, i32
  }
  func.func @transform_2(%arg0: i32) -> (i32, i32) {
    %c0_i32 = arith.constant 0 : i32
    %c0_i32_0 = arith.constant 0 : i32
    %c0_i32_1 = arith.constant 0 : i32
    return %c0_i32, %c0_i32_0 : i32, i32
  }
  func.func @transform_3(%arg0: i32) -> (i32, i32) {
    %c0_i32 = arith.constant 0 : i32
    %c0_i32_0 = arith.constant 0 : i32
    %c0_i32_1 = arith.constant 0 : i32
    return %c0_i32, %c0_i32_0 : i32, i32
  }
  func.func @transform_4(%arg0: i32) -> (i32, i32) {
    %c0_i32 = arith.constant 0 : i32
    %c0_i32_0 = arith.constant 0 : i32
    return %arg0, %c0_i32 : i32, i32
  }
  func.func @transform_5(%arg0: i32) -> (i32, i32, i32) {
    %c0_i32 = arith.constant 0 : i32
    %c0_i32_0 = arith.constant 0 : i32
    %c0_i32_1 = arith.constant 0 : i32
    return %arg0, %c0_i32, %c0_i32_0 : i32, i32, i32
  }
  func.func @transform_6(%arg0: i32) -> (i32, i32, i32) {
    %c0_i32 = arith.constant 0 : i32
    %c0_i32_0 = arith.constant 0 : i32
    %c0_i32_1 = arith.constant 0 : i32
    return %arg0, %c0_i32, %c0_i32_0 : i32, i32, i32
  }
}

module attributes {stable_mosaic.version = 11 : i64} {
  func.func @_conv3x3_bn_stats_kernel(%arg0: i32, %arg1: memref<1x18x18x128xbf16, #tpu.memory_space<vmem>>, %arg2: memref<9x128x128xbf16, #tpu.memory_space<vmem>>, %arg3: memref<18x18x128xf32, #tpu.memory_space<vmem>>, %arg4: memref<1x128xf32, #tpu.memory_space<vmem>>, %arg5: memref<1x128xf32, #tpu.memory_space<vmem>>, %arg6: memref<1x256x128xbf16, #tpu.memory_space<vmem>>, %arg7: memref<1x8x128xf32, #tpu.memory_space<vmem>>, %arg8: memref<1x8x128xf32, #tpu.memory_space<vmem>>) attributes {dimension_semantics = [#tpu.dimension_semantics<parallel>], iteration_bounds = array<i64: 2>, scalar_prefetch = 0 : i64, scratch_operands = 0 : i64, tpu.core_type = #tpu.core_type<tc>, window_params = [{transform_indices = @transform_0, window_bounds = array<i64: 1, 18, 18, 128>}, {pipeline_mode = #tpu.pipeline_mode<synchronous>, transform_indices = @transform_1, window_bounds = array<i64: 9, 128, 128>}, {pipeline_mode = #tpu.pipeline_mode<synchronous>, transform_indices = @transform_2, window_bounds = array<i64: 18, 18, 128>}, {pipeline_mode = #tpu.pipeline_mode<synchronous>, transform_indices = @transform_3, window_bounds = array<i64: 1, 128>}, {pipeline_mode = #tpu.pipeline_mode<synchronous>, transform_indices = @transform_4, window_bounds = array<i64: 1, 128>}, {transform_indices = @transform_5, window_bounds = array<i64: 1, 256, 128>}, {transform_indices = @transform_6, window_bounds = array<i64: 1, 8, 128>}, {transform_indices = @transform_7, window_bounds = array<i64: 1, 8, 128>}]} {
    %c0 = arith.constant 0 : index
    %c0_0 = arith.constant 0 : index
    %0 = vector.load %arg4[%c0, %c0_0] : memref<1x128xf32, #tpu.memory_space<vmem>>, vector<1x128xf32>
    %1 = vector.shape_cast %0 : vector<1x128xf32> to vector<1x1x128xf32>
    %2 = vector.shape_cast %1 : vector<1x1x128xf32> to vector<1x1x128xf32>
    %3 = vector.broadcast %2 : vector<1x1x128xf32> to vector<16x16x128xf32>
    %c0_1 = arith.constant 0 : index
    %c0_2 = arith.constant 0 : index
    %4 = vector.load %arg5[%c0_1, %c0_2] : memref<1x128xf32, #tpu.memory_space<vmem>>, vector<1x128xf32>
    %5 = vector.shape_cast %4 : vector<1x128xf32> to vector<1x1x128xf32>
    %6 = vector.shape_cast %5 : vector<1x1x128xf32> to vector<1x1x128xf32>
    %7 = vector.broadcast %6 : vector<1x1x128xf32> to vector<16x16x128xf32>
    %cst = arith.constant 0.000000e+00 : f32
    %8 = vector.broadcast %cst : f32 to vector<256x128xf32>
    %c0_3 = arith.constant 0 : index
    %c0_4 = arith.constant 0 : index
    %c0_5 = arith.constant 0 : index
    %c0_6 = arith.constant 0 : index
    %9 = vector.load %arg1[%c0_3, %c0_4, %c0_5, %c0_6] : memref<1x18x18x128xbf16, #tpu.memory_space<vmem>>, vector<1x16x16x128xbf16>
    %10 = vector.shape_cast %9 : vector<1x16x16x128xbf16> to vector<16x16x128xbf16>
    %11 = arith.extf %10 : vector<16x16x128xbf16> to vector<16x16x128xf32>
    %12 = arith.mulf %11, %3 : vector<16x16x128xf32>
    %13 = arith.addf %12, %7 : vector<16x16x128xf32>
    %cst_7 = arith.constant 0.000000e+00 : f32
    %14 = vector.broadcast %cst_7 : f32 to vector<16x16x128xf32>
    %15 = arith.maximumf %13, %14 : vector<16x16x128xf32>
    %c0_8 = arith.constant 0 : index
    %c0_9 = arith.constant 0 : index
    %c0_10 = arith.constant 0 : index
    %16 = vector.load %arg3[%c0_8, %c0_9, %c0_10] : memref<18x18x128xf32, #tpu.memory_space<vmem>>, vector<16x16x128xf32>
    %17 = arith.mulf %15, %16 : vector<16x16x128xf32>
    %18 = arith.truncf %17 : vector<16x16x128xf32> to vector<16x16x128xbf16>
    %19 = vector.shape_cast %18 : vector<16x16x128xbf16> to vector<256x128xbf16>
    %c0_11 = arith.constant 0 : index
    %c0_12 = arith.constant 0 : index
    %c0_13 = arith.constant 0 : index
    %20 = vector.load %arg2[%c0_11, %c0_12, %c0_13] : memref<9x128x128xbf16, #tpu.memory_space<vmem>>, vector<1x128x128xbf16>
    %21 = vector.shape_cast %20 : vector<1x128x128xbf16> to vector<128x128xbf16>
    %cst_14 = arith.constant dense<0.000000e+00> : vector<256x128xf32>
    %22 = tpu.matmul %19, %21, %cst_14 {dimension_numbers = #tpu.dot_dimension_numbers<[1], [0], [0], [1], [0, 0, 1, 1], [], []>} : vector<256x128xbf16>, vector<128x128xbf16>, vector<256x128xf32> -> vector<256x128xf32>
    %23 = arith.addf %8, %22 : vector<256x128xf32>
    %c0_15 = arith.constant 0 : index
    %c0_16 = arith.constant 0 : index
    %c1 = arith.constant 1 : index
    %c0_17 = arith.constant 0 : index
    %24 = vector.load %arg1[%c0_15, %c0_16, %c1, %c0_17] : memref<1x18x18x128xbf16, #tpu.memory_space<vmem>>, vector<1x16x16x128xbf16>
    %25 = vector.shape_cast %24 : vector<1x16x16x128xbf16> to vector<16x16x128xbf16>
    %26 = arith.extf %25 : vector<16x16x128xbf16> to vector<16x16x128xf32>
    %27 = arith.mulf %26, %3 : vector<16x16x128xf32>
    %28 = arith.addf %27, %7 : vector<16x16x128xf32>
    %cst_18 = arith.constant 0.000000e+00 : f32
    %29 = vector.broadcast %cst_18 : f32 to vector<16x16x128xf32>
    %30 = arith.maximumf %28, %29 : vector<16x16x128xf32>
    %c0_19 = arith.constant 0 : index
    %c1_20 = arith.constant 1 : index
    %c0_21 = arith.constant 0 : index
    %31 = vector.load %arg3[%c0_19, %c1_20, %c0_21] : memref<18x18x128xf32, #tpu.memory_space<vmem>>, vector<16x16x128xf32>
    %32 = arith.mulf %30, %31 : vector<16x16x128xf32>
    %33 = arith.truncf %32 : vector<16x16x128xf32> to vector<16x16x128xbf16>
    %34 = vector.shape_cast %33 : vector<16x16x128xbf16> to vector<256x128xbf16>
    %c1_22 = arith.constant 1 : index
    %c0_23 = arith.constant 0 : index
    %c0_24 = arith.constant 0 : index
    %35 = vector.load %arg2[%c1_22, %c0_23, %c0_24] : memref<9x128x128xbf16, #tpu.memory_space<vmem>>, vector<1x128x128xbf16>
    %36 = vector.shape_cast %35 : vector<1x128x128xbf16> to vector<128x128xbf16>
    %cst_25 = arith.constant dense<0.000000e+00> : vector<256x128xf32>
    %37 = tpu.matmul %34, %36, %cst_25 {dimension_numbers = #tpu.dot_dimension_numbers<[1], [0], [0], [1], [0, 0, 1, 1], [], []>} : vector<256x128xbf16>, vector<128x128xbf16>, vector<256x128xf32> -> vector<256x128xf32>
    %38 = arith.addf %23, %37 : vector<256x128xf32>
    %c0_26 = arith.constant 0 : index
    %c0_27 = arith.constant 0 : index
    %c2 = arith.constant 2 : index
    %c0_28 = arith.constant 0 : index
    %39 = vector.load %arg1[%c0_26, %c0_27, %c2, %c0_28] : memref<1x18x18x128xbf16, #tpu.memory_space<vmem>>, vector<1x16x16x128xbf16>
    %40 = vector.shape_cast %39 : vector<1x16x16x128xbf16> to vector<16x16x128xbf16>
    %41 = arith.extf %40 : vector<16x16x128xbf16> to vector<16x16x128xf32>
    %42 = arith.mulf %41, %3 : vector<16x16x128xf32>
    %43 = arith.addf %42, %7 : vector<16x16x128xf32>
    %cst_29 = arith.constant 0.000000e+00 : f32
    %44 = vector.broadcast %cst_29 : f32 to vector<16x16x128xf32>
    %45 = arith.maximumf %43, %44 : vector<16x16x128xf32>
    %c0_30 = arith.constant 0 : index
    %c2_31 = arith.constant 2 : index
    %c0_32 = arith.constant 0 : index
    %46 = vector.load %arg3[%c0_30, %c2_31, %c0_32] : memref<18x18x128xf32, #tpu.memory_space<vmem>>, vector<16x16x128xf32>
    %47 = arith.mulf %45, %46 : vector<16x16x128xf32>
    %48 = arith.truncf %47 : vector<16x16x128xf32> to vector<16x16x128xbf16>
    %49 = vector.shape_cast %48 : vector<16x16x128xbf16> to vector<256x128xbf16>
    %c2_33 = arith.constant 2 : index
    %c0_34 = arith.constant 0 : index
    %c0_35 = arith.constant 0 : index
    %50 = vector.load %arg2[%c2_33, %c0_34, %c0_35] : memref<9x128x128xbf16, #tpu.memory_space<vmem>>, vector<1x128x128xbf16>
    %51 = vector.shape_cast %50 : vector<1x128x128xbf16> to vector<128x128xbf16>
    %cst_36 = arith.constant dense<0.000000e+00> : vector<256x128xf32>
    %52 = tpu.matmul %49, %51, %cst_36 {dimension_numbers = #tpu.dot_dimension_numbers<[1], [0], [0], [1], [0, 0, 1, 1], [], []>} : vector<256x128xbf16>, vector<128x128xbf16>, vector<256x128xf32> -> vector<256x128xf32>
    %53 = arith.addf %38, %52 : vector<256x128xf32>
    %c0_37 = arith.constant 0 : index
    %c1_38 = arith.constant 1 : index
    %c0_39 = arith.constant 0 : index
    %c0_40 = arith.constant 0 : index
    %54 = vector.load %arg1[%c0_37, %c1_38, %c0_39, %c0_40] : memref<1x18x18x128xbf16, #tpu.memory_space<vmem>>, vector<1x16x16x128xbf16>
    %55 = vector.shape_cast %54 : vector<1x16x16x128xbf16> to vector<16x16x128xbf16>
    %56 = arith.extf %55 : vector<16x16x128xbf16> to vector<16x16x128xf32>
    %57 = arith.mulf %56, %3 : vector<16x16x128xf32>
    %58 = arith.addf %57, %7 : vector<16x16x128xf32>
    %cst_41 = arith.constant 0.000000e+00 : f32
    %59 = vector.broadcast %cst_41 : f32 to vector<16x16x128xf32>
    %60 = arith.maximumf %58, %59 : vector<16x16x128xf32>
    %c1_42 = arith.constant 1 : index
    %c0_43 = arith.constant 0 : index
    %c0_44 = arith.constant 0 : index
    %61 = vector.load %arg3[%c1_42, %c0_43, %c0_44] : memref<18x18x128xf32, #tpu.memory_space<vmem>>, vector<16x16x128xf32>
    %62 = arith.mulf %60, %61 : vector<16x16x128xf32>
    %63 = arith.truncf %62 : vector<16x16x128xf32> to vector<16x16x128xbf16>
    %64 = vector.shape_cast %63 : vector<16x16x128xbf16> to vector<256x128xbf16>
    %c3 = arith.constant 3 : index
    %c0_45 = arith.constant 0 : index
    %c0_46 = arith.constant 0 : index
    %65 = vector.load %arg2[%c3, %c0_45, %c0_46] : memref<9x128x128xbf16, #tpu.memory_space<vmem>>, vector<1x128x128xbf16>
    %66 = vector.shape_cast %65 : vector<1x128x128xbf16> to vector<128x128xbf16>
    %cst_47 = arith.constant dense<0.000000e+00> : vector<256x128xf32>
    %67 = tpu.matmul %64, %66, %cst_47 {dimension_numbers = #tpu.dot_dimension_numbers<[1], [0], [0], [1], [0, 0, 1, 1], [], []>} : vector<256x128xbf16>, vector<128x128xbf16>, vector<256x128xf32> -> vector<256x128xf32>
    %68 = arith.addf %53, %67 : vector<256x128xf32>
    %c0_48 = arith.constant 0 : index
    %c1_49 = arith.constant 1 : index
    %c1_50 = arith.constant 1 : index
    %c0_51 = arith.constant 0 : index
    %69 = vector.load %arg1[%c0_48, %c1_49, %c1_50, %c0_51] : memref<1x18x18x128xbf16, #tpu.memory_space<vmem>>, vector<1x16x16x128xbf16>
    %70 = vector.shape_cast %69 : vector<1x16x16x128xbf16> to vector<16x16x128xbf16>
    %71 = arith.extf %70 : vector<16x16x128xbf16> to vector<16x16x128xf32>
    %72 = arith.mulf %71, %3 : vector<16x16x128xf32>
    %73 = arith.addf %72, %7 : vector<16x16x128xf32>
    %cst_52 = arith.constant 0.000000e+00 : f32
    %74 = vector.broadcast %cst_52 : f32 to vector<16x16x128xf32>
    %75 = arith.maximumf %73, %74 : vector<16x16x128xf32>
    %c1_53 = arith.constant 1 : index
    %c1_54 = arith.constant 1 : index
    %c0_55 = arith.constant 0 : index
    %76 = vector.load %arg3[%c1_53, %c1_54, %c0_55] : memref<18x18x128xf32, #tpu.memory_space<vmem>>, vector<16x16x128xf32>
    %77 = arith.mulf %75, %76 : vector<16x16x128xf32>
    %78 = arith.truncf %77 : vector<16x16x128xf32> to vector<16x16x128xbf16>
    %79 = vector.shape_cast %78 : vector<16x16x128xbf16> to vector<256x128xbf16>
    %c4 = arith.constant 4 : index
    %c0_56 = arith.constant 0 : index
    %c0_57 = arith.constant 0 : index
    %80 = vector.load %arg2[%c4, %c0_56, %c0_57] : memref<9x128x128xbf16, #tpu.memory_space<vmem>>, vector<1x128x128xbf16>
    %81 = vector.shape_cast %80 : vector<1x128x128xbf16> to vector<128x128xbf16>
    %cst_58 = arith.constant dense<0.000000e+00> : vector<256x128xf32>
    %82 = tpu.matmul %79, %81, %cst_58 {dimension_numbers = #tpu.dot_dimension_numbers<[1], [0], [0], [1], [0, 0, 1, 1], [], []>} : vector<256x128xbf16>, vector<128x128xbf16>, vector<256x128xf32> -> vector<256x128xf32>
    %83 = arith.addf %68, %82 : vector<256x128xf32>
    %c0_59 = arith.constant 0 : index
    %c1_60 = arith.constant 1 : index
    %c2_61 = arith.constant 2 : index
    %c0_62 = arith.constant 0 : index
    %84 = vector.load %arg1[%c0_59, %c1_60, %c2_61, %c0_62] : memref<1x18x18x128xbf16, #tpu.memory_space<vmem>>, vector<1x16x16x128xbf16>
    %85 = vector.shape_cast %84 : vector<1x16x16x128xbf16> to vector<16x16x128xbf16>
    %86 = arith.extf %85 : vector<16x16x128xbf16> to vector<16x16x128xf32>
    %87 = arith.mulf %86, %3 : vector<16x16x128xf32>
    %88 = arith.addf %87, %7 : vector<16x16x128xf32>
    %cst_63 = arith.constant 0.000000e+00 : f32
    %89 = vector.broadcast %cst_63 : f32 to vector<16x16x128xf32>
    %90 = arith.maximumf %88, %89 : vector<16x16x128xf32>
    %c1_64 = arith.constant 1 : index
    %c2_65 = arith.constant 2 : index
    %c0_66 = arith.constant 0 : index
    %91 = vector.load %arg3[%c1_64, %c2_65, %c0_66] : memref<18x18x128xf32, #tpu.memory_space<vmem>>, vector<16x16x128xf32>
    %92 = arith.mulf %90, %91 : vector<16x16x128xf32>
    %93 = arith.truncf %92 : vector<16x16x128xf32> to vector<16x16x128xbf16>
    %94 = vector.shape_cast %93 : vector<16x16x128xbf16> to vector<256x128xbf16>
    %c5 = arith.constant 5 : index
    %c0_67 = arith.constant 0 : index
    %c0_68 = arith.constant 0 : index
    %95 = vector.load %arg2[%c5, %c0_67, %c0_68] : memref<9x128x128xbf16, #tpu.memory_space<vmem>>, vector<1x128x128xbf16>
    %96 = vector.shape_cast %95 : vector<1x128x128xbf16> to vector<128x128xbf16>
    %cst_69 = arith.constant dense<0.000000e+00> : vector<256x128xf32>
    %97 = tpu.matmul %94, %96, %cst_69 {dimension_numbers = #tpu.dot_dimension_numbers<[1], [0], [0], [1], [0, 0, 1, 1], [], []>} : vector<256x128xbf16>, vector<128x128xbf16>, vector<256x128xf32> -> vector<256x128xf32>
    %98 = arith.addf %83, %97 : vector<256x128xf32>
    %c0_70 = arith.constant 0 : index
    %c2_71 = arith.constant 2 : index
    %c0_72 = arith.constant 0 : index
    %c0_73 = arith.constant 0 : index
    %99 = vector.load %arg1[%c0_70, %c2_71, %c0_72, %c0_73] : memref<1x18x18x128xbf16, #tpu.memory_space<vmem>>, vector<1x16x16x128xbf16>
    %100 = vector.shape_cast %99 : vector<1x16x16x128xbf16> to vector<16x16x128xbf16>
    %101 = arith.extf %100 : vector<16x16x128xbf16> to vector<16x16x128xf32>
    %102 = arith.mulf %101, %3 : vector<16x16x128xf32>
    %103 = arith.addf %102, %7 : vector<16x16x128xf32>
    %cst_74 = arith.constant 0.000000e+00 : f32
    %104 = vector.broadcast %cst_74 : f32 to vector<16x16x128xf32>
    %105 = arith.maximumf %103, %104 : vector<16x16x128xf32>
    %c2_75 = arith.constant 2 : index
    %c0_76 = arith.constant 0 : index
    %c0_77 = arith.constant 0 : index
    %106 = vector.load %arg3[%c2_75, %c0_76, %c0_77] : memref<18x18x128xf32, #tpu.memory_space<vmem>>, vector<16x16x128xf32>
    %107 = arith.mulf %105, %106 : vector<16x16x128xf32>
    %108 = arith.truncf %107 : vector<16x16x128xf32> to vector<16x16x128xbf16>
    %109 = vector.shape_cast %108 : vector<16x16x128xbf16> to vector<256x128xbf16>
    %c6 = arith.constant 6 : index
    %c0_78 = arith.constant 0 : index
    %c0_79 = arith.constant 0 : index
    %110 = vector.load %arg2[%c6, %c0_78, %c0_79] : memref<9x128x128xbf16, #tpu.memory_space<vmem>>, vector<1x128x128xbf16>
    %111 = vector.shape_cast %110 : vector<1x128x128xbf16> to vector<128x128xbf16>
    %cst_80 = arith.constant dense<0.000000e+00> : vector<256x128xf32>
    %112 = tpu.matmul %109, %111, %cst_80 {dimension_numbers = #tpu.dot_dimension_numbers<[1], [0], [0], [1], [0, 0, 1, 1], [], []>} : vector<256x128xbf16>, vector<128x128xbf16>, vector<256x128xf32> -> vector<256x128xf32>
    %113 = arith.addf %98, %112 : vector<256x128xf32>
    %c0_81 = arith.constant 0 : index
    %c2_82 = arith.constant 2 : index
    %c1_83 = arith.constant 1 : index
    %c0_84 = arith.constant 0 : index
    %114 = vector.load %arg1[%c0_81, %c2_82, %c1_83, %c0_84] : memref<1x18x18x128xbf16, #tpu.memory_space<vmem>>, vector<1x16x16x128xbf16>
    %115 = vector.shape_cast %114 : vector<1x16x16x128xbf16> to vector<16x16x128xbf16>
    %116 = arith.extf %115 : vector<16x16x128xbf16> to vector<16x16x128xf32>
    %117 = arith.mulf %116, %3 : vector<16x16x128xf32>
    %118 = arith.addf %117, %7 : vector<16x16x128xf32>
    %cst_85 = arith.constant 0.000000e+00 : f32
    %119 = vector.broadcast %cst_85 : f32 to vector<16x16x128xf32>
    %120 = arith.maximumf %118, %119 : vector<16x16x128xf32>
    %c2_86 = arith.constant 2 : index
    %c1_87 = arith.constant 1 : index
    %c0_88 = arith.constant 0 : index
    %121 = vector.load %arg3[%c2_86, %c1_87, %c0_88] : memref<18x18x128xf32, #tpu.memory_space<vmem>>, vector<16x16x128xf32>
    %122 = arith.mulf %120, %121 : vector<16x16x128xf32>
    %123 = arith.truncf %122 : vector<16x16x128xf32> to vector<16x16x128xbf16>
    %124 = vector.shape_cast %123 : vector<16x16x128xbf16> to vector<256x128xbf16>
    %c7 = arith.constant 7 : index
    %c0_89 = arith.constant 0 : index
    %c0_90 = arith.constant 0 : index
    %125 = vector.load %arg2[%c7, %c0_89, %c0_90] : memref<9x128x128xbf16, #tpu.memory_space<vmem>>, vector<1x128x128xbf16>
    %126 = vector.shape_cast %125 : vector<1x128x128xbf16> to vector<128x128xbf16>
    %cst_91 = arith.constant dense<0.000000e+00> : vector<256x128xf32>
    %127 = tpu.matmul %124, %126, %cst_91 {dimension_numbers = #tpu.dot_dimension_numbers<[1], [0], [0], [1], [0, 0, 1, 1], [], []>} : vector<256x128xbf16>, vector<128x128xbf16>, vector<256x128xf32> -> vector<256x128xf32>
    %128 = arith.addf %113, %127 : vector<256x128xf32>
    %c0_92 = arith.constant 0 : index
    %c2_93 = arith.constant 2 : index
    %c2_94 = arith.constant 2 : index
    %c0_95 = arith.constant 0 : index
    %129 = vector.load %arg1[%c0_92, %c2_93, %c2_94, %c0_95] : memref<1x18x18x128xbf16, #tpu.memory_space<vmem>>, vector<1x16x16x128xbf16>
    %130 = vector.shape_cast %129 : vector<1x16x16x128xbf16> to vector<16x16x128xbf16>
    %131 = arith.extf %130 : vector<16x16x128xbf16> to vector<16x16x128xf32>
    %132 = arith.mulf %131, %3 : vector<16x16x128xf32>
    %133 = arith.addf %132, %7 : vector<16x16x128xf32>
    %cst_96 = arith.constant 0.000000e+00 : f32
    %134 = vector.broadcast %cst_96 : f32 to vector<16x16x128xf32>
    %135 = arith.maximumf %133, %134 : vector<16x16x128xf32>
    %c2_97 = arith.constant 2 : index
    %c2_98 = arith.constant 2 : index
    %c0_99 = arith.constant 0 : index
    %136 = vector.load %arg3[%c2_97, %c2_98, %c0_99] : memref<18x18x128xf32, #tpu.memory_space<vmem>>, vector<16x16x128xf32>
    %137 = arith.mulf %135, %136 : vector<16x16x128xf32>
    %138 = arith.truncf %137 : vector<16x16x128xf32> to vector<16x16x128xbf16>
    %139 = vector.shape_cast %138 : vector<16x16x128xbf16> to vector<256x128xbf16>
    %c8 = arith.constant 8 : index
    %c0_100 = arith.constant 0 : index
    %c0_101 = arith.constant 0 : index
    %140 = vector.load %arg2[%c8, %c0_100, %c0_101] : memref<9x128x128xbf16, #tpu.memory_space<vmem>>, vector<1x128x128xbf16>
    %141 = vector.shape_cast %140 : vector<1x128x128xbf16> to vector<128x128xbf16>
    %cst_102 = arith.constant dense<0.000000e+00> : vector<256x128xf32>
    %142 = tpu.matmul %139, %141, %cst_102 {dimension_numbers = #tpu.dot_dimension_numbers<[1], [0], [0], [1], [0, 0, 1, 1], [], []>} : vector<256x128xbf16>, vector<128x128xbf16>, vector<256x128xf32> -> vector<256x128xf32>
    %143 = arith.addf %128, %142 : vector<256x128xf32>
    %144 = arith.truncf %143 : vector<256x128xf32> to vector<256x128xbf16>
    %c0_103 = arith.constant 0 : index
    %c0_104 = arith.constant 0 : index
    %c0_105 = arith.constant 0 : index
    %145 = vector.load %arg6[%c0_103, %c0_104, %c0_105] : memref<1x256x128xbf16, #tpu.memory_space<vmem>>, vector<1x256x128xbf16>
    %146 = vector.shape_cast %145 : vector<1x256x128xbf16> to vector<256x128xbf16>
    %147 = vector.shape_cast %144 : vector<256x128xbf16> to vector<1x256x128xbf16>
    tpu.vector_store %arg6[%c0_103, %c0_104, %c0_105], %147 {strides = array<i32>} : memref<1x256x128xbf16, #tpu.memory_space<vmem>>, vector<1x256x128xbf16>,
    %148 = vector.shape_cast %143 : vector<256x128xf32> to vector<32x8x128xf32>
    %cst_106 = arith.constant dense<0.000000e+00> : vector<8x128xf32>
    %149 = vector.multi_reduction <add>, %148, %cst_106 [0] : vector<32x8x128xf32> to vector<8x128xf32>
    %c0_107 = arith.constant 0 : index
    %c0_108 = arith.constant 0 : index
    %c0_109 = arith.constant 0 : index
    %150 = vector.load %arg7[%c0_107, %c0_108, %c0_109] : memref<1x8x128xf32, #tpu.memory_space<vmem>>, vector<1x8x128xf32>
    %151 = vector.shape_cast %150 : vector<1x8x128xf32> to vector<8x128xf32>
    %152 = vector.shape_cast %149 : vector<8x128xf32> to vector<1x8x128xf32>
    tpu.vector_store %arg7[%c0_107, %c0_108, %c0_109], %152 {strides = array<i32>} : memref<1x8x128xf32, #tpu.memory_space<vmem>>, vector<1x8x128xf32>,
    %153 = arith.mulf %148, %148 : vector<32x8x128xf32>
    %cst_110 = arith.constant dense<0.000000e+00> : vector<8x128xf32>
    %154 = vector.multi_reduction <add>, %153, %cst_110 [0] : vector<32x8x128xf32> to vector<8x128xf32>
    %c0_111 = arith.constant 0 : index
    %c0_112 = arith.constant 0 : index
    %c0_113 = arith.constant 0 : index
    %155 = vector.load %arg8[%c0_111, %c0_112, %c0_113] : memref<1x8x128xf32, #tpu.memory_space<vmem>>, vector<1x8x128xf32>
    %156 = vector.shape_cast %155 : vector<1x8x128xf32> to vector<8x128xf32>
    %157 = vector.shape_cast %154 : vector<8x128xf32> to vector<1x8x128xf32>
    tpu.vector_store %arg8[%c0_111, %c0_112, %c0_113], %157 {strides = array<i32>} : memref<1x8x128xf32, #tpu.memory_space<vmem>>, vector<1x8x128xf32>,
    return
  }
  func.func @transform_0(%arg0: i32) -> (i32, i32, i32, i32) {
    %c0_i32 = arith.constant 0 : i32
    %c0_i32_0 = arith.constant 0 : i32
    %c0_i32_1 = arith.constant 0 : i32
    %c0_i32_2 = arith.constant 0 : i32
    return %arg0, %c0_i32, %c0_i32_0, %c0_i32_1 : i32, i32, i32, i32
  }
  func.func @transform_1(%arg0: i32) -> (i32, i32, i32) {
    %c0_i32 = arith.constant 0 : i32
    %c0_i32_0 = arith.constant 0 : i32
    %c0_i32_1 = arith.constant 0 : i32
    %c0_i32_2 = arith.constant 0 : i32
    return %c0_i32, %c0_i32_0, %c0_i32_1 : i32, i32, i32
  }
  func.func @transform_2(%arg0: i32) -> (i32, i32, i32) {
    %c0_i32 = arith.constant 0 : i32
    %c0_i32_0 = arith.constant 0 : i32
    %c0_i32_1 = arith.constant 0 : i32
    %c0_i32_2 = arith.constant 0 : i32
    return %c0_i32, %c0_i32_0, %c0_i32_1 : i32, i32, i32
  }
  func.func @transform_3(%arg0: i32) -> (i32, i32) {
    %c0_i32 = arith.constant 0 : i32
    %c0_i32_0 = arith.constant 0 : i32
    %c0_i32_1 = arith.constant 0 : i32
    return %c0_i32, %c0_i32_0 : i32, i32
  }
  func.func @transform_4(%arg0: i32) -> (i32, i32) {
    %c0_i32 = arith.constant 0 : i32
    %c0_i32_0 = arith.constant 0 : i32
    %c0_i32_1 = arith.constant 0 : i32
    return %c0_i32, %c0_i32_0 : i32, i32
  }
  func.func @transform_5(%arg0: i32) -> (i32, i32, i32) {
    %c0_i32 = arith.constant 0 : i32
    %c0_i32_0 = arith.constant 0 : i32
    %c0_i32_1 = arith.constant 0 : i32
    return %arg0, %c0_i32, %c0_i32_0 : i32, i32, i32
  }
  func.func @transform_6(%arg0: i32) -> (i32, i32, i32) {
    %c0_i32 = arith.constant 0 : i32
    %c0_i32_0 = arith.constant 0 : i32
    %c0_i32_1 = arith.constant 0 : i32
    return %arg0, %c0_i32, %c0_i32_0 : i32, i32, i32
  }
  func.func @transform_7(%arg0: i32) -> (i32, i32, i32) {
    %c0_i32 = arith.constant 0 : i32
    %c0_i32_0 = arith.constant 0 : i32
    %c0_i32_1 = arith.constant 0 : i32
    return %arg0, %c0_i32, %c0_i32_0 : i32, i32, i32
  }
}

module attributes {stable_mosaic.version = 11 : i64} {
  func.func @_bn_apply_kernel(%arg0: i32, %arg1: memref<256x256xbf16, #tpu.memory_space<vmem>>, %arg2: memref<1x256xf32, #tpu.memory_space<vmem>>, %arg3: memref<1x256xf32, #tpu.memory_space<vmem>>, %arg4: memref<256x256xbf16, #tpu.memory_space<vmem>>, %arg5: memref<256x256xbf16, #tpu.memory_space<vmem>>) attributes {dimension_semantics = [#tpu.dimension_semantics<parallel>], iteration_bounds = array<i64: 2>, scalar_prefetch = 0 : i64, scratch_operands = 0 : i64, tpu.core_type = #tpu.core_type<tc>, window_params = [{transform_indices = @transform_0, window_bounds = array<i64: 256, 256>}, {pipeline_mode = #tpu.pipeline_mode<synchronous>, transform_indices = @transform_1, window_bounds = array<i64: 1, 256>}, {pipeline_mode = #tpu.pipeline_mode<synchronous>, transform_indices = @transform_2, window_bounds = array<i64: 1, 256>}, {transform_indices = @transform_3, window_bounds = array<i64: 256, 256>}, {transform_indices = @transform_4, window_bounds = array<i64: 256, 256>}]} {
    %c0 = arith.constant 0 : index
    %c0_0 = arith.constant 0 : index
    %0 = vector.load %arg1[%c0, %c0_0] : memref<256x256xbf16, #tpu.memory_space<vmem>>, vector<256x256xbf16>
    %1 = arith.extf %0 : vector<256x256xbf16> to vector<256x256xf32>
    %c0_1 = arith.constant 0 : index
    %c0_2 = arith.constant 0 : index
    %2 = vector.load %arg2[%c0_1, %c0_2] : memref<1x256xf32, #tpu.memory_space<vmem>>, vector<1x256xf32>
    %3 = vector.broadcast %2 : vector<1x256xf32> to vector<256x256xf32>
    %4 = arith.mulf %1, %3 : vector<256x256xf32>
    %c0_3 = arith.constant 0 : index
    %c0_4 = arith.constant 0 : index
    %5 = vector.load %arg3[%c0_3, %c0_4] : memref<1x256xf32, #tpu.memory_space<vmem>>, vector<1x256xf32>
    %6 = vector.broadcast %5 : vector<1x256xf32> to vector<256x256xf32>
    %7 = arith.addf %4, %6 : vector<256x256xf32>
    %c0_5 = arith.constant 0 : index
    %c0_6 = arith.constant 0 : index
    %8 = vector.load %arg4[%c0_5, %c0_6] : memref<256x256xbf16, #tpu.memory_space<vmem>>, vector<256x256xbf16>
    %9 = arith.extf %8 : vector<256x256xbf16> to vector<256x256xf32>
    %10 = arith.addf %7, %9 : vector<256x256xf32>
    %cst = arith.constant 0.000000e+00 : f32
    %11 = vector.broadcast %cst : f32 to vector<256x256xf32>
    %12 = arith.maximumf %10, %11 : vector<256x256xf32>
    %13 = arith.truncf %12 : vector<256x256xf32> to vector<256x256xbf16>
    %c0_7 = arith.constant 0 : index
    %c0_8 = arith.constant 0 : index
    %14 = vector.load %arg5[%c0_7, %c0_8] : memref<256x256xbf16, #tpu.memory_space<vmem>>, vector<256x256xbf16>
    tpu.vector_store %arg5[%c0_7, %c0_8], %13 {strides = array<i32>} : memref<256x256xbf16, #tpu.memory_space<vmem>>, vector<256x256xbf16>,
    return
  }
  func.func @transform_0(%arg0: i32) -> (i32, i32) {
    %c0_i32 = arith.constant 0 : i32
    %c0_i32_0 = arith.constant 0 : i32
    return %arg0, %c0_i32 : i32, i32
  }
  func.func @transform_1(%arg0: i32) -> (i32, i32) {
    %c0_i32 = arith.constant 0 : i32
    %c0_i32_0 = arith.constant 0 : i32
    %c0_i32_1 = arith.constant 0 : i32
    return %c0_i32, %c0_i32_0 : i32, i32
  }
  func.func @transform_2(%arg0: i32) -> (i32, i32) {
    %c0_i32 = arith.constant 0 : i32
    %c0_i32_0 = arith.constant 0 : i32
    %c0_i32_1 = arith.constant 0 : i32
    return %c0_i32, %c0_i32_0 : i32, i32
  }
  func.func @transform_3(%arg0: i32) -> (i32, i32) {
    %c0_i32 = arith.constant 0 : i32
    %c0_i32_0 = arith.constant 0 : i32
    return %arg0, %c0_i32 : i32, i32
  }
  func.func @transform_4(%arg0: i32) -> (i32, i32) {
    %c0_i32 = arith.constant 0 : i32
    %c0_i32_0 = arith.constant 0 : i32
    return %arg0, %c0_i32 : i32, i32
  }
}

</mosaic_0001>

<llo_original>
// kernel: _lambda_.4
$region0: #{_lambda_.4}
  #allocation0 [shape = 'u32[]', space=smem, size = 0x4, offset = 0x4, fixed_abs, tag = 'smem constant byte address 0x4 - core index']
  #allocation1 [shape = 'u32[144,128]{1,0:T(1,128)}', space=vmem, size = 0x12000, scoped, tag = 'internal scratch']
  %s0 = inlined_call_operand.vmem [shape: bf16[512,256], index: 0, kind: input, shape index: {}]
  %s1 = inlined_call_operand.vmem [shape: bf16[256,128], index: 1, kind: input, shape index: {}]
  %s2 = inlined_call_operand.vmem [shape: bf16[512,128], index: 2, kind: output, shape index: {0}]
  %s3 = inlined_call_operand.vmem [shape: f32[2,8,128], index: 3, kind: output, shape index: {1}]
  %s4 = inlined_call_operand.vmem [shape: f32[2,8,128], index: 4, kind: output, shape index: {2}]
  %5 = xla_tuple %s2, %s3, %s4
  %s6 = sld [smem:[#allocation0]]
  $region57: #{_lambda_.4} parent=0
    _
  %s8 = ssub.s32 1, %s6
  %s9 = scalar_select 0, %s8, %s6
  loop: start=0, step=1, limit=4
  $region2: #{_lambda_.4} parent=0 // loop_pre_header
    _
  $region3: #{_lambda_.4} parent=0 // loop_header
    %s11 = sphi 0, %s15
    %p12 = scmp.ge.s32.totalorder %s11, 4
    %s21 = sphi 0, %s23
    %s24 = sphi 0, %s21
    %s25 = sphi 0, %s24
    %s41 = sphi 0, %s25
    %s45 = sphi 0, %s45
    %s47 = sphi 0, %s45
    %s48 = sphi 0, %s47
    %s62 = sphi 0, %s48
    %s68 = sphi 0, %s70
    %s71 = sphi 0, %s68
    %s72 = sphi 0, %s71
    %s88 = sphi 0, %s72
    %s94 = sphi 0, %s96
    %s97 = sphi 0, %s94
    %s98 = sphi 0, %s97
    %s114 = sphi 0, %s98
    %s120 = sphi 0, %s122
    %s123 = sphi 0, %s120
    %s124 = sphi 0, %s123
    %s140 = sphi 0, %s124
  $region4: #{_lambda_.4} parent=0 // loop_header_branch
    %14 = sbr.rel (%p12) target = $region8
  $region5: #{_lambda_.4} parent=0 // loop_body
    %s16 = ssub.s32 %s11, 1
    %s17 = ssub.s32 %s11, 2
    %s18 = sadd.s32 %s11, 1
    %s19 = ssub.s32 %s11, %s18
    %p20 = scmp.eq.s32.totalorder %s19, 0
    %s22 = sadd.s32 %s21, 1
    %s23 = scalar_select %p20, %s21, %s22
    %p26 = pneg %p20
    %p27 = scmp.eq.s32.totalorder %s11, 1
    %p28 = por %p26, %p27
    %p29 = scmp.ne.s32.totalorder %s21, %s24
    %p30 = scmp.eq.s32.totalorder %s11, 0
    %p31 = por %p29, %p30
    %p32 = scmp.ne.s32.totalorder %s21, %s24
    %p33 = scmp.eq.s32.totalorder %s16, 1
    %p34 = por %p32, %p33
    %p35 = scmp.ne.s32.totalorder %s24, %s25
    %p36 = scmp.eq.s32.totalorder %s16, 0
    %p37 = por %p35, %p36
    %p38 = scmp.ne.s32.totalorder %s24, %s25
    %p39 = scmp.eq.s32.totalorder %s17, 1
    %p40 = por %p38, %p39
    %p42 = scmp.ne.s32.totalorder %s25, %s41
    %p43 = scmp.eq.s32.totalorder %s17, 0
    %p44 = por %p42, %p43
    %s46 = sadd.s32 %s45, 1
    %p49 = scmp.eq.s32.totalorder %s11, 1
    %p50 = scmp.ne.s32.totalorder %s45, %s47
    %p51 = scmp.eq.s32.totalorder %s11, 0
    %p52 = por %p50, %p51
    %p53 = scmp.ne.s32.totalorder %s45, %s47
    %p54 = scmp.eq.s32.totalorder %s16, 1
    %p55 = por %p53, %p54
    %p56 = scmp.ne.s32.totalorder %s47, %s48
    %p57 = scmp.eq.s32.totalorder %s16, 0
    %p58 = por %p56, %p57
    %p59 = scmp.ne.s32.totalorder %s47, %s48
    %p60 = scmp.eq.s32.totalorder %s17, 1
    %p61 = por %p59, %p60
    %p63 = scmp.ne.s32.totalorder %s48, %s62
    %p64 = scmp.eq.s32.totalorder %s17, 0
    %p65 = por %p63, %p64
    %s66 = ssub.s32 %s11, %s18
    %p67 = scmp.eq.s32.totalorder %s66, 0
    %s69 = sadd.s32 %s68, 1
    %s70 = scalar_select %p67, %s68, %s69
    %p73 = pneg %p67
    %p74 = scmp.eq.s32.totalorder %s11, 1
    %p75 = por %p73, %p74
    %p76 = scmp.ne.s32.totalorder %s68, %s71
    %p77 = scmp.eq.s32.totalorder %s11, 0
    %p78 = por %p76, %p77
    %p79 = scmp.ne.s32.totalorder %s68, %s71
    %p80 = scmp.eq.s32.totalorder %s16, 1
    %p81 = por %p79, %p80
    %p82 = scmp.ne.s32.totalorder %s71, %s72
    %p83 = scmp.eq.s32.totalorder %s16, 0
    %p84 = por %p82, %p83
    %p85 = scmp.ne.s32.totalorder %s71, %s72
    %p86 = scmp.eq.s32.totalorder %s17, 1
    %p87 = por %p85, %p86
    %p89 = scmp.ne.s32.totalorder %s72, %s88
    %p90 = scmp.eq.s32.totalorder %s17, 0
    %p91 = por %p89, %p90
    %s92 = ssub.s32 %s11, %s18
    %p93 = scmp.eq.s32.totalorder %s92, 0
    %s95 = sadd.s32 %s94, 1
    %s96 = scalar_select %p93, %s94, %s95
    %p99 = pneg %p93
    %p100 = scmp.eq.s32.totalorder %s11, 1
    %p101 = por %p99, %p100
    %p102 = scmp.ne.s32.totalorder %s94, %s97
    %p103 = scmp.eq.s32.totalorder %s11, 0
    %p104 = por %p102, %p103
    %p105 = scmp.ne.s32.totalorder %s94, %s97
    %p106 = scmp.eq.s32.totalorder %s16, 1
    %p107 = por %p105, %p106
    %p108 = scmp.ne.s32.totalorder %s97, %s98
    %p109 = scmp.eq.s32.totalorder %s16, 0
    %p110 = por %p108, %p109
    %p111 = scmp.ne.s32.totalorder %s97, %s98
    %p112 = scmp.eq.s32.totalorder %s17, 1
    %p113 = por %p111, %p112
    %p115 = scmp.ne.s32.totalorder %s98, %s114
    %p116 = scmp.eq.s32.totalorder %s17, 0
    %p117 = por %p115, %p116
    %s118 = ssub.s32 %s11, %s18
    %p119 = scmp.eq.s32.totalorder %s118, 0
    %s121 = sadd.s32 %s120, 1
    %s122 = scalar_select %p119, %s120, %s121
    %p125 = pneg %p119
    %p126 = scmp.eq.s32.totalorder %s11, 1
    %p127 = por %p125, %p126
    %p128 = scmp.ne.s32.totalorder %s120, %s123
    %p129 = scmp.eq.s32.totalorder %s11, 0
    %p130 = por %p128, %p129
    %p131 = scmp.ne.s32.totalorder %s120, %s123
    %p132 = scmp.eq.s32.totalorder %s16, 1
    %p133 = por %p131, %p132
    %p134 = scmp.ne.s32.totalorder %s123, %s124
    %p135 = scmp.eq.s32.totalorder %s16, 0
    %p136 = por %p134, %p135
    %p137 = scmp.ne.s32.totalorder %s123, %s124
    %p138 = scmp.eq.s32.totalorder %s17, 1
    %p139 = por %p137, %p138
    %p141 = scmp.ne.s32.totalorder %s124, %s140
    %p142 = scmp.eq.s32.totalorder %s17, 0
    %p143 = por %p141, %p142
    %p144 = scmp.le.s32.totalorder 1, %s11
    %p145 = scmp.lt.s32.totalorder %s11, 3
    %p146 = pnand %p144, %p145
    %p147 = pneg %p146
    // Predicated region
    $region9: #{_lambda_.4} parent=5 // pred_check
      _
    $region10: #{_lambda_.4} parent=5 // pred_check_branch
      %149 = sbr.rel (%p146) target = $region12
    $region11: #{_lambda_.4} parent=5 // pred_region
      %s150 = ssub.s32 %s11, 1
      // Predicated region
      $region13: #{_lambda_.4} parent=11 // pred_check
        %p151 = pneg %p58
      $region14: #{_lambda_.4} parent=11 // pred_check_branch
        %153 = sbr.rel (%p151) target = $region16
      $region15: #{_lambda_.4} parent=11 // pred_region
        _
      $region16: #{_lambda_.4} parent=11 // pred_fallthru
        _
    $region12: #{_lambda_.4} parent=5 // pred_fallthru
      _
    %p154 = scmp.lt.s32.totalorder %s11, 2
    // Predicated region
    $region17: #{_lambda_.4} parent=5 // pred_check
      %p155 = pneg %p154
    $region18: #{_lambda_.4} parent=5 // pred_check_branch
      %157 = sbr.rel (%p155) target = $region20
    $region19: #{_lambda_.4} parent=5 // pred_region
      // Predicated region
      $region21: #{_lambda_.4} parent=19 // pred_check
        %p158 = pneg %p31
      $region22: #{_lambda_.4} parent=19 // pred_check_branch
        %160 = sbr.rel (%p158) target = $region24
      $region23: #{_lambda_.4} parent=19 // pred_region
        %s161 = smul.u32 32, %s11
        %p162 = scmp.lt.s32.totalorder %s161, 63
        %s163 = scalar_select %p162, %s161, 63
        %s164 = smul.addr %s163, 2
        %s165 = smul.addr %s164, 4
        %s166 = scalar_lea.vmem %s0, %s165
        %s167 = smul.u32 32, %s11
      $region24: #{_lambda_.4} parent=19 // pred_fallthru
        _
    $region20: #{_lambda_.4} parent=5 // pred_fallthru
      _
    %p168 = scmp.le.s32.totalorder 1, %s11
    %p169 = scmp.lt.s32.totalorder %s11, 3
    %p170 = pnand %p168, %p169
    %p171 = pneg %p170
    // Predicated region
    $region25: #{_lambda_.4} parent=5 // pred_check
      _
    $region26: #{_lambda_.4} parent=5 // pred_check_branch
      %173 = sbr.rel (%p170) target = $region28
    $region27: #{_lambda_.4} parent=5 // pred_region
      %s174 = ssub.s32 %s11, 1
      %s175 = smul.u32 32, %s16
      %p176 = scmp.lt.s32.totalorder %s175, 63
      %s177 = scalar_select %p176, %s175, 63
      %s178 = smul.addr %s177, 2
      %s179 = smul.addr %s178, 4
      %s180 = scalar_lea.vmem %s0, %s179
      %p181 = pneg %p37
      %p182 = pneg %p34
      %p183 = pneg %p58
      %p184 = pneg %p55
      %p185 = pneg %p84
      %p186 = pneg %p81
      %s187 = smul.u32 32, %s16
      %p188 = scmp.lt.s32.totalorder %s187, 63
      %s189 = scalar_select %p188, %s187, 63
      %s190 = smul.addr %s189, 4
      %s191 = scalar_lea.vmem %s2, %s190
      %p192 = pneg %p110
      %p193 = pneg %p107
      %p194 = scmp.lt.s32.totalorder %s16, 1
      %s195 = scalar_select %p194, %s16, 1
      %s196 = smul.addr %s195, 8
      %s197 = scalar_lea.vmem %s3, %s196
      %p198 = pneg %p136
      %p199 = pneg %p133
      %p200 = scmp.lt.s32.totalorder %s16, 1
      %s201 = scalar_select %p200, %s16, 1
      %s202 = smul.addr %s201, 8
      %s203 = scalar_lea.vmem %s4, %s202
      %s204 = smul.u32 32, %s16
      %p205 = scmp.lt.s32.totalorder %s204, 63
      %s206 = scalar_select %p205, %s204, 63
      %s207 = smul.addr %s206, 2
      %s208 = smul.addr %s207, 4
      %s209 = scalar_lea.vmem %s0, %s208
      %s210 = smul.u32 32, %s16
      %s211 = smul.u32 32, %s16
      %p212 = scmp.lt.s32.totalorder %s211, 63
      %s213 = scalar_select %p212, %s211, 63
      %s214 = smul.addr %s213, 4
      %s215 = scalar_lea.vmem %s2, %s214
      %s216 = smul.u32 32, %s16
      %p217 = scmp.lt.s32.totalorder %s16, 1
      %s218 = scalar_select %p217, %s16, 1
      %s219 = smul.addr %s218, 8
      %s220 = scalar_lea.vmem %s3, %s219
      %p221 = scmp.lt.s32.totalorder %s16, 1
      %s222 = scalar_select %p221, %s16, 1
      %s223 = smul.addr %s222, 8
      %s224 = scalar_lea.vmem %s4, %s223
      %v226 = vld [vmem:[%s209] sm:$0xff]
      %v227 = vld [vmem:[%s209 + $0x8] sm:$0xff]
      %v228 = vld [vmem:[%s209 + $0x10] sm:$0xff]
      %v229 = vld [vmem:[%s209 + $0x18] sm:$0xff]
      %v230 = vld [vmem:[%s209 + $0x20] sm:$0xff]
      %v231 = vld [vmem:[%s209 + $0x28] sm:$0xff]
      %v232 = vld [vmem:[%s209 + $0x30] sm:$0xff]
      %v233 = vld [vmem:[%s209 + $0x38] sm:$0xff]
      %v234 = vld [vmem:[%s209 + $0x40] sm:$0xff]
      %v235 = vld [vmem:[%s209 + $0x48] sm:$0xff]
      %v236 = vld [vmem:[%s209 + $0x50] sm:$0xff]
      %v237 = vld [vmem:[%s209 + $0x58] sm:$0xff]
      %v238 = vld [vmem:[%s209 + $0x60] sm:$0xff]
      %v239 = vld [vmem:[%s209 + $0x68] sm:$0xff]
      %v240 = vld [vmem:[%s209 + $0x70] sm:$0xff]
      %v241 = vld [vmem:[%s209 + $0x78] sm:$0xff]
      %v242 = vld [vmem:[%s209 + $0x80] sm:$0xff]
      %v243 = vld [vmem:[%s209 + $0x88] sm:$0xff]
      %v244 = vld [vmem:[%s209 + $0x90] sm:$0xff]
      %v245 = vld [vmem:[%s209 + $0x98] sm:$0xff]
      %v246 = vld [vmem:[%s209 + $0xa0] sm:$0xff]
      %v247 = vld [vmem:[%s209 + $0xa8] sm:$0xff]
      %v248 = vld [vmem:[%s209 + $0xb0] sm:$0xff]
      %v249 = vld [vmem:[%s209 + $0xb8] sm:$0xff]
      %v250 = vld [vmem:[%s209 + $0xc0] sm:$0xff]
      %v251 = vld [vmem:[%s209 + $0xc8] sm:$0xff]
      %v252 = vld [vmem:[%s209 + $0xd0] sm:$0xff]
      %v253 = vld [vmem:[%s209 + $0xd8] sm:$0xff]
      %v254 = vld [vmem:[%s209 + $0xe0] sm:$0xff]
      %v255 = vld [vmem:[%s209 + $0xe8] sm:$0xff]
      %v256 = vld [vmem:[%s209 + $0xf0] sm:$0xff]
      %v257 = vld [vmem:[%s209 + $0xf8] sm:$0xff]
      %v258 = vld [vmem:[%s1] sm:$0xf]
      %v259 = vld [vmem:[%s1 + $0x4] sm:$0xf]
      %v260 = vld [vmem:[%s1 + $0x8] sm:$0xf]
      %v261 = vld [vmem:[%s1 + $0xc] sm:$0xf]
      %v262 = vld [vmem:[%s1 + $0x10] sm:$0xf]
      %v263 = vld [vmem:[%s1 + $0x14] sm:$0xf]
      %v264 = vld [vmem:[%s1 + $0x18] sm:$0xf]
      %v265 = vld [vmem:[%s1 + $0x1c] sm:$0xf]
      %v266 = vld [vmem:[%s1 + $0x20] sm:$0xf]
      %v267 = vld [vmem:[%s1 + $0x24] sm:$0xf]
      %v268 = vld [vmem:[%s1 + $0x28] sm:$0xf]
      %v269 = vld [vmem:[%s1 + $0x2c] sm:$0xf]
      %v270 = vld [vmem:[%s1 + $0x30] sm:$0xf]
      %v271 = vld [vmem:[%s1 + $0x34] sm:$0xf]
      %v272 = vld [vmem:[%s1 + $0x38] sm:$0xf]
      %v273 = vld [vmem:[%s1 + $0x3c] sm:$0xf]
      %v274 = vld [vmem:[%s1 + $0x40] sm:$0xf]
      %v275 = vld [vmem:[%s1 + $0x44] sm:$0xf]
      %v276 = vld [vmem:[%s1 + $0x48] sm:$0xf]
      %v277 = vld [vmem:[%s1 + $0x4c] sm:$0xf]
      %v278 = vld [vmem:[%s1 + $0x50] sm:$0xf]
      %v279 = vld [vmem:[%s1 + $0x54] sm:$0xf]
      %v280 = vld [vmem:[%s1 + $0x58] sm:$0xf]
      %v281 = vld [vmem:[%s1 + $0x5c] sm:$0xf]
      %v282 = vld [vmem:[%s1 + $0x60] sm:$0xf]
      %v283 = vld [vmem:[%s1 + $0x64] sm:$0xf]
      %v284 = vld [vmem:[%s1 + $0x68] sm:$0xf]
      %v285 = vld [vmem:[%s1 + $0x6c] sm:$0xf]
      %v286 = vld [vmem:[%s1 + $0x70] sm:$0xf]
      %v287 = vld [vmem:[%s1 + $0x74] sm:$0xf]
      %v288 = vld [vmem:[%s1 + $0x78] sm:$0xf]
      %v289 = vld [vmem:[%s1 + $0x7c] sm:$0xf]
      %v322 = vunpack.c.l.b16 %v226
      %v323 = vunpack.c.h.b16 %v226
      %v324 = vunpack.c.l.b16 %v227
      %v325 = vunpack.c.h.b16 %v227
      %v326 = vunpack.c.l.b16 %v228
      %v327 = vunpack.c.h.b16 %v228
      %v328 = vunpack.c.l.b16 %v229
      %v329 = vunpack.c.h.b16 %v229
      %v330 = vunpack.c.l.b16 %v230
      %v331 = vunpack.c.h.b16 %v230
      %v332 = vunpack.c.l.b16 %v231
      %v333 = vunpack.c.h.b16 %v231
      %v334 = vunpack.c.l.b16 %v232
      %v335 = vunpack.c.h.b16 %v232
      %v336 = vunpack.c.l.b16 %v233
      %v337 = vunpack.c.h.b16 %v233
      %v338 = vunpack.c.l.b16 %v234
      %v339 = vunpack.c.h.b16 %v234
      %v340 = vunpack.c.l.b16 %v235
      %v341 = vunpack.c.h.b16 %v235
      %v342 = vunpack.c.l.b16 %v236
      %v343 = vunpack.c.h.b16 %v236
      %v344 = vunpack.c.l.b16 %v237
      %v345 = vunpack.c.h.b16 %v237
      %v346 = vunpack.c.l.b16 %v238
      %v347 = vunpack.c.h.b16 %v238
      %v348 = vunpack.c.l.b16 %v239
      %v349 = vunpack.c.h.b16 %v239
      %v350 = vunpack.c.l.b16 %v240
      %v351 = vunpack.c.h.b16 %v240
      %v352 = vunpack.c.l.b16 %v241
      %v353 = vunpack.c.h.b16 %v241
      %v354 = vunpack.c.l.b16 %v242
      %v355 = vunpack.c.h.b16 %v242
      %v356 = vunpack.c.l.b16 %v243
      %v357 = vunpack.c.h.b16 %v243
      %v358 = vunpack.c.l.b16 %v244
      %v359 = vunpack.c.h.b16 %v244
      %v360 = vunpack.c.l.b16 %v245
      %v361 = vunpack.c.h.b16 %v245
      %v362 = vunpack.c.l.b16 %v246
      %v363 = vunpack.c.h.b16 %v246
      %v364 = vunpack.c.l.b16 %v247
      %v365 = vunpack.c.h.b16 %v247
      %v366 = vunpack.c.l.b16 %v248
      %v367 = vunpack.c.h.b16 %v248
      %v368 = vunpack.c.l.b16 %v249
      %v369 = vunpack.c.h.b16 %v249
      %v370 = vunpack.c.l.b16 %v250
      %v371 = vunpack.c.h.b16 %v250
      %v372 = vunpack.c.l.b16 %v251
      %v373 = vunpack.c.h.b16 %v251
      %v374 = vunpack.c.l.b16 %v252
      %v375 = vunpack.c.h.b16 %v252
      %v376 = vunpack.c.l.b16 %v253
      %v377 = vunpack.c.h.b16 %v253
      %v378 = vunpack.c.l.b16 %v254
      %v379 = vunpack.c.h.b16 %v254
      %v380 = vunpack.c.l.b16 %v255
      %v381 = vunpack.c.h.b16 %v255
      %v382 = vunpack.c.l.b16 %v256
      %v383 = vunpack.c.h.b16 %v256
      %v384 = vunpack.c.l.b16 %v257
      %v385 = vunpack.c.h.b16 %v257
      %v386 = vpack.c.b16 %v324, %v322
      %v387 = vpack.c.b16 %v325, %v323
      %v388 = vpack.c.b16 %v328, %v326
      %v389 = vpack.c.b16 %v329, %v327
      %v390 = vpack.c.b16 %v332, %v330
      %v391 = vpack.c.b16 %v333, %v331
      %v392 = vpack.c.b16 %v336, %v334
      %v393 = vpack.c.b16 %v337, %v335
      %v394 = vpack.c.b16 %v340, %v338
      %v395 = vpack.c.b16 %v341, %v339
      %v396 = vpack.c.b16 %v344, %v342
      %v397 = vpack.c.b16 %v345, %v343
      %v398 = vpack.c.b16 %v348, %v346
      %v399 = vpack.c.b16 %v349, %v347
      %v400 = vpack.c.b16 %v352, %v350
      %v401 = vpack.c.b16 %v353, %v351
      %v402 = vpack.c.b16 %v356, %v354
      %v403 = vpack.c.b16 %v357, %v355
      %v404 = vpack.c.b16 %v360, %v358
      %v405 = vpack.c.b16 %v361, %v359
      %v406 = vpack.c.b16 %v364, %v362
      %v407 = vpack.c.b16 %v365, %v363
      %v408 = vpack.c.b16 %v368, %v366
      %v409 = vpack.c.b16 %v369, %v367
      %v410 = vpack.c.b16 %v372, %v370
      %v411 = vpack.c.b16 %v373, %v371
      %v412 = vpack.c.b16 %v376, %v374
      %v413 = vpack.c.b16 %v377, %v375
      %v414 = vpack.c.b16 %v380, %v378
      %v415 = vpack.c.b16 %v381, %v379
      %v416 = vpack.c.b16 %v384, %v382
      %v417 = vpack.c.b16 %v385, %v383
      %v482 = vunpack.c.l.b16 %v258
      %v483 = vunpack.c.l.b16 %v259
      %v484 = vunpack.c.l.b16 %v260
      %v485 = vunpack.c.l.b16 %v261
      %v486 = vunpack.c.l.b16 %v262
      %v487 = vunpack.c.l.b16 %v263
      %v488 = vunpack.c.l.b16 %v264
      %v489 = vunpack.c.l.b16 %v265
      %v490 = vunpack.c.l.b16 %v266
      %v491 = vunpack.c.l.b16 %v267
      %v492 = vunpack.c.l.b16 %v268
      %v493 = vunpack.c.l.b16 %v269
      %v494 = vunpack.c.l.b16 %v270
      %v495 = vunpack.c.l.b16 %v271
      %v496 = vunpack.c.l.b16 %v272
      %v497 = vunpack.c.l.b16 %v273
      %v498 = vunpack.c.l.b16 %v274
      %v499 = vunpack.c.l.b16 %v275
      %v500 = vunpack.c.l.b16 %v276
      %v501 = vunpack.c.l.b16 %v277
      %v502 = vunpack.c.l.b16 %v278
      %v503 = vunpack.c.l.b16 %v279
      %v504 = vunpack.c.l.b16 %v280
      %v505 = vunpack.c.l.b16 %v281
      %v506 = vunpack.c.l.b16 %v282
      %v507 = vunpack.c.l.b16 %v283
      %v508 = vunpack.c.l.b16 %v284
      %v509 = vunpack.c.l.b16 %v285
      %v510 = vunpack.c.l.b16 %v286
      %v511 = vunpack.c.l.b16 %v287
      %v512 = vunpack.c.l.b16 %v288
      %v513 = vunpack.c.l.b16 %v289
      %v514 = vpack.c.b16 %v483, %v482
      %v515 = vpack.c.b16 %v485, %v484
      %v516 = vpack.c.b16 %v487, %v486
      %v517 = vpack.c.b16 %v489, %v488
      %v518 = vpack.c.b16 %v491, %v490
      %v519 = vpack.c.b16 %v493, %v492
      %v520 = vpack.c.b16 %v495, %v494
      %v521 = vpack.c.b16 %v497, %v496
      %v522 = vpack.c.b16 %v499, %v498
      %v523 = vpack.c.b16 %v501, %v500
      %v524 = vpack.c.b16 %v503, %v502
      %v525 = vpack.c.b16 %v505, %v504
      %v526 = vpack.c.b16 %v507, %v506
      %v527 = vpack.c.b16 %v509, %v508
      %v528 = vpack.c.b16 %v511, %v510
      %v529 = vpack.c.b16 %v513, %v512
      %546 = vmatprep.subr.bf16.mxu0 0
      %547 = vmatpush1.bf16.msra.mxu0 %v514
      %548 = vmatprep.subr.bf16.mxu0 0
      %549 = vmatpush1.bf16.msra.mxu0 %v515
      %550 = vmatprep.subr.bf16.mxu0 0
      %551 = vmatpush1.bf16.msra.mxu0 %v516
      %552 = vmatprep.subr.bf16.mxu0 0
      %553 = vmatpush1.bf16.msra.mxu0 %v517
      %554 = vmatprep.subr.bf16.mxu0 0
      %555 = vmatpush1.bf16.msra.mxu0 %v518
      %556 = vmatprep.subr.bf16.mxu0 0
      %557 = vmatpush1.bf16.msra.mxu0 %v519
      %558 = vmatprep.subr.bf16.mxu0 0
      %559 = vmatpush1.bf16.msra.mxu0 %v520
      %560 = vmatprep.subr.bf16.mxu0 0
      %561 = vmatpush1.bf16.msra.mxu0 %v521
      %562 = vmatprep.subr.bf16.mxu0 0
      %563 = vmatpush1.bf16.msra.mxu0 %v522
      %564 = vmatprep.subr.bf16.mxu0 0
      %565 = vmatpush1.bf16.msra.mxu0 %v523
      %566 = vmatprep.subr.bf16.mxu0 0
      %567 = vmatpush1.bf16.msra.mxu0 %v524
      %568 = vmatprep.subr.bf16.mxu0 0
      %569 = vmatpush1.bf16.msra.mxu0 %v525
      %570 = vmatprep.subr.bf16.mxu0 0
      %571 = vmatpush1.bf16.msra.mxu0 %v526
      %572 = vmatprep.subr.bf16.mxu0 0
      %573 = vmatpush1.bf16.msra.mxu0 %v527
      %574 = vmatprep.subr.bf16.mxu0 0
      %575 = vmatpush1.bf16.msra.mxu0 %v528
      %576 = vmatprep.subr.bf16.mxu0 0
      %577 = vmatpush1.bf16.msra.mxu0 %v529
      %578 = vmatprep.mubr.bf16.mxu0 %v387
      %579 = vmatmul.mubr.bf16.gmra.mrb[0].mxu0 %v386
      %v580 = vpop.f32.mrb[0].mxu0
      %v581 = vadd.f32 0.0, %v580
      %v582 = vpop.f32.mrb[0].mxu0
      %v583 = vpop.f32.mrb[0].mxu0
      %v584 = vadd.f32 0.0, %v583
      %v585 = vpop.f32.mrb[0].mxu0
      %586 = vmatprep.mubr.bf16.mxu0 %v389
      %587 = vmatmul.mubr.bf16.gmra.mrb[0].mxu0 %v388
      %v588 = vpop.f32.mrb[0].mxu0
      %v589 = vadd.f32 0.0, %v588
      %v590 = vpop.f32.mrb[0].mxu0
      %v591 = vpop.f32.mrb[0].mxu0
      %v592 = vadd.f32 0.0, %v591
      %v593 = vpop.f32.mrb[0].mxu0
      %594 = vmatprep.mubr.bf16.mxu0 %v391
      %595 = vmatmul.mubr.bf16.gmra.mrb[0].mxu0 %v390
      %v596 = vpop.f32.mrb[0].mxu0
      %v597 = vadd.f32 0.0, %v596
      %v598 = vpop.f32.mrb[0].mxu0
      %v599 = vpop.f32.mrb[0].mxu0
      %v600 = vadd.f32 0.0, %v599
      %v601 = vpop.f32.mrb[0].mxu0
      %602 = vmatprep.mubr.bf16.mxu0 %v393
      %603 = vmatmul.mubr.bf16.gmra.mrb[0].mxu0 %v392
      %v604 = vpop.f32.mrb[0].mxu0
      %v605 = vadd.f32 0.0, %v604
      %v606 = vpop.f32.mrb[0].mxu0
      %v607 = vpop.f32.mrb[0].mxu0
      %v608 = vadd.f32 0.0, %v607
      %v609 = vpop.f32.mrb[0].mxu0
      %610 = vmatprep.mubr.bf16.mxu0 %v395
      %611 = vmatmul.mubr.bf16.gmra.mrb[0].mxu0 %v394
      %v612 = vpop.f32.mrb[0].mxu0
      %v613 = vadd.f32 0.0, %v612
      %v614 = vpop.f32.mrb[0].mxu0
      %v615 = vpop.f32.mrb[0].mxu0
      %v616 = vadd.f32 0.0, %v615
      %v617 = vpop.f32.mrb[0].mxu0
      %618 = vmatprep.mubr.bf16.mxu0 %v397
      %619 = vmatmul.mubr.bf16.gmra.mrb[0].mxu0 %v396
      %v620 = vpop.f32.mrb[0].mxu0
      %v621 = vadd.f32 0.0, %v620
      %v622 = vpop.f32.mrb[0].mxu0
      %v623 = vpop.f32.mrb[0].mxu0
      %v624 = vadd.f32 0.0, %v623
      %v625 = vpop.f32.mrb[0].mxu0
      %626 = vmatprep.mubr.bf16.mxu0 %v399
      %627 = vmatmul.mubr.bf16.gmra.mrb[0].mxu0 %v398
      %v628 = vpop.f32.mrb[0].mxu0
      %v629 = vadd.f32 0.0, %v628
      %v630 = vpop.f32.mrb[0].mxu0
      %v631 = vpop.f32.mrb[0].mxu0
      %v632 = vadd.f32 0.0, %v631
      %v633 = vpop.f32.mrb[0].mxu0
      %634 = vmatprep.mubr.bf16.mxu0 %v401
      %635 = vmatmul.mubr.bf16.gmra.mrb[0].mxu0 %v400
      %v636 = vpop.f32.mrb[0].mxu0
      %v637 = vadd.f32 0.0, %v636
      %v638 = vpop.f32.mrb[0].mxu0
      %v639 = vpop.f32.mrb[0].mxu0
      %v640 = vadd.f32 0.0, %v639
      %v641 = vpop.f32.mrb[0].mxu0
      %642 = vmatprep.mubr.bf16.mxu0 %v403
      %643 = vmatmul.mubr.bf16.gmra.mrb[0].mxu0 %v402
      %v644 = vpop.f32.mrb[0].mxu0
      %v645 = vadd.f32 0.0, %v644
      %v646 = vpop.f32.mrb[0].mxu0
      %v647 = vpop.f32.mrb[0].mxu0
      %v648 = vadd.f32 0.0, %v647
      %v649 = vpop.f32.mrb[0].mxu0
      %650 = vmatprep.mubr.bf16.mxu0 %v405
      %651 = vmatmul.mubr.bf16.gmra.mrb[0].mxu0 %v404
      %v652 = vpop.f32.mrb[0].mxu0
      %v653 = vadd.f32 0.0, %v652
      %v654 = vpop.f32.mrb[0].mxu0
      %v655 = vpop.f32.mrb[0].mxu0
      %v656 = vadd.f32 0.0, %v655
      %v657 = vpop.f32.mrb[0].mxu0
      %658 = vmatprep.mubr.bf16.mxu0 %v407
      %659 = vmatmul.mubr.bf16.gmra.mrb[0].mxu0 %v406
      %v660 = vpop.f32.mrb[0].mxu0
      %v661 = vadd.f32 0.0, %v660
      %v662 = vpop.f32.mrb[0].mxu0
      %v663 = vpop.f32.mrb[0].mxu0
      %v664 = vadd.f32 0.0, %v663
      %v665 = vpop.f32.mrb[0].mxu0
      %666 = vmatprep.mubr.bf16.mxu0 %v409
      %667 = vmatmul.mubr.bf16.gmra.mrb[0].mxu0 %v408
      %v668 = vpop.f32.mrb[0].mxu0
      %v669 = vadd.f32 0.0, %v668
      %v670 = vpop.f32.mrb[0].mxu0
      %v671 = vpop.f32.mrb[0].mxu0
      %v672 = vadd.f32 0.0, %v671
      %v673 = vpop.f32.mrb[0].mxu0
      %674 = vmatprep.mubr.bf16.mxu0 %v411
      %675 = vmatmul.mubr.bf16.gmra.mrb[0].mxu0 %v410
      %v676 = vpop.f32.mrb[0].mxu0
      %v677 = vadd.f32 0.0, %v676
      %v678 = vpop.f32.mrb[0].mxu0
      %v679 = vpop.f32.mrb[0].mxu0
      %v680 = vadd.f32 0.0, %v679
      %v681 = vpop.f32.mrb[0].mxu0
      %682 = vmatprep.mubr.bf16.mxu0 %v413
      %683 = vmatmul.mubr.bf16.gmra.mrb[0].mxu0 %v412
      %v684 = vpop.f32.mrb[0].mxu0
      %v685 = vadd.f32 0.0, %v684
      %v686 = vpop.f32.mrb[0].mxu0
      %v687 = vpop.f32.mrb[0].mxu0
      %v688 = vadd.f32 0.0, %v687
      %v689 = vpop.f32.mrb[0].mxu0
      %690 = vmatprep.mubr.bf16.mxu0 %v415
      %691 = vmatmul.mubr.bf16.gmra.mrb[0].mxu0 %v414
      %v692 = vpop.f32.mrb[0].mxu0
      %v693 = vadd.f32 0.0, %v692
      %v694 = vpop.f32.mrb[0].mxu0
      %v695 = vpop.f32.mrb[0].mxu0
      %v696 = vadd.f32 0.0, %v695
      %v697 = vpop.f32.mrb[0].mxu0
      %698 = vmatprep.mubr.bf16.mxu0 %v417
      %699 = vmatmul.mubr.bf16.gmra.mrb[0].mxu0 %v416
      %v700 = vpop.f32.mrb[0].mxu0
      %v701 = vadd.f32 0.0, %v700
      %v702 = vpop.f32.mrb[0].mxu0
      %v703 = vpop.f32.mrb[0].mxu0
      %v704 = vadd.f32 0.0, %v703
      %v705 = vpop.f32.mrb[0].mxu0
      %706 = vdwg.mxu0
      %v707 = vpack.c.bf16 %v584, %v581
      %v708 = vpack.c.bf16 %v592, %v589
      %v709 = vpack.c.bf16 %v600, %v597
      %v710 = vpack.c.bf16 %v608, %v605
      %v711 = vpack.c.bf16 %v616, %v613
      %v712 = vpack.c.bf16 %v624, %v621
      %v713 = vpack.c.bf16 %v632, %v629
      %v714 = vpack.c.bf16 %v640, %v637
      %v715 = vpack.c.bf16 %v648, %v645
      %v716 = vpack.c.bf16 %v656, %v653
      %v717 = vpack.c.bf16 %v664, %v661
      %v718 = vpack.c.bf16 %v672, %v669
      %v719 = vpack.c.bf16 %v680, %v677
      %v720 = vpack.c.bf16 %v688, %v685
      %v721 = vpack.c.bf16 %v696, %v693
      %v722 = vpack.c.bf16 %v704, %v701
      %v739 = vunpack.c.l.b16 %v707
      %v740 = vunpack.c.h.b16 %v707
      %v741 = vunpack.c.l.b16 %v708
      %v742 = vunpack.c.h.b16 %v708
      %v743 = vunpack.c.l.b16 %v709
      %v744 = vunpack.c.h.b16 %v709
      %v745 = vunpack.c.l.b16 %v710
      %v746 = vunpack.c.h.b16 %v710
      %v747 = vunpack.c.l.b16 %v711
      %v748 = vunpack.c.h.b16 %v711
      %v749 = vunpack.c.l.b16 %v712
      %v750 = vunpack.c.h.b16 %v712
      %v751 = vunpack.c.l.b16 %v713
      %v752 = vunpack.c.h.b16 %v713
      %v753 = vunpack.c.l.b16 %v714
      %v754 = vunpack.c.h.b16 %v714
      %v755 = vunpack.c.l.b16 %v715
      %v756 = vunpack.c.h.b16 %v715
      %v757 = vunpack.c.l.b16 %v716
      %v758 = vunpack.c.h.b16 %v716
      %v759 = vunpack.c.l.b16 %v717
      %v760 = vunpack.c.h.b16 %v717
      %v761 = vunpack.c.l.b16 %v718
      %v762 = vunpack.c.h.b16 %v718
      %v763 = vunpack.c.l.b16 %v719
      %v764 = vunpack.c.h.b16 %v719
      %v765 = vunpack.c.l.b16 %v720
      %v766 = vunpack.c.h.b16 %v720
      %v767 = vunpack.c.l.b16 %v721
      %v768 = vunpack.c.h.b16 %v721
      %v769 = vunpack.c.l.b16 %v722
      %v770 = vunpack.c.h.b16 %v722
      %v771 = vpack.c.b16 %v739, %v739
      %v772 = vpack.c.b16 %v740, %v740
      %v773 = vpack.c.b16 %v741, %v741
      %v774 = vpack.c.b16 %v742, %v742
      %v775 = vpack.c.b16 %v743, %v743
      %v776 = vpack.c.b16 %v744, %v744
      %v777 = vpack.c.b16 %v745, %v745
      %v778 = vpack.c.b16 %v746, %v746
      %v779 = vpack.c.b16 %v747, %v747
      %v780 = vpack.c.b16 %v748, %v748
      %v781 = vpack.c.b16 %v749, %v749
      %v782 = vpack.c.b16 %v750, %v750
      %v783 = vpack.c.b16 %v751, %v751
      %v784 = vpack.c.b16 %v752, %v752
      %v785 = vpack.c.b16 %v753, %v753
      %v786 = vpack.c.b16 %v754, %v754
      %v787 = vpack.c.b16 %v755, %v755
      %v788 = vpack.c.b16 %v756, %v756
      %v789 = vpack.c.b16 %v757, %v757
      %v790 = vpack.c.b16 %v758, %v758
      %v791 = vpack.c.b16 %v759, %v759
      %v792 = vpack.c.b16 %v760, %v760
      %v793 = vpack.c.b16 %v761, %v761
      %v794 = vpack.c.b16 %v762, %v762
      %v795 = vpack.c.b16 %v763, %v763
      %v796 = vpack.c.b16 %v764, %v764
      %v797 = vpack.c.b16 %v765, %v765
      %v798 = vpack.c.b16 %v766, %v766
      %v799 = vpack.c.b16 %v767, %v767
      %v800 = vpack.c.b16 %v768, %v768
      %v801 = vpack.c.b16 %v769, %v769
      %v802 = vpack.c.b16 %v770, %v770
      %835 = vst [vmem:[%s215] sm:$0xf] %v771
      %836 = vst [vmem:[%s215 + $0x4] sm:$0xf] %v772
      %837 = vst [vmem:[%s215 + $0x8] sm:$0xf] %v773
      %838 = vst [vmem:[%s215 + $0xc] sm:$0xf] %v774
      %839 = vst [vmem:[%s215 + $0x10] sm:$0xf] %v775
      %840 = vst [vmem:[%s215 + $0x14] sm:$0xf] %v776
      %841 = vst [vmem:[%s215 + $0x18] sm:$0xf] %v777
      %842 = vst [vmem:[%s215 + $0x1c] sm:$0xf] %v778
      %843 = vst [vmem:[%s215 + $0x20] sm:$0xf] %v779
      %844 = vst [vmem:[%s215 + $0x24] sm:$0xf] %v780
      %845 = vst [vmem:[%s215 + $0x28] sm:$0xf] %v781
      %846 = vst [vmem:[%s215 + $0x2c] sm:$0xf] %v782
      %847 = vst [vmem:[%s215 + $0x30] sm:$0xf] %v783
      %848 = vst [vmem:[%s215 + $0x34] sm:$0xf] %v784
      %849 = vst [vmem:[%s215 + $0x38] sm:$0xf] %v785
      %850 = vst [vmem:[%s215 + $0x3c] sm:$0xf] %v786
      %851 = vst [vmem:[%s215 + $0x40] sm:$0xf] %v787
      %852 = vst [vmem:[%s215 + $0x44] sm:$0xf] %v788
      %853 = vst [vmem:[%s215 + $0x48] sm:$0xf] %v789
      %854 = vst [vmem:[%s215 + $0x4c] sm:$0xf] %v790
      %855 = vst [vmem:[%s215 + $0x50] sm:$0xf] %v791
      %856 = vst [vmem:[%s215 + $0x54] sm:$0xf] %v792
      %857 = vst [vmem:[%s215 + $0x58] sm:$0xf] %v793
      %858 = vst [vmem:[%s215 + $0x5c] sm:$0xf] %v794
      %859 = vst [vmem:[%s215 + $0x60] sm:$0xf] %v795
      %860 = vst [vmem:[%s215 + $0x64] sm:$0xf] %v796
      %861 = vst [vmem:[%s215 + $0x68] sm:$0xf] %v797
      %862 = vst [vmem:[%s215 + $0x6c] sm:$0xf] %v798
      %863 = vst [vmem:[%s215 + $0x70] sm:$0xf] %v799
      %864 = vst [vmem:[%s215 + $0x74] sm:$0xf] %v800
      %865 = vst [vmem:[%s215 + $0x78] sm:$0xf] %v801
      %866 = vst [vmem:[%s215 + $0x7c] sm:$0xf] %v802
      %v867 = vadd.f32 %v581, %v584
      %v868 = vadd.f32 %v867, %v589
      %v869 = vadd.f32 %v868, %v592
      %v870 = vadd.f32 %v869, %v597
      %v871 = vadd.f32 %v870, %v600
      %v872 = vadd.f32 %v871, %v605
      %v873 = vadd.f32 %v872, %v608
      %v874 = vadd.f32 %v873, %v613
      %v875 = vadd.f32 %v874, %v616
      %v876 = vadd.f32 %v875, %v621
      %v877 = vadd.f32 %v876, %v624
      %v878 = vadd.f32 %v877, %v629
      %v879 = vadd.f32 %v878, %v632
      %v880 = vadd.f32 %v879, %v637
      %v881 = vadd.f32 %v880, %v640
      %v882 = vadd.f32 %v881, %v645
      %v883 = vadd.f32 %v882, %v648
      %v884 = vadd.f32 %v883, %v653
      %v885 = vadd.f32 %v884, %v656
      %v886 = vadd.f32 %v885, %v661
      %v887 = vadd.f32 %v886, %v664
      %v888 = vadd.f32 %v887, %v669
      %v889 = vadd.f32 %v888, %v672
      %v890 = vadd.f32 %v889, %v677
      %v891 = vadd.f32 %v890, %v680
      %v892 = vadd.f32 %v891, %v685
      %v893 = vadd.f32 %v892, %v688
      %v894 = vadd.f32 %v893, %v693
      %v895 = vadd.f32 %v894, %v696
      %v896 = vadd.f32 %v895, %v701
      %v897 = vadd.f32 %v896, %v704
      %898 = vst [vmem:[%s220] sm:$0xff] %v897
      %v899 = vmul.f32 %v581, %v581
      %v900 = vmul.f32 %v584, %v584
      %v901 = vmul.f32 %v589, %v589
      %v902 = vmul.f32 %v592, %v592
      %v903 = vmul.f32 %v597, %v597
      %v904 = vmul.f32 %v600, %v600
      %v905 = vmul.f32 %v605, %v605
      %v906 = vmul.f32 %v608, %v608
      %v907 = vmul.f32 %v613, %v613
      %v908 = vmul.f32 %v616, %v616
      %v909 = vmul.f32 %v621, %v621
      %v910 = vmul.f32 %v624, %v624
      %v911 = vmul.f32 %v629, %v629
      %v912 = vmul.f32 %v632, %v632
      %v913 = vmul.f32 %v637, %v637
      %v914 = vmul.f32 %v640, %v640
      %v915 = vmul.f32 %v645, %v645
      %v916 = vmul.f32 %v648, %v648
      %v917 = vmul.f32 %v653, %v653
      %v918 = vmul.f32 %v656, %v656
      %v919 = vmul.f32 %v661, %v661
      %v920 = vmul.f32 %v664, %v664
      %v921 = vmul.f32 %v669, %v669
      %v922 = vmul.f32 %v672, %v672
      %v923 = vmul.f32 %v677, %v677
      %v924 = vmul.f32 %v680, %v680
      %v925 = vmul.f32 %v685, %v685
      %v926 = vmul.f32 %v688, %v688
      %v927 = vmul.f32 %v693, %v693
      %v928 = vmul.f32 %v696, %v696
      %v929 = vmul.f32 %v701, %v701
      %v930 = vmul.f32 %v704, %v704
      %v931 = vadd.f32 %v899, %v900
      %v932 = vadd.f32 %v931, %v901
      %v933 = vadd.f32 %v932, %v902
      %v934 = vadd.f32 %v933, %v903
      %v935 = vadd.f32 %v934, %v904
      %v936 = vadd.f32 %v935, %v905
      %v937 = vadd.f32 %v936, %v906
      %v938 = vadd.f32 %v937, %v907
      %v939 = vadd.f32 %v938, %v908
      %v940 = vadd.f32 %v939, %v909
      %v941 = vadd.f32 %v940, %v910
      %v942 = vadd.f32 %v941, %v911
      %v943 = vadd.f32 %v942, %v912
      %v944 = vadd.f32 %v943, %v913
      %v945 = vadd.f32 %v944, %v914
      %v946 = vadd.f32 %v945, %v915
      %v947 = vadd.f32 %v946, %v916
      %v948 = vadd.f32 %v947, %v917
      %v949 = vadd.f32 %v948, %v918
      %v950 = vadd.f32 %v949, %v919
      %v951 = vadd.f32 %v950, %v920
      %v952 = vadd.f32 %v951, %v921
      %v953 = vadd.f32 %v952, %v922
      %v954 = vadd.f32 %v953, %v923
      %v955 = vadd.f32 %v954, %v924
      %v956 = vadd.f32 %v955, %v925
      %v957 = vadd.f32 %v956, %v926
      %v958 = vadd.f32 %v957, %v927
      %v959 = vadd.f32 %v958, %v928
      %v960 = vadd.f32 %v959, %v929
      %v961 = vadd.f32 %v960, %v930
      %962 = vst [vmem:[%s224] sm:$0xff] %v961
      %s963 = smul.u32 32, %s16
      %p964 = scmp.lt.s32.totalorder %s963, 63
      %s965 = scalar_select %p964, %s963, 63
      %s966 = smul.addr %s965, 4
      %s967 = scalar_lea.vmem %s2, %s966
      %p968 = scmp.lt.s32.totalorder %s16, 1
      %s969 = scalar_select %p968, %s16, 1
      %s970 = smul.addr %s969, 8
      %s971 = scalar_lea.vmem %s3, %s970
      %p972 = scmp.lt.s32.totalorder %s16, 1
      %s973 = scalar_select %p972, %s16, 1
      %s974 = smul.addr %s973, 8
      %s975 = scalar_lea.vmem %s4, %s974
      // Predicated region
      $region29: #{_lambda_.4} parent=27 // pred_check
        %p976 = pneg %p81
      $region30: #{_lambda_.4} parent=27 // pred_check_branch
        %978 = sbr.rel (%p976) target = $region32
      $region31: #{_lambda_.4} parent=27 // pred_region
        %s979 = smul.u32 32, %s16
      $region32: #{_lambda_.4} parent=27 // pred_fallthru
        _
      // Predicated region
      $region33: #{_lambda_.4} parent=27 // pred_check
        %p980 = pneg %p107
      $region34: #{_lambda_.4} parent=27 // pred_check_branch
        %982 = sbr.rel (%p980) target = $region36
      $region35: #{_lambda_.4} parent=27 // pred_region
        _
      $region36: #{_lambda_.4} parent=27 // pred_fallthru
        _
      // Predicated region
      $region37: #{_lambda_.4} parent=27 // pred_check
        %p983 = pneg %p133
      $region38: #{_lambda_.4} parent=27 // pred_check_branch
        %985 = sbr.rel (%p983) target = $region40
      $region39: #{_lambda_.4} parent=27 // pred_region
        _
      $region40: #{_lambda_.4} parent=27 // pred_fallthru
        _
    $region28: #{_lambda_.4} parent=5 // pred_fallthru
      _
    %p986 = scmp.le.s32.totalorder 2, %s11
    // Predicated region
    $region41: #{_lambda_.4} parent=5 // pred_check
      %p987 = pneg %p986
    $region42: #{_lambda_.4} parent=5 // pred_check_branch
      %989 = sbr.rel (%p987) target = $region44
    $region43: #{_lambda_.4} parent=5 // pred_region
      %s990 = ssub.s32 %s11, 2
      // Predicated region
      $region45: #{_lambda_.4} parent=43 // pred_check
        %p991 = pneg %p87
      $region46: #{_lambda_.4} parent=43 // pred_check_branch
        %993 = sbr.rel (%p991) target = $region48
      $region47: #{_lambda_.4} parent=43 // pred_region
        %s994 = smul.u32 32, %s17
        %p995 = scmp.lt.s32.totalorder %s994, 63
        %s996 = scalar_select %p995, %s994, 63
        %s997 = smul.addr %s996, 4
        %s998 = scalar_lea.vmem %s2, %s997
      $region48: #{_lambda_.4} parent=43 // pred_fallthru
        _
      // Predicated region
      $region49: #{_lambda_.4} parent=43 // pred_check
        %p999 = pneg %p113
      $region50: #{_lambda_.4} parent=43 // pred_check_branch
        %1001 = sbr.rel (%p999) target = $region52
      $region51: #{_lambda_.4} parent=43 // pred_region
        %p1002 = scmp.lt.s32.totalorder %s17, 1
        %s1003 = scalar_select %p1002, %s17, 1
        %s1004 = smul.addr %s1003, 8
        %s1005 = scalar_lea.vmem %s3, %s1004
      $region52: #{_lambda_.4} parent=43 // pred_fallthru
        _
      // Predicated region
      $region53: #{_lambda_.4} parent=43 // pred_check
        %p1006 = pneg %p139
      $region54: #{_lambda_.4} parent=43 // pred_check_branch
        %1008 = sbr.rel (%p1006) target = $region56
      $region55: #{_lambda_.4} parent=43 // pred_region
        %p1009 = scmp.lt.s32.totalorder %s17, 1
        %s1010 = scalar_select %p1009, %s17, 1
        %s1011 = smul.addr %s1010, 8
        %s1012 = scalar_lea.vmem %s4, %s1011
      $region56: #{_lambda_.4} parent=43 // pred_fallthru
        _
    $region44: #{_lambda_.4} parent=5 // pred_fallthru
      _
  $region6: #{_lambda_.4} parent=0 // loop_footer
    %s15 = sadd.s32 1, %s11
  $region7: #{_lambda_.4} parent=0 // loop_footer_branch
    %10 = sbr.rel target = $region3
  $region8: #{_lambda_.4} parent=0 // loop_exit
    _

// kernel: _lambda_.6
$region0: #{_lambda_.6}
  #allocation0 [shape = 'u32[]', space=smem, size = 0x4, offset = 0x4, fixed_abs, tag = 'smem constant byte address 0x4 - core index']
  #allocation1 [shape = 'u32[144,128]{1,0:T(1,128)}', space=vmem, size = 0x12000, scoped, tag = 'internal scratch']
  %s0 = inlined_call_operand.vmem [shape: bf16[512,128], index: 0, kind: input, shape index: {}]
  %s1 = inlined_call_operand.vmem [shape: bf16[128,256], index: 1, kind: input, shape index: {}]
  %s2 = inlined_call_operand.vmem [shape: f32[1,128], index: 2, kind: input, shape index: {}]
  %s3 = inlined_call_operand.vmem [shape: f32[1,128], index: 3, kind: input, shape index: {}]
  %s4 = inlined_call_operand.vmem [shape: bf16[512,256], index: 4, kind: output, shape index: {0}]
  %s5 = inlined_call_operand.vmem [shape: f32[2,8,256], index: 5, kind: output, shape index: {1}]
  %s6 = inlined_call_operand.vmem [shape: f32[2,8,256], index: 6, kind: output, shape index: {2}]
  %7 = xla_tuple %s4, %s5, %s6
  %s8 = sld [smem:[#allocation0]]
  $region65: #{_lambda_.6} parent=0
    _
  %s10 = ssub.s32 1, %s8
  %s11 = scalar_select 0, %s10, %s8
  loop: start=0, step=1, limit=4
  $region2: #{_lambda_.6} parent=0 // loop_pre_header
    _
  $region3: #{_lambda_.6} parent=0 // loop_header
    %s13 = sphi 0, %s17
    %p14 = scmp.ge.s32.totalorder %s13, 4
    %s23 = sphi 0, %s25
    %s26 = sphi 0, %s23
    %s27 = sphi 0, %s26
    %s43 = sphi 0, %s27
    %s47 = sphi 0, %s47
    %s49 = sphi 0, %s47
    %s50 = sphi 0, %s49
    %s64 = sphi 0, %s50
    %s68 = sphi 0, %s68
    %s70 = sphi 0, %s68
    %s71 = sphi 0, %s70
    %s85 = sphi 0, %s71
    %s89 = sphi 0, %s89
    %s91 = sphi 0, %s89
    %s92 = sphi 0, %s91
    %s106 = sphi 0, %s92
    %s112 = sphi 0, %s114
    %s115 = sphi 0, %s112
    %s116 = sphi 0, %s115
    %s132 = sphi 0, %s116
    %s138 = sphi 0, %s140
    %s141 = sphi 0, %s138
    %s142 = sphi 0, %s141
    %s158 = sphi 0, %s142
    %s164 = sphi 0, %s166
    %s167 = sphi 0, %s164
    %s168 = sphi 0, %s167
    %s184 = sphi 0, %s168
  $region4: #{_lambda_.6} parent=0 // loop_header_branch
    %16 = sbr.rel (%p14) target = $region8
  $region5: #{_lambda_.6} parent=0 // loop_body
    %s18 = ssub.s32 %s13, 1
    %s19 = ssub.s32 %s13, 2
    %s20 = sadd.s32 %s13, 1
    %s21 = ssub.s32 %s13, %s20
    %p22 = scmp.eq.s32.totalorder %s21, 0
    %s24 = sadd.s32 %s23, 1
    %s25 = scalar_select %p22, %s23, %s24
    %p28 = pneg %p22
    %p29 = scmp.eq.s32.totalorder %s13, 1
    %p30 = por %p28, %p29
    %p31 = scmp.ne.s32.totalorder %s23, %s26
    %p32 = scmp.eq.s32.totalorder %s13, 0
    %p33 = por %p31, %p32
    %p34 = scmp.ne.s32.totalorder %s23, %s26
    %p35 = scmp.eq.s32.totalorder %s18, 1
    %p36 = por %p34, %p35
    %p37 = scmp.ne.s32.totalorder %s26, %s27
    %p38 = scmp.eq.s32.totalorder %s18, 0
    %p39 = por %p37, %p38
    %p40 = scmp.ne.s32.totalorder %s26, %s27
    %p41 = scmp.eq.s32.totalorder %s19, 1
    %p42 = por %p40, %p41
    %p44 = scmp.ne.s32.totalorder %s27, %s43
    %p45 = scmp.eq.s32.totalorder %s19, 0
    %p46 = por %p44, %p45
    %s48 = sadd.s32 %s47, 1
    %p51 = scmp.eq.s32.totalorder %s13, 1
    %p52 = scmp.ne.s32.totalorder %s47, %s49
    %p53 = scmp.eq.s32.totalorder %s13, 0
    %p54 = por %p52, %p53
    %p55 = scmp.ne.s32.totalorder %s47, %s49
    %p56 = scmp.eq.s32.totalorder %s18, 1
    %p57 = por %p55, %p56
    %p58 = scmp.ne.s32.totalorder %s49, %s50
    %p59 = scmp.eq.s32.totalorder %s18, 0
    %p60 = por %p58, %p59
    %p61 = scmp.ne.s32.totalorder %s49, %s50
    %p62 = scmp.eq.s32.totalorder %s19, 1
    %p63 = por %p61, %p62
    %p65 = scmp.ne.s32.totalorder %s50, %s64
    %p66 = scmp.eq.s32.totalorder %s19, 0
    %p67 = por %p65, %p66
    %s69 = sadd.s32 %s68, 1
    %p72 = scmp.eq.s32.totalorder %s13, 1
    %p73 = scmp.ne.s32.totalorder %s68, %s70
    %p74 = scmp.eq.s32.totalorder %s13, 0
    %p75 = por %p73, %p74
    %p76 = scmp.ne.s32.totalorder %s68, %s70
    %p77 = scmp.eq.s32.totalorder %s18, 1
    %p78 = por %p76, %p77
    %p79 = scmp.ne.s32.totalorder %s70, %s71
    %p80 = scmp.eq.s32.totalorder %s18, 0
    %p81 = por %p79, %p80
    %p82 = scmp.ne.s32.totalorder %s70, %s71
    %p83 = scmp.eq.s32.totalorder %s19, 1
    %p84 = por %p82, %p83
    %p86 = scmp.ne.s32.totalorder %s71, %s85
    %p87 = scmp.eq.s32.totalorder %s19, 0
    %p88 = por %p86, %p87
    %s90 = sadd.s32 %s89, 1
    %p93 = scmp.eq.s32.totalorder %s13, 1
    %p94 = scmp.ne.s32.totalorder %s89, %s91
    %p95 = scmp.eq.s32.totalorder %s13, 0
    %p96 = por %p94, %p95
    %p97 = scmp.ne.s32.totalorder %s89, %s91
    %p98 = scmp.eq.s32.totalorder %s18, 1
    %p99 = por %p97, %p98
    %p100 = scmp.ne.s32.totalorder %s91, %s92
    %p101 = scmp.eq.s32.totalorder %s18, 0
    %p102 = por %p100, %p101
    %p103 = scmp.ne.s32.totalorder %s91, %s92
    %p104 = scmp.eq.s32.totalorder %s19, 1
    %p105 = por %p103, %p104
    %p107 = scmp.ne.s32.totalorder %s92, %s106
    %p108 = scmp.eq.s32.totalorder %s19, 0
    %p109 = por %p107, %p108
    %s110 = ssub.s32 %s13, %s20
    %p111 = scmp.eq.s32.totalorder %s110, 0
    %s113 = sadd.s32 %s112, 1
    %s114 = scalar_select %p111, %s112, %s113
    %p117 = pneg %p111
    %p118 = scmp.eq.s32.totalorder %s13, 1
    %p119 = por %p117, %p118
    %p120 = scmp.ne.s32.totalorder %s112, %s115
    %p121 = scmp.eq.s32.totalorder %s13, 0
    %p122 = por %p120, %p121
    %p123 = scmp.ne.s32.totalorder %s112, %s115
    %p124 = scmp.eq.s32.totalorder %s18, 1
    %p125 = por %p123, %p124
    %p126 = scmp.ne.s32.totalorder %s115, %s116
    %p127 = scmp.eq.s32.totalorder %s18, 0
    %p128 = por %p126, %p127
    %p129 = scmp.ne.s32.totalorder %s115, %s116
    %p130 = scmp.eq.s32.totalorder %s19, 1
    %p131 = por %p129, %p130
    %p133 = scmp.ne.s32.totalorder %s116, %s132
    %p134 = scmp.eq.s32.totalorder %s19, 0
    %p135 = por %p133, %p134
    %s136 = ssub.s32 %s13, %s20
    %p137 = scmp.eq.s32.totalorder %s136, 0
    %s139 = sadd.s32 %s138, 1
    %s140 = scalar_select %p137, %s138, %s139
    %p143 = pneg %p137
    %p144 = scmp.eq.s32.totalorder %s13, 1
    %p145 = por %p143, %p144
    %p146 = scmp.ne.s32.totalorder %s138, %s141
    %p147 = scmp.eq.s32.totalorder %s13, 0
    %p148 = por %p146, %p147
    %p149 = scmp.ne.s32.totalorder %s138, %s141
    %p150 = scmp.eq.s32.totalorder %s18, 1
    %p151 = por %p149, %p150
    %p152 = scmp.ne.s32.totalorder %s141, %s142
    %p153 = scmp.eq.s32.totalorder %s18, 0
    %p154 = por %p152, %p153
    %p155 = scmp.ne.s32.totalorder %s141, %s142
    %p156 = scmp.eq.s32.totalorder %s19, 1
    %p157 = por %p155, %p156
    %p159 = scmp.ne.s32.totalorder %s142, %s158
    %p160 = scmp.eq.s32.totalorder %s19, 0
    %p161 = por %p159, %p160
    %s162 = ssub.s32 %s13, %s20
    %p163 = scmp.eq.s32.totalorder %s162, 0
    %s165 = sadd.s32 %s164, 1
    %s166 = scalar_select %p163, %s164, %s165
    %p169 = pneg %p163
    %p170 = scmp.eq.s32.totalorder %s13, 1
    %p171 = por %p169, %p170
    %p172 = scmp.ne.s32.totalorder %s164, %s167
    %p173 = scmp.eq.s32.totalorder %s13, 0
    %p174 = por %p172, %p173
    %p175 = scmp.ne.s32.totalorder %s164, %s167
    %p176 = scmp.eq.s32.totalorder %s18, 1
    %p177 = por %p175, %p176
    %p178 = scmp.ne.s32.totalorder %s167, %s168
    %p179 = scmp.eq.s32.totalorder %s18, 0
    %p180 = por %p178, %p179
    %p181 = scmp.ne.s32.totalorder %s167, %s168
    %p182 = scmp.eq.s32.totalorder %s19, 1
    %p183 = por %p181, %p182
    %p185 = scmp.ne.s32.totalorder %s168, %s184
    %p186 = scmp.eq.s32.totalorder %s19, 0
    %p187 = por %p185, %p186
    %p188 = scmp.le.s32.totalorder 1, %s13
    %p189 = scmp.lt.s32.totalorder %s13, 3
    %p190 = pnand %p188, %p189
    %p191 = pneg %p190
    // Predicated region
    $region9: #{_lambda_.6} parent=5 // pred_check
      _
    $region10: #{_lambda_.6} parent=5 // pred_check_branch
      %193 = sbr.rel (%p190) target = $region12
    $region11: #{_lambda_.6} parent=5 // pred_region
      %s194 = ssub.s32 %s13, 1
      // Predicated region
      $region13: #{_lambda_.6} parent=11 // pred_check
        %p195 = pneg %p60
      $region14: #{_lambda_.6} parent=11 // pred_check_branch
        %197 = sbr.rel (%p195) target = $region16
      $region15: #{_lambda_.6} parent=11 // pred_region
        _
      $region16: #{_lambda_.6} parent=11 // pred_fallthru
        _
      // Predicated region
      $region17: #{_lambda_.6} parent=11 // pred_check
        %p198 = pneg %p81
      $region18: #{_lambda_.6} parent=11 // pred_check_branch
        %200 = sbr.rel (%p198) target = $region20
      $region19: #{_lambda_.6} parent=11 // pred_region
        _
      $region20: #{_lambda_.6} parent=11 // pred_fallthru
        _
      // Predicated region
      $region21: #{_lambda_.6} parent=11 // pred_check
        %p201 = pneg %p102
      $region22: #{_lambda_.6} parent=11 // pred_check_branch
        %203 = sbr.rel (%p201) target = $region24
      $region23: #{_lambda_.6} parent=11 // pred_region
        _
      $region24: #{_lambda_.6} parent=11 // pred_fallthru
        _
    $region12: #{_lambda_.6} parent=5 // pred_fallthru
      _
    %p204 = scmp.lt.s32.totalorder %s13, 2
    // Predicated region
    $region25: #{_lambda_.6} parent=5 // pred_check
      %p205 = pneg %p204
    $region26: #{_lambda_.6} parent=5 // pred_check_branch
      %207 = sbr.rel (%p205) target = $region28
    $region27: #{_lambda_.6} parent=5 // pred_region
      // Predicated region
      $region29: #{_lambda_.6} parent=27 // pred_check
        %p208 = pneg %p33
      $region30: #{_lambda_.6} parent=27 // pred_check_branch
        %210 = sbr.rel (%p208) target = $region32
      $region31: #{_lambda_.6} parent=27 // pred_region
        %s211 = smul.u32 32, %s13
        %p212 = scmp.lt.s32.totalorder %s211, 63
        %s213 = scalar_select %p212, %s211, 63
        %s214 = smul.addr %s213, 4
        %s215 = scalar_lea.vmem %s0, %s214
        %s216 = smul.u32 32, %s13
      $region32: #{_lambda_.6} parent=27 // pred_fallthru
        _
    $region28: #{_lambda_.6} parent=5 // pred_fallthru
      _
    %p217 = scmp.le.s32.totalorder 1, %s13
    %p218 = scmp.lt.s32.totalorder %s13, 3
    %p219 = pnand %p217, %p218
    %p220 = pneg %p219
    // Predicated region
    $region33: #{_lambda_.6} parent=5 // pred_check
      _
    $region34: #{_lambda_.6} parent=5 // pred_check_branch
      %222 = sbr.rel (%p219) target = $region36
    $region35: #{_lambda_.6} parent=5 // pred_region
      %s223 = ssub.s32 %s13, 1
      %s224 = smul.u32 32, %s18
      %p225 = scmp.lt.s32.totalorder %s224, 63
      %s226 = scalar_select %p225, %s224, 63
      %s227 = smul.addr %s226, 4
      %s228 = scalar_lea.vmem %s0, %s227
      %p229 = pneg %p39
      %p230 = pneg %p36
      %p231 = pneg %p60
      %p232 = pneg %p57
      %p233 = pneg %p81
      %p234 = pneg %p78
      %p235 = pneg %p102
      %p236 = pneg %p99
      %p237 = pneg %p128
      %p238 = pneg %p125
      %s239 = smul.u32 32, %s18
      %p240 = scmp.lt.s32.totalorder %s239, 63
      %s241 = scalar_select %p240, %s239, 63
      %s242 = smul.addr %s241, 2
      %s243 = smul.addr %s242, 4
      %s244 = scalar_lea.vmem %s4, %s243
      %p245 = pneg %p154
      %p246 = pneg %p151
      %p247 = scmp.lt.s32.totalorder %s18, 1
      %s248 = scalar_select %p247, %s18, 1
      %s249 = smul.addr %s248, 2
      %s250 = smul.addr %s249, 8
      %s251 = scalar_lea.vmem %s5, %s250
      %p252 = pneg %p180
      %p253 = pneg %p177
      %p254 = scmp.lt.s32.totalorder %s18, 1
      %s255 = scalar_select %p254, %s18, 1
      %s256 = smul.addr %s255, 2
      %s257 = smul.addr %s256, 8
      %s258 = scalar_lea.vmem %s6, %s257
      %s259 = smul.u32 32, %s18
      %p260 = scmp.lt.s32.totalorder %s259, 63
      %s261 = scalar_select %p260, %s259, 63
      %s262 = smul.addr %s261, 4
      %s263 = scalar_lea.vmem %s0, %s262
      %s264 = smul.u32 32, %s18
      %s265 = smul.u32 32, %s18
      %p266 = scmp.lt.s32.totalorder %s265, 63
      %s267 = scalar_select %p266, %s265, 63
      %s268 = smul.addr %s267, 2
      %s269 = smul.addr %s268, 4
      %s270 = scalar_lea.vmem %s4, %s269
      %s271 = smul.u32 32, %s18
      %p272 = scmp.lt.s32.totalorder %s18, 1
      %s273 = scalar_select %p272, %s18, 1
      %s274 = smul.addr %s273, 2
      %s275 = smul.addr %s274, 8
      %s276 = scalar_lea.vmem %s5, %s275
      %p277 = scmp.lt.s32.totalorder %s18, 1
      %s278 = scalar_select %p277, %s18, 1
      %s279 = smul.addr %s278, 2
      %s280 = smul.addr %s279, 8
      %s281 = scalar_lea.vmem %s6, %s280
      %v283 = vld [vmem:[%s263] sm:$0xf]
      %v284 = vld [vmem:[%s263 + $0x4] sm:$0xf]
      %v285 = vld [vmem:[%s263 + $0x8] sm:$0xf]
      %v286 = vld [vmem:[%s263 + $0xc] sm:$0xf]
      %v287 = vld [vmem:[%s263 + $0x10] sm:$0xf]
      %v288 = vld [vmem:[%s263 + $0x14] sm:$0xf]
      %v289 = vld [vmem:[%s263 + $0x18] sm:$0xf]
      %v290 = vld [vmem:[%s263 + $0x1c] sm:$0xf]
      %v291 = vld [vmem:[%s263 + $0x20] sm:$0xf]
      %v292 = vld [vmem:[%s263 + $0x24] sm:$0xf]
      %v293 = vld [vmem:[%s263 + $0x28] sm:$0xf]
      %v294 = vld [vmem:[%s263 + $0x2c] sm:$0xf]
      %v295 = vld [vmem:[%s263 + $0x30] sm:$0xf]
      %v296 = vld [vmem:[%s263 + $0x34] sm:$0xf]
      %v297 = vld [vmem:[%s263 + $0x38] sm:$0xf]
      %v298 = vld [vmem:[%s263 + $0x3c] sm:$0xf]
      %v299 = vld [vmem:[%s263 + $0x40] sm:$0xf]
      %v300 = vld [vmem:[%s263 + $0x44] sm:$0xf]
      %v301 = vld [vmem:[%s263 + $0x48] sm:$0xf]
      %v302 = vld [vmem:[%s263 + $0x4c] sm:$0xf]
      %v303 = vld [vmem:[%s263 + $0x50] sm:$0xf]
      %v304 = vld [vmem:[%s263 + $0x54] sm:$0xf]
      %v305 = vld [vmem:[%s263 + $0x58] sm:$0xf]
      %v306 = vld [vmem:[%s263 + $0x5c] sm:$0xf]
      %v307 = vld [vmem:[%s263 + $0x60] sm:$0xf]
      %v308 = vld [vmem:[%s263 + $0x64] sm:$0xf]
      %v309 = vld [vmem:[%s263 + $0x68] sm:$0xf]
      %v310 = vld [vmem:[%s263 + $0x6c] sm:$0xf]
      %v311 = vld [vmem:[%s263 + $0x70] sm:$0xf]
      %v312 = vld [vmem:[%s263 + $0x74] sm:$0xf]
      %v313 = vld [vmem:[%s263 + $0x78] sm:$0xf]
      %v314 = vld [vmem:[%s263 + $0x7c] sm:$0xf]
      %v315 = vunpack.c.l.bf16 %v283
      %v316 = vunpack.c.l.bf16 %v284
      %v317 = vunpack.c.l.bf16 %v285
      %v318 = vunpack.c.l.bf16 %v286
      %v319 = vunpack.c.l.bf16 %v287
      %v320 = vunpack.c.l.bf16 %v288
      %v321 = vunpack.c.l.bf16 %v289
      %v322 = vunpack.c.l.bf16 %v290
      %v323 = vunpack.c.l.bf16 %v291
      %v324 = vunpack.c.l.bf16 %v292
      %v325 = vunpack.c.l.bf16 %v293
      %v326 = vunpack.c.l.bf16 %v294
      %v327 = vunpack.c.l.bf16 %v295
      %v328 = vunpack.c.l.bf16 %v296
      %v329 = vunpack.c.l.bf16 %v297
      %v330 = vunpack.c.l.bf16 %v298
      %v331 = vunpack.c.l.bf16 %v299
      %v332 = vunpack.c.l.bf16 %v300
      %v333 = vunpack.c.l.bf16 %v301
      %v334 = vunpack.c.l.bf16 %v302
      %v335 = vunpack.c.l.bf16 %v303
      %v336 = vunpack.c.l.bf16 %v304
      %v337 = vunpack.c.l.bf16 %v305
      %v338 = vunpack.c.l.bf16 %v306
      %v339 = vunpack.c.l.bf16 %v307
      %v340 = vunpack.c.l.bf16 %v308
      %v341 = vunpack.c.l.bf16 %v309
      %v342 = vunpack.c.l.bf16 %v310
      %v343 = vunpack.c.l.bf16 %v311
      %v344 = vunpack.c.l.bf16 %v312
      %v345 = vunpack.c.l.bf16 %v313
      %v346 = vunpack.c.l.bf16 %v314
      %v347 = vld [vmem:[%s2] sm:$0x1]
      %v349 = vlaneseq
      %v350 = vshrl.u32 %v349, 7
      %v351 = vsub.s32 0, %v350
      %v352 = vrot.slane %v347, %v351
      %v354 = vmul.f32 %v315, %v352
      %v355 = vmul.f32 %v316, %v352
      %v356 = vmul.f32 %v317, %v352
      %v357 = vmul.f32 %v318, %v352
      %v358 = vmul.f32 %v319, %v352
      %v359 = vmul.f32 %v320, %v352
      %v360 = vmul.f32 %v321, %v352
      %v361 = vmul.f32 %v322, %v352
      %v362 = vmul.f32 %v323, %v352
      %v363 = vmul.f32 %v324, %v352
      %v364 = vmul.f32 %v325, %v352
      %v365 = vmul.f32 %v326, %v352
      %v366 = vmul.f32 %v327, %v352
      %v367 = vmul.f32 %v328, %v352
      %v368 = vmul.f32 %v329, %v352
      %v369 = vmul.f32 %v330, %v352
      %v370 = vmul.f32 %v331, %v352
      %v371 = vmul.f32 %v332, %v352
      %v372 = vmul.f32 %v333, %v352
      %v373 = vmul.f32 %v334, %v352
      %v374 = vmul.f32 %v335, %v352
      %v375 = vmul.f32 %v336, %v352
      %v376 = vmul.f32 %v337, %v352
      %v377 = vmul.f32 %v338, %v352
      %v378 = vmul.f32 %v339, %v352
      %v379 = vmul.f32 %v340, %v352
      %v380 = vmul.f32 %v341, %v352
      %v381 = vmul.f32 %v342, %v352
      %v382 = vmul.f32 %v343, %v352
      %v383 = vmul.f32 %v344, %v352
      %v384 = vmul.f32 %v345, %v352
      %v385 = vmul.f32 %v346, %v352
      %v386 = vld [vmem:[%s3] sm:$0x1]
      %v388 = vlaneseq
      %v389 = vshrl.u32 %v388, 7
      %v390 = vsub.s32 0, %v389
      %v391 = vrot.slane %v386, %v390
      %v393 = vadd.f32 %v354, %v391
      %v394 = vadd.f32 %v355, %v391
      %v395 = vadd.f32 %v356, %v391
      %v396 = vadd.f32 %v357, %v391
      %v397 = vadd.f32 %v358, %v391
      %v398 = vadd.f32 %v359, %v391
      %v399 = vadd.f32 %v360, %v391
      %v400 = vadd.f32 %v361, %v391
      %v401 = vadd.f32 %v362, %v391
      %v402 = vadd.f32 %v363, %v391
      %v403 = vadd.f32 %v364, %v391
      %v404 = vadd.f32 %v365, %v391
      %v405 = vadd.f32 %v366, %v391
      %v406 = vadd.f32 %v367, %v391
      %v407 = vadd.f32 %v368, %v391
      %v408 = vadd.f32 %v369, %v391
      %v409 = vadd.f32 %v370, %v391
      %v410 = vadd.f32 %v371, %v391
      %v411 = vadd.f32 %v372, %v391
      %v412 = vadd.f32 %v373, %v391
      %v413 = vadd.f32 %v374, %v391
      %v414 = vadd.f32 %v375, %v391
      %v415 = vadd.f32 %v376, %v391
      %v416 = vadd.f32 %v377, %v391
      %v417 = vadd.f32 %v378, %v391
      %v418 = vadd.f32 %v379, %v391
      %v419 = vadd.f32 %v380, %v391
      %v420 = vadd.f32 %v381, %v391
      %v421 = vadd.f32 %v382, %v391
      %v422 = vadd.f32 %v383, %v391
      %v423 = vadd.f32 %v384, %v391
      %v424 = vadd.f32 %v385, %v391
      %v425 = vmax.f32 %v393, 0.0
      %v426 = vmax.f32 %v394, 0.0
      %v427 = vmax.f32 %v395, 0.0
      %v428 = vmax.f32 %v396, 0.0
      %v429 = vmax.f32 %v397, 0.0
      %v430 = vmax.f32 %v398, 0.0
      %v431 = vmax.f32 %v399, 0.0
      %v432 = vmax.f32 %v400, 0.0
      %v433 = vmax.f32 %v401, 0.0
      %v434 = vmax.f32 %v402, 0.0
      %v435 = vmax.f32 %v403, 0.0
      %v436 = vmax.f32 %v404, 0.0
      %v437 = vmax.f32 %v405, 0.0
      %v438 = vmax.f32 %v406, 0.0
      %v439 = vmax.f32 %v407, 0.0
      %v440 = vmax.f32 %v408, 0.0
      %v441 = vmax.f32 %v409, 0.0
      %v442 = vmax.f32 %v410, 0.0
      %v443 = vmax.f32 %v411, 0.0
      %v444 = vmax.f32 %v412, 0.0
      %v445 = vmax.f32 %v413, 0.0
      %v446 = vmax.f32 %v414, 0.0
      %v447 = vmax.f32 %v415, 0.0
      %v448 = vmax.f32 %v416, 0.0
      %v449 = vmax.f32 %v417, 0.0
      %v450 = vmax.f32 %v418, 0.0
      %v451 = vmax.f32 %v419, 0.0
      %v452 = vmax.f32 %v420, 0.0
      %v453 = vmax.f32 %v421, 0.0
      %v454 = vmax.f32 %v422, 0.0
      %v455 = vmax.f32 %v423, 0.0
      %v456 = vmax.f32 %v424, 0.0
      %v457 = vpack.c.bf16 %v426, %v425
      %v458 = vpack.c.bf16 %v428, %v427
      %v459 = vpack.c.bf16 %v430, %v429
      %v460 = vpack.c.bf16 %v432, %v431
      %v461 = vpack.c.bf16 %v434, %v433
      %v462 = vpack.c.bf16 %v436, %v435
      %v463 = vpack.c.bf16 %v438, %v437
      %v464 = vpack.c.bf16 %v440, %v439
      %v465 = vpack.c.bf16 %v442, %v441
      %v466 = vpack.c.bf16 %v444, %v443
      %v467 = vpack.c.bf16 %v446, %v445
      %v468 = vpack.c.bf16 %v448, %v447
      %v469 = vpack.c.bf16 %v450, %v449
      %v470 = vpack.c.bf16 %v452, %v451
      %v471 = vpack.c.bf16 %v454, %v453
      %v472 = vpack.c.bf16 %v456, %v455
      %v473 = vld [vmem:[%s1] sm:$0xff]
      %v474 = vld [vmem:[%s1 + $0x8] sm:$0xff]
      %v475 = vld [vmem:[%s1 + $0x10] sm:$0xff]
      %v476 = vld [vmem:[%s1 + $0x18] sm:$0xff]
      %v477 = vld [vmem:[%s1 + $0x20] sm:$0xff]
      %v478 = vld [vmem:[%s1 + $0x28] sm:$0xff]
      %v479 = vld [vmem:[%s1 + $0x30] sm:$0xff]
      %v480 = vld [vmem:[%s1 + $0x38] sm:$0xff]
      %v481 = vld [vmem:[%s1 + $0x40] sm:$0xff]
      %v482 = vld [vmem:[%s1 + $0x48] sm:$0xff]
      %v483 = vld [vmem:[%s1 + $0x50] sm:$0xff]
      %v484 = vld [vmem:[%s1 + $0x58] sm:$0xff]
      %v485 = vld [vmem:[%s1 + $0x60] sm:$0xff]
      %v486 = vld [vmem:[%s1 + $0x68] sm:$0xff]
      %v487 = vld [vmem:[%s1 + $0x70] sm:$0xff]
      %v488 = vld [vmem:[%s1 + $0x78] sm:$0xff]
      %v505 = vunpack.c.l.b16 %v473
      %v506 = vunpack.c.h.b16 %v473
      %v507 = vunpack.c.l.b16 %v474
      %v508 = vunpack.c.h.b16 %v474
      %v509 = vunpack.c.l.b16 %v475
      %v510 = vunpack.c.h.b16 %v475
      %v511 = vunpack.c.l.b16 %v476
      %v512 = vunpack.c.h.b16 %v476
      %v513 = vunpack.c.l.b16 %v477
      %v514 = vunpack.c.h.b16 %v477
      %v515 = vunpack.c.l.b16 %v478
      %v516 = vunpack.c.h.b16 %v478
      %v517 = vunpack.c.l.b16 %v479
      %v518 = vunpack.c.h.b16 %v479
      %v519 = vunpack.c.l.b16 %v480
      %v520 = vunpack.c.h.b16 %v480
      %v521 = vunpack.c.l.b16 %v481
      %v522 = vunpack.c.h.b16 %v481
      %v523 = vunpack.c.l.b16 %v482
      %v524 = vunpack.c.h.b16 %v482
      %v525 = vunpack.c.l.b16 %v483
      %v526 = vunpack.c.h.b16 %v483
      %v527 = vunpack.c.l.b16 %v484
      %v528 = vunpack.c.h.b16 %v484
      %v529 = vunpack.c.l.b16 %v485
      %v530 = vunpack.c.h.b16 %v485
      %v531 = vunpack.c.l.b16 %v486
      %v532 = vunpack.c.h.b16 %v486
      %v533 = vunpack.c.l.b16 %v487
      %v534 = vunpack.c.h.b16 %v487
      %v535 = vunpack.c.l.b16 %v488
      %v536 = vunpack.c.h.b16 %v488
      %v537 = vpack.c.b16 %v507, %v505
      %v538 = vpack.c.b16 %v508, %v506
      %v539 = vpack.c.b16 %v511, %v509
      %v540 = vpack.c.b16 %v512, %v510
      %v541 = vpack.c.b16 %v515, %v513
      %v542 = vpack.c.b16 %v516, %v514
      %v543 = vpack.c.b16 %v519, %v517
      %v544 = vpack.c.b16 %v520, %v518
      %v545 = vpack.c.b16 %v523, %v521
      %v546 = vpack.c.b16 %v524, %v522
      %v547 = vpack.c.b16 %v527, %v525
      %v548 = vpack.c.b16 %v528, %v526
      %v549 = vpack.c.b16 %v531, %v529
      %v550 = vpack.c.b16 %v532, %v530
      %v551 = vpack.c.b16 %v535, %v533
      %v552 = vpack.c.b16 %v536, %v534
      %569 = vmatprep.subr.bf16.mxu0 %v538
      %570 = vmatpush1.bf16.msra.mxu0 %v537
      %571 = vmatprep.subr.bf16.mxu0 %v540
      %572 = vmatpush1.bf16.msra.mxu0 %v539
      %573 = vmatprep.subr.bf16.mxu0 %v542
      %574 = vmatpush1.bf16.msra.mxu0 %v541
      %575 = vmatprep.subr.bf16.mxu0 %v544
      %576 = vmatpush1.bf16.msra.mxu0 %v543
      %577 = vmatprep.subr.bf16.mxu0 %v546
      %578 = vmatpush1.bf16.msra.mxu0 %v545
      %579 = vmatprep.subr.bf16.mxu0 %v548
      %580 = vmatpush1.bf16.msra.mxu0 %v547
      %581 = vmatprep.subr.bf16.mxu0 %v550
      %582 = vmatpush1.bf16.msra.mxu0 %v549
      %583 = vmatprep.subr.bf16.mxu0 %v552
      %584 = vmatpush1.bf16.msra.mxu0 %v551
      %585 = vmatprep.subr.bf16.mxu0 0
      %586 = vmatpush1.bf16.msra.mxu0 0
      %587 = vmatprep.subr.bf16.mxu0 0
      %588 = vmatpush1.bf16.msra.mxu0 0
      %589 = vmatprep.subr.bf16.mxu0 0
      %590 = vmatpush1.bf16.msra.mxu0 0
      %591 = vmatprep.subr.bf16.mxu0 0
      %592 = vmatpush1.bf16.msra.mxu0 0
      %593 = vmatprep.subr.bf16.mxu0 0
      %594 = vmatpush1.bf16.msra.mxu0 0
      %595 = vmatprep.subr.bf16.mxu0 0
      %596 = vmatpush1.bf16.msra.mxu0 0
      %597 = vmatprep.subr.bf16.mxu0 0
      %598 = vmatpush1.bf16.msra.mxu0 0
      %599 = vmatprep.subr.bf16.mxu0 0
      %600 = vmatpush1.bf16.msra.mxu0 0
      %601 = vmatprep.mubr.bf16.mxu0 0
      %602 = vmatmul.mubr.bf16.gmra.mrb[0].mxu0 %v457
      %v603 = vpop.f32.mrb[0].mxu0
      %v604 = vadd.f32 0.0, %v603
      %v605 = vpop.f32.mrb[0].mxu0
      %v606 = vadd.f32 0.0, %v605
      %v607 = vpop.f32.mrb[0].mxu0
      %v608 = vadd.f32 0.0, %v607
      %v609 = vpop.f32.mrb[0].mxu0
      %v610 = vadd.f32 0.0, %v609
      %611 = vmatprep.mubr.bf16.mxu0 0
      %612 = vmatmul.mubr.bf16.gmra.mrb[0].mxu0 %v458
      %v613 = vpop.f32.mrb[0].mxu0
      %v614 = vadd.f32 0.0, %v613
      %v615 = vpop.f32.mrb[0].mxu0
      %v616 = vadd.f32 0.0, %v615
      %v617 = vpop.f32.mrb[0].mxu0
      %v618 = vadd.f32 0.0, %v617
      %v619 = vpop.f32.mrb[0].mxu0
      %v620 = vadd.f32 0.0, %v619
      %621 = vmatprep.mubr.bf16.mxu0 0
      %622 = vmatmul.mubr.bf16.gmra.mrb[0].mxu0 %v459
      %v623 = vpop.f32.mrb[0].mxu0
      %v624 = vadd.f32 0.0, %v623
      %v625 = vpop.f32.mrb[0].mxu0
      %v626 = vadd.f32 0.0, %v625
      %v627 = vpop.f32.mrb[0].mxu0
      %v628 = vadd.f32 0.0, %v627
      %v629 = vpop.f32.mrb[0].mxu0
      %v630 = vadd.f32 0.0, %v629
      %631 = vmatprep.mubr.bf16.mxu0 0
      %632 = vmatmul.mubr.bf16.gmra.mrb[0].mxu0 %v460
      %v633 = vpop.f32.mrb[0].mxu0
      %v634 = vadd.f32 0.0, %v633
      %v635 = vpop.f32.mrb[0].mxu0
      %v636 = vadd.f32 0.0, %v635
      %v637 = vpop.f32.mrb[0].mxu0
      %v638 = vadd.f32 0.0, %v637
      %v639 = vpop.f32.mrb[0].mxu0
      %v640 = vadd.f32 0.0, %v639
      %641 = vmatprep.mubr.bf16.mxu0 0
      %642 = vmatmul.mubr.bf16.gmra.mrb[0].mxu0 %v461
      %v643 = vpop.f32.mrb[0].mxu0
      %v644 = vadd.f32 0.0, %v643
      %v645 = vpop.f32.mrb[0].mxu0
      %v646 = vadd.f32 0.0, %v645
      %v647 = vpop.f32.mrb[0].mxu0
      %v648 = vadd.f32 0.0, %v647
      %v649 = vpop.f32.mrb[0].mxu0
      %v650 = vadd.f32 0.0, %v649
      %651 = vmatprep.mubr.bf16.mxu0 0
      %652 = vmatmul.mubr.bf16.gmra.mrb[0].mxu0 %v462
      %v653 = vpop.f32.mrb[0].mxu0
      %v654 = vadd.f32 0.0, %v653
      %v655 = vpop.f32.mrb[0].mxu0
      %v656 = vadd.f32 0.0, %v655
      %v657 = vpop.f32.mrb[0].mxu0
      %v658 = vadd.f32 0.0, %v657
      %v659 = vpop.f32.mrb[0].mxu0
      %v660 = vadd.f32 0.0, %v659
      %661 = vmatprep.mubr.bf16.mxu0 0
      %662 = vmatmul.mubr.bf16.gmra.mrb[0].mxu0 %v463
      %v663 = vpop.f32.mrb[0].mxu0
      %v664 = vadd.f32 0.0, %v663
      %v665 = vpop.f32.mrb[0].mxu0
      %v666 = vadd.f32 0.0, %v665
      %v667 = vpop.f32.mrb[0].mxu0
      %v668 = vadd.f32 0.0, %v667
      %v669 = vpop.f32.mrb[0].mxu0
      %v670 = vadd.f32 0.0, %v669
      %671 = vmatprep.mubr.bf16.mxu0 0
      %672 = vmatmul.mubr.bf16.gmra.mrb[0].mxu0 %v464
      %v673 = vpop.f32.mrb[0].mxu0
      %v674 = vadd.f32 0.0, %v673
      %v675 = vpop.f32.mrb[0].mxu0
      %v676 = vadd.f32 0.0, %v675
      %v677 = vpop.f32.mrb[0].mxu0
      %v678 = vadd.f32 0.0, %v677
      %v679 = vpop.f32.mrb[0].mxu0
      %v680 = vadd.f32 0.0, %v679
      %681 = vmatprep.mubr.bf16.mxu0 0
      %682 = vmatmul.mubr.bf16.gmra.mrb[0].mxu0 %v465
      %v683 = vpop.f32.mrb[0].mxu0
      %v684 = vadd.f32 0.0, %v683
      %v685 = vpop.f32.mrb[0].mxu0
      %v686 = vadd.f32 0.0, %v685
      %v687 = vpop.f32.mrb[0].mxu0
      %v688 = vadd.f32 0.0, %v687
      %v689 = vpop.f32.mrb[0].mxu0
      %v690 = vadd.f32 0.0, %v689
      %691 = vmatprep.mubr.bf16.mxu0 0
      %692 = vmatmul.mubr.bf16.gmra.mrb[0].mxu0 %v466
      %v693 = vpop.f32.mrb[0].mxu0
      %v694 = vadd.f32 0.0, %v693
      %v695 = vpop.f32.mrb[0].mxu0
      %v696 = vadd.f32 0.0, %v695
      %v697 = vpop.f32.mrb[0].mxu0
      %v698 = vadd.f32 0.0, %v697
      %v699 = vpop.f32.mrb[0].mxu0
      %v700 = vadd.f32 0.0, %v699
      %701 = vmatprep.mubr.bf16.mxu0 0
      %702 = vmatmul.mubr.bf16.gmra.mrb[0].mxu0 %v467
      %v703 = vpop.f32.mrb[0].mxu0
      %v704 = vadd.f32 0.0, %v703
      %v705 = vpop.f32.mrb[0].mxu0
      %v706 = vadd.f32 0.0, %v705
      %v707 = vpop.f32.mrb[0].mxu0
      %v708 = vadd.f32 0.0, %v707
      %v709 = vpop.f32.mrb[0].mxu0
      %v710 = vadd.f32 0.0, %v709
      %711 = vmatprep.mubr.bf16.mxu0 0
      %712 = vmatmul.mubr.bf16.gmra.mrb[0].mxu0 %v468
      %v713 = vpop.f32.mrb[0].mxu0
      %v714 = vadd.f32 0.0, %v713
      %v715 = vpop.f32.mrb[0].mxu0
      %v716 = vadd.f32 0.0, %v715
      %v717 = vpop.f32.mrb[0].mxu0
      %v718 = vadd.f32 0.0, %v717
      %v719 = vpop.f32.mrb[0].mxu0
      %v720 = vadd.f32 0.0, %v719
      %721 = vmatprep.mubr.bf16.mxu0 0
      %722 = vmatmul.mubr.bf16.gmra.mrb[0].mxu0 %v469
      %v723 = vpop.f32.mrb[0].mxu0
      %v724 = vadd.f32 0.0, %v723
      %v725 = vpop.f32.mrb[0].mxu0
      %v726 = vadd.f32 0.0, %v725
      %v727 = vpop.f32.mrb[0].mxu0
      %v728 = vadd.f32 0.0, %v727
      %v729 = vpop.f32.mrb[0].mxu0
      %v730 = vadd.f32 0.0, %v729
      %731 = vmatprep.mubr.bf16.mxu0 0
      %732 = vmatmul.mubr.bf16.gmra.mrb[0].mxu0 %v470
      %v733 = vpop.f32.mrb[0].mxu0
      %v734 = vadd.f32 0.0, %v733
      %v735 = vpop.f32.mrb[0].mxu0
      %v736 = vadd.f32 0.0, %v735
      %v737 = vpop.f32.mrb[0].mxu0
      %v738 = vadd.f32 0.0, %v737
      %v739 = vpop.f32.mrb[0].mxu0
      %v740 = vadd.f32 0.0, %v739
      %741 = vmatprep.mubr.bf16.mxu0 0
      %742 = vmatmul.mubr.bf16.gmra.mrb[0].mxu0 %v471
      %v743 = vpop.f32.mrb[0].mxu0
      %v744 = vadd.f32 0.0, %v743
      %v745 = vpop.f32.mrb[0].mxu0
      %v746 = vadd.f32 0.0, %v745
      %v747 = vpop.f32.mrb[0].mxu0
      %v748 = vadd.f32 0.0, %v747
      %v749 = vpop.f32.mrb[0].mxu0
      %v750 = vadd.f32 0.0, %v749
      %751 = vmatprep.mubr.bf16.mxu0 0
      %752 = vmatmul.mubr.bf16.gmra.mrb[0].mxu0 %v472
      %v753 = vpop.f32.mrb[0].mxu0
      %v754 = vadd.f32 0.0, %v753
      %v755 = vpop.f32.mrb[0].mxu0
      %v756 = vadd.f32 0.0, %v755
      %v757 = vpop.f32.mrb[0].mxu0
      %v758 = vadd.f32 0.0, %v757
      %v759 = vpop.f32.mrb[0].mxu0
      %v760 = vadd.f32 0.0, %v759
      %761 = vdwg.mxu0
      %v762 = vpack.c.bf16 %v608, %v604
      %v763 = vpack.c.bf16 %v610, %v606
      %v764 = vpack.c.bf16 %v618, %v614
      %v765 = vpack.c.bf16 %v620, %v616
      %v766 = vpack.c.bf16 %v628, %v624
      %v767 = vpack.c.bf16 %v630, %v626
      %v768 = vpack.c.bf16 %v638, %v634
      %v769 = vpack.c.bf16 %v640, %v636
      %v770 = vpack.c.bf16 %v648, %v644
      %v771 = vpack.c.bf16 %v650, %v646
      %v772 = vpack.c.bf16 %v658, %v654
      %v773 = vpack.c.bf16 %v660, %v656
      %v774 = vpack.c.bf16 %v668, %v664
      %v775 = vpack.c.bf16 %v670, %v666
      %v776 = vpack.c.bf16 %v678, %v674
      %v777 = vpack.c.bf16 %v680, %v676
      %v778 = vpack.c.bf16 %v688, %v684
      %v779 = vpack.c.bf16 %v690, %v686
      %v780 = vpack.c.bf16 %v698, %v694
      %v781 = vpack.c.bf16 %v700, %v696
      %v782 = vpack.c.bf16 %v708, %v704
      %v783 = vpack.c.bf16 %v710, %v706
      %v784 = vpack.c.bf16 %v718, %v714
      %v785 = vpack.c.bf16 %v720, %v716
      %v786 = vpack.c.bf16 %v728, %v724
      %v787 = vpack.c.bf16 %v730, %v726
      %v788 = vpack.c.bf16 %v738, %v734
      %v789 = vpack.c.bf16 %v740, %v736
      %v790 = vpack.c.bf16 %v748, %v744
      %v791 = vpack.c.bf16 %v750, %v746
      %v792 = vpack.c.bf16 %v758, %v754
      %v793 = vpack.c.bf16 %v760, %v756
      %v826 = vunpack.c.l.b16 %v762
      %v827 = vunpack.c.l.b16 %v763
      %v828 = vunpack.c.h.b16 %v762
      %v829 = vunpack.c.h.b16 %v763
      %v830 = vunpack.c.l.b16 %v764
      %v831 = vunpack.c.l.b16 %v765
      %v832 = vunpack.c.h.b16 %v764
      %v833 = vunpack.c.h.b16 %v765
      %v834 = vunpack.c.l.b16 %v766
      %v835 = vunpack.c.l.b16 %v767
      %v836 = vunpack.c.h.b16 %v766
      %v837 = vunpack.c.h.b16 %v767
      %v838 = vunpack.c.l.b16 %v768
      %v839 = vunpack.c.l.b16 %v769
      %v840 = vunpack.c.h.b16 %v768
      %v841 = vunpack.c.h.b16 %v769
      %v842 = vunpack.c.l.b16 %v770
      %v843 = vunpack.c.l.b16 %v771
      %v844 = vunpack.c.h.b16 %v770
      %v845 = vunpack.c.h.b16 %v771
      %v846 = vunpack.c.l.b16 %v772
      %v847 = vunpack.c.l.b16 %v773
      %v848 = vunpack.c.h.b16 %v772
      %v849 = vunpack.c.h.b16 %v773
      %v850 = vunpack.c.l.b16 %v774
      %v851 = vunpack.c.l.b16 %v775
      %v852 = vunpack.c.h.b16 %v774
      %v853 = vunpack.c.h.b16 %v775
      %v854 = vunpack.c.l.b16 %v776
      %v855 = vunpack.c.l.b16 %v777
      %v856 = vunpack.c.h.b16 %v776
      %v857 = vunpack.c.h.b16 %v777
      %v858 = vunpack.c.l.b16 %v778
      %v859 = vunpack.c.l.b16 %v779
      %v860 = vunpack.c.h.b16 %v778
      %v861 = vunpack.c.h.b16 %v779
      %v862 = vunpack.c.l.b16 %v780
      %v863 = vunpack.c.l.b16 %v781
      %v864 = vunpack.c.h.b16 %v780
      %v865 = vunpack.c.h.b16 %v781
      %v866 = vunpack.c.l.b16 %v782
      %v867 = vunpack.c.l.b16 %v783
      %v868 = vunpack.c.h.b16 %v782
      %v869 = vunpack.c.h.b16 %v783
      %v870 = vunpack.c.l.b16 %v784
      %v871 = vunpack.c.l.b16 %v785
      %v872 = vunpack.c.h.b16 %v784
      %v873 = vunpack.c.h.b16 %v785
      %v874 = vunpack.c.l.b16 %v786
      %v875 = vunpack.c.l.b16 %v787
      %v876 = vunpack.c.h.b16 %v786
      %v877 = vunpack.c.h.b16 %v787
      %v878 = vunpack.c.l.b16 %v788
      %v879 = vunpack.c.l.b16 %v789
      %v880 = vunpack.c.h.b16 %v788
      %v881 = vunpack.c.h.b16 %v789
      %v882 = vunpack.c.l.b16 %v790
      %v883 = vunpack.c.l.b16 %v791
      %v884 = vunpack.c.h.b16 %v790
      %v885 = vunpack.c.h.b16 %v791
      %v886 = vunpack.c.l.b16 %v792
      %v887 = vunpack.c.l.b16 %v793
      %v888 = vunpack.c.h.b16 %v792
      %v889 = vunpack.c.h.b16 %v793
      %v890 = vpack.c.b16 %v827, %v826
      %v891 = vpack.c.b16 %v829, %v828
      %v892 = vpack.c.b16 %v831, %v830
      %v893 = vpack.c.b16 %v833, %v832
      %v894 = vpack.c.b16 %v835, %v834
      %v895 = vpack.c.b16 %v837, %v836
      %v896 = vpack.c.b16 %v839, %v838
      %v897 = vpack.c.b16 %v841, %v840
      %v898 = vpack.c.b16 %v843, %v842
      %v899 = vpack.c.b16 %v845, %v844
      %v900 = vpack.c.b16 %v847, %v846
      %v901 = vpack.c.b16 %v849, %v848
      %v902 = vpack.c.b16 %v851, %v850
      %v903 = vpack.c.b16 %v853, %v852
      %v904 = vpack.c.b16 %v855, %v854
      %v905 = vpack.c.b16 %v857, %v856
      %v906 = vpack.c.b16 %v859, %v858
      %v907 = vpack.c.b16 %v861, %v860
      %v908 = vpack.c.b16 %v863, %v862
      %v909 = vpack.c.b16 %v865, %v864
      %v910 = vpack.c.b16 %v867, %v866
      %v911 = vpack.c.b16 %v869, %v868
      %v912 = vpack.c.b16 %v871, %v870
      %v913 = vpack.c.b16 %v873, %v872
      %v914 = vpack.c.b16 %v875, %v874
      %v915 = vpack.c.b16 %v877, %v876
      %v916 = vpack.c.b16 %v879, %v878
      %v917 = vpack.c.b16 %v881, %v880
      %v918 = vpack.c.b16 %v883, %v882
      %v919 = vpack.c.b16 %v885, %v884
      %v920 = vpack.c.b16 %v887, %v886
      %v921 = vpack.c.b16 %v889, %v888
      %954 = vst [vmem:[%s270] sm:$0xff] %v890
      %955 = vst [vmem:[%s270 + $0x8] sm:$0xff] %v891
      %956 = vst [vmem:[%s270 + $0x10] sm:$0xff] %v892
      %957 = vst [vmem:[%s270 + $0x18] sm:$0xff] %v893
      %958 = vst [vmem:[%s270 + $0x20] sm:$0xff] %v894
      %959 = vst [vmem:[%s270 + $0x28] sm:$0xff] %v895
      %960 = vst [vmem:[%s270 + $0x30] sm:$0xff] %v896
      %961 = vst [vmem:[%s270 + $0x38] sm:$0xff] %v897
      %962 = vst [vmem:[%s270 + $0x40] sm:$0xff] %v898
      %963 = vst [vmem:[%s270 + $0x48] sm:$0xff] %v899
      %964 = vst [vmem:[%s270 + $0x50] sm:$0xff] %v900
      %965 = vst [vmem:[%s270 + $0x58] sm:$0xff] %v901
      %966 = vst [vmem:[%s270 + $0x60] sm:$0xff] %v902
      %967 = vst [vmem:[%s270 + $0x68] sm:$0xff] %v903
      %968 = vst [vmem:[%s270 + $0x70] sm:$0xff] %v904
      %969 = vst [vmem:[%s270 + $0x78] sm:$0xff] %v905
      %970 = vst [vmem:[%s270 + $0x80] sm:$0xff] %v906
      %971 = vst [vmem:[%s270 + $0x88] sm:$0xff] %v907
      %972 = vst [vmem:[%s270 + $0x90] sm:$0xff] %v908
      %973 = vst [vmem:[%s270 + $0x98] sm:$0xff] %v909
      %974 = vst [vmem:[%s270 + $0xa0] sm:$0xff] %v910
      %975 = vst [vmem:[%s270 + $0xa8] sm:$0xff] %v911
      %976 = vst [vmem:[%s270 + $0xb0] sm:$0xff] %v912
      %977 = vst [vmem:[%s270 + $0xb8] sm:$0xff] %v913
      %978 = vst [vmem:[%s270 + $0xc0] sm:$0xff] %v914
      %979 = vst [vmem:[%s270 + $0xc8] sm:$0xff] %v915
      %980 = vst [vmem:[%s270 + $0xd0] sm:$0xff] %v916
      %981 = vst [vmem:[%s270 + $0xd8] sm:$0xff] %v917
      %982 = vst [vmem:[%s270 + $0xe0] sm:$0xff] %v918
      %983 = vst [vmem:[%s270 + $0xe8] sm:$0xff] %v919
      %984 = vst [vmem:[%s270 + $0xf0] sm:$0xff] %v920
      %985 = vst [vmem:[%s270 + $0xf8] sm:$0xff] %v921
      %v986 = vadd.f32 %v604, %v608
      %v987 = vadd.f32 %v986, %v614
      %v988 = vadd.f32 %v987, %v618
      %v989 = vadd.f32 %v988, %v624
      %v990 = vadd.f32 %v989, %v628
      %v991 = vadd.f32 %v990, %v634
      %v992 = vadd.f32 %v991, %v638
      %v993 = vadd.f32 %v992, %v644
      %v994 = vadd.f32 %v993, %v648
      %v995 = vadd.f32 %v994, %v654
      %v996 = vadd.f32 %v995, %v658
      %v997 = vadd.f32 %v996, %v664
      %v998 = vadd.f32 %v997, %v668
      %v999 = vadd.f32 %v998, %v674
      %v1000 = vadd.f32 %v999, %v678
      %v1001 = vadd.f32 %v1000, %v684
      %v1002 = vadd.f32 %v1001, %v688
      %v1003 = vadd.f32 %v1002, %v694
      %v1004 = vadd.f32 %v1003, %v698
      %v1005 = vadd.f32 %v1004, %v704
      %v1006 = vadd.f32 %v1005, %v708
      %v1007 = vadd.f32 %v1006, %v714
      %v1008 = vadd.f32 %v1007, %v718
      %v1009 = vadd.f32 %v1008, %v724
      %v1010 = vadd.f32 %v1009, %v728
      %v1011 = vadd.f32 %v1010, %v734
      %v1012 = vadd.f32 %v1011, %v738
      %v1013 = vadd.f32 %v1012, %v744
      %v1014 = vadd.f32 %v1013, %v748
      %v1015 = vadd.f32 %v1014, %v754
      %v1016 = vadd.f32 %v1015, %v758
      %v1017 = vadd.f32 %v606, %v610
      %v1018 = vadd.f32 %v1017, %v616
      %v1019 = vadd.f32 %v1018, %v620
      %v1020 = vadd.f32 %v1019, %v626
      %v1021 = vadd.f32 %v1020, %v630
      %v1022 = vadd.f32 %v1021, %v636
      %v1023 = vadd.f32 %v1022, %v640
      %v1024 = vadd.f32 %v1023, %v646
      %v1025 = vadd.f32 %v1024, %v650
      %v1026 = vadd.f32 %v1025, %v656
      %v1027 = vadd.f32 %v1026, %v660
      %v1028 = vadd.f32 %v1027, %v666
      %v1029 = vadd.f32 %v1028, %v670
      %v1030 = vadd.f32 %v1029, %v676
      %v1031 = vadd.f32 %v1030, %v680
      %v1032 = vadd.f32 %v1031, %v686
      %v1033 = vadd.f32 %v1032, %v690
      %v1034 = vadd.f32 %v1033, %v696
      %v1035 = vadd.f32 %v1034, %v700
      %v1036 = vadd.f32 %v1035, %v706
      %v1037 = vadd.f32 %v1036, %v710
      %v1038 = vadd.f32 %v1037, %v716
      %v1039 = vadd.f32 %v1038, %v720
      %v1040 = vadd.f32 %v1039, %v726
      %v1041 = vadd.f32 %v1040, %v730
      %v1042 = vadd.f32 %v1041, %v736
      %v1043 = vadd.f32 %v1042, %v740
      %v1044 = vadd.f32 %v1043, %v746
      %v1045 = vadd.f32 %v1044, %v750
      %v1046 = vadd.f32 %v1045, %v756
      %v1047 = vadd.f32 %v1046, %v760
      %1048 = vst [vmem:[%s276] sm:$0xff] %v1016
      %1049 = vst [vmem:[%s276 + $0x8] sm:$0xff] %v1047
      %v1050 = vmul.f32 %v604, %v604
      %v1051 = vmul.f32 %v606, %v606
      %v1052 = vmul.f32 %v608, %v608
      %v1053 = vmul.f32 %v610, %v610
      %v1054 = vmul.f32 %v614, %v614
      %v1055 = vmul.f32 %v616, %v616
      %v1056 = vmul.f32 %v618, %v618
      %v1057 = vmul.f32 %v620, %v620
      %v1058 = vmul.f32 %v624, %v624
      %v1059 = vmul.f32 %v626, %v626
      %v1060 = vmul.f32 %v628, %v628
      %v1061 = vmul.f32 %v630, %v630
      %v1062 = vmul.f32 %v634, %v634
      %v1063 = vmul.f32 %v636, %v636
      %v1064 = vmul.f32 %v638, %v638
      %v1065 = vmul.f32 %v640, %v640
      %v1066 = vmul.f32 %v644, %v644
      %v1067 = vmul.f32 %v646, %v646
      %v1068 = vmul.f32 %v648, %v648
      %v1069 = vmul.f32 %v650, %v650
      %v1070 = vmul.f32 %v654, %v654
      %v1071 = vmul.f32 %v656, %v656
      %v1072 = vmul.f32 %v658, %v658
      %v1073 = vmul.f32 %v660, %v660
      %v1074 = vmul.f32 %v664, %v664
      %v1075 = vmul.f32 %v666, %v666
      %v1076 = vmul.f32 %v668, %v668
      %v1077 = vmul.f32 %v670, %v670
      %v1078 = vmul.f32 %v674, %v674
      %v1079 = vmul.f32 %v676, %v676
      %v1080 = vmul.f32 %v678, %v678
      %v1081 = vmul.f32 %v680, %v680
      %v1082 = vmul.f32 %v684, %v684
      %v1083 = vmul.f32 %v686, %v686
      %v1084 = vmul.f32 %v688, %v688
      %v1085 = vmul.f32 %v690, %v690
      %v1086 = vmul.f32 %v694, %v694
      %v1087 = vmul.f32 %v696, %v696
      %v1088 = vmul.f32 %v698, %v698
      %v1089 = vmul.f32 %v700, %v700
      %v1090 = vmul.f32 %v704, %v704
      %v1091 = vmul.f32 %v706, %v706
      %v1092 = vmul.f32 %v708, %v708
      %v1093 = vmul.f32 %v710, %v710
      %v1094 = vmul.f32 %v714, %v714
      %v1095 = vmul.f32 %v716, %v716
      %v1096 = vmul.f32 %v718, %v718
      %v1097 = vmul.f32 %v720, %v720
      %v1098 = vmul.f32 %v724, %v724
      %v1099 = vmul.f32 %v726, %v726
      %v1100 = vmul.f32 %v728, %v728
      %v1101 = vmul.f32 %v730, %v730
      %v1102 = vmul.f32 %v734, %v734
      %v1103 = vmul.f32 %v736, %v736
      %v1104 = vmul.f32 %v738, %v738
      %v1105 = vmul.f32 %v740, %v740
      %v1106 = vmul.f32 %v744, %v744
      %v1107 = vmul.f32 %v746, %v746
      %v1108 = vmul.f32 %v748, %v748
      %v1109 = vmul.f32 %v750, %v750
      %v1110 = vmul.f32 %v754, %v754
      %v1111 = vmul.f32 %v756, %v756
      %v1112 = vmul.f32 %v758, %v758
      %v1113 = vmul.f32 %v760, %v760
      %v1114 = vadd.f32 %v1050, %v1052
      %v1115 = vadd.f32 %v1114, %v1054
      %v1116 = vadd.f32 %v1115, %v1056
      %v1117 = vadd.f32 %v1116, %v1058
      %v1118 = vadd.f32 %v1117, %v1060
      %v1119 = vadd.f32 %v1118, %v1062
      %v1120 = vadd.f32 %v1119, %v1064
      %v1121 = vadd.f32 %v1120, %v1066
      %v1122 = vadd.f32 %v1121, %v1068
      %v1123 = vadd.f32 %v1122, %v1070
      %v1124 = vadd.f32 %v1123, %v1072
      %v1125 = vadd.f32 %v1124, %v1074
      %v1126 = vadd.f32 %v1125, %v1076
      %v1127 = vadd.f32 %v1126, %v1078
      %v1128 = vadd.f32 %v1127, %v1080
      %v1129 = vadd.f32 %v1128, %v1082
      %v1130 = vadd.f32 %v1129, %v1084
      %v1131 = vadd.f32 %v1130, %v1086
      %v1132 = vadd.f32 %v1131, %v1088
      %v1133 = vadd.f32 %v1132, %v1090
      %v1134 = vadd.f32 %v1133, %v1092
      %v1135 = vadd.f32 %v1134, %v1094
      %v1136 = vadd.f32 %v1135, %v1096
      %v1137 = vadd.f32 %v1136, %v1098
      %v1138 = vadd.f32 %v1137, %v1100
      %v1139 = vadd.f32 %v1138, %v1102
      %v1140 = vadd.f32 %v1139, %v1104
      %v1141 = vadd.f32 %v1140, %v1106
      %v1142 = vadd.f32 %v1141, %v1108
      %v1143 = vadd.f32 %v1142, %v1110
      %v1144 = vadd.f32 %v1143, %v1112
      %v1145 = vadd.f32 %v1051, %v1053
      %v1146 = vadd.f32 %v1145, %v1055
      %v1147 = vadd.f32 %v1146, %v1057
      %v1148 = vadd.f32 %v1147, %v1059
      %v1149 = vadd.f32 %v1148, %v1061
      %v1150 = vadd.f32 %v1149, %v1063
      %v1151 = vadd.f32 %v1150, %v1065
      %v1152 = vadd.f32 %v1151, %v1067
      %v1153 = vadd.f32 %v1152, %v1069
      %v1154 = vadd.f32 %v1153, %v1071
      %v1155 = vadd.f32 %v1154, %v1073
      %v1156 = vadd.f32 %v1155, %v1075
      %v1157 = vadd.f32 %v1156, %v1077
      %v1158 = vadd.f32 %v1157, %v1079
      %v1159 = vadd.f32 %v1158, %v1081
      %v1160 = vadd.f32 %v1159, %v1083
      %v1161 = vadd.f32 %v1160, %v1085
      %v1162 = vadd.f32 %v1161, %v1087
      %v1163 = vadd.f32 %v1162, %v1089
      %v1164 = vadd.f32 %v1163, %v1091
      %v1165 = vadd.f32 %v1164, %v1093
      %v1166 = vadd.f32 %v1165, %v1095
      %v1167 = vadd.f32 %v1166, %v1097
      %v1168 = vadd.f32 %v1167, %v1099
      %v1169 = vadd.f32 %v1168, %v1101
      %v1170 = vadd.f32 %v1169, %v1103
      %v1171 = vadd.f32 %v1170, %v1105
      %v1172 = vadd.f32 %v1171, %v1107
      %v1173 = vadd.f32 %v1172, %v1109
      %v1174 = vadd.f32 %v1173, %v1111
      %v1175 = vadd.f32 %v1174, %v1113
      %1176 = vst [vmem:[%s281] sm:$0xff] %v1144
      %1177 = vst [vmem:[%s281 + $0x8] sm:$0xff] %v1175
      %s1178 = smul.u32 32, %s18
      %p1179 = scmp.lt.s32.totalorder %s1178, 63
      %s1180 = scalar_select %p1179, %s1178, 63
      %s1181 = smul.addr %s1180, 2
      %s1182 = smul.addr %s1181, 4
      %s1183 = scalar_lea.vmem %s4, %s1182
      %p1184 = scmp.lt.s32.totalorder %s18, 1
      %s1185 = scalar_select %p1184, %s18, 1
      %s1186 = smul.addr %s1185, 2
      %s1187 = smul.addr %s1186, 8
      %s1188 = scalar_lea.vmem %s5, %s1187
      %p1189 = scmp.lt.s32.totalorder %s18, 1
      %s1190 = scalar_select %p1189, %s18, 1
      %s1191 = smul.addr %s1190, 2
      %s1192 = smul.addr %s1191, 8
      %s1193 = scalar_lea.vmem %s6, %s1192
      // Predicated region
      $region37: #{_lambda_.6} parent=35 // pred_check
        %p1194 = pneg %p125
      $region38: #{_lambda_.6} parent=35 // pred_check_branch
        %1196 = sbr.rel (%p1194) target = $region40
      $region39: #{_lambda_.6} parent=35 // pred_region
        %s1197 = smul.u32 32, %s18
      $region40: #{_lambda_.6} parent=35 // pred_fallthru
        _
      // Predicated region
      $region41: #{_lambda_.6} parent=35 // pred_check
        %p1198 = pneg %p151
      $region42: #{_lambda_.6} parent=35 // pred_check_branch
        %1200 = sbr.rel (%p1198) target = $region44
      $region43: #{_lambda_.6} parent=35 // pred_region
        _
      $region44: #{_lambda_.6} parent=35 // pred_fallthru
        _
      // Predicated region
      $region45: #{_lambda_.6} parent=35 // pred_check
        %p1201 = pneg %p177
      $region46: #{_lambda_.6} parent=35 // pred_check_branch
        %1203 = sbr.rel (%p1201) target = $region48
      $region47: #{_lambda_.6} parent=35 // pred_region
        _
      $region48: #{_lambda_.6} parent=35 // pred_fallthru
        _
    $region36: #{_lambda_.6} parent=5 // pred_fallthru
      _
    %p1204 = scmp.le.s32.totalorder 2, %s13
    // Predicated region
    $region49: #{_lambda_.6} parent=5 // pred_check
      %p1205 = pneg %p1204
    $region50: #{_lambda_.6} parent=5 // pred_check_branch
      %1207 = sbr.rel (%p1205) target = $region52
    $region51: #{_lambda_.6} parent=5 // pred_region
      %s1208 = ssub.s32 %s13, 2
      // Predicated region
      $region53: #{_lambda_.6} parent=51 // pred_check
        %p1209 = pneg %p131
      $region54: #{_lambda_.6} parent=51 // pred_check_branch
        %1211 = sbr.rel (%p1209) target = $region56
      $region55: #{_lambda_.6} parent=51 // pred_region
        %s1212 = smul.u32 32, %s19
        %p1213 = scmp.lt.s32.totalorder %s1212, 63
        %s1214 = scalar_select %p1213, %s1212, 63
        %s1215 = smul.addr %s1214, 2
        %s1216 = smul.addr %s1215, 4
        %s1217 = scalar_lea.vmem %s4, %s1216
      $region56: #{_lambda_.6} parent=51 // pred_fallthru
        _
      // Predicated region
      $region57: #{_lambda_.6} parent=51 // pred_check
        %p1218 = pneg %p157
      $region58: #{_lambda_.6} parent=51 // pred_check_branch
        %1220 = sbr.rel (%p1218) target = $region60
      $region59: #{_lambda_.6} parent=51 // pred_region
        %p1221 = scmp.lt.s32.totalorder %s19, 1
        %s1222 = scalar_select %p1221, %s19, 1
        %s1223 = smul.addr %s1222, 2
        %s1224 = smul.addr %s1223, 8
        %s1225 = scalar_lea.vmem %s5, %s1224
      $region60: #{_lambda_.6} parent=51 // pred_fallthru
        _
      // Predicated region
      $region61: #{_lambda_.6} parent=51 // pred_check
        %p1226 = pneg %p183
      $region62: #{_lambda_.6} parent=51 // pred_check_branch
        %1228 = sbr.rel (%p1226) target = $region64
      $region63: #{_lambda_.6} parent=51 // pred_region
        %p1229 = scmp.lt.s32.totalorder %s19, 1
        %s1230 = scalar_select %p1229, %s19, 1
        %s1231 = smul.addr %s1230, 2
        %s1232 = smul.addr %s1231, 8
        %s1233 = scalar_lea.vmem %s6, %s1232
      $region64: #{_lambda_.6} parent=51 // pred_fallthru
        _
    $region52: #{_lambda_.6} parent=5 // pred_fallthru
      _
  $region6: #{_lambda_.6} parent=0 // loop_footer
    %s17 = sadd.s32 1, %s13
  $region7: #{_lambda_.6} parent=0 // loop_footer_branch
    %12 = sbr.rel target = $region3
  $region8: #{_lambda_.6} parent=0 // loop_exit
    _

// kernel: _lambda_.7
$region0: #{_lambda_.7}
  #allocation0 [shape = 'u32[]', space=smem, size = 0x4, offset = 0x4, fixed_abs, tag = 'smem constant byte address 0x4 - core index']
  #allocation1 [shape = 'u32[144,128]{1,0:T(1,128)}', space=vmem, size = 0x12000, scoped, tag = 'internal scratch']
  %s0 = inlined_call_operand.vmem [shape: bf16[512,256], index: 0, kind: input, shape index: {}]
  %s1 = inlined_call_operand.vmem [shape: f32[1,256], index: 1, kind: input, shape index: {}]
  %s2 = inlined_call_operand.vmem [shape: f32[1,256], index: 2, kind: input, shape index: {}]
  %s3 = inlined_call_operand.vmem [shape: bf16[512,256], index: 3, kind: input, shape index: {}]
  %s4 = inlined_call_operand.vmem [shape: bf16[512,256], index: 4, kind: output, shape index: {}]
  %s5 = sld [smem:[#allocation0]]
  $region49: #{_lambda_.7} parent=0
    _
  %s7 = ssub.s32 1, %s5
  %s8 = scalar_select 0, %s7, %s5
  loop: start=0, step=1, limit=4
  $region2: #{_lambda_.7} parent=0 // loop_pre_header
    _
  $region3: #{_lambda_.7} parent=0 // loop_header
    %s10 = sphi 0, %s14
    %p11 = scmp.ge.s32.totalorder %s10, 4
    %s20 = sphi 0, %s22
    %s23 = sphi 0, %s20
    %s24 = sphi 0, %s23
    %s40 = sphi 0, %s24
    %s44 = sphi 0, %s44
    %s46 = sphi 0, %s44
    %s47 = sphi 0, %s46
    %s61 = sphi 0, %s47
    %s65 = sphi 0, %s65
    %s67 = sphi 0, %s65
    %s68 = sphi 0, %s67
    %s82 = sphi 0, %s68
    %s88 = sphi 0, %s90
    %s91 = sphi 0, %s88
    %s92 = sphi 0, %s91
    %s108 = sphi 0, %s92
    %s114 = sphi 0, %s116
    %s117 = sphi 0, %s114
    %s118 = sphi 0, %s117
    %s134 = sphi 0, %s118
  $region4: #{_lambda_.7} parent=0 // loop_header_branch
    %13 = sbr.rel (%p11) target = $region8
  $region5: #{_lambda_.7} parent=0 // loop_body
    %s15 = ssub.s32 %s10, 1
    %s16 = ssub.s32 %s10, 2
    %s17 = sadd.s32 %s10, 1
    %s18 = ssub.s32 %s10, %s17
    %p19 = scmp.eq.s32.totalorder %s18, 0
    %s21 = sadd.s32 %s20, 1
    %s22 = scalar_select %p19, %s20, %s21
    %p25 = pneg %p19
    %p26 = scmp.eq.s32.totalorder %s10, 1
    %p27 = por %p25, %p26
    %p28 = scmp.ne.s32.totalorder %s20, %s23
    %p29 = scmp.eq.s32.totalorder %s10, 0
    %p30 = por %p28, %p29
    %p31 = scmp.ne.s32.totalorder %s20, %s23
    %p32 = scmp.eq.s32.totalorder %s15, 1
    %p33 = por %p31, %p32
    %p34 = scmp.ne.s32.totalorder %s23, %s24
    %p35 = scmp.eq.s32.totalorder %s15, 0
    %p36 = por %p34, %p35
    %p37 = scmp.ne.s32.totalorder %s23, %s24
    %p38 = scmp.eq.s32.totalorder %s16, 1
    %p39 = por %p37, %p38
    %p41 = scmp.ne.s32.totalorder %s24, %s40
    %p42 = scmp.eq.s32.totalorder %s16, 0
    %p43 = por %p41, %p42
    %s45 = sadd.s32 %s44, 1
    %p48 = scmp.eq.s32.totalorder %s10, 1
    %p49 = scmp.ne.s32.totalorder %s44, %s46
    %p50 = scmp.eq.s32.totalorder %s10, 0
    %p51 = por %p49, %p50
    %p52 = scmp.ne.s32.totalorder %s44, %s46
    %p53 = scmp.eq.s32.totalorder %s15, 1
    %p54 = por %p52, %p53
    %p55 = scmp.ne.s32.totalorder %s46, %s47
    %p56 = scmp.eq.s32.totalorder %s15, 0
    %p57 = por %p55, %p56
    %p58 = scmp.ne.s32.totalorder %s46, %s47
    %p59 = scmp.eq.s32.totalorder %s16, 1
    %p60 = por %p58, %p59
    %p62 = scmp.ne.s32.totalorder %s47, %s61
    %p63 = scmp.eq.s32.totalorder %s16, 0
    %p64 = por %p62, %p63
    %s66 = sadd.s32 %s65, 1
    %p69 = scmp.eq.s32.totalorder %s10, 1
    %p70 = scmp.ne.s32.totalorder %s65, %s67
    %p71 = scmp.eq.s32.totalorder %s10, 0
    %p72 = por %p70, %p71
    %p73 = scmp.ne.s32.totalorder %s65, %s67
    %p74 = scmp.eq.s32.totalorder %s15, 1
    %p75 = por %p73, %p74
    %p76 = scmp.ne.s32.totalorder %s67, %s68
    %p77 = scmp.eq.s32.totalorder %s15, 0
    %p78 = por %p76, %p77
    %p79 = scmp.ne.s32.totalorder %s67, %s68
    %p80 = scmp.eq.s32.totalorder %s16, 1
    %p81 = por %p79, %p80
    %p83 = scmp.ne.s32.totalorder %s68, %s82
    %p84 = scmp.eq.s32.totalorder %s16, 0
    %p85 = por %p83, %p84
    %s86 = ssub.s32 %s10, %s17
    %p87 = scmp.eq.s32.totalorder %s86, 0
    %s89 = sadd.s32 %s88, 1
    %s90 = scalar_select %p87, %s88, %s89
    %p93 = pneg %p87
    %p94 = scmp.eq.s32.totalorder %s10, 1
    %p95 = por %p93, %p94
    %p96 = scmp.ne.s32.totalorder %s88, %s91
    %p97 = scmp.eq.s32.totalorder %s10, 0
    %p98 = por %p96, %p97
    %p99 = scmp.ne.s32.totalorder %s88, %s91
    %p100 = scmp.eq.s32.totalorder %s15, 1
    %p101 = por %p99, %p100
    %p102 = scmp.ne.s32.totalorder %s91, %s92
    %p103 = scmp.eq.s32.totalorder %s15, 0
    %p104 = por %p102, %p103
    %p105 = scmp.ne.s32.totalorder %s91, %s92
    %p106 = scmp.eq.s32.totalorder %s16, 1
    %p107 = por %p105, %p106
    %p109 = scmp.ne.s32.totalorder %s92, %s108
    %p110 = scmp.eq.s32.totalorder %s16, 0
    %p111 = por %p109, %p110
    %s112 = ssub.s32 %s10, %s17
    %p113 = scmp.eq.s32.totalorder %s112, 0
    %s115 = sadd.s32 %s114, 1
    %s116 = scalar_select %p113, %s114, %s115
    %p119 = pneg %p113
    %p120 = scmp.eq.s32.totalorder %s10, 1
    %p121 = por %p119, %p120
    %p122 = scmp.ne.s32.totalorder %s114, %s117
    %p123 = scmp.eq.s32.totalorder %s10, 0
    %p124 = por %p122, %p123
    %p125 = scmp.ne.s32.totalorder %s114, %s117
    %p126 = scmp.eq.s32.totalorder %s15, 1
    %p127 = por %p125, %p126
    %p128 = scmp.ne.s32.totalorder %s117, %s118
    %p129 = scmp.eq.s32.totalorder %s15, 0
    %p130 = por %p128, %p129
    %p131 = scmp.ne.s32.totalorder %s117, %s118
    %p132 = scmp.eq.s32.totalorder %s16, 1
    %p133 = por %p131, %p132
    %p135 = scmp.ne.s32.totalorder %s118, %s134
    %p136 = scmp.eq.s32.totalorder %s16, 0
    %p137 = por %p135, %p136
    %p138 = scmp.le.s32.totalorder 1, %s10
    %p139 = scmp.lt.s32.totalorder %s10, 3
    %p140 = pnand %p138, %p139
    %p141 = pneg %p140
    // Predicated region
    $region9: #{_lambda_.7} parent=5 // pred_check
      _
    $region10: #{_lambda_.7} parent=5 // pred_check_branch
      %143 = sbr.rel (%p140) target = $region12
    $region11: #{_lambda_.7} parent=5 // pred_region
      %s144 = ssub.s32 %s10, 1
      // Predicated region
      $region13: #{_lambda_.7} parent=11 // pred_check
        %p145 = pneg %p57
      $region14: #{_lambda_.7} parent=11 // pred_check_branch
        %147 = sbr.rel (%p145) target = $region16
      $region15: #{_lambda_.7} parent=11 // pred_region
        _
      $region16: #{_lambda_.7} parent=11 // pred_fallthru
        _
      // Predicated region
      $region17: #{_lambda_.7} parent=11 // pred_check
        %p148 = pneg %p78
      $region18: #{_lambda_.7} parent=11 // pred_check_branch
        %150 = sbr.rel (%p148) target = $region20
      $region19: #{_lambda_.7} parent=11 // pred_region
        _
      $region20: #{_lambda_.7} parent=11 // pred_fallthru
        _
    $region12: #{_lambda_.7} parent=5 // pred_fallthru
      _
    %p151 = scmp.lt.s32.totalorder %s10, 2
    // Predicated region
    $region21: #{_lambda_.7} parent=5 // pred_check
      %p152 = pneg %p151
    $region22: #{_lambda_.7} parent=5 // pred_check_branch
      %154 = sbr.rel (%p152) target = $region24
    $region23: #{_lambda_.7} parent=5 // pred_region
      // Predicated region
      $region25: #{_lambda_.7} parent=23 // pred_check
        %p155 = pneg %p30
      $region26: #{_lambda_.7} parent=23 // pred_check_branch
        %157 = sbr.rel (%p155) target = $region28
      $region27: #{_lambda_.7} parent=23 // pred_region
        %s158 = smul.u32 32, %s10
        %p159 = scmp.lt.s32.totalorder %s158, 63
        %s160 = scalar_select %p159, %s158, 63
        %s161 = smul.addr %s160, 2
        %s162 = smul.addr %s161, 4
        %s163 = scalar_lea.vmem %s0, %s162
        %s164 = smul.u32 32, %s10
      $region28: #{_lambda_.7} parent=23 // pred_fallthru
        _
      // Predicated region
      $region29: #{_lambda_.7} parent=23 // pred_check
        %p165 = pneg %p98
      $region30: #{_lambda_.7} parent=23 // pred_check_branch
        %167 = sbr.rel (%p165) target = $region32
      $region31: #{_lambda_.7} parent=23 // pred_region
        %s168 = smul.u32 32, %s10
        %p169 = scmp.lt.s32.totalorder %s168, 63
        %s170 = scalar_select %p169, %s168, 63
        %s171 = smul.addr %s170, 2
        %s172 = smul.addr %s171, 4
        %s173 = scalar_lea.vmem %s3, %s172
        %s174 = smul.u32 32, %s10
      $region32: #{_lambda_.7} parent=23 // pred_fallthru
        _
    $region24: #{_lambda_.7} parent=5 // pred_fallthru
      _
    %p175 = scmp.le.s32.totalorder 1, %s10
    %p176 = scmp.lt.s32.totalorder %s10, 3
    %p177 = pnand %p175, %p176
    %p178 = pneg %p177
    // Predicated region
    $region33: #{_lambda_.7} parent=5 // pred_check
      _
    $region34: #{_lambda_.7} parent=5 // pred_check_branch
      %180 = sbr.rel (%p177) target = $region36
    $region35: #{_lambda_.7} parent=5 // pred_region
      %s181 = ssub.s32 %s10, 1
      %s182 = smul.u32 32, %s15
      %p183 = scmp.lt.s32.totalorder %s182, 63
      %s184 = scalar_select %p183, %s182, 63
      %s185 = smul.addr %s184, 2
      %s186 = smul.addr %s185, 4
      %s187 = scalar_lea.vmem %s0, %s186
      %p188 = pneg %p36
      %p189 = pneg %p33
      %p190 = pneg %p57
      %p191 = pneg %p54
      %p192 = pneg %p78
      %p193 = pneg %p75
      %s194 = smul.u32 32, %s15
      %p195 = scmp.lt.s32.totalorder %s194, 63
      %s196 = scalar_select %p195, %s194, 63
      %s197 = smul.addr %s196, 2
      %s198 = smul.addr %s197, 4
      %s199 = scalar_lea.vmem %s3, %s198
      %p200 = pneg %p104
      %p201 = pneg %p101
      %p202 = pneg %p130
      %p203 = pneg %p127
      %s204 = smul.u32 32, %s15
      %p205 = scmp.lt.s32.totalorder %s204, 63
      %s206 = scalar_select %p205, %s204, 63
      %s207 = smul.addr %s206, 2
      %s208 = smul.addr %s207, 4
      %s209 = scalar_lea.vmem %s4, %s208
      %s210 = smul.u32 32, %s15
      %p211 = scmp.lt.s32.totalorder %s210, 63
      %s212 = scalar_select %p211, %s210, 63
      %s213 = smul.addr %s212, 2
      %s214 = smul.addr %s213, 4
      %s215 = scalar_lea.vmem %s0, %s214
      %s216 = smul.u32 32, %s15
      %s217 = smul.u32 32, %s15
      %p218 = scmp.lt.s32.totalorder %s217, 63
      %s219 = scalar_select %p218, %s217, 63
      %s220 = smul.addr %s219, 2
      %s221 = smul.addr %s220, 4
      %s222 = scalar_lea.vmem %s3, %s221
      %s223 = smul.u32 32, %s15
      %s224 = smul.u32 32, %s15
      %p225 = scmp.lt.s32.totalorder %s224, 63
      %s226 = scalar_select %p225, %s224, 63
      %s227 = smul.addr %s226, 2
      %s228 = smul.addr %s227, 4
      %s229 = scalar_lea.vmem %s4, %s228
      %s230 = smul.u32 32, %s15
      %v231 = vld [vmem:[%s215] sm:$0xff]
      %v232 = vld [vmem:[%s215 + $0x8] sm:$0xff]
      %v233 = vld [vmem:[%s215 + $0x10] sm:$0xff]
      %v234 = vld [vmem:[%s215 + $0x18] sm:$0xff]
      %v235 = vld [vmem:[%s215 + $0x20] sm:$0xff]
      %v236 = vld [vmem:[%s215 + $0x28] sm:$0xff]
      %v237 = vld [vmem:[%s215 + $0x30] sm:$0xff]
      %v238 = vld [vmem:[%s215 + $0x38] sm:$0xff]
      %v239 = vld [vmem:[%s215 + $0x40] sm:$0xff]
      %v240 = vld [vmem:[%s215 + $0x48] sm:$0xff]
      %v241 = vld [vmem:[%s215 + $0x50] sm:$0xff]
      %v242 = vld [vmem:[%s215 + $0x58] sm:$0xff]
      %v243 = vld [vmem:[%s215 + $0x60] sm:$0xff]
      %v244 = vld [vmem:[%s215 + $0x68] sm:$0xff]
      %v245 = vld [vmem:[%s215 + $0x70] sm:$0xff]
      %v246 = vld [vmem:[%s215 + $0x78] sm:$0xff]
      %v247 = vld [vmem:[%s215 + $0x80] sm:$0xff]
      %v248 = vld [vmem:[%s215 + $0x88] sm:$0xff]
      %v249 = vld [vmem:[%s215 + $0x90] sm:$0xff]
      %v250 = vld [vmem:[%s215 + $0x98] sm:$0xff]
      %v251 = vld [vmem:[%s215 + $0xa0] sm:$0xff]
      %v252 = vld [vmem:[%s215 + $0xa8] sm:$0xff]
      %v253 = vld [vmem:[%s215 + $0xb0] sm:$0xff]
      %v254 = vld [vmem:[%s215 + $0xb8] sm:$0xff]
      %v255 = vld [vmem:[%s215 + $0xc0] sm:$0xff]
      %v256 = vld [vmem:[%s215 + $0xc8] sm:$0xff]
      %v257 = vld [vmem:[%s215 + $0xd0] sm:$0xff]
      %v258 = vld [vmem:[%s215 + $0xd8] sm:$0xff]
      %v259 = vld [vmem:[%s215 + $0xe0] sm:$0xff]
      %v260 = vld [vmem:[%s215 + $0xe8] sm:$0xff]
      %v261 = vld [vmem:[%s215 + $0xf0] sm:$0xff]
      %v262 = vld [vmem:[%s215 + $0xf8] sm:$0xff]
      %v263 = vunpack.c.l.bf16 %v231
      %v264 = vunpack.c.h.bf16 %v231
      %v265 = vunpack.c.l.bf16 %v232
      %v266 = vunpack.c.h.bf16 %v232
      %v267 = vunpack.c.l.bf16 %v233
      %v268 = vunpack.c.h.bf16 %v233
      %v269 = vunpack.c.l.bf16 %v234
      %v270 = vunpack.c.h.bf16 %v234
      %v271 = vunpack.c.l.bf16 %v235
      %v272 = vunpack.c.h.bf16 %v235
      %v273 = vunpack.c.l.bf16 %v236
      %v274 = vunpack.c.h.bf16 %v236
      %v275 = vunpack.c.l.bf16 %v237
      %v276 = vunpack.c.h.bf16 %v237
      %v277 = vunpack.c.l.bf16 %v238
      %v278 = vunpack.c.h.bf16 %v238
      %v279 = vunpack.c.l.bf16 %v239
      %v280 = vunpack.c.h.bf16 %v239
      %v281 = vunpack.c.l.bf16 %v240
      %v282 = vunpack.c.h.bf16 %v240
      %v283 = vunpack.c.l.bf16 %v241
      %v284 = vunpack.c.h.bf16 %v241
      %v285 = vunpack.c.l.bf16 %v242
      %v286 = vunpack.c.h.bf16 %v242
      %v287 = vunpack.c.l.bf16 %v243
      %v288 = vunpack.c.h.bf16 %v243
      %v289 = vunpack.c.l.bf16 %v244
      %v290 = vunpack.c.h.bf16 %v244
      %v291 = vunpack.c.l.bf16 %v245
      %v292 = vunpack.c.h.bf16 %v245
      %v293 = vunpack.c.l.bf16 %v246
      %v294 = vunpack.c.h.bf16 %v246
      %v295 = vunpack.c.l.bf16 %v247
      %v296 = vunpack.c.h.bf16 %v247
      %v297 = vunpack.c.l.bf16 %v248
      %v298 = vunpack.c.h.bf16 %v248
      %v299 = vunpack.c.l.bf16 %v249
      %v300 = vunpack.c.h.bf16 %v249
      %v301 = vunpack.c.l.bf16 %v250
      %v302 = vunpack.c.h.bf16 %v250
      %v303 = vunpack.c.l.bf16 %v251
      %v304 = vunpack.c.h.bf16 %v251
      %v305 = vunpack.c.l.bf16 %v252
      %v306 = vunpack.c.h.bf16 %v252
      %v307 = vunpack.c.l.bf16 %v253
      %v308 = vunpack.c.h.bf16 %v253
      %v309 = vunpack.c.l.bf16 %v254
      %v310 = vunpack.c.h.bf16 %v254
      %v311 = vunpack.c.l.bf16 %v255
      %v312 = vunpack.c.h.bf16 %v255
      %v313 = vunpack.c.l.bf16 %v256
      %v314 = vunpack.c.h.bf16 %v256
      %v315 = vunpack.c.l.bf16 %v257
      %v316 = vunpack.c.h.bf16 %v257
      %v317 = vunpack.c.l.bf16 %v258
      %v318 = vunpack.c.h.bf16 %v258
      %v319 = vunpack.c.l.bf16 %v259
      %v320 = vunpack.c.h.bf16 %v259
      %v321 = vunpack.c.l.bf16 %v260
      %v322 = vunpack.c.h.bf16 %v260
      %v323 = vunpack.c.l.bf16 %v261
      %v324 = vunpack.c.h.bf16 %v261
      %v325 = vunpack.c.l.bf16 %v262
      %v326 = vunpack.c.h.bf16 %v262
      %v327 = vld [vmem:[%s1] sm:$0x3]
      %v329 = vlaneseq
      %v330 = vshrl.u32 %v329, 7
      %v331 = vsub.s32 0, %v330
      %v332 = vrot.slane %v327, %v331
      %v333 = vlaneseq
      %v334 = vshrl.u32 %v333, 7
      %v335 = vsub.s32 1, %v334
      %v336 = vrot.slane %v327, %v335
      %v339 = vmul.f32 %v263, %v332
      %v340 = vmul.f32 %v264, %v336
      %v341 = vmul.f32 %v265, %v332
      %v342 = vmul.f32 %v266, %v336
      %v343 = vmul.f32 %v267, %v332
      %v344 = vmul.f32 %v268, %v336
      %v345 = vmul.f32 %v269, %v332
      %v346 = vmul.f32 %v270, %v336
      %v347 = vmul.f32 %v271, %v332
      %v348 = vmul.f32 %v272, %v336
      %v349 = vmul.f32 %v273, %v332
      %v350 = vmul.f32 %v274, %v336
      %v351 = vmul.f32 %v275, %v332
      %v352 = vmul.f32 %v276, %v336
      %v353 = vmul.f32 %v277, %v332
      %v354 = vmul.f32 %v278, %v336
      %v355 = vmul.f32 %v279, %v332
      %v356 = vmul.f32 %v280, %v336
      %v357 = vmul.f32 %v281, %v332
      %v358 = vmul.f32 %v282, %v336
      %v359 = vmul.f32 %v283, %v332
      %v360 = vmul.f32 %v284, %v336
      %v361 = vmul.f32 %v285, %v332
      %v362 = vmul.f32 %v286, %v336
      %v363 = vmul.f32 %v287, %v332
      %v364 = vmul.f32 %v288, %v336
      %v365 = vmul.f32 %v289, %v332
      %v366 = vmul.f32 %v290, %v336
      %v367 = vmul.f32 %v291, %v332
      %v368 = vmul.f32 %v292, %v336
      %v369 = vmul.f32 %v293, %v332
      %v370 = vmul.f32 %v294, %v336
      %v371 = vmul.f32 %v295, %v332
      %v372 = vmul.f32 %v296, %v336
      %v373 = vmul.f32 %v297, %v332
      %v374 = vmul.f32 %v298, %v336
      %v375 = vmul.f32 %v299, %v332
      %v376 = vmul.f32 %v300, %v336
      %v377 = vmul.f32 %v301, %v332
      %v378 = vmul.f32 %v302, %v336
      %v379 = vmul.f32 %v303, %v332
      %v380 = vmul.f32 %v304, %v336
      %v381 = vmul.f32 %v305, %v332
      %v382 = vmul.f32 %v306, %v336
      %v383 = vmul.f32 %v307, %v332
      %v384 = vmul.f32 %v308, %v336
      %v385 = vmul.f32 %v309, %v332
      %v386 = vmul.f32 %v310, %v336
      %v387 = vmul.f32 %v311, %v332
      %v388 = vmul.f32 %v312, %v336
      %v389 = vmul.f32 %v313, %v332
      %v390 = vmul.f32 %v314, %v336
      %v391 = vmul.f32 %v315, %v332
      %v392 = vmul.f32 %v316, %v336
      %v393 = vmul.f32 %v317, %v332
      %v394 = vmul.f32 %v318, %v336
      %v395 = vmul.f32 %v319, %v332
      %v396 = vmul.f32 %v320, %v336
      %v397 = vmul.f32 %v321, %v332
      %v398 = vmul.f32 %v322, %v336
      %v399 = vmul.f32 %v323, %v332
      %v400 = vmul.f32 %v324, %v336
      %v401 = vmul.f32 %v325, %v332
      %v402 = vmul.f32 %v326, %v336
      %v403 = vld [vmem:[%s2] sm:$0x3]
      %v405 = vlaneseq
      %v406 = vshrl.u32 %v405, 7
      %v407 = vsub.s32 0, %v406
      %v408 = vrot.slane %v403, %v407
      %v409 = vlaneseq
      %v410 = vshrl.u32 %v409, 7
      %v411 = vsub.s32 1, %v410
      %v412 = vrot.slane %v403, %v411
      %v415 = vadd.f32 %v339, %v408
      %v416 = vadd.f32 %v340, %v412
      %v417 = vadd.f32 %v341, %v408
      %v418 = vadd.f32 %v342, %v412
      %v419 = vadd.f32 %v343, %v408
      %v420 = vadd.f32 %v344, %v412
      %v421 = vadd.f32 %v345, %v408
      %v422 = vadd.f32 %v346, %v412
      %v423 = vadd.f32 %v347, %v408
      %v424 = vadd.f32 %v348, %v412
      %v425 = vadd.f32 %v349, %v408
      %v426 = vadd.f32 %v350, %v412
      %v427 = vadd.f32 %v351, %v408
      %v428 = vadd.f32 %v352, %v412
      %v429 = vadd.f32 %v353, %v408
      %v430 = vadd.f32 %v354, %v412
      %v431 = vadd.f32 %v355, %v408
      %v432 = vadd.f32 %v356, %v412
      %v433 = vadd.f32 %v357, %v408
      %v434 = vadd.f32 %v358, %v412
      %v435 = vadd.f32 %v359, %v408
      %v436 = vadd.f32 %v360, %v412
      %v437 = vadd.f32 %v361, %v408
      %v438 = vadd.f32 %v362, %v412
      %v439 = vadd.f32 %v363, %v408
      %v440 = vadd.f32 %v364, %v412
      %v441 = vadd.f32 %v365, %v408
      %v442 = vadd.f32 %v366, %v412
      %v443 = vadd.f32 %v367, %v408
      %v444 = vadd.f32 %v368, %v412
      %v445 = vadd.f32 %v369, %v408
      %v446 = vadd.f32 %v370, %v412
      %v447 = vadd.f32 %v371, %v408
      %v448 = vadd.f32 %v372, %v412
      %v449 = vadd.f32 %v373, %v408
      %v450 = vadd.f32 %v374, %v412
      %v451 = vadd.f32 %v375, %v408
      %v452 = vadd.f32 %v376, %v412
      %v453 = vadd.f32 %v377, %v408
      %v454 = vadd.f32 %v378, %v412
      %v455 = vadd.f32 %v379, %v408
      %v456 = vadd.f32 %v380, %v412
      %v457 = vadd.f32 %v381, %v408
      %v458 = vadd.f32 %v382, %v412
      %v459 = vadd.f32 %v383, %v408
      %v460 = vadd.f32 %v384, %v412
      %v461 = vadd.f32 %v385, %v408
      %v462 = vadd.f32 %v386, %v412
      %v463 = vadd.f32 %v387, %v408
      %v464 = vadd.f32 %v388, %v412
      %v465 = vadd.f32 %v389, %v408
      %v466 = vadd.f32 %v390, %v412
      %v467 = vadd.f32 %v391, %v408
      %v468 = vadd.f32 %v392, %v412
      %v469 = vadd.f32 %v393, %v408
      %v470 = vadd.f32 %v394, %v412
      %v471 = vadd.f32 %v395, %v408
      %v472 = vadd.f32 %v396, %v412
      %v473 = vadd.f32 %v397, %v408
      %v474 = vadd.f32 %v398, %v412
      %v475 = vadd.f32 %v399, %v408
      %v476 = vadd.f32 %v400, %v412
      %v477 = vadd.f32 %v401, %v408
      %v478 = vadd.f32 %v402, %v412
      %v479 = vld [vmem:[%s222] sm:$0xff]
      %v480 = vld [vmem:[%s222 + $0x8] sm:$0xff]
      %v481 = vld [vmem:[%s222 + $0x10] sm:$0xff]
      %v482 = vld [vmem:[%s222 + $0x18] sm:$0xff]
      %v483 = vld [vmem:[%s222 + $0x20] sm:$0xff]
      %v484 = vld [vmem:[%s222 + $0x28] sm:$0xff]
      %v485 = vld [vmem:[%s222 + $0x30] sm:$0xff]
      %v486 = vld [vmem:[%s222 + $0x38] sm:$0xff]
      %v487 = vld [vmem:[%s222 + $0x40] sm:$0xff]
      %v488 = vld [vmem:[%s222 + $0x48] sm:$0xff]
      %v489 = vld [vmem:[%s222 + $0x50] sm:$0xff]
      %v490 = vld [vmem:[%s222 + $0x58] sm:$0xff]
      %v491 = vld [vmem:[%s222 + $0x60] sm:$0xff]
      %v492 = vld [vmem:[%s222 + $0x68] sm:$0xff]
      %v493 = vld [vmem:[%s222 + $0x70] sm:$0xff]
      %v494 = vld [vmem:[%s222 + $0x78] sm:$0xff]
      %v495 = vld [vmem:[%s222 + $0x80] sm:$0xff]
      %v496 = vld [vmem:[%s222 + $0x88] sm:$0xff]
      %v497 = vld [vmem:[%s222 + $0x90] sm:$0xff]
      %v498 = vld [vmem:[%s222 + $0x98] sm:$0xff]
      %v499 = vld [vmem:[%s222 + $0xa0] sm:$0xff]
      %v500 = vld [vmem:[%s222 + $0xa8] sm:$0xff]
      %v501 = vld [vmem:[%s222 + $0xb0] sm:$0xff]
      %v502 = vld [vmem:[%s222 + $0xb8] sm:$0xff]
      %v503 = vld [vmem:[%s222 + $0xc0] sm:$0xff]
      %v504 = vld [vmem:[%s222 + $0xc8] sm:$0xff]
      %v505 = vld [vmem:[%s222 + $0xd0] sm:$0xff]
      %v506 = vld [vmem:[%s222 + $0xd8] sm:$0xff]
      %v507 = vld [vmem:[%s222 + $0xe0] sm:$0xff]
      %v508 = vld [vmem:[%s222 + $0xe8] sm:$0xff]
      %v509 = vld [vmem:[%s222 + $0xf0] sm:$0xff]
      %v510 = vld [vmem:[%s222 + $0xf8] sm:$0xff]
      %v511 = vunpack.c.l.bf16 %v479
      %v512 = vunpack.c.h.bf16 %v479
      %v513 = vunpack.c.l.bf16 %v480
      %v514 = vunpack.c.h.bf16 %v480
      %v515 = vunpack.c.l.bf16 %v481
      %v516 = vunpack.c.h.bf16 %v481
      %v517 = vunpack.c.l.bf16 %v482
      %v518 = vunpack.c.h.bf16 %v482
      %v519 = vunpack.c.l.bf16 %v483
      %v520 = vunpack.c.h.bf16 %v483
      %v521 = vunpack.c.l.bf16 %v484
      %v522 = vunpack.c.h.bf16 %v484
      %v523 = vunpack.c.l.bf16 %v485
      %v524 = vunpack.c.h.bf16 %v485
      %v525 = vunpack.c.l.bf16 %v486
      %v526 = vunpack.c.h.bf16 %v486
      %v527 = vunpack.c.l.bf16 %v487
      %v528 = vunpack.c.h.bf16 %v487
      %v529 = vunpack.c.l.bf16 %v488
      %v530 = vunpack.c.h.bf16 %v488
      %v531 = vunpack.c.l.bf16 %v489
      %v532 = vunpack.c.h.bf16 %v489
      %v533 = vunpack.c.l.bf16 %v490
      %v534 = vunpack.c.h.bf16 %v490
      %v535 = vunpack.c.l.bf16 %v491
      %v536 = vunpack.c.h.bf16 %v491
      %v537 = vunpack.c.l.bf16 %v492
      %v538 = vunpack.c.h.bf16 %v492
      %v539 = vunpack.c.l.bf16 %v493
      %v540 = vunpack.c.h.bf16 %v493
      %v541 = vunpack.c.l.bf16 %v494
      %v542 = vunpack.c.h.bf16 %v494
      %v543 = vunpack.c.l.bf16 %v495
      %v544 = vunpack.c.h.bf16 %v495
      %v545 = vunpack.c.l.bf16 %v496
      %v546 = vunpack.c.h.bf16 %v496
      %v547 = vunpack.c.l.bf16 %v497
      %v548 = vunpack.c.h.bf16 %v497
      %v549 = vunpack.c.l.bf16 %v498
      %v550 = vunpack.c.h.bf16 %v498
      %v551 = vunpack.c.l.bf16 %v499
      %v552 = vunpack.c.h.bf16 %v499
      %v553 = vunpack.c.l.bf16 %v500
      %v554 = vunpack.c.h.bf16 %v500
      %v555 = vunpack.c.l.bf16 %v501
      %v556 = vunpack.c.h.bf16 %v501
      %v557 = vunpack.c.l.bf16 %v502
      %v558 = vunpack.c.h.bf16 %v502
      %v559 = vunpack.c.l.bf16 %v503
      %v560 = vunpack.c.h.bf16 %v503
      %v561 = vunpack.c.l.bf16 %v504
      %v562 = vunpack.c.h.bf16 %v504
      %v563 = vunpack.c.l.bf16 %v505
      %v564 = vunpack.c.h.bf16 %v505
      %v565 = vunpack.c.l.bf16 %v506
      %v566 = vunpack.c.h.bf16 %v506
      %v567 = vunpack.c.l.bf16 %v507
      %v568 = vunpack.c.h.bf16 %v507
      %v569 = vunpack.c.l.bf16 %v508
      %v570 = vunpack.c.h.bf16 %v508
      %v571 = vunpack.c.l.bf16 %v509
      %v572 = vunpack.c.h.bf16 %v509
      %v573 = vunpack.c.l.bf16 %v510
      %v574 = vunpack.c.h.bf16 %v510
      %v575 = vadd.f32 %v415, %v511
      %v576 = vadd.f32 %v416, %v512
      %v577 = vadd.f32 %v417, %v513
      %v578 = vadd.f32 %v418, %v514
      %v579 = vadd.f32 %v419, %v515
      %v580 = vadd.f32 %v420, %v516
      %v581 = vadd.f32 %v421, %v517
      %v582 = vadd.f32 %v422, %v518
      %v583 = vadd.f32 %v423, %v519
      %v584 = vadd.f32 %v424, %v520
      %v585 = vadd.f32 %v425, %v521
      %v586 = vadd.f32 %v426, %v522
      %v587 = vadd.f32 %v427, %v523
      %v588 = vadd.f32 %v428, %v524
      %v589 = vadd.f32 %v429, %v525
      %v590 = vadd.f32 %v430, %v526
      %v591 = vadd.f32 %v431, %v527
      %v592 = vadd.f32 %v432, %v528
      %v593 = vadd.f32 %v433, %v529
      %v594 = vadd.f32 %v434, %v530
      %v595 = vadd.f32 %v435, %v531
      %v596 = vadd.f32 %v436, %v532
      %v597 = vadd.f32 %v437, %v533
      %v598 = vadd.f32 %v438, %v534
      %v599 = vadd.f32 %v439, %v535
      %v600 = vadd.f32 %v440, %v536
      %v601 = vadd.f32 %v441, %v537
      %v602 = vadd.f32 %v442, %v538
      %v603 = vadd.f32 %v443, %v539
      %v604 = vadd.f32 %v444, %v540
      %v605 = vadd.f32 %v445, %v541
      %v606 = vadd.f32 %v446, %v542
      %v607 = vadd.f32 %v447, %v543
      %v608 = vadd.f32 %v448, %v544
      %v609 = vadd.f32 %v449, %v545
      %v610 = vadd.f32 %v450, %v546
      %v611 = vadd.f32 %v451, %v547
      %v612 = vadd.f32 %v452, %v548
      %v613 = vadd.f32 %v453, %v549
      %v614 = vadd.f32 %v454, %v550
      %v615 = vadd.f32 %v455, %v551
      %v616 = vadd.f32 %v456, %v552
      %v617 = vadd.f32 %v457, %v553
      %v618 = vadd.f32 %v458, %v554
      %v619 = vadd.f32 %v459, %v555
      %v620 = vadd.f32 %v460, %v556
      %v621 = vadd.f32 %v461, %v557
      %v622 = vadd.f32 %v462, %v558
      %v623 = vadd.f32 %v463, %v559
      %v624 = vadd.f32 %v464, %v560
      %v625 = vadd.f32 %v465, %v561
      %v626 = vadd.f32 %v466, %v562
      %v627 = vadd.f32 %v467, %v563
      %v628 = vadd.f32 %v468, %v564
      %v629 = vadd.f32 %v469, %v565
      %v630 = vadd.f32 %v470, %v566
      %v631 = vadd.f32 %v471, %v567
      %v632 = vadd.f32 %v472, %v568
      %v633 = vadd.f32 %v473, %v569
      %v634 = vadd.f32 %v474, %v570
      %v635 = vadd.f32 %v475, %v571
      %v636 = vadd.f32 %v476, %v572
      %v637 = vadd.f32 %v477, %v573
      %v638 = vadd.f32 %v478, %v574
      %v639 = vmax.f32 %v575, 0.0
      %v640 = vmax.f32 %v576, 0.0
      %v641 = vmax.f32 %v577, 0.0
      %v642 = vmax.f32 %v578, 0.0
      %v643 = vmax.f32 %v579, 0.0
      %v644 = vmax.f32 %v580, 0.0
      %v645 = vmax.f32 %v581, 0.0
      %v646 = vmax.f32 %v582, 0.0
      %v647 = vmax.f32 %v583, 0.0
      %v648 = vmax.f32 %v584, 0.0
      %v649 = vmax.f32 %v585, 0.0
      %v650 = vmax.f32 %v586, 0.0
      %v651 = vmax.f32 %v587, 0.0
      %v652 = vmax.f32 %v588, 0.0
      %v653 = vmax.f32 %v589, 0.0
      %v654 = vmax.f32 %v590, 0.0
      %v655 = vmax.f32 %v591, 0.0
      %v656 = vmax.f32 %v592, 0.0
      %v657 = vmax.f32 %v593, 0.0
      %v658 = vmax.f32 %v594, 0.0
      %v659 = vmax.f32 %v595, 0.0
      %v660 = vmax.f32 %v596, 0.0
      %v661 = vmax.f32 %v597, 0.0
      %v662 = vmax.f32 %v598, 0.0
      %v663 = vmax.f32 %v599, 0.0
      %v664 = vmax.f32 %v600, 0.0
      %v665 = vmax.f32 %v601, 0.0
      %v666 = vmax.f32 %v602, 0.0
      %v667 = vmax.f32 %v603, 0.0
      %v668 = vmax.f32 %v604, 0.0
      %v669 = vmax.f32 %v605, 0.0
      %v670 = vmax.f32 %v606, 0.0
      %v671 = vmax.f32 %v607, 0.0
      %v672 = vmax.f32 %v608, 0.0
      %v673 = vmax.f32 %v609, 0.0
      %v674 = vmax.f32 %v610, 0.0
      %v675 = vmax.f32 %v611, 0.0
      %v676 = vmax.f32 %v612, 0.0
      %v677 = vmax.f32 %v613, 0.0
      %v678 = vmax.f32 %v614, 0.0
      %v679 = vmax.f32 %v615, 0.0
      %v680 = vmax.f32 %v616, 0.0
      %v681 = vmax.f32 %v617, 0.0
      %v682 = vmax.f32 %v618, 0.0
      %v683 = vmax.f32 %v619, 0.0
      %v684 = vmax.f32 %v620, 0.0
      %v685 = vmax.f32 %v621, 0.0
      %v686 = vmax.f32 %v622, 0.0
      %v687 = vmax.f32 %v623, 0.0
      %v688 = vmax.f32 %v624, 0.0
      %v689 = vmax.f32 %v625, 0.0
      %v690 = vmax.f32 %v626, 0.0
      %v691 = vmax.f32 %v627, 0.0
      %v692 = vmax.f32 %v628, 0.0
      %v693 = vmax.f32 %v629, 0.0
      %v694 = vmax.f32 %v630, 0.0
      %v695 = vmax.f32 %v631, 0.0
      %v696 = vmax.f32 %v632, 0.0
      %v697 = vmax.f32 %v633, 0.0
      %v698 = vmax.f32 %v634, 0.0
      %v699 = vmax.f32 %v635, 0.0
      %v700 = vmax.f32 %v636, 0.0
      %v701 = vmax.f32 %v637, 0.0
      %v702 = vmax.f32 %v638, 0.0
      %v703 = vpack.c.bf16 %v641, %v639
      %v704 = vpack.c.bf16 %v642, %v640
      %v705 = vpack.c.bf16 %v645, %v643
      %v706 = vpack.c.bf16 %v646, %v644
      %v707 = vpack.c.bf16 %v649, %v647
      %v708 = vpack.c.bf16 %v650, %v648
      %v709 = vpack.c.bf16 %v653, %v651
      %v710 = vpack.c.bf16 %v654, %v652
      %v711 = vpack.c.bf16 %v657, %v655
      %v712 = vpack.c.bf16 %v658, %v656
      %v713 = vpack.c.bf16 %v661, %v659
      %v714 = vpack.c.bf16 %v662, %v660
      %v715 = vpack.c.bf16 %v665, %v663
      %v716 = vpack.c.bf16 %v666, %v664
      %v717 = vpack.c.bf16 %v669, %v667
      %v718 = vpack.c.bf16 %v670, %v668
      %v719 = vpack.c.bf16 %v673, %v671
      %v720 = vpack.c.bf16 %v674, %v672
      %v721 = vpack.c.bf16 %v677, %v675
      %v722 = vpack.c.bf16 %v678, %v676
      %v723 = vpack.c.bf16 %v681, %v679
      %v724 = vpack.c.bf16 %v682, %v680
      %v725 = vpack.c.bf16 %v685, %v683
      %v726 = vpack.c.bf16 %v686, %v684
      %v727 = vpack.c.bf16 %v689, %v687
      %v728 = vpack.c.bf16 %v690, %v688
      %v729 = vpack.c.bf16 %v693, %v691
      %v730 = vpack.c.bf16 %v694, %v692
      %v731 = vpack.c.bf16 %v697, %v695
      %v732 = vpack.c.bf16 %v698, %v696
      %v733 = vpack.c.bf16 %v701, %v699
      %v734 = vpack.c.bf16 %v702, %v700
      %v767 = vunpack.c.l.b16 %v703
      %v768 = vunpack.c.l.b16 %v704
      %v769 = vunpack.c.h.b16 %v703
      %v770 = vunpack.c.h.b16 %v704
      %v771 = vunpack.c.l.b16 %v705
      %v772 = vunpack.c.l.b16 %v706
      %v773 = vunpack.c.h.b16 %v705
      %v774 = vunpack.c.h.b16 %v706
      %v775 = vunpack.c.l.b16 %v707
      %v776 = vunpack.c.l.b16 %v708
      %v777 = vunpack.c.h.b16 %v707
      %v778 = vunpack.c.h.b16 %v708
      %v779 = vunpack.c.l.b16 %v709
      %v780 = vunpack.c.l.b16 %v710
      %v781 = vunpack.c.h.b16 %v709
      %v782 = vunpack.c.h.b16 %v710
      %v783 = vunpack.c.l.b16 %v711
      %v784 = vunpack.c.l.b16 %v712
      %v785 = vunpack.c.h.b16 %v711
      %v786 = vunpack.c.h.b16 %v712
      %v787 = vunpack.c.l.b16 %v713
      %v788 = vunpack.c.l.b16 %v714
      %v789 = vunpack.c.h.b16 %v713
      %v790 = vunpack.c.h.b16 %v714
      %v791 = vunpack.c.l.b16 %v715
      %v792 = vunpack.c.l.b16 %v716
      %v793 = vunpack.c.h.b16 %v715
      %v794 = vunpack.c.h.b16 %v716
      %v795 = vunpack.c.l.b16 %v717
      %v796 = vunpack.c.l.b16 %v718
      %v797 = vunpack.c.h.b16 %v717
      %v798 = vunpack.c.h.b16 %v718
      %v799 = vunpack.c.l.b16 %v719
      %v800 = vunpack.c.l.b16 %v720
      %v801 = vunpack.c.h.b16 %v719
      %v802 = vunpack.c.h.b16 %v720
      %v803 = vunpack.c.l.b16 %v721
      %v804 = vunpack.c.l.b16 %v722
      %v805 = vunpack.c.h.b16 %v721
      %v806 = vunpack.c.h.b16 %v722
      %v807 = vunpack.c.l.b16 %v723
      %v808 = vunpack.c.l.b16 %v724
      %v809 = vunpack.c.h.b16 %v723
      %v810 = vunpack.c.h.b16 %v724
      %v811 = vunpack.c.l.b16 %v725
      %v812 = vunpack.c.l.b16 %v726
      %v813 = vunpack.c.h.b16 %v725
      %v814 = vunpack.c.h.b16 %v726
      %v815 = vunpack.c.l.b16 %v727
      %v816 = vunpack.c.l.b16 %v728
      %v817 = vunpack.c.h.b16 %v727
      %v818 = vunpack.c.h.b16 %v728
      %v819 = vunpack.c.l.b16 %v729
      %v820 = vunpack.c.l.b16 %v730
      %v821 = vunpack.c.h.b16 %v729
      %v822 = vunpack.c.h.b16 %v730
      %v823 = vunpack.c.l.b16 %v731
      %v824 = vunpack.c.l.b16 %v732
      %v825 = vunpack.c.h.b16 %v731
      %v826 = vunpack.c.h.b16 %v732
      %v827 = vunpack.c.l.b16 %v733
      %v828 = vunpack.c.l.b16 %v734
      %v829 = vunpack.c.h.b16 %v733
      %v830 = vunpack.c.h.b16 %v734
      %v831 = vpack.c.b16 %v768, %v767
      %v832 = vpack.c.b16 %v770, %v769
      %v833 = vpack.c.b16 %v772, %v771
      %v834 = vpack.c.b16 %v774, %v773
      %v835 = vpack.c.b16 %v776, %v775
      %v836 = vpack.c.b16 %v778, %v777
      %v837 = vpack.c.b16 %v780, %v779
      %v838 = vpack.c.b16 %v782, %v781
      %v839 = vpack.c.b16 %v784, %v783
      %v840 = vpack.c.b16 %v786, %v785
      %v841 = vpack.c.b16 %v788, %v787
      %v842 = vpack.c.b16 %v790, %v789
      %v843 = vpack.c.b16 %v792, %v791
      %v844 = vpack.c.b16 %v794, %v793
      %v845 = vpack.c.b16 %v796, %v795
      %v846 = vpack.c.b16 %v798, %v797
      %v847 = vpack.c.b16 %v800, %v799
      %v848 = vpack.c.b16 %v802, %v801
      %v849 = vpack.c.b16 %v804, %v803
      %v850 = vpack.c.b16 %v806, %v805
      %v851 = vpack.c.b16 %v808, %v807
      %v852 = vpack.c.b16 %v810, %v809
      %v853 = vpack.c.b16 %v812, %v811
      %v854 = vpack.c.b16 %v814, %v813
      %v855 = vpack.c.b16 %v816, %v815
      %v856 = vpack.c.b16 %v818, %v817
      %v857 = vpack.c.b16 %v820, %v819
      %v858 = vpack.c.b16 %v822, %v821
      %v859 = vpack.c.b16 %v824, %v823
      %v860 = vpack.c.b16 %v826, %v825
      %v861 = vpack.c.b16 %v828, %v827
      %v862 = vpack.c.b16 %v830, %v829
      %895 = vst [vmem:[%s229] sm:$0xff] %v831
      %896 = vst [vmem:[%s229 + $0x8] sm:$0xff] %v832
      %897 = vst [vmem:[%s229 + $0x10] sm:$0xff] %v833
      %898 = vst [vmem:[%s229 + $0x18] sm:$0xff] %v834
      %899 = vst [vmem:[%s229 + $0x20] sm:$0xff] %v835
      %900 = vst [vmem:[%s229 + $0x28] sm:$0xff] %v836
      %901 = vst [vmem:[%s229 + $0x30] sm:$0xff] %v837
      %902 = vst [vmem:[%s229 + $0x38] sm:$0xff] %v838
      %903 = vst [vmem:[%s229 + $0x40] sm:$0xff] %v839
      %904 = vst [vmem:[%s229 + $0x48] sm:$0xff] %v840
      %905 = vst [vmem:[%s229 + $0x50] sm:$0xff] %v841
      %906 = vst [vmem:[%s229 + $0x58] sm:$0xff] %v842
      %907 = vst [vmem:[%s229 + $0x60] sm:$0xff] %v843
      %908 = vst [vmem:[%s229 + $0x68] sm:$0xff] %v844
      %909 = vst [vmem:[%s229 + $0x70] sm:$0xff] %v845
      %910 = vst [vmem:[%s229 + $0x78] sm:$0xff] %v846
      %911 = vst [vmem:[%s229 + $0x80] sm:$0xff] %v847
      %912 = vst [vmem:[%s229 + $0x88] sm:$0xff] %v848
      %913 = vst [vmem:[%s229 + $0x90] sm:$0xff] %v849
      %914 = vst [vmem:[%s229 + $0x98] sm:$0xff] %v850
      %915 = vst [vmem:[%s229 + $0xa0] sm:$0xff] %v851
      %916 = vst [vmem:[%s229 + $0xa8] sm:$0xff] %v852
      %917 = vst [vmem:[%s229 + $0xb0] sm:$0xff] %v853
      %918 = vst [vmem:[%s229 + $0xb8] sm:$0xff] %v854
      %919 = vst [vmem:[%s229 + $0xc0] sm:$0xff] %v855
      %920 = vst [vmem:[%s229 + $0xc8] sm:$0xff] %v856
      %921 = vst [vmem:[%s229 + $0xd0] sm:$0xff] %v857
      %922 = vst [vmem:[%s229 + $0xd8] sm:$0xff] %v858
      %923 = vst [vmem:[%s229 + $0xe0] sm:$0xff] %v859
      %924 = vst [vmem:[%s229 + $0xe8] sm:$0xff] %v860
      %925 = vst [vmem:[%s229 + $0xf0] sm:$0xff] %v861
      %926 = vst [vmem:[%s229 + $0xf8] sm:$0xff] %v862
      %s927 = smul.u32 32, %s15
      %p928 = scmp.lt.s32.totalorder %s927, 63
      %s929 = scalar_select %p928, %s927, 63
      %s930 = smul.addr %s929, 2
      %s931 = smul.addr %s930, 4
      %s932 = scalar_lea.vmem %s4, %s931
      // Predicated region
      $region37: #{_lambda_.7} parent=35 // pred_check
        %p933 = pneg %p127
      $region38: #{_lambda_.7} parent=35 // pred_check_branch
        %935 = sbr.rel (%p933) target = $region40
      $region39: #{_lambda_.7} parent=35 // pred_region
        %s936 = smul.u32 32, %s15
      $region40: #{_lambda_.7} parent=35 // pred_fallthru
        _
    $region36: #{_lambda_.7} parent=5 // pred_fallthru
      _
    %p937 = scmp.le.s32.totalorder 2, %s10
    // Predicated region
    $region41: #{_lambda_.7} parent=5 // pred_check
      %p938 = pneg %p937
    $region42: #{_lambda_.7} parent=5 // pred_check_branch
      %940 = sbr.rel (%p938) target = $region44
    $region43: #{_lambda_.7} parent=5 // pred_region
      %s941 = ssub.s32 %s10, 2
      // Predicated region
      $region45: #{_lambda_.7} parent=43 // pred_check
        %p942 = pneg %p133
      $region46: #{_lambda_.7} parent=43 // pred_check_branch
        %944 = sbr.rel (%p942) target = $region48
      $region47: #{_lambda_.7} parent=43 // pred_region
        %s945 = smul.u32 32, %s16
        %p946 = scmp.lt.s32.totalorder %s945, 63
        %s947 = scalar_select %p946, %s945, 63
        %s948 = smul.addr %s947, 2
        %s949 = smul.addr %s948, 4
        %s950 = scalar_lea.vmem %s4, %s949
      $region48: #{_lambda_.7} parent=43 // pred_fallthru
        _
    $region44: #{_lambda_.7} parent=5 // pred_fallthru
      _
  $region6: #{_lambda_.7} parent=0 // loop_footer
    %s14 = sadd.s32 1, %s10
  $region7: #{_lambda_.7} parent=0 // loop_footer_branch
    %9 = sbr.rel target = $region3
  $region8: #{_lambda_.7} parent=0 // loop_exit
    _

// kernel: _lambda_.5
$region0: #{_lambda_.5}
  #allocation0 [shape = 'u32[]', space=smem, size = 0x4, offset = 0x4, fixed_abs, tag = 'smem constant byte address 0x4 - core index']
  #allocation1 [shape = 'u32[144,128]{1,0:T(1,128)}', space=vmem, size = 0x12000, scoped, tag = 'internal scratch']
  %s0 = inlined_call_operand.vmem [shape: bf16[2,18,18,128], index: 0, kind: input, shape index: {}]
  %s1 = inlined_call_operand.vmem [shape: bf16[9,128,128], index: 1, kind: input, shape index: {}]
  %s2 = inlined_call_operand.vmem [shape: f32[18,18,128], index: 2, kind: input, shape index: {}]
  %s3 = inlined_call_operand.vmem [shape: f32[1,128], index: 3, kind: input, shape index: {}]
  %s4 = inlined_call_operand.vmem [shape: f32[1,128], index: 4, kind: input, shape index: {}]
  %s5 = inlined_call_operand.vmem [shape: bf16[2,256,128], index: 5, kind: output, shape index: {0}]
  %s6 = inlined_call_operand.vmem [shape: f32[2,8,128], index: 6, kind: output, shape index: {1}]
  %s7 = inlined_call_operand.vmem [shape: f32[2,8,128], index: 7, kind: output, shape index: {2}]
  %8 = xla_tuple %s5, %s6, %s7
  %s9 = sld [smem:[#allocation0]]
  $region69: #{_lambda_.5} parent=0
    _
  %s11 = ssub.s32 1, %s9
  %s12 = scalar_select 0, %s11, %s9
  loop: start=0, step=1, limit=4
  $region2: #{_lambda_.5} parent=0 // loop_pre_header
    _
  $region3: #{_lambda_.5} parent=0 // loop_header
    %s14 = sphi 0, %s18
    %p15 = scmp.ge.s32.totalorder %s14, 4
    %s24 = sphi 0, %s26
    %s27 = sphi 0, %s24
    %s28 = sphi 0, %s27
    %s44 = sphi 0, %s28
    %s48 = sphi 0, %s48
    %s50 = sphi 0, %s48
    %s51 = sphi 0, %s50
    %s65 = sphi 0, %s51
    %s69 = sphi 0, %s69
    %s71 = sphi 0, %s69
    %s72 = sphi 0, %s71
    %s86 = sphi 0, %s72
    %s90 = sphi 0, %s90
    %s92 = sphi 0, %s90
    %s93 = sphi 0, %s92
    %s107 = sphi 0, %s93
    %s111 = sphi 0, %s111
    %s113 = sphi 0, %s111
    %s114 = sphi 0, %s113
    %s128 = sphi 0, %s114
    %s134 = sphi 0, %s136
    %s137 = sphi 0, %s134
    %s138 = sphi 0, %s137
    %s154 = sphi 0, %s138
    %s160 = sphi 0, %s162
    %s163 = sphi 0, %s160
    %s164 = sphi 0, %s163
    %s180 = sphi 0, %s164
    %s186 = sphi 0, %s188
    %s189 = sphi 0, %s186
    %s190 = sphi 0, %s189
    %s206 = sphi 0, %s190
  $region4: #{_lambda_.5} parent=0 // loop_header_branch
    %17 = sbr.rel (%p15) target = $region8
  $region5: #{_lambda_.5} parent=0 // loop_body
    %s19 = ssub.s32 %s14, 1
    %s20 = ssub.s32 %s14, 2
    %s21 = sadd.s32 %s14, 1
    %s22 = ssub.s32 %s14, %s21
    %p23 = scmp.eq.s32.totalorder %s22, 0
    %s25 = sadd.s32 %s24, 1
    %s26 = scalar_select %p23, %s24, %s25
    %p29 = pneg %p23
    %p30 = scmp.eq.s32.totalorder %s14, 1
    %p31 = por %p29, %p30
    %p32 = scmp.ne.s32.totalorder %s24, %s27
    %p33 = scmp.eq.s32.totalorder %s14, 0
    %p34 = por %p32, %p33
    %p35 = scmp.ne.s32.totalorder %s24, %s27
    %p36 = scmp.eq.s32.totalorder %s19, 1
    %p37 = por %p35, %p36
    %p38 = scmp.ne.s32.totalorder %s27, %s28
    %p39 = scmp.eq.s32.totalorder %s19, 0
    %p40 = por %p38, %p39
    %p41 = scmp.ne.s32.totalorder %s27, %s28
    %p42 = scmp.eq.s32.totalorder %s20, 1
    %p43 = por %p41, %p42
    %p45 = scmp.ne.s32.totalorder %s28, %s44
    %p46 = scmp.eq.s32.totalorder %s20, 0
    %p47 = por %p45, %p46
    %s49 = sadd.s32 %s48, 1
    %p52 = scmp.eq.s32.totalorder %s14, 1
    %p53 = scmp.ne.s32.totalorder %s48, %s50
    %p54 = scmp.eq.s32.totalorder %s14, 0
    %p55 = por %p53, %p54
    %p56 = scmp.ne.s32.totalorder %s48, %s50
    %p57 = scmp.eq.s32.totalorder %s19, 1
    %p58 = por %p56, %p57
    %p59 = scmp.ne.s32.totalorder %s50, %s51
    %p60 = scmp.eq.s32.totalorder %s19, 0
    %p61 = por %p59, %p60
    %p62 = scmp.ne.s32.totalorder %s50, %s51
    %p63 = scmp.eq.s32.totalorder %s20, 1
    %p64 = por %p62, %p63
    %p66 = scmp.ne.s32.totalorder %s51, %s65
    %p67 = scmp.eq.s32.totalorder %s20, 0
    %p68 = por %p66, %p67
    %s70 = sadd.s32 %s69, 1
    %p73 = scmp.eq.s32.totalorder %s14, 1
    %p74 = scmp.ne.s32.totalorder %s69, %s71
    %p75 = scmp.eq.s32.totalorder %s14, 0
    %p76 = por %p74, %p75
    %p77 = scmp.ne.s32.totalorder %s69, %s71
    %p78 = scmp.eq.s32.totalorder %s19, 1
    %p79 = por %p77, %p78
    %p80 = scmp.ne.s32.totalorder %s71, %s72
    %p81 = scmp.eq.s32.totalorder %s19, 0
    %p82 = por %p80, %p81
    %p83 = scmp.ne.s32.totalorder %s71, %s72
    %p84 = scmp.eq.s32.totalorder %s20, 1
    %p85 = por %p83, %p84
    %p87 = scmp.ne.s32.totalorder %s72, %s86
    %p88 = scmp.eq.s32.totalorder %s20, 0
    %p89 = por %p87, %p88
    %s91 = sadd.s32 %s90, 1
    %p94 = scmp.eq.s32.totalorder %s14, 1
    %p95 = scmp.ne.s32.totalorder %s90, %s92
    %p96 = scmp.eq.s32.totalorder %s14, 0
    %p97 = por %p95, %p96
    %p98 = scmp.ne.s32.totalorder %s90, %s92
    %p99 = scmp.eq.s32.totalorder %s19, 1
    %p100 = por %p98, %p99
    %p101 = scmp.ne.s32.totalorder %s92, %s93
    %p102 = scmp.eq.s32.totalorder %s19, 0
    %p103 = por %p101, %p102
    %p104 = scmp.ne.s32.totalorder %s92, %s93
    %p105 = scmp.eq.s32.totalorder %s20, 1
    %p106 = por %p104, %p105
    %p108 = scmp.ne.s32.totalorder %s93, %s107
    %p109 = scmp.eq.s32.totalorder %s20, 0
    %p110 = por %p108, %p109
    %s112 = sadd.s32 %s111, 1
    %p115 = scmp.eq.s32.totalorder %s14, 1
    %p116 = scmp.ne.s32.totalorder %s111, %s113
    %p117 = scmp.eq.s32.totalorder %s14, 0
    %p118 = por %p116, %p117
    %p119 = scmp.ne.s32.totalorder %s111, %s113
    %p120 = scmp.eq.s32.totalorder %s19, 1
    %p121 = por %p119, %p120
    %p122 = scmp.ne.s32.totalorder %s113, %s114
    %p123 = scmp.eq.s32.totalorder %s19, 0
    %p124 = por %p122, %p123
    %p125 = scmp.ne.s32.totalorder %s113, %s114
    %p126 = scmp.eq.s32.totalorder %s20, 1
    %p127 = por %p125, %p126
    %p129 = scmp.ne.s32.totalorder %s114, %s128
    %p130 = scmp.eq.s32.totalorder %s20, 0
    %p131 = por %p129, %p130
    %s132 = ssub.s32 %s14, %s21
    %p133 = scmp.eq.s32.totalorder %s132, 0
    %s135 = sadd.s32 %s134, 1
    %s136 = scalar_select %p133, %s134, %s135
    %p139 = pneg %p133
    %p140 = scmp.eq.s32.totalorder %s14, 1
    %p141 = por %p139, %p140
    %p142 = scmp.ne.s32.totalorder %s134, %s137
    %p143 = scmp.eq.s32.totalorder %s14, 0
    %p144 = por %p142, %p143
    %p145 = scmp.ne.s32.totalorder %s134, %s137
    %p146 = scmp.eq.s32.totalorder %s19, 1
    %p147 = por %p145, %p146
    %p148 = scmp.ne.s32.totalorder %s137, %s138
    %p149 = scmp.eq.s32.totalorder %s19, 0
    %p150 = por %p148, %p149
    %p151 = scmp.ne.s32.totalorder %s137, %s138
    %p152 = scmp.eq.s32.totalorder %s20, 1
    %p153 = por %p151, %p152
    %p155 = scmp.ne.s32.totalorder %s138, %s154
    %p156 = scmp.eq.s32.totalorder %s20, 0
    %p157 = por %p155, %p156
    %s158 = ssub.s32 %s14, %s21
    %p159 = scmp.eq.s32.totalorder %s158, 0
    %s161 = sadd.s32 %s160, 1
    %s162 = scalar_select %p159, %s160, %s161
    %p165 = pneg %p159
    %p166 = scmp.eq.s32.totalorder %s14, 1
    %p167 = por %p165, %p166
    %p168 = scmp.ne.s32.totalorder %s160, %s163
    %p169 = scmp.eq.s32.totalorder %s14, 0
    %p170 = por %p168, %p169
    %p171 = scmp.ne.s32.totalorder %s160, %s163
    %p172 = scmp.eq.s32.totalorder %s19, 1
    %p173 = por %p171, %p172
    %p174 = scmp.ne.s32.totalorder %s163, %s164
    %p175 = scmp.eq.s32.totalorder %s19, 0
    %p176 = por %p174, %p175
    %p177 = scmp.ne.s32.totalorder %s163, %s164
    %p178 = scmp.eq.s32.totalorder %s20, 1
    %p179 = por %p177, %p178
    %p181 = scmp.ne.s32.totalorder %s164, %s180
    %p182 = scmp.eq.s32.totalorder %s20, 0
    %p183 = por %p181, %p182
    %s184 = ssub.s32 %s14, %s21
    %p185 = scmp.eq.s32.totalorder %s184, 0
    %s187 = sadd.s32 %s186, 1
    %s188 = scalar_select %p185, %s186, %s187
    %p191 = pneg %p185
    %p192 = scmp.eq.s32.totalorder %s14, 1
    %p193 = por %p191, %p192
    %p194 = scmp.ne.s32.totalorder %s186, %s189
    %p195 = scmp.eq.s32.totalorder %s14, 0
    %p196 = por %p194, %p195
    %p197 = scmp.ne.s32.totalorder %s186, %s189
    %p198 = scmp.eq.s32.totalorder %s19, 1
    %p199 = por %p197, %p198
    %p200 = scmp.ne.s32.totalorder %s189, %s190
    %p201 = scmp.eq.s32.totalorder %s19, 0
    %p202 = por %p200, %p201
    %p203 = scmp.ne.s32.totalorder %s189, %s190
    %p204 = scmp.eq.s32.totalorder %s20, 1
    %p205 = por %p203, %p204
    %p207 = scmp.ne.s32.totalorder %s190, %s206
    %p208 = scmp.eq.s32.totalorder %s20, 0
    %p209 = por %p207, %p208
    %p210 = scmp.le.s32.totalorder 1, %s14
    %p211 = scmp.lt.s32.totalorder %s14, 3
    %p212 = pnand %p210, %p211
    %p213 = pneg %p212
    // Predicated region
    $region9: #{_lambda_.5} parent=5 // pred_check
      _
    $region10: #{_lambda_.5} parent=5 // pred_check_branch
      %215 = sbr.rel (%p212) target = $region12
    $region11: #{_lambda_.5} parent=5 // pred_region
      %s216 = ssub.s32 %s14, 1
      // Predicated region
      $region13: #{_lambda_.5} parent=11 // pred_check
        %p217 = pneg %p61
      $region14: #{_lambda_.5} parent=11 // pred_check_branch
        %219 = sbr.rel (%p217) target = $region16
      $region15: #{_lambda_.5} parent=11 // pred_region
        _
      $region16: #{_lambda_.5} parent=11 // pred_fallthru
        _
      // Predicated region
      $region17: #{_lambda_.5} parent=11 // pred_check
        %p220 = pneg %p82
      $region18: #{_lambda_.5} parent=11 // pred_check_branch
        %222 = sbr.rel (%p220) target = $region20
      $region19: #{_lambda_.5} parent=11 // pred_region
        _
      $region20: #{_lambda_.5} parent=11 // pred_fallthru
        _
      // Predicated region
      $region21: #{_lambda_.5} parent=11 // pred_check
        %p223 = pneg %p103
      $region22: #{_lambda_.5} parent=11 // pred_check_branch
        %225 = sbr.rel (%p223) target = $region24
      $region23: #{_lambda_.5} parent=11 // pred_region
        _
      $region24: #{_lambda_.5} parent=11 // pred_fallthru
        _
      // Predicated region
      $region25: #{_lambda_.5} parent=11 // pred_check
        %p226 = pneg %p124
      $region26: #{_lambda_.5} parent=11 // pred_check_branch
        %228 = sbr.rel (%p226) target = $region28
      $region27: #{_lambda_.5} parent=11 // pred_region
        _
      $region28: #{_lambda_.5} parent=11 // pred_fallthru
        _
    $region12: #{_lambda_.5} parent=5 // pred_fallthru
      _
    %p229 = scmp.lt.s32.totalorder %s14, 2
    // Predicated region
    $region29: #{_lambda_.5} parent=5 // pred_check
      %p230 = pneg %p229
    $region30: #{_lambda_.5} parent=5 // pred_check_branch
      %232 = sbr.rel (%p230) target = $region32
    $region31: #{_lambda_.5} parent=5 // pred_region
      // Predicated region
      $region33: #{_lambda_.5} parent=31 // pred_check
        %p233 = pneg %p34
      $region34: #{_lambda_.5} parent=31 // pred_check_branch
        %235 = sbr.rel (%p233) target = $region36
      $region35: #{_lambda_.5} parent=31 // pred_region
        %p236 = scmp.lt.s32.totalorder %s14, 1
        %s237 = scalar_select %p236, %s14, 1
        %s238 = smul.addr %s237, 54
        %s239 = smul.addr %s238, 4
        %s240 = scalar_lea.vmem %s0, %s239
      $region36: #{_lambda_.5} parent=31 // pred_fallthru
        _
    $region32: #{_lambda_.5} parent=5 // pred_fallthru
      _
    %p241 = scmp.le.s32.totalorder 1, %s14
    %p242 = scmp.lt.s32.totalorder %s14, 3
    %p243 = pnand %p241, %p242
    %p244 = pneg %p243
    // Predicated region
    $region37: #{_lambda_.5} parent=5 // pred_check
      _
    $region38: #{_lambda_.5} parent=5 // pred_check_branch
      %246 = sbr.rel (%p243) target = $region40
    $region39: #{_lambda_.5} parent=5 // pred_region
      %s247 = ssub.s32 %s14, 1
      %p248 = scmp.lt.s32.totalorder %s19, 1
      %s249 = scalar_select %p248, %s19, 1
      %s250 = smul.addr %s249, 54
      %s251 = smul.addr %s250, 4
      %s252 = scalar_lea.vmem %s0, %s251
      %p253 = pneg %p40
      %p254 = pneg %p37
      %p255 = pneg %p61
      %p256 = pneg %p58
      %p257 = pneg %p82
      %p258 = pneg %p79
      %p259 = pneg %p103
      %p260 = pneg %p100
      %p261 = pneg %p124
      %p262 = pneg %p121
      %p263 = pneg %p150
      %p264 = pneg %p147
      %p265 = scmp.lt.s32.totalorder %s19, 1
      %s266 = scalar_select %p265, %s19, 1
      %s267 = smul.addr %s266, 32
      %s268 = smul.addr %s267, 4
      %s269 = scalar_lea.vmem %s5, %s268
      %p270 = pneg %p176
      %p271 = pneg %p173
      %p272 = scmp.lt.s32.totalorder %s19, 1
      %s273 = scalar_select %p272, %s19, 1
      %s274 = smul.addr %s273, 8
      %s275 = scalar_lea.vmem %s6, %s274
      %p276 = pneg %p202
      %p277 = pneg %p199
      %p278 = scmp.lt.s32.totalorder %s19, 1
      %s279 = scalar_select %p278, %s19, 1
      %s280 = smul.addr %s279, 8
      %s281 = scalar_lea.vmem %s7, %s280
      %p282 = scmp.lt.s32.totalorder %s19, 1
      %s283 = scalar_select %p282, %s19, 1
      %s284 = smul.addr %s283, 54
      %s285 = smul.addr %s284, 4
      %s286 = scalar_lea.vmem %s0, %s285
      %p287 = scmp.lt.s32.totalorder %s19, 1
      %s288 = scalar_select %p287, %s19, 1
      %s289 = smul.addr %s288, 32
      %s290 = smul.addr %s289, 4
      %s291 = scalar_lea.vmem %s5, %s290
      %p292 = scmp.lt.s32.totalorder %s19, 1
      %s293 = scalar_select %p292, %s19, 1
      %s294 = smul.addr %s293, 8
      %s295 = scalar_lea.vmem %s6, %s294
      %p296 = scmp.lt.s32.totalorder %s19, 1
      %s297 = scalar_select %p296, %s19, 1
      %s298 = smul.addr %s297, 8
      %s299 = scalar_lea.vmem %s7, %s298
      %v301 = vld [vmem:[%s3] sm:$0x1]
      %v303 = vlaneseq
      %v304 = vshrl.u32 %v303, 7
      %v305 = vsub.s32 0, %v304
      %v306 = vrot.slane %v301, %v305
      %v308 = vld [vmem:[%s4] sm:$0x1]
      %v310 = vlaneseq
      %v311 = vshrl.u32 %v310, 7
      %v312 = vsub.s32 0, %v311
      %v313 = vrot.slane %v308, %v312
      %v315 = vld [vmem:[%s286] sm:$0xf]
      %v316 = vld [vmem:[%s286 + $0x4] sm:$0xf]
      %v317 = vld [vmem:[%s286 + $0xc] sm:$0xf]
      %v318 = vld [vmem:[%s286 + $0x10] sm:$0xf]
      %v319 = vld [vmem:[%s286 + $0x18] sm:$0xf]
      %v320 = vld [vmem:[%s286 + $0x1c] sm:$0xf]
      %v321 = vld [vmem:[%s286 + $0x24] sm:$0xf]
      %v322 = vld [vmem:[%s286 + $0x28] sm:$0xf]
      %v323 = vld [vmem:[%s286 + $0x30] sm:$0xf]
      %v324 = vld [vmem:[%s286 + $0x34] sm:$0xf]
      %v325 = vld [vmem:[%s286 + $0x3c] sm:$0xf]
      %v326 = vld [vmem:[%s286 + $0x40] sm:$0xf]
      %v327 = vld [vmem:[%s286 + $0x48] sm:$0xf]
      %v328 = vld [vmem:[%s286 + $0x4c] sm:$0xf]
      %v329 = vld [vmem:[%s286 + $0x54] sm:$0xf]
      %v330 = vld [vmem:[%s286 + $0x58] sm:$0xf]
      %v331 = vld [vmem:[%s286 + $0x60] sm:$0xf]
      %v332 = vld [vmem:[%s286 + $0x64] sm:$0xf]
      %v333 = vld [vmem:[%s286 + $0x6c] sm:$0xf]
      %v334 = vld [vmem:[%s286 + $0x70] sm:$0xf]
      %v335 = vld [vmem:[%s286 + $0x78] sm:$0xf]
      %v336 = vld [vmem:[%s286 + $0x7c] sm:$0xf]
      %v337 = vld [vmem:[%s286 + $0x84] sm:$0xf]
      %v338 = vld [vmem:[%s286 + $0x88] sm:$0xf]
      %v339 = vld [vmem:[%s286 + $0x90] sm:$0xf]
      %v340 = vld [vmem:[%s286 + $0x94] sm:$0xf]
      %v341 = vld [vmem:[%s286 + $0x9c] sm:$0xf]
      %v342 = vld [vmem:[%s286 + $0xa0] sm:$0xf]
      %v343 = vld [vmem:[%s286 + $0xa8] sm:$0xf]
      %v344 = vld [vmem:[%s286 + $0xac] sm:$0xf]
      %v345 = vld [vmem:[%s286 + $0xb4] sm:$0xf]
      %v346 = vld [vmem:[%s286 + $0xb8] sm:$0xf]
      %v347 = vunpack.c.l.bf16 %v315
      %v348 = vunpack.c.l.bf16 %v316
      %v349 = vunpack.c.l.bf16 %v317
      %v350 = vunpack.c.l.bf16 %v318
      %v351 = vunpack.c.l.bf16 %v319
      %v352 = vunpack.c.l.bf16 %v320
      %v353 = vunpack.c.l.bf16 %v321
      %v354 = vunpack.c.l.bf16 %v322
      %v355 = vunpack.c.l.bf16 %v323
      %v356 = vunpack.c.l.bf16 %v324
      %v357 = vunpack.c.l.bf16 %v325
      %v358 = vunpack.c.l.bf16 %v326
      %v359 = vunpack.c.l.bf16 %v327
      %v360 = vunpack.c.l.bf16 %v328
      %v361 = vunpack.c.l.bf16 %v329
      %v362 = vunpack.c.l.bf16 %v330
      %v363 = vunpack.c.l.bf16 %v331
      %v364 = vunpack.c.l.bf16 %v332
      %v365 = vunpack.c.l.bf16 %v333
      %v366 = vunpack.c.l.bf16 %v334
      %v367 = vunpack.c.l.bf16 %v335
      %v368 = vunpack.c.l.bf16 %v336
      %v369 = vunpack.c.l.bf16 %v337
      %v370 = vunpack.c.l.bf16 %v338
      %v371 = vunpack.c.l.bf16 %v339
      %v372 = vunpack.c.l.bf16 %v340
      %v373 = vunpack.c.l.bf16 %v341
      %v374 = vunpack.c.l.bf16 %v342
      %v375 = vunpack.c.l.bf16 %v343
      %v376 = vunpack.c.l.bf16 %v344
      %v377 = vunpack.c.l.bf16 %v345
      %v378 = vunpack.c.l.bf16 %v346
      %v379 = vmul.f32 %v347, %v306
      %v380 = vmul.f32 %v348, %v306
      %v381 = vmul.f32 %v349, %v306
      %v382 = vmul.f32 %v350, %v306
      %v383 = vmul.f32 %v351, %v306
      %v384 = vmul.f32 %v352, %v306
      %v385 = vmul.f32 %v353, %v306
      %v386 = vmul.f32 %v354, %v306
      %v387 = vmul.f32 %v355, %v306
      %v388 = vmul.f32 %v356, %v306
      %v389 = vmul.f32 %v357, %v306
      %v390 = vmul.f32 %v358, %v306
      %v391 = vmul.f32 %v359, %v306
      %v392 = vmul.f32 %v360, %v306
      %v393 = vmul.f32 %v361, %v306
      %v394 = vmul.f32 %v362, %v306
      %v395 = vmul.f32 %v363, %v306
      %v396 = vmul.f32 %v364, %v306
      %v397 = vmul.f32 %v365, %v306
      %v398 = vmul.f32 %v366, %v306
      %v399 = vmul.f32 %v367, %v306
      %v400 = vmul.f32 %v368, %v306
      %v401 = vmul.f32 %v369, %v306
      %v402 = vmul.f32 %v370, %v306
      %v403 = vmul.f32 %v371, %v306
      %v404 = vmul.f32 %v372, %v306
      %v405 = vmul.f32 %v373, %v306
      %v406 = vmul.f32 %v374, %v306
      %v407 = vmul.f32 %v375, %v306
      %v408 = vmul.f32 %v376, %v306
      %v409 = vmul.f32 %v377, %v306
      %v410 = vmul.f32 %v378, %v306
      %v411 = vadd.f32 %v379, %v313
      %v412 = vadd.f32 %v380, %v313
      %v413 = vadd.f32 %v381, %v313
      %v414 = vadd.f32 %v382, %v313
      %v415 = vadd.f32 %v383, %v313
      %v416 = vadd.f32 %v384, %v313
      %v417 = vadd.f32 %v385, %v313
      %v418 = vadd.f32 %v386, %v313
      %v419 = vadd.f32 %v387, %v313
      %v420 = vadd.f32 %v388, %v313
      %v421 = vadd.f32 %v389, %v313
      %v422 = vadd.f32 %v390, %v313
      %v423 = vadd.f32 %v391, %v313
      %v424 = vadd.f32 %v392, %v313
      %v425 = vadd.f32 %v393, %v313
      %v426 = vadd.f32 %v394, %v313
      %v427 = vadd.f32 %v395, %v313
      %v428 = vadd.f32 %v396, %v313
      %v429 = vadd.f32 %v397, %v313
      %v430 = vadd.f32 %v398, %v313
      %v431 = vadd.f32 %v399, %v313
      %v432 = vadd.f32 %v400, %v313
      %v433 = vadd.f32 %v401, %v313
      %v434 = vadd.f32 %v402, %v313
      %v435 = vadd.f32 %v403, %v313
      %v436 = vadd.f32 %v404, %v313
      %v437 = vadd.f32 %v405, %v313
      %v438 = vadd.f32 %v406, %v313
      %v439 = vadd.f32 %v407, %v313
      %v440 = vadd.f32 %v408, %v313
      %v441 = vadd.f32 %v409, %v313
      %v442 = vadd.f32 %v410, %v313
      %v443 = vmax.f32 %v411, 0.0
      %v444 = vmax.f32 %v412, 0.0
      %v445 = vmax.f32 %v413, 0.0
      %v446 = vmax.f32 %v414, 0.0
      %v447 = vmax.f32 %v415, 0.0
      %v448 = vmax.f32 %v416, 0.0
      %v449 = vmax.f32 %v417, 0.0
      %v450 = vmax.f32 %v418, 0.0
      %v451 = vmax.f32 %v419, 0.0
      %v452 = vmax.f32 %v420, 0.0
      %v453 = vmax.f32 %v421, 0.0
      %v454 = vmax.f32 %v422, 0.0
      %v455 = vmax.f32 %v423, 0.0
      %v456 = vmax.f32 %v424, 0.0
      %v457 = vmax.f32 %v425, 0.0
      %v458 = vmax.f32 %v426, 0.0
      %v459 = vmax.f32 %v427, 0.0
      %v460 = vmax.f32 %v428, 0.0
      %v461 = vmax.f32 %v429, 0.0
      %v462 = vmax.f32 %v430, 0.0
      %v463 = vmax.f32 %v431, 0.0
      %v464 = vmax.f32 %v432, 0.0
      %v465 = vmax.f32 %v433, 0.0
      %v466 = vmax.f32 %v434, 0.0
      %v467 = vmax.f32 %v435, 0.0
      %v468 = vmax.f32 %v436, 0.0
      %v469 = vmax.f32 %v437, 0.0
      %v470 = vmax.f32 %v438, 0.0
      %v471 = vmax.f32 %v439, 0.0
      %v472 = vmax.f32 %v440, 0.0
      %v473 = vmax.f32 %v441, 0.0
      %v474 = vmax.f32 %v442, 0.0
      %v475 = vld [vmem:[%s2] sm:$0xff]
      %v476 = vld [vmem:[%s2 + $0x8] sm:$0xff]
      %v477 = vld [vmem:[%s2 + $0x18] sm:$0xff]
      %v478 = vld [vmem:[%s2 + $0x20] sm:$0xff]
      %v479 = vld [vmem:[%s2 + $0x30] sm:$0xff]
      %v480 = vld [vmem:[%s2 + $0x38] sm:$0xff]
      %v481 = vld [vmem:[%s2 + $0x48] sm:$0xff]
      %v482 = vld [vmem:[%s2 + $0x50] sm:$0xff]
      %v483 = vld [vmem:[%s2 + $0x60] sm:$0xff]
      %v484 = vld [vmem:[%s2 + $0x68] sm:$0xff]
      %v485 = vld [vmem:[%s2 + $0x78] sm:$0xff]
      %v486 = vld [vmem:[%s2 + $0x80] sm:$0xff]
      %v487 = vld [vmem:[%s2 + $0x90] sm:$0xff]
      %v488 = vld [vmem:[%s2 + $0x98] sm:$0xff]
      %v489 = vld [vmem:[%s2 + $0xa8] sm:$0xff]
      %v490 = vld [vmem:[%s2 + $0xb0] sm:$0xff]
      %v491 = vld [vmem:[%s2 + $0xc0] sm:$0xff]
      %v492 = vld [vmem:[%s2 + $0xc8] sm:$0xff]
      %v493 = vld [vmem:[%s2 + $0xd8] sm:$0xff]
      %v494 = vld [vmem:[%s2 + $0xe0] sm:$0xff]
      %v495 = vld [vmem:[%s2 + $0xf0] sm:$0xff]
      %v496 = vld [vmem:[%s2 + $0xf8] sm:$0xff]
      %v497 = vld [vmem:[%s2 + $0x108] sm:$0xff]
      %v498 = vld [vmem:[%s2 + $0x110] sm:$0xff]
      %v499 = vld [vmem:[%s2 + $0x120] sm:$0xff]
      %v500 = vld [vmem:[%s2 + $0x128] sm:$0xff]
      %v501 = vld [vmem:[%s2 + $0x138] sm:$0xff]
      %v502 = vld [vmem:[%s2 + $0x140] sm:$0xff]
      %v503 = vld [vmem:[%s2 + $0x150] sm:$0xff]
      %v504 = vld [vmem:[%s2 + $0x158] sm:$0xff]
      %v505 = vld [vmem:[%s2 + $0x168] sm:$0xff]
      %v506 = vld [vmem:[%s2 + $0x170] sm:$0xff]
      %v507 = vmul.f32 %v443, %v475
      %v508 = vmul.f32 %v444, %v476
      %v509 = vmul.f32 %v445, %v477
      %v510 = vmul.f32 %v446, %v478
      %v511 = vmul.f32 %v447, %v479
      %v512 = vmul.f32 %v448, %v480
      %v513 = vmul.f32 %v449, %v481
      %v514 = vmul.f32 %v450, %v482
      %v515 = vmul.f32 %v451, %v483
      %v516 = vmul.f32 %v452, %v484
      %v517 = vmul.f32 %v453, %v485
      %v518 = vmul.f32 %v454, %v486
      %v519 = vmul.f32 %v455, %v487
      %v520 = vmul.f32 %v456, %v488
      %v521 = vmul.f32 %v457, %v489
      %v522 = vmul.f32 %v458, %v490
      %v523 = vmul.f32 %v459, %v491
      %v524 = vmul.f32 %v460, %v492
      %v525 = vmul.f32 %v461, %v493
      %v526 = vmul.f32 %v462, %v494
      %v527 = vmul.f32 %v463, %v495
      %v528 = vmul.f32 %v464, %v496
      %v529 = vmul.f32 %v465, %v497
      %v530 = vmul.f32 %v466, %v498
      %v531 = vmul.f32 %v467, %v499
      %v532 = vmul.f32 %v468, %v500
      %v533 = vmul.f32 %v469, %v501
      %v534 = vmul.f32 %v470, %v502
      %v535 = vmul.f32 %v471, %v503
      %v536 = vmul.f32 %v472, %v504
      %v537 = vmul.f32 %v473, %v505
      %v538 = vmul.f32 %v474, %v506
      %v539 = vpack.c.bf16 %v508, %v507
      %v540 = vpack.c.bf16 %v510, %v509
      %v541 = vpack.c.bf16 %v512, %v511
      %v542 = vpack.c.bf16 %v514, %v513
      %v543 = vpack.c.bf16 %v516, %v515
      %v544 = vpack.c.bf16 %v518, %v517
      %v545 = vpack.c.bf16 %v520, %v519
      %v546 = vpack.c.bf16 %v522, %v521
      %v547 = vpack.c.bf16 %v524, %v523
      %v548 = vpack.c.bf16 %v526, %v525
      %v549 = vpack.c.bf16 %v528, %v527
      %v550 = vpack.c.bf16 %v530, %v529
      %v551 = vpack.c.bf16 %v532, %v531
      %v552 = vpack.c.bf16 %v534, %v533
      %v553 = vpack.c.bf16 %v536, %v535
      %v554 = vpack.c.bf16 %v538, %v537
      %v555 = vld [vmem:[%s1] sm:$0xf]
      %v556 = vld [vmem:[%s1 + $0x4] sm:$0xf]
      %v557 = vld [vmem:[%s1 + $0x8] sm:$0xf]
      %v558 = vld [vmem:[%s1 + $0xc] sm:$0xf]
      %v559 = vld [vmem:[%s1 + $0x10] sm:$0xf]
      %v560 = vld [vmem:[%s1 + $0x14] sm:$0xf]
      %v561 = vld [vmem:[%s1 + $0x18] sm:$0xf]
      %v562 = vld [vmem:[%s1 + $0x1c] sm:$0xf]
      %v563 = vld [vmem:[%s1 + $0x20] sm:$0xf]
      %v564 = vld [vmem:[%s1 + $0x24] sm:$0xf]
      %v565 = vld [vmem:[%s1 + $0x28] sm:$0xf]
      %v566 = vld [vmem:[%s1 + $0x2c] sm:$0xf]
      %v567 = vld [vmem:[%s1 + $0x30] sm:$0xf]
      %v568 = vld [vmem:[%s1 + $0x34] sm:$0xf]
      %v569 = vld [vmem:[%s1 + $0x38] sm:$0xf]
      %v570 = vld [vmem:[%s1 + $0x3c] sm:$0xf]
      %v571 = vld [vmem:[%s286 + $0x8] sm:$0x1]
      %v572 = vld [vmem:[%s286 + $0x14] sm:$0x1]
      %v573 = vld [vmem:[%s286 + $0x20] sm:$0x1]
      %v574 = vld [vmem:[%s286 + $0x2c] sm:$0x1]
      %v575 = vld [vmem:[%s286 + $0x38] sm:$0x1]
      %v576 = vld [vmem:[%s286 + $0x44] sm:$0x1]
      %v577 = vld [vmem:[%s286 + $0x50] sm:$0x1]
      %v578 = vld [vmem:[%s286 + $0x5c] sm:$0x1]
      %v579 = vld [vmem:[%s286 + $0x68] sm:$0x1]
      %v580 = vld [vmem:[%s286 + $0x74] sm:$0x1]
      %v581 = vld [vmem:[%s286 + $0x80] sm:$0x1]
      %v582 = vld [vmem:[%s286 + $0x8c] sm:$0x1]
      %v583 = vld [vmem:[%s286 + $0x98] sm:$0x1]
      %v584 = vld [vmem:[%s286 + $0xa4] sm:$0x1]
      %v585 = vld [vmem:[%s286 + $0xb0] sm:$0x1]
      %v586 = vld [vmem:[%s286 + $0xbc] sm:$0x1]
      %v587 = vunpack.c.l.bf16 %v571
      %v588 = vunpack.c.l.bf16 %v572
      %v589 = vunpack.c.l.bf16 %v573
      %v590 = vunpack.c.l.bf16 %v574
      %v591 = vunpack.c.l.bf16 %v575
      %v592 = vunpack.c.l.bf16 %v576
      %v593 = vunpack.c.l.bf16 %v577
      %v594 = vunpack.c.l.bf16 %v578
      %v595 = vunpack.c.l.bf16 %v579
      %v596 = vunpack.c.l.bf16 %v580
      %v597 = vunpack.c.l.bf16 %v581
      %v598 = vunpack.c.l.bf16 %v582
      %v599 = vunpack.c.l.bf16 %v583
      %v600 = vunpack.c.l.bf16 %v584
      %v601 = vunpack.c.l.bf16 %v585
      %v602 = vunpack.c.l.bf16 %v586
      %v603 = vmul.f32 %v587, %v306
      %v604 = vmul.f32 %v588, %v306
      %v605 = vmul.f32 %v589, %v306
      %v606 = vmul.f32 %v590, %v306
      %v607 = vmul.f32 %v591, %v306
      %v608 = vmul.f32 %v592, %v306
      %v609 = vmul.f32 %v593, %v306
      %v610 = vmul.f32 %v594, %v306
      %v611 = vmul.f32 %v595, %v306
      %v612 = vmul.f32 %v596, %v306
      %v613 = vmul.f32 %v597, %v306
      %v614 = vmul.f32 %v598, %v306
      %v615 = vmul.f32 %v599, %v306
      %v616 = vmul.f32 %v600, %v306
      %v617 = vmul.f32 %v601, %v306
      %v618 = vmul.f32 %v602, %v306
      %v619 = vadd.f32 %v603, %v313
      %v620 = vadd.f32 %v604, %v313
      %v621 = vadd.f32 %v605, %v313
      %v622 = vadd.f32 %v606, %v313
      %v623 = vadd.f32 %v607, %v313
      %v624 = vadd.f32 %v608, %v313
      %v625 = vadd.f32 %v609, %v313
      %v626 = vadd.f32 %v610, %v313
      %v627 = vadd.f32 %v611, %v313
      %v628 = vadd.f32 %v612, %v313
      %v629 = vadd.f32 %v613, %v313
      %v630 = vadd.f32 %v614, %v313
      %v631 = vadd.f32 %v615, %v313
      %v632 = vadd.f32 %v616, %v313
      %v633 = vadd.f32 %v617, %v313
      %v634 = vadd.f32 %v618, %v313
      %v635 = vmax.f32 %v619, 0.0
      %v636 = vmax.f32 %v620, 0.0
      %v637 = vmax.f32 %v621, 0.0
      %v638 = vmax.f32 %v622, 0.0
      %v639 = vmax.f32 %v623, 0.0
      %v640 = vmax.f32 %v624, 0.0
      %v641 = vmax.f32 %v625, 0.0
      %v642 = vmax.f32 %v626, 0.0
      %v643 = vmax.f32 %v627, 0.0
      %v644 = vmax.f32 %v628, 0.0
      %v645 = vmax.f32 %v629, 0.0
      %v646 = vmax.f32 %v630, 0.0
      %v647 = vmax.f32 %v631, 0.0
      %v648 = vmax.f32 %v632, 0.0
      %v649 = vmax.f32 %v633, 0.0
      %v650 = vmax.f32 %v634, 0.0
      %v651 = vld [vmem:[%s2 + $0x1] sm:$0xff]
      %v652 = vld [vmem:[%s2 + $0x9] sm:$0xff]
      %v653 = vld [vmem:[%s2 + $0x19] sm:$0xff]
      %v654 = vld [vmem:[%s2 + $0x21] sm:$0xff]
      %v655 = vld [vmem:[%s2 + $0x31] sm:$0xff]
      %v656 = vld [vmem:[%s2 + $0x39] sm:$0xff]
      %v657 = vld [vmem:[%s2 + $0x49] sm:$0xff]
      %v658 = vld [vmem:[%s2 + $0x51] sm:$0xff]
      %v659 = vld [vmem:[%s2 + $0x61] sm:$0xff]
      %v660 = vld [vmem:[%s2 + $0x69] sm:$0xff]
      %v661 = vld [vmem:[%s2 + $0x79] sm:$0xff]
      %v662 = vld [vmem:[%s2 + $0x81] sm:$0xff]
      %v663 = vld [vmem:[%s2 + $0x91] sm:$0xff]
      %v664 = vld [vmem:[%s2 + $0x99] sm:$0xff]
      %v665 = vld [vmem:[%s2 + $0xa9] sm:$0xff]
      %v666 = vld [vmem:[%s2 + $0xb1] sm:$0xff]
      %v667 = vld [vmem:[%s2 + $0xc1] sm:$0xff]
      %v668 = vld [vmem:[%s2 + $0xc9] sm:$0xff]
      %v669 = vld [vmem:[%s2 + $0xd9] sm:$0xff]
      %v670 = vld [vmem:[%s2 + $0xe1] sm:$0xff]
      %v671 = vld [vmem:[%s2 + $0xf1] sm:$0xff]
      %v672 = vld [vmem:[%s2 + $0xf9] sm:$0xff]
      %v673 = vld [vmem:[%s2 + $0x109] sm:$0xff]
      %v674 = vld [vmem:[%s2 + $0x111] sm:$0xff]
      %v675 = vld [vmem:[%s2 + $0x121] sm:$0xff]
      %v676 = vld [vmem:[%s2 + $0x129] sm:$0xff]
      %v677 = vld [vmem:[%s2 + $0x139] sm:$0xff]
      %v678 = vld [vmem:[%s2 + $0x141] sm:$0xff]
      %v679 = vld [vmem:[%s2 + $0x151] sm:$0xff]
      %v680 = vld [vmem:[%s2 + $0x159] sm:$0xff]
      %v681 = vld [vmem:[%s2 + $0x169] sm:$0xff]
      %v682 = vld [vmem:[%s2 + $0x171] sm:$0xff]
      %vm715 = vcmask 1040384
      %v716 = vrot.slane %v651, 7
      %v717 = vrot.slane %v652, 7
      %v718 = vsel %vm715, %v716, %v717
      %v719 = vrot.slane %v653, 7
      %v720 = vrot.slane %v654, 7
      %v721 = vsel %vm715, %v719, %v720
      %v722 = vrot.slane %v655, 7
      %v723 = vrot.slane %v656, 7
      %v724 = vsel %vm715, %v722, %v723
      %v725 = vrot.slane %v657, 7
      %v726 = vrot.slane %v658, 7
      %v727 = vsel %vm715, %v725, %v726
      %v728 = vrot.slane %v659, 7
      %v729 = vrot.slane %v660, 7
      %v730 = vsel %vm715, %v728, %v729
      %v731 = vrot.slane %v661, 7
      %v732 = vrot.slane %v662, 7
      %v733 = vsel %vm715, %v731, %v732
      %v734 = vrot.slane %v663, 7
      %v735 = vrot.slane %v664, 7
      %v736 = vsel %vm715, %v734, %v735
      %v737 = vrot.slane %v665, 7
      %v738 = vrot.slane %v666, 7
      %v739 = vsel %vm715, %v737, %v738
      %v740 = vrot.slane %v667, 7
      %v741 = vrot.slane %v668, 7
      %v742 = vsel %vm715, %v740, %v741
      %v743 = vrot.slane %v669, 7
      %v744 = vrot.slane %v670, 7
      %v745 = vsel %vm715, %v743, %v744
      %v746 = vrot.slane %v671, 7
      %v747 = vrot.slane %v672, 7
      %v748 = vsel %vm715, %v746, %v747
      %v749 = vrot.slane %v673, 7
      %v750 = vrot.slane %v674, 7
      %v751 = vsel %vm715, %v749, %v750
      %v752 = vrot.slane %v675, 7
      %v753 = vrot.slane %v676, 7
      %v754 = vsel %vm715, %v752, %v753
      %v755 = vrot.slane %v677, 7
      %v756 = vrot.slane %v678, 7
      %v757 = vsel %vm715, %v755, %v756
      %v758 = vrot.slane %v679, 7
      %v759 = vrot.slane %v680, 7
      %v760 = vsel %vm715, %v758, %v759
      %v761 = vrot.slane %v681, 7
      %v762 = vrot.slane %v682, 7
      %v763 = vsel %vm715, %v761, %v762
      %v812 = vmul.f32 %v443, %v716
      %v813 = vmul.f32 %v444, %v718
      %v814 = vmul.f32 %v635, %v717
      %v815 = vmul.f32 %v445, %v719
      %v816 = vmul.f32 %v446, %v721
      %v817 = vmul.f32 %v636, %v720
      %v818 = vmul.f32 %v447, %v722
      %v819 = vmul.f32 %v448, %v724
      %v820 = vmul.f32 %v637, %v723
      %v821 = vmul.f32 %v449, %v725
      %v822 = vmul.f32 %v450, %v727
      %v823 = vmul.f32 %v638, %v726
      %v824 = vmul.f32 %v451, %v728
      %v825 = vmul.f32 %v452, %v730
      %v826 = vmul.f32 %v639, %v729
      %v827 = vmul.f32 %v453, %v731
      %v828 = vmul.f32 %v454, %v733
      %v829 = vmul.f32 %v640, %v732
      %v830 = vmul.f32 %v455, %v734
      %v831 = vmul.f32 %v456, %v736
      %v832 = vmul.f32 %v641, %v735
      %v833 = vmul.f32 %v457, %v737
      %v834 = vmul.f32 %v458, %v739
      %v835 = vmul.f32 %v642, %v738
      %v836 = vmul.f32 %v459, %v740
      %v837 = vmul.f32 %v460, %v742
      %v838 = vmul.f32 %v643, %v741
      %v839 = vmul.f32 %v461, %v743
      %v840 = vmul.f32 %v462, %v745
      %v841 = vmul.f32 %v644, %v744
      %v842 = vmul.f32 %v463, %v746
      %v843 = vmul.f32 %v464, %v748
      %v844 = vmul.f32 %v645, %v747
      %v845 = vmul.f32 %v465, %v749
      %v846 = vmul.f32 %v466, %v751
      %v847 = vmul.f32 %v646, %v750
      %v848 = vmul.f32 %v467, %v752
      %v849 = vmul.f32 %v468, %v754
      %v850 = vmul.f32 %v647, %v753
      %v851 = vmul.f32 %v469, %v755
      %v852 = vmul.f32 %v470, %v757
      %v853 = vmul.f32 %v648, %v756
      %v854 = vmul.f32 %v471, %v758
      %v855 = vmul.f32 %v472, %v760
      %v856 = vmul.f32 %v649, %v759
      %v857 = vmul.f32 %v473, %v761
      %v858 = vmul.f32 %v474, %v763
      %v859 = vmul.f32 %v650, %v762
      %v860 = vpack.c.bf16 %v813, %v812
      %v861 = vpack.c.bf16 %v814, %v814
      %v862 = vpack.c.bf16 %v816, %v815
      %v863 = vpack.c.bf16 %v817, %v817
      %v864 = vpack.c.bf16 %v819, %v818
      %v865 = vpack.c.bf16 %v820, %v820
      %v866 = vpack.c.bf16 %v822, %v821
      %v867 = vpack.c.bf16 %v823, %v823
      %v868 = vpack.c.bf16 %v825, %v824
      %v869 = vpack.c.bf16 %v826, %v826
      %v870 = vpack.c.bf16 %v828, %v827
      %v871 = vpack.c.bf16 %v829, %v829
      %v872 = vpack.c.bf16 %v831, %v830
      %v873 = vpack.c.bf16 %v832, %v832
      %v874 = vpack.c.bf16 %v834, %v833
      %v875 = vpack.c.bf16 %v835, %v835
      %v876 = vpack.c.bf16 %v837, %v836
      %v877 = vpack.c.bf16 %v838, %v838
      %v878 = vpack.c.bf16 %v840, %v839
      %v879 = vpack.c.bf16 %v841, %v841
      %v880 = vpack.c.bf16 %v843, %v842
      %v881 = vpack.c.bf16 %v844, %v844
      %v882 = vpack.c.bf16 %v846, %v845
      %v883 = vpack.c.bf16 %v847, %v847
      %v884 = vpack.c.bf16 %v849, %v848
      %v885 = vpack.c.bf16 %v850, %v850
      %v886 = vpack.c.bf16 %v852, %v851
      %v887 = vpack.c.bf16 %v853, %v853
      %v888 = vpack.c.bf16 %v855, %v854
      %v889 = vpack.c.bf16 %v856, %v856
      %v890 = vpack.c.bf16 %v858, %v857
      %v891 = vpack.c.bf16 %v859, %v859
      %vm892 = vsmask.f32 7424
      %v894 = vshrl.u32 %v860, 16
      %v896 = vshll.u32 %v860, 16
      %v898 = vrot.slane %v896, 1
      %v899 = vor.u32 %v894, %v898
      %v901 = vshll.u32 %v861, 16
      %v903 = vrot.slane %v901, 1
      %v904 = vsel %vm892, %v899, %v903
      %v906 = vshrl.u32 %v862, 16
      %v908 = vshll.u32 %v862, 16
      %v910 = vrot.slane %v908, 1
      %v911 = vor.u32 %v906, %v910
      %v913 = vshll.u32 %v863, 16
      %v915 = vrot.slane %v913, 1
      %v916 = vsel %vm892, %v911, %v915
      %v918 = vshrl.u32 %v864, 16
      %v920 = vshll.u32 %v864, 16
      %v922 = vrot.slane %v920, 1
      %v923 = vor.u32 %v918, %v922
      %v925 = vshll.u32 %v865, 16
      %v927 = vrot.slane %v925, 1
      %v928 = vsel %vm892, %v923, %v927
      %v930 = vshrl.u32 %v866, 16
      %v932 = vshll.u32 %v866, 16
      %v934 = vrot.slane %v932, 1
      %v935 = vor.u32 %v930, %v934
      %v937 = vshll.u32 %v867, 16
      %v939 = vrot.slane %v937, 1
      %v940 = vsel %vm892, %v935, %v939
      %v942 = vshrl.u32 %v868, 16
      %v944 = vshll.u32 %v868, 16
      %v946 = vrot.slane %v944, 1
      %v947 = vor.u32 %v942, %v946
      %v949 = vshll.u32 %v869, 16
      %v951 = vrot.slane %v949, 1
      %v952 = vsel %vm892, %v947, %v951
      %v954 = vshrl.u32 %v870, 16
      %v956 = vshll.u32 %v870, 16
      %v958 = vrot.slane %v956, 1
      %v959 = vor.u32 %v954, %v958
      %v961 = vshll.u32 %v871, 16
      %v963 = vrot.slane %v961, 1
      %v964 = vsel %vm892, %v959, %v963
      %v966 = vshrl.u32 %v872, 16
      %v968 = vshll.u32 %v872, 16
      %v970 = vrot.slane %v968, 1
      %v971 = vor.u32 %v966, %v970
      %v973 = vshll.u32 %v873, 16
      %v975 = vrot.slane %v973, 1
      %v976 = vsel %vm892, %v971, %v975
      %v978 = vshrl.u32 %v874, 16
      %v980 = vshll.u32 %v874, 16
      %v982 = vrot.slane %v980, 1
      %v983 = vor.u32 %v978, %v982
      %v985 = vshll.u32 %v875, 16
      %v987 = vrot.slane %v985, 1
      %v988 = vsel %vm892, %v983, %v987
      %v990 = vshrl.u32 %v876, 16
      %v992 = vshll.u32 %v876, 16
      %v994 = vrot.slane %v992, 1
      %v995 = vor.u32 %v990, %v994
      %v997 = vshll.u32 %v877, 16
      %v999 = vrot.slane %v997, 1
      %v1000 = vsel %vm892, %v995, %v999
      %v1002 = vshrl.u32 %v878, 16
      %v1004 = vshll.u32 %v878, 16
      %v1006 = vrot.slane %v1004, 1
      %v1007 = vor.u32 %v1002, %v1006
      %v1009 = vshll.u32 %v879, 16
      %v1011 = vrot.slane %v1009, 1
      %v1012 = vsel %vm892, %v1007, %v1011
      %v1014 = vshrl.u32 %v880, 16
      %v1016 = vshll.u32 %v880, 16
      %v1018 = vrot.slane %v1016, 1
      %v1019 = vor.u32 %v1014, %v1018
      %v1021 = vshll.u32 %v881, 16
      %v1023 = vrot.slane %v1021, 1
      %v1024 = vsel %vm892, %v1019, %v1023
      %v1026 = vshrl.u32 %v882, 16
      %v1028 = vshll.u32 %v882, 16
      %v1030 = vrot.slane %v1028, 1
      %v1031 = vor.u32 %v1026, %v1030
      %v1033 = vshll.u32 %v883, 16
      %v1035 = vrot.slane %v1033, 1
      %v1036 = vsel %vm892, %v1031, %v1035
      %v1038 = vshrl.u32 %v884, 16
      %v1040 = vshll.u32 %v884, 16
      %v1042 = vrot.slane %v1040, 1
      %v1043 = vor.u32 %v1038, %v1042
      %v1045 = vshll.u32 %v885, 16
      %v1047 = vrot.slane %v1045, 1
      %v1048 = vsel %vm892, %v1043, %v1047
      %v1050 = vshrl.u32 %v886, 16
      %v1052 = vshll.u32 %v886, 16
      %v1054 = vrot.slane %v1052, 1
      %v1055 = vor.u32 %v1050, %v1054
      %v1057 = vshll.u32 %v887, 16
      %v1059 = vrot.slane %v1057, 1
      %v1060 = vsel %vm892, %v1055, %v1059
      %v1062 = vshrl.u32 %v888, 16
      %v1064 = vshll.u32 %v888, 16
      %v1066 = vrot.slane %v1064, 1
      %v1067 = vor.u32 %v1062, %v1066
      %v1069 = vshll.u32 %v889, 16
      %v1071 = vrot.slane %v1069, 1
      %v1072 = vsel %vm892, %v1067, %v1071
      %v1074 = vshrl.u32 %v890, 16
      %v1076 = vshll.u32 %v890, 16
      %v1078 = vrot.slane %v1076, 1
      %v1079 = vor.u32 %v1074, %v1078
      %v1081 = vshll.u32 %v891, 16
      %v1083 = vrot.slane %v1081, 1
      %v1084 = vsel %vm892, %v1079, %v1083
      %s1101 = scalar_lea.vmem %s1, 64
      %v1102 = vld [vmem:[%s1101] sm:$0xf]
      %v1103 = vld [vmem:[%s1101 + $0x4] sm:$0xf]
      %v1104 = vld [vmem:[%s1101 + $0x8] sm:$0xf]
      %v1105 = vld [vmem:[%s1101 + $0xc] sm:$0xf]
      %v1106 = vld [vmem:[%s1101 + $0x10] sm:$0xf]
      %v1107 = vld [vmem:[%s1101 + $0x14] sm:$0xf]
      %v1108 = vld [vmem:[%s1101 + $0x18] sm:$0xf]
      %v1109 = vld [vmem:[%s1101 + $0x1c] sm:$0xf]
      %v1110 = vld [vmem:[%s1101 + $0x20] sm:$0xf]
      %v1111 = vld [vmem:[%s1101 + $0x24] sm:$0xf]
      %v1112 = vld [vmem:[%s1101 + $0x28] sm:$0xf]
      %v1113 = vld [vmem:[%s1101 + $0x2c] sm:$0xf]
      %v1114 = vld [vmem:[%s1101 + $0x30] sm:$0xf]
      %v1115 = vld [vmem:[%s1101 + $0x34] sm:$0xf]
      %v1116 = vld [vmem:[%s1101 + $0x38] sm:$0xf]
      %v1117 = vld [vmem:[%s1101 + $0x3c] sm:$0xf]
      %v1134 = vunpack.c.l.b16 %v1102
      %v1135 = vunpack.c.l.b16 %v1103
      %v1136 = vunpack.c.l.b16 %v1104
      %v1137 = vunpack.c.l.b16 %v1105
      %v1138 = vunpack.c.l.b16 %v1106
      %v1139 = vunpack.c.l.b16 %v1107
      %v1140 = vunpack.c.l.b16 %v1108
      %v1141 = vunpack.c.l.b16 %v1109
      %v1142 = vunpack.c.l.b16 %v1110
      %v1143 = vunpack.c.l.b16 %v1111
      %v1144 = vunpack.c.l.b16 %v1112
      %v1145 = vunpack.c.l.b16 %v1113
      %v1146 = vunpack.c.l.b16 %v1114
      %v1147 = vunpack.c.l.b16 %v1115
      %v1148 = vunpack.c.l.b16 %v1116
      %v1149 = vunpack.c.l.b16 %v1117
      %v1150 = vpack.c.b16 %v1135, %v1134
      %v1151 = vpack.c.b16 %v1137, %v1136
      %v1152 = vpack.c.b16 %v1139, %v1138
      %v1153 = vpack.c.b16 %v1141, %v1140
      %v1154 = vpack.c.b16 %v1143, %v1142
      %v1155 = vpack.c.b16 %v1145, %v1144
      %v1156 = vpack.c.b16 %v1147, %v1146
      %v1157 = vpack.c.b16 %v1149, %v1148
      %1166 = vmatprep.subr.bf16.mxu0 0
      %1167 = vmatpush1.bf16.msra.mxu0 %v1150
      %1168 = vmatprep.subr.bf16.mxu0 0
      %1169 = vmatpush1.bf16.msra.mxu0 %v1151
      %1170 = vmatprep.subr.bf16.mxu0 0
      %1171 = vmatpush1.bf16.msra.mxu0 %v1152
      %1172 = vmatprep.subr.bf16.mxu0 0
      %1173 = vmatpush1.bf16.msra.mxu0 %v1153
      %1174 = vmatprep.subr.bf16.mxu0 0
      %1175 = vmatpush1.bf16.msra.mxu0 %v1154
      %1176 = vmatprep.subr.bf16.mxu0 0
      %1177 = vmatpush1.bf16.msra.mxu0 %v1155
      %1178 = vmatprep.subr.bf16.mxu0 0
      %1179 = vmatpush1.bf16.msra.mxu0 %v1156
      %1180 = vmatprep.subr.bf16.mxu0 0
      %1181 = vmatpush1.bf16.msra.mxu0 %v1157
      %1182 = vmatprep.subr.bf16.mxu0 0
      %1183 = vmatpush1.bf16.msra.mxu0 0
      %1184 = vmatprep.subr.bf16.mxu0 0
      %1185 = vmatpush1.bf16.msra.mxu0 0
      %1186 = vmatprep.subr.bf16.mxu0 0
      %1187 = vmatpush1.bf16.msra.mxu0 0
      %1188 = vmatprep.subr.bf16.mxu0 0
      %1189 = vmatpush1.bf16.msra.mxu0 0
      %1190 = vmatprep.subr.bf16.mxu0 0
      %1191 = vmatpush1.bf16.msra.mxu0 0
      %1192 = vmatprep.subr.bf16.mxu0 0
      %1193 = vmatpush1.bf16.msra.mxu0 0
      %1194 = vmatprep.subr.bf16.mxu0 0
      %1195 = vmatpush1.bf16.msra.mxu0 0
      %1196 = vmatprep.subr.bf16.mxu0 0
      %1197 = vmatpush1.bf16.msra.mxu0 0
      %1198 = vmatprep.mubr.bf16.mxu0 0
      %1199 = vmatmul.mubr.bf16.gmra.mrb[0].mxu0 %v904
      %v1200 = vpop.f32.mrb[0].mxu0
      %v1201 = vadd.f32 0.0, %v1200
      %v1202 = vpop.f32.mrb[0].mxu0
      %v1203 = vpop.f32.mrb[0].mxu0
      %v1204 = vadd.f32 0.0, %v1203
      %v1205 = vpop.f32.mrb[0].mxu0
      %1206 = vmatprep.mubr.bf16.mxu0 0
      %1207 = vmatmul.mubr.bf16.gmra.mrb[0].mxu0 %v916
      %v1208 = vpop.f32.mrb[0].mxu0
      %v1209 = vadd.f32 0.0, %v1208
      %v1210 = vpop.f32.mrb[0].mxu0
      %v1211 = vpop.f32.mrb[0].mxu0
      %v1212 = vadd.f32 0.0, %v1211
      %v1213 = vpop.f32.mrb[0].mxu0
      %1214 = vmatprep.mubr.bf16.mxu0 0
      %1215 = vmatmul.mubr.bf16.gmra.mrb[0].mxu0 %v928
      %v1216 = vpop.f32.mrb[0].mxu0
      %v1217 = vadd.f32 0.0, %v1216
      %v1218 = vpop.f32.mrb[0].mxu0
      %v1219 = vpop.f32.mrb[0].mxu0
      %v1220 = vadd.f32 0.0, %v1219
      %v1221 = vpop.f32.mrb[0].mxu0
      %1222 = vmatprep.mubr.bf16.mxu0 0
      %1223 = vmatmul.mubr.bf16.gmra.mrb[0].mxu0 %v940
      %v1224 = vpop.f32.mrb[0].mxu0
      %v1225 = vadd.f32 0.0, %v1224
      %v1226 = vpop.f32.mrb[0].mxu0
      %v1227 = vpop.f32.mrb[0].mxu0
      %v1228 = vadd.f32 0.0, %v1227
      %v1229 = vpop.f32.mrb[0].mxu0
      %1230 = vmatprep.mubr.bf16.mxu0 0
      %1231 = vmatmul.mubr.bf16.gmra.mrb[0].mxu0 %v952
      %v1232 = vpop.f32.mrb[0].mxu0
      %v1233 = vadd.f32 0.0, %v1232
      %v1234 = vpop.f32.mrb[0].mxu0
      %v1235 = vpop.f32.mrb[0].mxu0
      %v1236 = vadd.f32 0.0, %v1235
      %v1237 = vpop.f32.mrb[0].mxu0
      %1238 = vmatprep.mubr.bf16.mxu0 0
      %1239 = vmatmul.mubr.bf16.gmra.mrb[0].mxu0 %v964
      %v1240 = vpop.f32.mrb[0].mxu0
      %v1241 = vadd.f32 0.0, %v1240
      %v1242 = vpop.f32.mrb[0].mxu0
      %v1243 = vpop.f32.mrb[0].mxu0
      %v1244 = vadd.f32 0.0, %v1243
      %v1245 = vpop.f32.mrb[0].mxu0
      %1246 = vmatprep.mubr.bf16.mxu0 0
      %1247 = vmatmul.mubr.bf16.gmra.mrb[0].mxu0 %v976
      %v1248 = vpop.f32.mrb[0].mxu0
      %v1249 = vadd.f32 0.0, %v1248
      %v1250 = vpop.f32.mrb[0].mxu0
      %v1251 = vpop.f32.mrb[0].mxu0
      %v1252 = vadd.f32 0.0, %v1251
      %v1253 = vpop.f32.mrb[0].mxu0
      %1254 = vmatprep.mubr.bf16.mxu0 0
      %1255 = vmatmul.mubr.bf16.gmra.mrb[0].mxu0 %v988
      %v1256 = vpop.f32.mrb[0].mxu0
      %v1257 = vadd.f32 0.0, %v1256
      %v1258 = vpop.f32.mrb[0].mxu0
      %v1259 = vpop.f32.mrb[0].mxu0
      %v1260 = vadd.f32 0.0, %v1259
      %v1261 = vpop.f32.mrb[0].mxu0
      %1262 = vmatprep.mubr.bf16.mxu0 0
      %1263 = vmatmul.mubr.bf16.gmra.mrb[0].mxu0 %v1000
      %v1264 = vpop.f32.mrb[0].mxu0
      %v1265 = vadd.f32 0.0, %v1264
      %v1266 = vpop.f32.mrb[0].mxu0
      %v1267 = vpop.f32.mrb[0].mxu0
      %v1268 = vadd.f32 0.0, %v1267
      %v1269 = vpop.f32.mrb[0].mxu0
      %1270 = vmatprep.mubr.bf16.mxu0 0
      %1271 = vmatmul.mubr.bf16.gmra.mrb[0].mxu0 %v1012
      %v1272 = vpop.f32.mrb[0].mxu0
      %v1273 = vadd.f32 0.0, %v1272
      %v1274 = vpop.f32.mrb[0].mxu0
      %v1275 = vpop.f32.mrb[0].mxu0
      %v1276 = vadd.f32 0.0, %v1275
      %v1277 = vpop.f32.mrb[0].mxu0
      %1278 = vmatprep.mubr.bf16.mxu0 0
      %1279 = vmatmul.mubr.bf16.gmra.mrb[0].mxu0 %v1024
      %v1280 = vpop.f32.mrb[0].mxu0
      %v1281 = vadd.f32 0.0, %v1280
      %v1282 = vpop.f32.mrb[0].mxu0
      %v1283 = vpop.f32.mrb[0].mxu0
      %v1284 = vadd.f32 0.0, %v1283
      %v1285 = vpop.f32.mrb[0].mxu0
      %1286 = vmatprep.mubr.bf16.mxu0 0
      %1287 = vmatmul.mubr.bf16.gmra.mrb[0].mxu0 %v1036
      %v1288 = vpop.f32.mrb[0].mxu0
      %v1289 = vadd.f32 0.0, %v1288
      %v1290 = vpop.f32.mrb[0].mxu0
      %v1291 = vpop.f32.mrb[0].mxu0
      %v1292 = vadd.f32 0.0, %v1291
      %v1293 = vpop.f32.mrb[0].mxu0
      %1294 = vmatprep.mubr.bf16.mxu0 0
      %1295 = vmatmul.mubr.bf16.gmra.mrb[0].mxu0 %v1048
      %v1296 = vpop.f32.mrb[0].mxu0
      %v1297 = vadd.f32 0.0, %v1296
      %v1298 = vpop.f32.mrb[0].mxu0
      %v1299 = vpop.f32.mrb[0].mxu0
      %v1300 = vadd.f32 0.0, %v1299
      %v1301 = vpop.f32.mrb[0].mxu0
      %1302 = vmatprep.mubr.bf16.mxu0 0
      %1303 = vmatmul.mubr.bf16.gmra.mrb[0].mxu0 %v1060
      %v1304 = vpop.f32.mrb[0].mxu0
      %v1305 = vadd.f32 0.0, %v1304
      %v1306 = vpop.f32.mrb[0].mxu0
      %v1307 = vpop.f32.mrb[0].mxu0
      %v1308 = vadd.f32 0.0, %v1307
      %v1309 = vpop.f32.mrb[0].mxu0
      %1310 = vmatprep.mubr.bf16.mxu0 0
      %1311 = vmatmul.mubr.bf16.gmra.mrb[0].mxu0 %v1072
      %v1312 = vpop.f32.mrb[0].mxu0
      %v1313 = vadd.f32 0.0, %v1312
      %v1314 = vpop.f32.mrb[0].mxu0
      %v1315 = vpop.f32.mrb[0].mxu0
      %v1316 = vadd.f32 0.0, %v1315
      %v1317 = vpop.f32.mrb[0].mxu0
      %1318 = vmatprep.mubr.bf16.mxu0 0
      %1319 = vmatmul.mubr.bf16.gmra.mrb[0].mxu0 %v1084
      %v1320 = vpop.f32.mrb[0].mxu0
      %v1321 = vadd.f32 0.0, %v1320
      %v1322 = vpop.f32.mrb[0].mxu0
      %v1323 = vpop.f32.mrb[0].mxu0
      %v1324 = vadd.f32 0.0, %v1323
      %v1325 = vpop.f32.mrb[0].mxu0
      %1326 = vdwg.mxu0
      %v1343 = vunpack.c.l.b16 %v555
      %v1344 = vunpack.c.l.b16 %v556
      %v1345 = vunpack.c.l.b16 %v557
      %v1346 = vunpack.c.l.b16 %v558
      %v1347 = vunpack.c.l.b16 %v559
      %v1348 = vunpack.c.l.b16 %v560
      %v1349 = vunpack.c.l.b16 %v561
      %v1350 = vunpack.c.l.b16 %v562
      %v1351 = vunpack.c.l.b16 %v563
      %v1352 = vunpack.c.l.b16 %v564
      %v1353 = vunpack.c.l.b16 %v565
      %v1354 = vunpack.c.l.b16 %v566
      %v1355 = vunpack.c.l.b16 %v567
      %v1356 = vunpack.c.l.b16 %v568
      %v1357 = vunpack.c.l.b16 %v569
      %v1358 = vunpack.c.l.b16 %v570
      %v1359 = vpack.c.b16 %v1344, %v1343
      %v1360 = vpack.c.b16 %v1346, %v1345
      %v1361 = vpack.c.b16 %v1348, %v1347
      %v1362 = vpack.c.b16 %v1350, %v1349
      %v1363 = vpack.c.b16 %v1352, %v1351
      %v1364 = vpack.c.b16 %v1354, %v1353
      %v1365 = vpack.c.b16 %v1356, %v1355
      %v1366 = vpack.c.b16 %v1358, %v1357
      %1375 = vmatprep.subr.bf16.mxu0 0
      %1376 = vmatpush1.bf16.msra.mxu0 %v1359
      %1377 = vmatprep.subr.bf16.mxu0 0
      %1378 = vmatpush1.bf16.msra.mxu0 %v1360
      %1379 = vmatprep.subr.bf16.mxu0 0
      %1380 = vmatpush1.bf16.msra.mxu0 %v1361
      %1381 = vmatprep.subr.bf16.mxu0 0
      %1382 = vmatpush1.bf16.msra.mxu0 %v1362
      %1383 = vmatprep.subr.bf16.mxu0 0
      %1384 = vmatpush1.bf16.msra.mxu0 %v1363
      %1385 = vmatprep.subr.bf16.mxu0 0
      %1386 = vmatpush1.bf16.msra.mxu0 %v1364
      %1387 = vmatprep.subr.bf16.mxu0 0
      %1388 = vmatpush1.bf16.msra.mxu0 %v1365
      %1389 = vmatprep.subr.bf16.mxu0 0
      %1390 = vmatpush1.bf16.msra.mxu0 %v1366
      %1391 = vmatprep.subr.bf16.mxu0 0
      %1392 = vmatpush1.bf16.msra.mxu0 0
      %1393 = vmatprep.subr.bf16.mxu0 0
      %1394 = vmatpush1.bf16.msra.mxu0 0
      %1395 = vmatprep.subr.bf16.mxu0 0
      %1396 = vmatpush1.bf16.msra.mxu0 0
      %1397 = vmatprep.subr.bf16.mxu0 0
      %1398 = vmatpush1.bf16.msra.mxu0 0
      %1399 = vmatprep.subr.bf16.mxu0 0
      %1400 = vmatpush1.bf16.msra.mxu0 0
      %1401 = vmatprep.subr.bf16.mxu0 0
      %1402 = vmatpush1.bf16.msra.mxu0 0
      %1403 = vmatprep.subr.bf16.mxu0 0
      %1404 = vmatpush1.bf16.msra.mxu0 0
      %1405 = vmatprep.subr.bf16.mxu0 0
      %1406 = vmatpush1.bf16.msra.mxu0 0
      %1407 = vmatprep.mubr.bf16.mxu0 0
      %1408 = vmatmul.mubr.bf16.gmra.mrb[0].mxu0 %v539
      %v1409 = vpop.f32.mrb[0].mxu0
      %v1410 = vadd.f32 %v1201, %v1409
      %v1411 = vpop.f32.mrb[0].mxu0
      %v1412 = vpop.f32.mrb[0].mxu0
      %v1413 = vadd.f32 %v1204, %v1412
      %v1414 = vpop.f32.mrb[0].mxu0
      %1415 = vmatprep.mubr.bf16.mxu0 0
      %1416 = vmatmul.mubr.bf16.gmra.mrb[0].mxu0 %v540
      %v1417 = vpop.f32.mrb[0].mxu0
      %v1418 = vadd.f32 %v1209, %v1417
      %v1419 = vpop.f32.mrb[0].mxu0
      %v1420 = vpop.f32.mrb[0].mxu0
      %v1421 = vadd.f32 %v1212, %v1420
      %v1422 = vpop.f32.mrb[0].mxu0
      %1423 = vmatprep.mubr.bf16.mxu0 0
      %1424 = vmatmul.mubr.bf16.gmra.mrb[0].mxu0 %v541
      %v1425 = vpop.f32.mrb[0].mxu0
      %v1426 = vadd.f32 %v1217, %v1425
      %v1427 = vpop.f32.mrb[0].mxu0
      %v1428 = vpop.f32.mrb[0].mxu0
      %v1429 = vadd.f32 %v1220, %v1428
      %v1430 = vpop.f32.mrb[0].mxu0
      %1431 = vmatprep.mubr.bf16.mxu0 0
      %1432 = vmatmul.mubr.bf16.gmra.mrb[0].mxu0 %v542
      %v1433 = vpop.f32.mrb[0].mxu0
      %v1434 = vadd.f32 %v1225, %v1433
      %v1435 = vpop.f32.mrb[0].mxu0
      %v1436 = vpop.f32.mrb[0].mxu0
      %v1437 = vadd.f32 %v1228, %v1436
      %v1438 = vpop.f32.mrb[0].mxu0
      %1439 = vmatprep.mubr.bf16.mxu0 0
      %1440 = vmatmul.mubr.bf16.gmra.mrb[0].mxu0 %v543
      %v1441 = vpop.f32.mrb[0].mxu0
      %v1442 = vadd.f32 %v1233, %v1441
      %v1443 = vpop.f32.mrb[0].mxu0
      %v1444 = vpop.f32.mrb[0].mxu0
      %v1445 = vadd.f32 %v1236, %v1444
      %v1446 = vpop.f32.mrb[0].mxu0
      %1447 = vmatprep.mubr.bf16.mxu0 0
      %1448 = vmatmul.mubr.bf16.gmra.mrb[0].mxu0 %v544
      %v1449 = vpop.f32.mrb[0].mxu0
      %v1450 = vadd.f32 %v1241, %v1449
      %v1451 = vpop.f32.mrb[0].mxu0
      %v1452 = vpop.f32.mrb[0].mxu0
      %v1453 = vadd.f32 %v1244, %v1452
      %v1454 = vpop.f32.mrb[0].mxu0
      %1455 = vmatprep.mubr.bf16.mxu0 0
      %1456 = vmatmul.mubr.bf16.gmra.mrb[0].mxu0 %v545
      %v1457 = vpop.f32.mrb[0].mxu0
      %v1458 = vadd.f32 %v1249, %v1457
      %v1459 = vpop.f32.mrb[0].mxu0
      %v1460 = vpop.f32.mrb[0].mxu0
      %v1461 = vadd.f32 %v1252, %v1460
      %v1462 = vpop.f32.mrb[0].mxu0
      %1463 = vmatprep.mubr.bf16.mxu0 0
      %1464 = vmatmul.mubr.bf16.gmra.mrb[0].mxu0 %v546
      %v1465 = vpop.f32.mrb[0].mxu0
      %v1466 = vadd.f32 %v1257, %v1465
      %v1467 = vpop.f32.mrb[0].mxu0
      %v1468 = vpop.f32.mrb[0].mxu0
      %v1469 = vadd.f32 %v1260, %v1468
      %v1470 = vpop.f32.mrb[0].mxu0
      %1471 = vmatprep.mubr.bf16.mxu0 0
      %1472 = vmatmul.mubr.bf16.gmra.mrb[0].mxu0 %v547
      %v1473 = vpop.f32.mrb[0].mxu0
      %v1474 = vadd.f32 %v1265, %v1473
      %v1475 = vpop.f32.mrb[0].mxu0
      %v1476 = vpop.f32.mrb[0].mxu0
      %v1477 = vadd.f32 %v1268, %v1476
      %v1478 = vpop.f32.mrb[0].mxu0
      %1479 = vmatprep.mubr.bf16.mxu0 0
      %1480 = vmatmul.mubr.bf16.gmra.mrb[0].mxu0 %v548
      %v1481 = vpop.f32.mrb[0].mxu0
      %v1482 = vadd.f32 %v1273, %v1481
      %v1483 = vpop.f32.mrb[0].mxu0
      %v1484 = vpop.f32.mrb[0].mxu0
      %v1485 = vadd.f32 %v1276, %v1484
      %v1486 = vpop.f32.mrb[0].mxu0
      %1487 = vmatprep.mubr.bf16.mxu0 0
      %1488 = vmatmul.mubr.bf16.gmra.mrb[0].mxu0 %v549
      %v1489 = vpop.f32.mrb[0].mxu0
      %v1490 = vadd.f32 %v1281, %v1489
      %v1491 = vpop.f32.mrb[0].mxu0
      %v1492 = vpop.f32.mrb[0].mxu0
      %v1493 = vadd.f32 %v1284, %v1492
      %v1494 = vpop.f32.mrb[0].mxu0
      %1495 = vmatprep.mubr.bf16.mxu0 0
      %1496 = vmatmul.mubr.bf16.gmra.mrb[0].mxu0 %v550
      %v1497 = vpop.f32.mrb[0].mxu0
      %v1498 = vadd.f32 %v1289, %v1497
      %v1499 = vpop.f32.mrb[0].mxu0
      %v1500 = vpop.f32.mrb[0].mxu0
      %v1501 = vadd.f32 %v1292, %v1500
      %v1502 = vpop.f32.mrb[0].mxu0
      %1503 = vmatprep.mubr.bf16.mxu0 0
      %1504 = vmatmul.mubr.bf16.gmra.mrb[0].mxu0 %v551
      %v1505 = vpop.f32.mrb[0].mxu0
      %v1506 = vadd.f32 %v1297, %v1505
      %v1507 = vpop.f32.mrb[0].mxu0
      %v1508 = vpop.f32.mrb[0].mxu0
      %v1509 = vadd.f32 %v1300, %v1508
      %v1510 = vpop.f32.mrb[0].mxu0
      %1511 = vmatprep.mubr.bf16.mxu0 0
      %1512 = vmatmul.mubr.bf16.gmra.mrb[0].mxu0 %v552
      %v1513 = vpop.f32.mrb[0].mxu0
      %v1514 = vadd.f32 %v1305, %v1513
      %v1515 = vpop.f32.mrb[0].mxu0
      %v1516 = vpop.f32.mrb[0].mxu0
      %v1517 = vadd.f32 %v1308, %v1516
      %v1518 = vpop.f32.mrb[0].mxu0
      %1519 = vmatprep.mubr.bf16.mxu0 0
      %1520 = vmatmul.mubr.bf16.gmra.mrb[0].mxu0 %v553
      %v1521 = vpop.f32.mrb[0].mxu0
      %v1522 = vadd.f32 %v1313, %v1521
      %v1523 = vpop.f32.mrb[0].mxu0
      %v1524 = vpop.f32.mrb[0].mxu0
      %v1525 = vadd.f32 %v1316, %v1524
      %v1526 = vpop.f32.mrb[0].mxu0
      %1527 = vmatprep.mubr.bf16.mxu0 0
      %1528 = vmatmul.mubr.bf16.gmra.mrb[0].mxu0 %v554
      %v1529 = vpop.f32.mrb[0].mxu0
      %v1530 = vadd.f32 %v1321, %v1529
      %v1531 = vpop.f32.mrb[0].mxu0
      %v1532 = vpop.f32.mrb[0].mxu0
      %v1533 = vadd.f32 %v1324, %v1532
      %v1534 = vpop.f32.mrb[0].mxu0
      %1535 = vdwg.mxu0
      %v1536 = vld [vmem:[%s286] sm:$0xe]
      %v1537 = vld [vmem:[%s286 + $0xc] sm:$0xe]
      %v1538 = vld [vmem:[%s286 + $0x18] sm:$0xe]
      %v1539 = vld [vmem:[%s286 + $0x24] sm:$0xe]
      %v1540 = vld [vmem:[%s286 + $0x30] sm:$0xe]
      %v1541 = vld [vmem:[%s286 + $0x3c] sm:$0xe]
      %v1542 = vld [vmem:[%s286 + $0x48] sm:$0xe]
      %v1543 = vld [vmem:[%s286 + $0x54] sm:$0xe]
      %v1544 = vld [vmem:[%s286 + $0x60] sm:$0xe]
      %v1545 = vld [vmem:[%s286 + $0x6c] sm:$0xe]
      %v1546 = vld [vmem:[%s286 + $0x78] sm:$0xe]
      %v1547 = vld [vmem:[%s286 + $0x84] sm:$0xe]
      %v1548 = vld [vmem:[%s286 + $0x90] sm:$0xe]
      %v1549 = vld [vmem:[%s286 + $0x9c] sm:$0xe]
      %v1550 = vld [vmem:[%s286 + $0xa8] sm:$0xe]
      %v1551 = vld [vmem:[%s286 + $0xb4] sm:$0xe]
      %v1552 = vunpack.c.l.bf16 %v1536
      %v1553 = vunpack.c.l.bf16 %v1537
      %v1554 = vunpack.c.l.bf16 %v1538
      %v1555 = vunpack.c.l.bf16 %v1539
      %v1556 = vunpack.c.l.bf16 %v1540
      %v1557 = vunpack.c.l.bf16 %v1541
      %v1558 = vunpack.c.l.bf16 %v1542
      %v1559 = vunpack.c.l.bf16 %v1543
      %v1560 = vunpack.c.l.bf16 %v1544
      %v1561 = vunpack.c.l.bf16 %v1545
      %v1562 = vunpack.c.l.bf16 %v1546
      %v1563 = vunpack.c.l.bf16 %v1547
      %v1564 = vunpack.c.l.bf16 %v1548
      %v1565 = vunpack.c.l.bf16 %v1549
      %v1566 = vunpack.c.l.bf16 %v1550
      %v1567 = vunpack.c.l.bf16 %v1551
      %v1568 = vmul.f32 %v1552, %v306
      %v1569 = vmul.f32 %v1553, %v306
      %v1570 = vmul.f32 %v1554, %v306
      %v1571 = vmul.f32 %v1555, %v306
      %v1572 = vmul.f32 %v1556, %v306
      %v1573 = vmul.f32 %v1557, %v306
      %v1574 = vmul.f32 %v1558, %v306
      %v1575 = vmul.f32 %v1559, %v306
      %v1576 = vmul.f32 %v1560, %v306
      %v1577 = vmul.f32 %v1561, %v306
      %v1578 = vmul.f32 %v1562, %v306
      %v1579 = vmul.f32 %v1563, %v306
      %v1580 = vmul.f32 %v1564, %v306
      %v1581 = vmul.f32 %v1565, %v306
      %v1582 = vmul.f32 %v1566, %v306
      %v1583 = vmul.f32 %v1567, %v306
      %v1584 = vadd.f32 %v1568, %v313
      %v1585 = vadd.f32 %v1569, %v313
      %v1586 = vadd.f32 %v1570, %v313
      %v1587 = vadd.f32 %v1571, %v313
      %v1588 = vadd.f32 %v1572, %v313
      %v1589 = vadd.f32 %v1573, %v313
      %v1590 = vadd.f32 %v1574, %v313
      %v1591 = vadd.f32 %v1575, %v313
      %v1592 = vadd.f32 %v1576, %v313
      %v1593 = vadd.f32 %v1577, %v313
      %v1594 = vadd.f32 %v1578, %v313
      %v1595 = vadd.f32 %v1579, %v313
      %v1596 = vadd.f32 %v1580, %v313
      %v1597 = vadd.f32 %v1581, %v313
      %v1598 = vadd.f32 %v1582, %v313
      %v1599 = vadd.f32 %v1583, %v313
      %v1600 = vmax.f32 %v1584, 0.0
      %v1601 = vmax.f32 %v1585, 0.0
      %v1602 = vmax.f32 %v1586, 0.0
      %v1603 = vmax.f32 %v1587, 0.0
      %v1604 = vmax.f32 %v1588, 0.0
      %v1605 = vmax.f32 %v1589, 0.0
      %v1606 = vmax.f32 %v1590, 0.0
      %v1607 = vmax.f32 %v1591, 0.0
      %v1608 = vmax.f32 %v1592, 0.0
      %v1609 = vmax.f32 %v1593, 0.0
      %v1610 = vmax.f32 %v1594, 0.0
      %v1611 = vmax.f32 %v1595, 0.0
      %v1612 = vmax.f32 %v1596, 0.0
      %v1613 = vmax.f32 %v1597, 0.0
      %v1614 = vmax.f32 %v1598, 0.0
      %v1615 = vmax.f32 %v1599, 0.0
      %v1616 = vld [vmem:[%s2 + $0x2] sm:$0xff]
      %v1617 = vld [vmem:[%s2 + $0xa] sm:$0xff]
      %v1618 = vld [vmem:[%s2 + $0x1a] sm:$0xff]
      %v1619 = vld [vmem:[%s2 + $0x22] sm:$0xff]
      %v1620 = vld [vmem:[%s2 + $0x32] sm:$0xff]
      %v1621 = vld [vmem:[%s2 + $0x3a] sm:$0xff]
      %v1622 = vld [vmem:[%s2 + $0x4a] sm:$0xff]
      %v1623 = vld [vmem:[%s2 + $0x52] sm:$0xff]
      %v1624 = vld [vmem:[%s2 + $0x62] sm:$0xff]
      %v1625 = vld [vmem:[%s2 + $0x6a] sm:$0xff]
      %v1626 = vld [vmem:[%s2 + $0x7a] sm:$0xff]
      %v1627 = vld [vmem:[%s2 + $0x82] sm:$0xff]
      %v1628 = vld [vmem:[%s2 + $0x92] sm:$0xff]
      %v1629 = vld [vmem:[%s2 + $0x9a] sm:$0xff]
      %v1630 = vld [vmem:[%s2 + $0xaa] sm:$0xff]
      %v1631 = vld [vmem:[%s2 + $0xb2] sm:$0xff]
      %v1632 = vld [vmem:[%s2 + $0xc2] sm:$0xff]
      %v1633 = vld [vmem:[%s2 + $0xca] sm:$0xff]
      %v1634 = vld [vmem:[%s2 + $0xda] sm:$0xff]
      %v1635 = vld [vmem:[%s2 + $0xe2] sm:$0xff]
      %v1636 = vld [vmem:[%s2 + $0xf2] sm:$0xff]
      %v1637 = vld [vmem:[%s2 + $0xfa] sm:$0xff]
      %v1638 = vld [vmem:[%s2 + $0x10a] sm:$0xff]
      %v1639 = vld [vmem:[%s2 + $0x112] sm:$0xff]
      %v1640 = vld [vmem:[%s2 + $0x122] sm:$0xff]
      %v1641 = vld [vmem:[%s2 + $0x12a] sm:$0xff]
      %v1642 = vld [vmem:[%s2 + $0x13a] sm:$0xff]
      %v1643 = vld [vmem:[%s2 + $0x142] sm:$0xff]
      %v1644 = vld [vmem:[%s2 + $0x152] sm:$0xff]
      %v1645 = vld [vmem:[%s2 + $0x15a] sm:$0xff]
      %v1646 = vld [vmem:[%s2 + $0x16a] sm:$0xff]
      %v1647 = vld [vmem:[%s2 + $0x172] sm:$0xff]
      %vm1680 = vcmask 1041408
      %v1681 = vrot.slane %v1616, 6
      %v1682 = vrot.slane %v1617, 6
      %v1683 = vsel %vm1680, %v1681, %v1682
      %v1684 = vrot.slane %v1618, 6
      %v1685 = vrot.slane %v1619, 6
      %v1686 = vsel %vm1680, %v1684, %v1685
      %v1687 = vrot.slane %v1620, 6
      %v1688 = vrot.slane %v1621, 6
      %v1689 = vsel %vm1680, %v1687, %v1688
      %v1690 = vrot.slane %v1622, 6
      %v1691 = vrot.slane %v1623, 6
      %v1692 = vsel %vm1680, %v1690, %v1691
      %v1693 = vrot.slane %v1624, 6
      %v1694 = vrot.slane %v1625, 6
      %v1695 = vsel %vm1680, %v1693, %v1694
      %v1696 = vrot.slane %v1626, 6
      %v1697 = vrot.slane %v1627, 6
      %v1698 = vsel %vm1680, %v1696, %v1697
      %v1699 = vrot.slane %v1628, 6
      %v1700 = vrot.slane %v1629, 6
      %v1701 = vsel %vm1680, %v1699, %v1700
      %v1702 = vrot.slane %v1630, 6
      %v1703 = vrot.slane %v1631, 6
      %v1704 = vsel %vm1680, %v1702, %v1703
      %v1705 = vrot.slane %v1632, 6
      %v1706 = vrot.slane %v1633, 6
      %v1707 = vsel %vm1680, %v1705, %v1706
      %v1708 = vrot.slane %v1634, 6
      %v1709 = vrot.slane %v1635, 6
      %v1710 = vsel %vm1680, %v1708, %v1709
      %v1711 = vrot.slane %v1636, 6
      %v1712 = vrot.slane %v1637, 6
      %v1713 = vsel %vm1680, %v1711, %v1712
      %v1714 = vrot.slane %v1638, 6
      %v1715 = vrot.slane %v1639, 6
      %v1716 = vsel %vm1680, %v1714, %v1715
      %v1717 = vrot.slane %v1640, 6
      %v1718 = vrot.slane %v1641, 6
      %v1719 = vsel %vm1680, %v1717, %v1718
      %v1720 = vrot.slane %v1642, 6
      %v1721 = vrot.slane %v1643, 6
      %v1722 = vsel %vm1680, %v1720, %v1721
      %v1723 = vrot.slane %v1644, 6
      %v1724 = vrot.slane %v1645, 6
      %v1725 = vsel %vm1680, %v1723, %v1724
      %v1726 = vrot.slane %v1646, 6
      %v1727 = vrot.slane %v1647, 6
      %v1728 = vsel %vm1680, %v1726, %v1727
      %v1777 = vmul.f32 %v1600, %v1681
      %v1778 = vmul.f32 %v444, %v1683
      %v1779 = vmul.f32 %v635, %v1682
      %v1780 = vmul.f32 %v1601, %v1684
      %v1781 = vmul.f32 %v446, %v1686
      %v1782 = vmul.f32 %v636, %v1685
      %v1783 = vmul.f32 %v1602, %v1687
      %v1784 = vmul.f32 %v448, %v1689
      %v1785 = vmul.f32 %v637, %v1688
      %v1786 = vmul.f32 %v1603, %v1690
      %v1787 = vmul.f32 %v450, %v1692
      %v1788 = vmul.f32 %v638, %v1691
      %v1789 = vmul.f32 %v1604, %v1693
      %v1790 = vmul.f32 %v452, %v1695
      %v1791 = vmul.f32 %v639, %v1694
      %v1792 = vmul.f32 %v1605, %v1696
      %v1793 = vmul.f32 %v454, %v1698
      %v1794 = vmul.f32 %v640, %v1697
      %v1795 = vmul.f32 %v1606, %v1699
      %v1796 = vmul.f32 %v456, %v1701
      %v1797 = vmul.f32 %v641, %v1700
      %v1798 = vmul.f32 %v1607, %v1702
      %v1799 = vmul.f32 %v458, %v1704
      %v1800 = vmul.f32 %v642, %v1703
      %v1801 = vmul.f32 %v1608, %v1705
      %v1802 = vmul.f32 %v460, %v1707
      %v1803 = vmul.f32 %v643, %v1706
      %v1804 = vmul.f32 %v1609, %v1708
      %v1805 = vmul.f32 %v462, %v1710
      %v1806 = vmul.f32 %v644, %v1709
      %v1807 = vmul.f32 %v1610, %v1711
      %v1808 = vmul.f32 %v464, %v1713
      %v1809 = vmul.f32 %v645, %v1712
      %v1810 = vmul.f32 %v1611, %v1714
      %v1811 = vmul.f32 %v466, %v1716
      %v1812 = vmul.f32 %v646, %v1715
      %v1813 = vmul.f32 %v1612, %v1717
      %v1814 = vmul.f32 %v468, %v1719
      %v1815 = vmul.f32 %v647, %v1718
      %v1816 = vmul.f32 %v1613, %v1720
      %v1817 = vmul.f32 %v470, %v1722
      %v1818 = vmul.f32 %v648, %v1721
      %v1819 = vmul.f32 %v1614, %v1723
      %v1820 = vmul.f32 %v472, %v1725
      %v1821 = vmul.f32 %v649, %v1724
      %v1822 = vmul.f32 %v1615, %v1726
      %v1823 = vmul.f32 %v474, %v1728
      %v1824 = vmul.f32 %v650, %v1727
      %v1825 = vpack.c.bf16 %v1778, %v1777
      %v1826 = vpack.c.bf16 %v1779, %v1779
      %v1827 = vpack.c.bf16 %v1781, %v1780
      %v1828 = vpack.c.bf16 %v1782, %v1782
      %v1829 = vpack.c.bf16 %v1784, %v1783
      %v1830 = vpack.c.bf16 %v1785, %v1785
      %v1831 = vpack.c.bf16 %v1787, %v1786
      %v1832 = vpack.c.bf16 %v1788, %v1788
      %v1833 = vpack.c.bf16 %v1790, %v1789
      %v1834 = vpack.c.bf16 %v1791, %v1791
      %v1835 = vpack.c.bf16 %v1793, %v1792
      %v1836 = vpack.c.bf16 %v1794, %v1794
      %v1837 = vpack.c.bf16 %v1796, %v1795
      %v1838 = vpack.c.bf16 %v1797, %v1797
      %v1839 = vpack.c.bf16 %v1799, %v1798
      %v1840 = vpack.c.bf16 %v1800, %v1800
      %v1841 = vpack.c.bf16 %v1802, %v1801
      %v1842 = vpack.c.bf16 %v1803, %v1803
      %v1843 = vpack.c.bf16 %v1805, %v1804
      %v1844 = vpack.c.bf16 %v1806, %v1806
      %v1845 = vpack.c.bf16 %v1808, %v1807
      %v1846 = vpack.c.bf16 %v1809, %v1809
      %v1847 = vpack.c.bf16 %v1811, %v1810
      %v1848 = vpack.c.bf16 %v1812, %v1812
      %v1849 = vpack.c.bf16 %v1814, %v1813
      %v1850 = vpack.c.bf16 %v1815, %v1815
      %v1851 = vpack.c.bf16 %v1817, %v1816
      %v1852 = vpack.c.bf16 %v1818, %v1818
      %v1853 = vpack.c.bf16 %v1820, %v1819
      %v1854 = vpack.c.bf16 %v1821, %v1821
      %v1855 = vpack.c.bf16 %v1823, %v1822
      %v1856 = vpack.c.bf16 %v1824, %v1824
      %vm1889 = vcmask 1046528
      %v1890 = vrot.slane %v1825, 1
      %v1891 = vrot.slane %v1826, 1
      %v1892 = vsel %vm1889, %v1890, %v1891
      %v1893 = vrot.slane %v1827, 1
      %v1894 = vrot.slane %v1828, 1
      %v1895 = vsel %vm1889, %v1893, %v1894
      %v1896 = vrot.slane %v1829, 1
      %v1897 = vrot.slane %v1830, 1
      %v1898 = vsel %vm1889, %v1896, %v1897
      %v1899 = vrot.slane %v1831, 1
      %v1900 = vrot.slane %v1832, 1
      %v1901 = vsel %vm1889, %v1899, %v1900
      %v1902 = vrot.slane %v1833, 1
      %v1903 = vrot.slane %v1834, 1
      %v1904 = vsel %vm1889, %v1902, %v1903
      %v1905 = vrot.slane %v1835, 1
      %v1906 = vrot.slane %v1836, 1
      %v1907 = vsel %vm1889, %v1905, %v1906
      %v1908 = vrot.slane %v1837, 1
      %v1909 = vrot.slane %v1838, 1
      %v1910 = vsel %vm1889, %v1908, %v1909
      %v1911 = vrot.slane %v1839, 1
      %v1912 = vrot.slane %v1840, 1
      %v1913 = vsel %vm1889, %v1911, %v1912
      %v1914 = vrot.slane %v1841, 1
      %v1915 = vrot.slane %v1842, 1
      %v1916 = vsel %vm1889, %v1914, %v1915
      %v1917 = vrot.slane %v1843, 1
      %v1918 = vrot.slane %v1844, 1
      %v1919 = vsel %vm1889, %v1917, %v1918
      %v1920 = vrot.slane %v1845, 1
      %v1921 = vrot.slane %v1846, 1
      %v1922 = vsel %vm1889, %v1920, %v1921
      %v1923 = vrot.slane %v1847, 1
      %v1924 = vrot.slane %v1848, 1
      %v1925 = vsel %vm1889, %v1923, %v1924
      %v1926 = vrot.slane %v1849, 1
      %v1927 = vrot.slane %v1850, 1
      %v1928 = vsel %vm1889, %v1926, %v1927
      %v1929 = vrot.slane %v1851, 1
      %v1930 = vrot.slane %v1852, 1
      %v1931 = vsel %vm1889, %v1929, %v1930
      %v1932 = vrot.slane %v1853, 1
      %v1933 = vrot.slane %v1854, 1
      %v1934 = vsel %vm1889, %v1932, %v1933
      %v1935 = vrot.slane %v1855, 1
      %v1936 = vrot.slane %v1856, 1
      %v1937 = vsel %vm1889, %v1935, %v1936
      %s1954 = scalar_lea.vmem %s1, 128
      %v1955 = vld [vmem:[%s1954] sm:$0xf]
      %v1956 = vld [vmem:[%s1954 + $0x4] sm:$0xf]
      %v1957 = vld [vmem:[%s1954 + $0x8] sm:$0xf]
      %v1958 = vld [vmem:[%s1954 + $0xc] sm:$0xf]
      %v1959 = vld [vmem:[%s1954 + $0x10] sm:$0xf]
      %v1960 = vld [vmem:[%s1954 + $0x14] sm:$0xf]
      %v1961 = vld [vmem:[%s1954 + $0x18] sm:$0xf]
      %v1962 = vld [vmem:[%s1954 + $0x1c] sm:$0xf]
      %v1963 = vld [vmem:[%s1954 + $0x20] sm:$0xf]
      %v1964 = vld [vmem:[%s1954 + $0x24] sm:$0xf]
      %v1965 = vld [vmem:[%s1954 + $0x28] sm:$0xf]
      %v1966 = vld [vmem:[%s1954 + $0x2c] sm:$0xf]
      %v1967 = vld [vmem:[%s1954 + $0x30] sm:$0xf]
      %v1968 = vld [vmem:[%s1954 + $0x34] sm:$0xf]
      %v1969 = vld [vmem:[%s1954 + $0x38] sm:$0xf]
      %v1970 = vld [vmem:[%s1954 + $0x3c] sm:$0xf]
      %v1987 = vunpack.c.l.b16 %v1955
      %v1988 = vunpack.c.l.b16 %v1956
      %v1989 = vunpack.c.l.b16 %v1957
      %v1990 = vunpack.c.l.b16 %v1958
      %v1991 = vunpack.c.l.b16 %v1959
      %v1992 = vunpack.c.l.b16 %v1960
      %v1993 = vunpack.c.l.b16 %v1961
      %v1994 = vunpack.c.l.b16 %v1962
      %v1995 = vunpack.c.l.b16 %v1963
      %v1996 = vunpack.c.l.b16 %v1964
      %v1997 = vunpack.c.l.b16 %v1965
      %v1998 = vunpack.c.l.b16 %v1966
      %v1999 = vunpack.c.l.b16 %v1967
      %v2000 = vunpack.c.l.b16 %v1968
      %v2001 = vunpack.c.l.b16 %v1969
      %v2002 = vunpack.c.l.b16 %v1970
      %v2003 = vpack.c.b16 %v1988, %v1987
      %v2004 = vpack.c.b16 %v1990, %v1989
      %v2005 = vpack.c.b16 %v1992, %v1991
      %v2006 = vpack.c.b16 %v1994, %v1993
      %v2007 = vpack.c.b16 %v1996, %v1995
      %v2008 = vpack.c.b16 %v1998, %v1997
      %v2009 = vpack.c.b16 %v2000, %v1999
      %v2010 = vpack.c.b16 %v2002, %v2001
      %2019 = vmatprep.subr.bf16.mxu0 0
      %2020 = vmatpush1.bf16.msra.mxu0 %v2003
      %2021 = vmatprep.subr.bf16.mxu0 0
      %2022 = vmatpush1.bf16.msra.mxu0 %v2004
      %2023 = vmatprep.subr.bf16.mxu0 0
      %2024 = vmatpush1.bf16.msra.mxu0 %v2005
      %2025 = vmatprep.subr.bf16.mxu0 0
      %2026 = vmatpush1.bf16.msra.mxu0 %v2006
      %2027 = vmatprep.subr.bf16.mxu0 0
      %2028 = vmatpush1.bf16.msra.mxu0 %v2007
      %2029 = vmatprep.subr.bf16.mxu0 0
      %2030 = vmatpush1.bf16.msra.mxu0 %v2008
      %2031 = vmatprep.subr.bf16.mxu0 0
      %2032 = vmatpush1.bf16.msra.mxu0 %v2009
      %2033 = vmatprep.subr.bf16.mxu0 0
      %2034 = vmatpush1.bf16.msra.mxu0 %v2010
      %2035 = vmatprep.subr.bf16.mxu0 0
      %2036 = vmatpush1.bf16.msra.mxu0 0
      %2037 = vmatprep.subr.bf16.mxu0 0
      %2038 = vmatpush1.bf16.msra.mxu0 0
      %2039 = vmatprep.subr.bf16.mxu0 0
      %2040 = vmatpush1.bf16.msra.mxu0 0
      %2041 = vmatprep.subr.bf16.mxu0 0
      %2042 = vmatpush1.bf16.msra.mxu0 0
      %2043 = vmatprep.subr.bf16.mxu0 0
      %2044 = vmatpush1.bf16.msra.mxu0 0
      %2045 = vmatprep.subr.bf16.mxu0 0
      %2046 = vmatpush1.bf16.msra.mxu0 0
      %2047 = vmatprep.subr.bf16.mxu0 0
      %2048 = vmatpush1.bf16.msra.mxu0 0
      %2049 = vmatprep.subr.bf16.mxu0 0
      %2050 = vmatpush1.bf16.msra.mxu0 0
      %2051 = vmatprep.mubr.bf16.mxu0 0
      %2052 = vmatmul.mubr.bf16.gmra.mrb[0].mxu0 %v1892
      %v2053 = vpop.f32.mrb[0].mxu0
      %v2054 = vadd.f32 0.0, %v2053
      %v2055 = vpop.f32.mrb[0].mxu0
      %v2056 = vpop.f32.mrb[0].mxu0
      %v2057 = vadd.f32 0.0, %v2056
      %v2058 = vpop.f32.mrb[0].mxu0
      %2059 = vmatprep.mubr.bf16.mxu0 0
      %2060 = vmatmul.mubr.bf16.gmra.mrb[0].mxu0 %v1895
      %v2061 = vpop.f32.mrb[0].mxu0
      %v2062 = vadd.f32 0.0, %v2061
      %v2063 = vpop.f32.mrb[0].mxu0
      %v2064 = vpop.f32.mrb[0].mxu0
      %v2065 = vadd.f32 0.0, %v2064
      %v2066 = vpop.f32.mrb[0].mxu0
      %2067 = vmatprep.mubr.bf16.mxu0 0
      %2068 = vmatmul.mubr.bf16.gmra.mrb[0].mxu0 %v1898
      %v2069 = vpop.f32.mrb[0].mxu0
      %v2070 = vadd.f32 0.0, %v2069
      %v2071 = vpop.f32.mrb[0].mxu0
      %v2072 = vpop.f32.mrb[0].mxu0
      %v2073 = vadd.f32 0.0, %v2072
      %v2074 = vpop.f32.mrb[0].mxu0
      %2075 = vmatprep.mubr.bf16.mxu0 0
      %2076 = vmatmul.mubr.bf16.gmra.mrb[0].mxu0 %v1901
      %v2077 = vpop.f32.mrb[0].mxu0
      %v2078 = vadd.f32 0.0, %v2077
      %v2079 = vpop.f32.mrb[0].mxu0
      %v2080 = vpop.f32.mrb[0].mxu0
      %v2081 = vadd.f32 0.0, %v2080
      %v2082 = vpop.f32.mrb[0].mxu0
      %2083 = vmatprep.mubr.bf16.mxu0 0
      %2084 = vmatmul.mubr.bf16.gmra.mrb[0].mxu0 %v1904
      %v2085 = vpop.f32.mrb[0].mxu0
      %v2086 = vadd.f32 0.0, %v2085
      %v2087 = vpop.f32.mrb[0].mxu0
      %v2088 = vpop.f32.mrb[0].mxu0
      %v2089 = vadd.f32 0.0, %v2088
      %v2090 = vpop.f32.mrb[0].mxu0
      %2091 = vmatprep.mubr.bf16.mxu0 0
      %2092 = vmatmul.mubr.bf16.gmra.mrb[0].mxu0 %v1907
      %v2093 = vpop.f32.mrb[0].mxu0
      %v2094 = vadd.f32 0.0, %v2093
      %v2095 = vpop.f32.mrb[0].mxu0
      %v2096 = vpop.f32.mrb[0].mxu0
      %v2097 = vadd.f32 0.0, %v2096
      %v2098 = vpop.f32.mrb[0].mxu0
      %2099 = vmatprep.mubr.bf16.mxu0 0
      %2100 = vmatmul.mubr.bf16.gmra.mrb[0].mxu0 %v1910
      %v2101 = vpop.f32.mrb[0].mxu0
      %v2102 = vadd.f32 0.0, %v2101
      %v2103 = vpop.f32.mrb[0].mxu0
      %v2104 = vpop.f32.mrb[0].mxu0
      %v2105 = vadd.f32 0.0, %v2104
      %v2106 = vpop.f32.mrb[0].mxu0
      %2107 = vmatprep.mubr.bf16.mxu0 0
      %2108 = vmatmul.mubr.bf16.gmra.mrb[0].mxu0 %v1913
      %v2109 = vpop.f32.mrb[0].mxu0
      %v2110 = vadd.f32 0.0, %v2109
      %v2111 = vpop.f32.mrb[0].mxu0
      %v2112 = vpop.f32.mrb[0].mxu0
      %v2113 = vadd.f32 0.0, %v2112
      %v2114 = vpop.f32.mrb[0].mxu0
      %2115 = vmatprep.mubr.bf16.mxu0 0
      %2116 = vmatmul.mubr.bf16.gmra.mrb[0].mxu0 %v1916
      %v2117 = vpop.f32.mrb[0].mxu0
      %v2118 = vadd.f32 0.0, %v2117
      %v2119 = vpop.f32.mrb[0].mxu0
      %v2120 = vpop.f32.mrb[0].mxu0
      %v2121 = vadd.f32 0.0, %v2120
      %v2122 = vpop.f32.mrb[0].mxu0
      %2123 = vmatprep.mubr.bf16.mxu0 0
      %2124 = vmatmul.mubr.bf16.gmra.mrb[0].mxu0 %v1919
      %v2125 = vpop.f32.mrb[0].mxu0
      %v2126 = vadd.f32 0.0, %v2125
      %v2127 = vpop.f32.mrb[0].mxu0
      %v2128 = vpop.f32.mrb[0].mxu0
      %v2129 = vadd.f32 0.0, %v2128
      %v2130 = vpop.f32.mrb[0].mxu0
      %2131 = vmatprep.mubr.bf16.mxu0 0
      %2132 = vmatmul.mubr.bf16.gmra.mrb[0].mxu0 %v1922
      %v2133 = vpop.f32.mrb[0].mxu0
      %v2134 = vadd.f32 0.0, %v2133
      %v2135 = vpop.f32.mrb[0].mxu0
      %v2136 = vpop.f32.mrb[0].mxu0
      %v2137 = vadd.f32 0.0, %v2136
      %v2138 = vpop.f32.mrb[0].mxu0
      %2139 = vmatprep.mubr.bf16.mxu0 0
      %2140 = vmatmul.mubr.bf16.gmra.mrb[0].mxu0 %v1925
      %v2141 = vpop.f32.mrb[0].mxu0
      %v2142 = vadd.f32 0.0, %v2141
      %v2143 = vpop.f32.mrb[0].mxu0
      %v2144 = vpop.f32.mrb[0].mxu0
      %v2145 = vadd.f32 0.0, %v2144
      %v2146 = vpop.f32.mrb[0].mxu0
      %2147 = vmatprep.mubr.bf16.mxu0 0
      %2148 = vmatmul.mubr.bf16.gmra.mrb[0].mxu0 %v1928
      %v2149 = vpop.f32.mrb[0].mxu0
      %v2150 = vadd.f32 0.0, %v2149
      %v2151 = vpop.f32.mrb[0].mxu0
      %v2152 = vpop.f32.mrb[0].mxu0
      %v2153 = vadd.f32 0.0, %v2152
      %v2154 = vpop.f32.mrb[0].mxu0
      %2155 = vmatprep.mubr.bf16.mxu0 0
      %2156 = vmatmul.mubr.bf16.gmra.mrb[0].mxu0 %v1931
      %v2157 = vpop.f32.mrb[0].mxu0
      %v2158 = vadd.f32 0.0, %v2157
      %v2159 = vpop.f32.mrb[0].mxu0
      %v2160 = vpop.f32.mrb[0].mxu0
      %v2161 = vadd.f32 0.0, %v2160
      %v2162 = vpop.f32.mrb[0].mxu0
      %2163 = vmatprep.mubr.bf16.mxu0 0
      %2164 = vmatmul.mubr.bf16.gmra.mrb[0].mxu0 %v1934
      %v2165 = vpop.f32.mrb[0].mxu0
      %v2166 = vadd.f32 0.0, %v2165
      %v2167 = vpop.f32.mrb[0].mxu0
      %v2168 = vpop.f32.mrb[0].mxu0
      %v2169 = vadd.f32 0.0, %v2168
      %v2170 = vpop.f32.mrb[0].mxu0
      %2171 = vmatprep.mubr.bf16.mxu0 0
      %2172 = vmatmul.mubr.bf16.gmra.mrb[0].mxu0 %v1937
      %v2173 = vpop.f32.mrb[0].mxu0
      %v2174 = vadd.f32 0.0, %v2173
      %v2175 = vpop.f32.mrb[0].mxu0
      %v2176 = vpop.f32.mrb[0].mxu0
      %v2177 = vadd.f32 0.0, %v2176
      %v2178 = vpop.f32.mrb[0].mxu0
      %2179 = vdwg.mxu0
      %v2180 = vadd.f32 %v1410, %v2054
      %v2181 = vadd.f32 %v1413, %v2057
      %v2182 = vadd.f32 %v1418, %v2062
      %v2183 = vadd.f32 %v1421, %v2065
      %v2184 = vadd.f32 %v1426, %v2070
      %v2185 = vadd.f32 %v1429, %v2073
      %v2186 = vadd.f32 %v1434, %v2078
      %v2187 = vadd.f32 %v1437, %v2081
      %v2188 = vadd.f32 %v1442, %v2086
      %v2189 = vadd.f32 %v1445, %v2089
      %v2190 = vadd.f32 %v1450, %v2094
      %v2191 = vadd.f32 %v1453, %v2097
      %v2192 = vadd.f32 %v1458, %v2102
      %v2193 = vadd.f32 %v1461, %v2105
      %v2194 = vadd.f32 %v1466, %v2110
      %v2195 = vadd.f32 %v1469, %v2113
      %v2196 = vadd.f32 %v1474, %v2118
      %v2197 = vadd.f32 %v1477, %v2121
      %v2198 = vadd.f32 %v1482, %v2126
      %v2199 = vadd.f32 %v1485, %v2129
      %v2200 = vadd.f32 %v1490, %v2134
      %v2201 = vadd.f32 %v1493, %v2137
      %v2202 = vadd.f32 %v1498, %v2142
      %v2203 = vadd.f32 %v1501, %v2145
      %v2204 = vadd.f32 %v1506, %v2150
      %v2205 = vadd.f32 %v1509, %v2153
      %v2206 = vadd.f32 %v1514, %v2158
      %v2207 = vadd.f32 %v1517, %v2161
      %v2208 = vadd.f32 %v1522, %v2166
      %v2209 = vadd.f32 %v1525, %v2169
      %v2210 = vadd.f32 %v1530, %v2174
      %v2211 = vadd.f32 %v1533, %v2177
      %s2212 = scalar_lea.vmem %s286, 12
      %v2213 = vld [vmem:[%s2212] sm:$0xf]
      %v2214 = vld [vmem:[%s2212 + $0x4] sm:$0xf]
      %v2215 = vld [vmem:[%s2212 + $0xc] sm:$0xf]
      %v2216 = vld [vmem:[%s2212 + $0x10] sm:$0xf]
      %v2217 = vld [vmem:[%s2212 + $0x18] sm:$0xf]
      %v2218 = vld [vmem:[%s2212 + $0x1c] sm:$0xf]
      %v2219 = vld [vmem:[%s2212 + $0x24] sm:$0xf]
      %v2220 = vld [vmem:[%s2212 + $0x28] sm:$0xf]
      %v2221 = vld [vmem:[%s2212 + $0x30] sm:$0xf]
      %v2222 = vld [vmem:[%s2212 + $0x34] sm:$0xf]
      %v2223 = vld [vmem:[%s2212 + $0x3c] sm:$0xf]
      %v2224 = vld [vmem:[%s2212 + $0x40] sm:$0xf]
      %v2225 = vld [vmem:[%s2212 + $0x48] sm:$0xf]
      %v2226 = vld [vmem:[%s2212 + $0x4c] sm:$0xf]
      %v2227 = vld [vmem:[%s2212 + $0x54] sm:$0xf]
      %v2228 = vld [vmem:[%s2212 + $0x58] sm:$0xf]
      %v2229 = vld [vmem:[%s2212 + $0x60] sm:$0xf]
      %v2230 = vld [vmem:[%s2212 + $0x64] sm:$0xf]
      %v2231 = vld [vmem:[%s2212 + $0x6c] sm:$0xf]
      %v2232 = vld [vmem:[%s2212 + $0x70] sm:$0xf]
      %v2233 = vld [vmem:[%s2212 + $0x78] sm:$0xf]
      %v2234 = vld [vmem:[%s2212 + $0x7c] sm:$0xf]
      %v2235 = vld [vmem:[%s2212 + $0x84] sm:$0xf]
      %v2236 = vld [vmem:[%s2212 + $0x88] sm:$0xf]
      %v2237 = vld [vmem:[%s2212 + $0x90] sm:$0xf]
      %v2238 = vld [vmem:[%s2212 + $0x94] sm:$0xf]
      %v2239 = vld [vmem:[%s2212 + $0x9c] sm:$0xf]
      %v2240 = vld [vmem:[%s2212 + $0xa0] sm:$0xf]
      %v2241 = vld [vmem:[%s2212 + $0xa8] sm:$0xf]
      %v2242 = vld [vmem:[%s2212 + $0xac] sm:$0xf]
      %v2243 = vld [vmem:[%s2212 + $0xb4] sm:$0xf]
      %v2244 = vld [vmem:[%s2212 + $0xb8] sm:$0xf]
      %v2245 = vunpack.c.l.bf16 %v2213
      %v2246 = vunpack.c.l.bf16 %v2214
      %v2247 = vunpack.c.l.bf16 %v2215
      %v2248 = vunpack.c.l.bf16 %v2216
      %v2249 = vunpack.c.l.bf16 %v2217
      %v2250 = vunpack.c.l.bf16 %v2218
      %v2251 = vunpack.c.l.bf16 %v2219
      %v2252 = vunpack.c.l.bf16 %v2220
      %v2253 = vunpack.c.l.bf16 %v2221
      %v2254 = vunpack.c.l.bf16 %v2222
      %v2255 = vunpack.c.l.bf16 %v2223
      %v2256 = vunpack.c.l.bf16 %v2224
      %v2257 = vunpack.c.l.bf16 %v2225
      %v2258 = vunpack.c.l.bf16 %v2226
      %v2259 = vunpack.c.l.bf16 %v2227
      %v2260 = vunpack.c.l.bf16 %v2228
      %v2261 = vunpack.c.l.bf16 %v2229
      %v2262 = vunpack.c.l.bf16 %v2230
      %v2263 = vunpack.c.l.bf16 %v2231
      %v2264 = vunpack.c.l.bf16 %v2232
      %v2265 = vunpack.c.l.bf16 %v2233
      %v2266 = vunpack.c.l.bf16 %v2234
      %v2267 = vunpack.c.l.bf16 %v2235
      %v2268 = vunpack.c.l.bf16 %v2236
      %v2269 = vunpack.c.l.bf16 %v2237
      %v2270 = vunpack.c.l.bf16 %v2238
      %v2271 = vunpack.c.l.bf16 %v2239
      %v2272 = vunpack.c.l.bf16 %v2240
      %v2273 = vunpack.c.l.bf16 %v2241
      %v2274 = vunpack.c.l.bf16 %v2242
      %v2275 = vunpack.c.l.bf16 %v2243
      %v2276 = vunpack.c.l.bf16 %v2244
      %v2277 = vmul.f32 %v2245, %v306
      %v2278 = vmul.f32 %v2246, %v306
      %v2279 = vmul.f32 %v2247, %v306
      %v2280 = vmul.f32 %v2248, %v306
      %v2281 = vmul.f32 %v2249, %v306
      %v2282 = vmul.f32 %v2250, %v306
      %v2283 = vmul.f32 %v2251, %v306
      %v2284 = vmul.f32 %v2252, %v306
      %v2285 = vmul.f32 %v2253, %v306
      %v2286 = vmul.f32 %v2254, %v306
      %v2287 = vmul.f32 %v2255, %v306
      %v2288 = vmul.f32 %v2256, %v306
      %v2289 = vmul.f32 %v2257, %v306
      %v2290 = vmul.f32 %v2258, %v306
      %v2291 = vmul.f32 %v2259, %v306
      %v2292 = vmul.f32 %v2260, %v306
      %v2293 = vmul.f32 %v2261, %v306
      %v2294 = vmul.f32 %v2262, %v306
      %v2295 = vmul.f32 %v2263, %v306
      %v2296 = vmul.f32 %v2264, %v306
      %v2297 = vmul.f32 %v2265, %v306
      %v2298 = vmul.f32 %v2266, %v306
      %v2299 = vmul.f32 %v2267, %v306
      %v2300 = vmul.f32 %v2268, %v306
      %v2301 = vmul.f32 %v2269, %v306
      %v2302 = vmul.f32 %v2270, %v306
      %v2303 = vmul.f32 %v2271, %v306
      %v2304 = vmul.f32 %v2272, %v306
      %v2305 = vmul.f32 %v2273, %v306
      %v2306 = vmul.f32 %v2274, %v306
      %v2307 = vmul.f32 %v2275, %v306
      %v2308 = vmul.f32 %v2276, %v306
      %v2309 = vadd.f32 %v2277, %v313
      %v2310 = vadd.f32 %v2278, %v313
      %v2311 = vadd.f32 %v2279, %v313
      %v2312 = vadd.f32 %v2280, %v313
      %v2313 = vadd.f32 %v2281, %v313
      %v2314 = vadd.f32 %v2282, %v313
      %v2315 = vadd.f32 %v2283, %v313
      %v2316 = vadd.f32 %v2284, %v313
      %v2317 = vadd.f32 %v2285, %v313
      %v2318 = vadd.f32 %v2286, %v313
      %v2319 = vadd.f32 %v2287, %v313
      %v2320 = vadd.f32 %v2288, %v313
      %v2321 = vadd.f32 %v2289, %v313
      %v2322 = vadd.f32 %v2290, %v313
      %v2323 = vadd.f32 %v2291, %v313
      %v2324 = vadd.f32 %v2292, %v313
      %v2325 = vadd.f32 %v2293, %v313
      %v2326 = vadd.f32 %v2294, %v313
      %v2327 = vadd.f32 %v2295, %v313
      %v2328 = vadd.f32 %v2296, %v313
      %v2329 = vadd.f32 %v2297, %v313
      %v2330 = vadd.f32 %v2298, %v313
      %v2331 = vadd.f32 %v2299, %v313
      %v2332 = vadd.f32 %v2300, %v313
      %v2333 = vadd.f32 %v2301, %v313
      %v2334 = vadd.f32 %v2302, %v313
      %v2335 = vadd.f32 %v2303, %v313
      %v2336 = vadd.f32 %v2304, %v313
      %v2337 = vadd.f32 %v2305, %v313
      %v2338 = vadd.f32 %v2306, %v313
      %v2339 = vadd.f32 %v2307, %v313
      %v2340 = vadd.f32 %v2308, %v313
      %v2341 = vmax.f32 %v2309, 0.0
      %v2342 = vmax.f32 %v2310, 0.0
      %v2343 = vmax.f32 %v2311, 0.0
      %v2344 = vmax.f32 %v2312, 0.0
      %v2345 = vmax.f32 %v2313, 0.0
      %v2346 = vmax.f32 %v2314, 0.0
      %v2347 = vmax.f32 %v2315, 0.0
      %v2348 = vmax.f32 %v2316, 0.0
      %v2349 = vmax.f32 %v2317, 0.0
      %v2350 = vmax.f32 %v2318, 0.0
      %v2351 = vmax.f32 %v2319, 0.0
      %v2352 = vmax.f32 %v2320, 0.0
      %v2353 = vmax.f32 %v2321, 0.0
      %v2354 = vmax.f32 %v2322, 0.0
      %v2355 = vmax.f32 %v2323, 0.0
      %v2356 = vmax.f32 %v2324, 0.0
      %v2357 = vmax.f32 %v2325, 0.0
      %v2358 = vmax.f32 %v2326, 0.0
      %v2359 = vmax.f32 %v2327, 0.0
      %v2360 = vmax.f32 %v2328, 0.0
      %v2361 = vmax.f32 %v2329, 0.0
      %v2362 = vmax.f32 %v2330, 0.0
      %v2363 = vmax.f32 %v2331, 0.0
      %v2364 = vmax.f32 %v2332, 0.0
      %v2365 = vmax.f32 %v2333, 0.0
      %v2366 = vmax.f32 %v2334, 0.0
      %v2367 = vmax.f32 %v2335, 0.0
      %v2368 = vmax.f32 %v2336, 0.0
      %v2369 = vmax.f32 %v2337, 0.0
      %v2370 = vmax.f32 %v2338, 0.0
      %v2371 = vmax.f32 %v2339, 0.0
      %v2372 = vmax.f32 %v2340, 0.0
      %s2373 = scalar_lea.vmem %s2, 24
      %v2374 = vld [vmem:[%s2373] sm:$0xff]
      %v2375 = vld [vmem:[%s2373 + $0x8] sm:$0xff]
      %v2376 = vld [vmem:[%s2373 + $0x18] sm:$0xff]
      %v2377 = vld [vmem:[%s2373 + $0x20] sm:$0xff]
      %v2378 = vld [vmem:[%s2373 + $0x30] sm:$0xff]
      %v2379 = vld [vmem:[%s2373 + $0x38] sm:$0xff]
      %v2380 = vld [vmem:[%s2373 + $0x48] sm:$0xff]
      %v2381 = vld [vmem:[%s2373 + $0x50] sm:$0xff]
      %v2382 = vld [vmem:[%s2373 + $0x60] sm:$0xff]
      %v2383 = vld [vmem:[%s2373 + $0x68] sm:$0xff]
      %v2384 = vld [vmem:[%s2373 + $0x78] sm:$0xff]
      %v2385 = vld [vmem:[%s2373 + $0x80] sm:$0xff]
      %v2386 = vld [vmem:[%s2373 + $0x90] sm:$0xff]
      %v2387 = vld [vmem:[%s2373 + $0x98] sm:$0xff]
      %v2388 = vld [vmem:[%s2373 + $0xa8] sm:$0xff]
      %v2389 = vld [vmem:[%s2373 + $0xb0] sm:$0xff]
      %v2390 = vld [vmem:[%s2373 + $0xc0] sm:$0xff]
      %v2391 = vld [vmem:[%s2373 + $0xc8] sm:$0xff]
      %v2392 = vld [vmem:[%s2373 + $0xd8] sm:$0xff]
      %v2393 = vld [vmem:[%s2373 + $0xe0] sm:$0xff]
      %v2394 = vld [vmem:[%s2373 + $0xf0] sm:$0xff]
      %v2395 = vld [vmem:[%s2373 + $0xf8] sm:$0xff]
      %v2396 = vld [vmem:[%s2373 + $0x108] sm:$0xff]
      %v2397 = vld [vmem:[%s2373 + $0x110] sm:$0xff]
      %v2398 = vld [vmem:[%s2373 + $0x120] sm:$0xff]
      %v2399 = vld [vmem:[%s2373 + $0x128] sm:$0xff]
      %v2400 = vld [vmem:[%s2373 + $0x138] sm:$0xff]
      %v2401 = vld [vmem:[%s2373 + $0x140] sm:$0xff]
      %v2402 = vld [vmem:[%s2373 + $0x150] sm:$0xff]
      %v2403 = vld [vmem:[%s2373 + $0x158] sm:$0xff]
      %v2404 = vld [vmem:[%s2373 + $0x168] sm:$0xff]
      %v2405 = vld [vmem:[%s2373 + $0x170] sm:$0xff]
      %v2406 = vmul.f32 %v2341, %v2374
      %v2407 = vmul.f32 %v2342, %v2375
      %v2408 = vmul.f32 %v2343, %v2376
      %v2409 = vmul.f32 %v2344, %v2377
      %v2410 = vmul.f32 %v2345, %v2378
      %v2411 = vmul.f32 %v2346, %v2379
      %v2412 = vmul.f32 %v2347, %v2380
      %v2413 = vmul.f32 %v2348, %v2381
      %v2414 = vmul.f32 %v2349, %v2382
      %v2415 = vmul.f32 %v2350, %v2383
      %v2416 = vmul.f32 %v2351, %v2384
      %v2417 = vmul.f32 %v2352, %v2385
      %v2418 = vmul.f32 %v2353, %v2386
      %v2419 = vmul.f32 %v2354, %v2387
      %v2420 = vmul.f32 %v2355, %v2388
      %v2421 = vmul.f32 %v2356, %v2389
      %v2422 = vmul.f32 %v2357, %v2390
      %v2423 = vmul.f32 %v2358, %v2391
      %v2424 = vmul.f32 %v2359, %v2392
      %v2425 = vmul.f32 %v2360, %v2393
      %v2426 = vmul.f32 %v2361, %v2394
      %v2427 = vmul.f32 %v2362, %v2395
      %v2428 = vmul.f32 %v2363, %v2396
      %v2429 = vmul.f32 %v2364, %v2397
      %v2430 = vmul.f32 %v2365, %v2398
      %v2431 = vmul.f32 %v2366, %v2399
      %v2432 = vmul.f32 %v2367, %v2400
      %v2433 = vmul.f32 %v2368, %v2401
      %v2434 = vmul.f32 %v2369, %v2402
      %v2435 = vmul.f32 %v2370, %v2403
      %v2436 = vmul.f32 %v2371, %v2404
      %v2437 = vmul.f32 %v2372, %v2405
      %v2438 = vpack.c.bf16 %v2407, %v2406
      %v2439 = vpack.c.bf16 %v2409, %v2408
      %v2440 = vpack.c.bf16 %v2411, %v2410
      %v2441 = vpack.c.bf16 %v2413, %v2412
      %v2442 = vpack.c.bf16 %v2415, %v2414
      %v2443 = vpack.c.bf16 %v2417, %v2416
      %v2444 = vpack.c.bf16 %v2419, %v2418
      %v2445 = vpack.c.bf16 %v2421, %v2420
      %v2446 = vpack.c.bf16 %v2423, %v2422
      %v2447 = vpack.c.bf16 %v2425, %v2424
      %v2448 = vpack.c.bf16 %v2427, %v2426
      %v2449 = vpack.c.bf16 %v2429, %v2428
      %v2450 = vpack.c.bf16 %v2431, %v2430
      %v2451 = vpack.c.bf16 %v2433, %v2432
      %v2452 = vpack.c.bf16 %v2435, %v2434
      %v2453 = vpack.c.bf16 %v2437, %v2436
      %s2454 = scalar_lea.vmem %s1, 192
      %v2455 = vld [vmem:[%s2454] sm:$0xf]
      %v2456 = vld [vmem:[%s2454 + $0x4] sm:$0xf]
      %v2457 = vld [vmem:[%s2454 + $0x8] sm:$0xf]
      %v2458 = vld [vmem:[%s2454 + $0xc] sm:$0xf]
      %v2459 = vld [vmem:[%s2454 + $0x10] sm:$0xf]
      %v2460 = vld [vmem:[%s2454 + $0x14] sm:$0xf]
      %v2461 = vld [vmem:[%s2454 + $0x18] sm:$0xf]
      %v2462 = vld [vmem:[%s2454 + $0x1c] sm:$0xf]
      %v2463 = vld [vmem:[%s2454 + $0x20] sm:$0xf]
      %v2464 = vld [vmem:[%s2454 + $0x24] sm:$0xf]
      %v2465 = vld [vmem:[%s2454 + $0x28] sm:$0xf]
      %v2466 = vld [vmem:[%s2454 + $0x2c] sm:$0xf]
      %v2467 = vld [vmem:[%s2454 + $0x30] sm:$0xf]
      %v2468 = vld [vmem:[%s2454 + $0x34] sm:$0xf]
      %v2469 = vld [vmem:[%s2454 + $0x38] sm:$0xf]
      %v2470 = vld [vmem:[%s2454 + $0x3c] sm:$0xf]
      %v2487 = vunpack.c.l.b16 %v2455
      %v2488 = vunpack.c.l.b16 %v2456
      %v2489 = vunpack.c.l.b16 %v2457
      %v2490 = vunpack.c.l.b16 %v2458
      %v2491 = vunpack.c.l.b16 %v2459
      %v2492 = vunpack.c.l.b16 %v2460
      %v2493 = vunpack.c.l.b16 %v2461
      %v2494 = vunpack.c.l.b16 %v2462
      %v2495 = vunpack.c.l.b16 %v2463
      %v2496 = vunpack.c.l.b16 %v2464
      %v2497 = vunpack.c.l.b16 %v2465
      %v2498 = vunpack.c.l.b16 %v2466
      %v2499 = vunpack.c.l.b16 %v2467
      %v2500 = vunpack.c.l.b16 %v2468
      %v2501 = vunpack.c.l.b16 %v2469
      %v2502 = vunpack.c.l.b16 %v2470
      %v2503 = vpack.c.b16 %v2488, %v2487
      %v2504 = vpack.c.b16 %v2490, %v2489
      %v2505 = vpack.c.b16 %v2492, %v2491
      %v2506 = vpack.c.b16 %v2494, %v2493
      %v2507 = vpack.c.b16 %v2496, %v2495
      %v2508 = vpack.c.b16 %v2498, %v2497
      %v2509 = vpack.c.b16 %v2500, %v2499
      %v2510 = vpack.c.b16 %v2502, %v2501
      %2519 = vmatprep.subr.bf16.mxu0 0
      %2520 = vmatpush1.bf16.msra.mxu0 %v2503
      %2521 = vmatprep.subr.bf16.mxu0 0
      %2522 = vmatpush1.bf16.msra.mxu0 %v2504
      %2523 = vmatprep.subr.bf16.mxu0 0
      %2524 = vmatpush1.bf16.msra.mxu0 %v2505
      %2525 = vmatprep.subr.bf16.mxu0 0
      %2526 = vmatpush1.bf16.msra.mxu0 %v2506
      %2527 = vmatprep.subr.bf16.mxu0 0
      %2528 = vmatpush1.bf16.msra.mxu0 %v2507
      %2529 = vmatprep.subr.bf16.mxu0 0
      %2530 = vmatpush1.bf16.msra.mxu0 %v2508
      %2531 = vmatprep.subr.bf16.mxu0 0
      %2532 = vmatpush1.bf16.msra.mxu0 %v2509
      %2533 = vmatprep.subr.bf16.mxu0 0
      %2534 = vmatpush1.bf16.msra.mxu0 %v2510
      %2535 = vmatprep.subr.bf16.mxu0 0
      %2536 = vmatpush1.bf16.msra.mxu0 0
      %2537 = vmatprep.subr.bf16.mxu0 0
      %2538 = vmatpush1.bf16.msra.mxu0 0
      %2539 = vmatprep.subr.bf16.mxu0 0
      %2540 = vmatpush1.bf16.msra.mxu0 0
      %2541 = vmatprep.subr.bf16.mxu0 0
      %2542 = vmatpush1.bf16.msra.mxu0 0
      %2543 = vmatprep.subr.bf16.mxu0 0
      %2544 = vmatpush1.bf16.msra.mxu0 0
      %2545 = vmatprep.subr.bf16.mxu0 0
      %2546 = vmatpush1.bf16.msra.mxu0 0
      %2547 = vmatprep.subr.bf16.mxu0 0
      %2548 = vmatpush1.bf16.msra.mxu0 0
      %2549 = vmatprep.subr.bf16.mxu0 0
      %2550 = vmatpush1.bf16.msra.mxu0 0
      %2551 = vmatprep.mubr.bf16.mxu0 0
      %2552 = vmatmul.mubr.bf16.gmra.mrb[0].mxu0 %v2438
      %v2553 = vpop.f32.mrb[0].mxu0
      %v2554 = vadd.f32 0.0, %v2553
      %v2555 = vpop.f32.mrb[0].mxu0
      %v2556 = vpop.f32.mrb[0].mxu0
      %v2557 = vadd.f32 0.0, %v2556
      %v2558 = vpop.f32.mrb[0].mxu0
      %2559 = vmatprep.mubr.bf16.mxu0 0
      %2560 = vmatmul.mubr.bf16.gmra.mrb[0].mxu0 %v2439
      %v2561 = vpop.f32.mrb[0].mxu0
      %v2562 = vadd.f32 0.0, %v2561
      %v2563 = vpop.f32.mrb[0].mxu0
      %v2564 = vpop.f32.mrb[0].mxu0
      %v2565 = vadd.f32 0.0, %v2564
      %v2566 = vpop.f32.mrb[0].mxu0
      %2567 = vmatprep.mubr.bf16.mxu0 0
      %2568 = vmatmul.mubr.bf16.gmra.mrb[0].mxu0 %v2440
      %v2569 = vpop.f32.mrb[0].mxu0
      %v2570 = vadd.f32 0.0, %v2569
      %v2571 = vpop.f32.mrb[0].mxu0
      %v2572 = vpop.f32.mrb[0].mxu0
      %v2573 = vadd.f32 0.0, %v2572
      %v2574 = vpop.f32.mrb[0].mxu0
      %2575 = vmatprep.mubr.bf16.mxu0 0
      %2576 = vmatmul.mubr.bf16.gmra.mrb[0].mxu0 %v2441
      %v2577 = vpop.f32.mrb[0].mxu0
      %v2578 = vadd.f32 0.0, %v2577
      %v2579 = vpop.f32.mrb[0].mxu0
      %v2580 = vpop.f32.mrb[0].mxu0
      %v2581 = vadd.f32 0.0, %v2580
      %v2582 = vpop.f32.mrb[0].mxu0
      %2583 = vmatprep.mubr.bf16.mxu0 0
      %2584 = vmatmul.mubr.bf16.gmra.mrb[0].mxu0 %v2442
      %v2585 = vpop.f32.mrb[0].mxu0
      %v2586 = vadd.f32 0.0, %v2585
      %v2587 = vpop.f32.mrb[0].mxu0
      %v2588 = vpop.f32.mrb[0].mxu0
      %v2589 = vadd.f32 0.0, %v2588
      %v2590 = vpop.f32.mrb[0].mxu0
      %2591 = vmatprep.mubr.bf16.mxu0 0
      %2592 = vmatmul.mubr.bf16.gmra.mrb[0].mxu0 %v2443
      %v2593 = vpop.f32.mrb[0].mxu0
      %v2594 = vadd.f32 0.0, %v2593
      %v2595 = vpop.f32.mrb[0].mxu0
      %v2596 = vpop.f32.mrb[0].mxu0
      %v2597 = vadd.f32 0.0, %v2596
      %v2598 = vpop.f32.mrb[0].mxu0
      %2599 = vmatprep.mubr.bf16.mxu0 0
      %2600 = vmatmul.mubr.bf16.gmra.mrb[0].mxu0 %v2444
      %v2601 = vpop.f32.mrb[0].mxu0
      %v2602 = vadd.f32 0.0, %v2601
      %v2603 = vpop.f32.mrb[0].mxu0
      %v2604 = vpop.f32.mrb[0].mxu0
      %v2605 = vadd.f32 0.0, %v2604
      %v2606 = vpop.f32.mrb[0].mxu0
      %2607 = vmatprep.mubr.bf16.mxu0 0
      %2608 = vmatmul.mubr.bf16.gmra.mrb[0].mxu0 %v2445
      %v2609 = vpop.f32.mrb[0].mxu0
      %v2610 = vadd.f32 0.0, %v2609
      %v2611 = vpop.f32.mrb[0].mxu0
      %v2612 = vpop.f32.mrb[0].mxu0
      %v2613 = vadd.f32 0.0, %v2612
      %v2614 = vpop.f32.mrb[0].mxu0
      %2615 = vmatprep.mubr.bf16.mxu0 0
      %2616 = vmatmul.mubr.bf16.gmra.mrb[0].mxu0 %v2446
      %v2617 = vpop.f32.mrb[0].mxu0
      %v2618 = vadd.f32 0.0, %v2617
      %v2619 = vpop.f32.mrb[0].mxu0
      %v2620 = vpop.f32.mrb[0].mxu0
      %v2621 = vadd.f32 0.0, %v2620
      %v2622 = vpop.f32.mrb[0].mxu0
      %2623 = vmatprep.mubr.bf16.mxu0 0
      %2624 = vmatmul.mubr.bf16.gmra.mrb[0].mxu0 %v2447
      %v2625 = vpop.f32.mrb[0].mxu0
      %v2626 = vadd.f32 0.0, %v2625
      %v2627 = vpop.f32.mrb[0].mxu0
      %v2628 = vpop.f32.mrb[0].mxu0
      %v2629 = vadd.f32 0.0, %v2628
      %v2630 = vpop.f32.mrb[0].mxu0
      %2631 = vmatprep.mubr.bf16.mxu0 0
      %2632 = vmatmul.mubr.bf16.gmra.mrb[0].mxu0 %v2448
      %v2633 = vpop.f32.mrb[0].mxu0
      %v2634 = vadd.f32 0.0, %v2633
      %v2635 = vpop.f32.mrb[0].mxu0
      %v2636 = vpop.f32.mrb[0].mxu0
      %v2637 = vadd.f32 0.0, %v2636
      %v2638 = vpop.f32.mrb[0].mxu0
      %2639 = vmatprep.mubr.bf16.mxu0 0
      %2640 = vmatmul.mubr.bf16.gmra.mrb[0].mxu0 %v2449
      %v2641 = vpop.f32.mrb[0].mxu0
      %v2642 = vadd.f32 0.0, %v2641
      %v2643 = vpop.f32.mrb[0].mxu0
      %v2644 = vpop.f32.mrb[0].mxu0
      %v2645 = vadd.f32 0.0, %v2644
      %v2646 = vpop.f32.mrb[0].mxu0
      %2647 = vmatprep.mubr.bf16.mxu0 0
      %2648 = vmatmul.mubr.bf16.gmra.mrb[0].mxu0 %v2450
      %v2649 = vpop.f32.mrb[0].mxu0
      %v2650 = vadd.f32 0.0, %v2649
      %v2651 = vpop.f32.mrb[0].mxu0
      %v2652 = vpop.f32.mrb[0].mxu0
      %v2653 = vadd.f32 0.0, %v2652
      %v2654 = vpop.f32.mrb[0].mxu0
      %2655 = vmatprep.mubr.bf16.mxu0 0
      %2656 = vmatmul.mubr.bf16.gmra.mrb[0].mxu0 %v2451
      %v2657 = vpop.f32.mrb[0].mxu0
      %v2658 = vadd.f32 0.0, %v2657
      %v2659 = vpop.f32.mrb[0].mxu0
      %v2660 = vpop.f32.mrb[0].mxu0
      %v2661 = vadd.f32 0.0, %v2660
      %v2662 = vpop.f32.mrb[0].mxu0
      %2663 = vmatprep.mubr.bf16.mxu0 0
      %2664 = vmatmul.mubr.bf16.gmra.mrb[0].mxu0 %v2452
      %v2665 = vpop.f32.mrb[0].mxu0
      %v2666 = vadd.f32 0.0, %v2665
      %v2667 = vpop.f32.mrb[0].mxu0
      %v2668 = vpop.f32.mrb[0].mxu0
      %v2669 = vadd.f32 0.0, %v2668
      %v2670 = vpop.f32.mrb[0].mxu0
      %2671 = vmatprep.mubr.bf16.mxu0 0
      %2672 = vmatmul.mubr.bf16.gmra.mrb[0].mxu0 %v2453
      %v2673 = vpop.f32.mrb[0].mxu0
      %v2674 = vadd.f32 0.0, %v2673
      %v2675 = vpop.f32.mrb[0].mxu0
      %v2676 = vpop.f32.mrb[0].mxu0
      %v2677 = vadd.f32 0.0, %v2676
      %v2678 = vpop.f32.mrb[0].mxu0
      %2679 = vdwg.mxu0
      %v2680 = vadd.f32 %v2180, %v2554
      %v2681 = vadd.f32 %v2181, %v2557
      %v2682 = vadd.f32 %v2182, %v2562
      %v2683 = vadd.f32 %v2183, %v2565
      %v2684 = vadd.f32 %v2184, %v2570
      %v2685 = vadd.f32 %v2185, %v2573
      %v2686 = vadd.f32 %v2186, %v2578
      %v2687 = vadd.f32 %v2187, %v2581
      %v2688 = vadd.f32 %v2188, %v2586
      %v2689 = vadd.f32 %v2189, %v2589
      %v2690 = vadd.f32 %v2190, %v2594
      %v2691 = vadd.f32 %v2191, %v2597
      %v2692 = vadd.f32 %v2192, %v2602
      %v2693 = vadd.f32 %v2193, %v2605
      %v2694 = vadd.f32 %v2194, %v2610
      %v2695 = vadd.f32 %v2195, %v2613
      %v2696 = vadd.f32 %v2196, %v2618
      %v2697 = vadd.f32 %v2197, %v2621
      %v2698 = vadd.f32 %v2198, %v2626
      %v2699 = vadd.f32 %v2199, %v2629
      %v2700 = vadd.f32 %v2200, %v2634
      %v2701 = vadd.f32 %v2201, %v2637
      %v2702 = vadd.f32 %v2202, %v2642
      %v2703 = vadd.f32 %v2203, %v2645
      %v2704 = vadd.f32 %v2204, %v2650
      %v2705 = vadd.f32 %v2205, %v2653
      %v2706 = vadd.f32 %v2206, %v2658
      %v2707 = vadd.f32 %v2207, %v2661
      %v2708 = vadd.f32 %v2208, %v2666
      %v2709 = vadd.f32 %v2209, %v2669
      %v2710 = vadd.f32 %v2210, %v2674
      %v2711 = vadd.f32 %v2211, %v2677
      %v2712 = vld [vmem:[%s2212] sm:$0xf]
      %v2713 = vld [vmem:[%s2212 + $0x4] sm:$0xf]
      %v2714 = vld [vmem:[%s2212 + $0x8] sm:$0x1]
      %v2715 = vld [vmem:[%s2212 + $0xc] sm:$0xf]
      %v2716 = vld [vmem:[%s2212 + $0x10] sm:$0xf]
      %v2717 = vld [vmem:[%s2212 + $0x14] sm:$0x1]
      %v2718 = vld [vmem:[%s2212 + $0x18] sm:$0xf]
      %v2719 = vld [vmem:[%s2212 + $0x1c] sm:$0xf]
      %v2720 = vld [vmem:[%s2212 + $0x20] sm:$0x1]
      %v2721 = vld [vmem:[%s2212 + $0x24] sm:$0xf]
      %v2722 = vld [vmem:[%s2212 + $0x28] sm:$0xf]
      %v2723 = vld [vmem:[%s2212 + $0x2c] sm:$0x1]
      %v2724 = vld [vmem:[%s2212 + $0x30] sm:$0xf]
      %v2725 = vld [vmem:[%s2212 + $0x34] sm:$0xf]
      %v2726 = vld [vmem:[%s2212 + $0x38] sm:$0x1]
      %v2727 = vld [vmem:[%s2212 + $0x3c] sm:$0xf]
      %v2728 = vld [vmem:[%s2212 + $0x40] sm:$0xf]
      %v2729 = vld [vmem:[%s2212 + $0x44] sm:$0x1]
      %v2730 = vld [vmem:[%s2212 + $0x48] sm:$0xf]
      %v2731 = vld [vmem:[%s2212 + $0x4c] sm:$0xf]
      %v2732 = vld [vmem:[%s2212 + $0x50] sm:$0x1]
      %v2733 = vld [vmem:[%s2212 + $0x54] sm:$0xf]
      %v2734 = vld [vmem:[%s2212 + $0x58] sm:$0xf]
      %v2735 = vld [vmem:[%s2212 + $0x5c] sm:$0x1]
      %v2736 = vld [vmem:[%s2212 + $0x60] sm:$0xf]
      %v2737 = vld [vmem:[%s2212 + $0x64] sm:$0xf]
      %v2738 = vld [vmem:[%s2212 + $0x68] sm:$0x1]
      %v2739 = vld [vmem:[%s2212 + $0x6c] sm:$0xf]
      %v2740 = vld [vmem:[%s2212 + $0x70] sm:$0xf]
      %v2741 = vld [vmem:[%s2212 + $0x74] sm:$0x1]
      %v2742 = vld [vmem:[%s2212 + $0x78] sm:$0xf]
      %v2743 = vld [vmem:[%s2212 + $0x7c] sm:$0xf]
      %v2744 = vld [vmem:[%s2212 + $0x80] sm:$0x1]
      %v2745 = vld [vmem:[%s2212 + $0x84] sm:$0xf]
      %v2746 = vld [vmem:[%s2212 + $0x88] sm:$0xf]
      %v2747 = vld [vmem:[%s2212 + $0x8c] sm:$0x1]
      %v2748 = vld [vmem:[%s2212 + $0x90] sm:$0xf]
      %v2749 = vld [vmem:[%s2212 + $0x94] sm:$0xf]
      %v2750 = vld [vmem:[%s2212 + $0x98] sm:$0x1]
      %v2751 = vld [vmem:[%s2212 + $0x9c] sm:$0xf]
      %v2752 = vld [vmem:[%s2212 + $0xa0] sm:$0xf]
      %v2753 = vld [vmem:[%s2212 + $0xa4] sm:$0x1]
      %v2754 = vld [vmem:[%s2212 + $0xa8] sm:$0xf]
      %v2755 = vld [vmem:[%s2212 + $0xac] sm:$0xf]
      %v2756 = vld [vmem:[%s2212 + $0xb0] sm:$0x1]
      %v2757 = vld [vmem:[%s2212 + $0xb4] sm:$0xf]
      %v2758 = vld [vmem:[%s2212 + $0xb8] sm:$0xf]
      %v2759 = vld [vmem:[%s2212 + $0xbc] sm:$0x1]
      %v2760 = vunpack.c.l.bf16 %v2712
      %v2761 = vunpack.c.l.bf16 %v2713
      %v2762 = vunpack.c.l.bf16 %v2714
      %v2763 = vunpack.c.l.bf16 %v2715
      %v2764 = vunpack.c.l.bf16 %v2716
      %v2765 = vunpack.c.l.bf16 %v2717
      %v2766 = vunpack.c.l.bf16 %v2718
      %v2767 = vunpack.c.l.bf16 %v2719
      %v2768 = vunpack.c.l.bf16 %v2720
      %v2769 = vunpack.c.l.bf16 %v2721
      %v2770 = vunpack.c.l.bf16 %v2722
      %v2771 = vunpack.c.l.bf16 %v2723
      %v2772 = vunpack.c.l.bf16 %v2724
      %v2773 = vunpack.c.l.bf16 %v2725
      %v2774 = vunpack.c.l.bf16 %v2726
      %v2775 = vunpack.c.l.bf16 %v2727
      %v2776 = vunpack.c.l.bf16 %v2728
      %v2777 = vunpack.c.l.bf16 %v2729
      %v2778 = vunpack.c.l.bf16 %v2730
      %v2779 = vunpack.c.l.bf16 %v2731
      %v2780 = vunpack.c.l.bf16 %v2732
      %v2781 = vunpack.c.l.bf16 %v2733
      %v2782 = vunpack.c.l.bf16 %v2734
      %v2783 = vunpack.c.l.bf16 %v2735
      %v2784 = vunpack.c.l.bf16 %v2736
      %v2785 = vunpack.c.l.bf16 %v2737
      %v2786 = vunpack.c.l.bf16 %v2738
      %v2787 = vunpack.c.l.bf16 %v2739
      %v2788 = vunpack.c.l.bf16 %v2740
      %v2789 = vunpack.c.l.bf16 %v2741
      %v2790 = vunpack.c.l.bf16 %v2742
      %v2791 = vunpack.c.l.bf16 %v2743
      %v2792 = vunpack.c.l.bf16 %v2744
      %v2793 = vunpack.c.l.bf16 %v2745
      %v2794 = vunpack.c.l.bf16 %v2746
      %v2795 = vunpack.c.l.bf16 %v2747
      %v2796 = vunpack.c.l.bf16 %v2748
      %v2797 = vunpack.c.l.bf16 %v2749
      %v2798 = vunpack.c.l.bf16 %v2750
      %v2799 = vunpack.c.l.bf16 %v2751
      %v2800 = vunpack.c.l.bf16 %v2752
      %v2801 = vunpack.c.l.bf16 %v2753
      %v2802 = vunpack.c.l.bf16 %v2754
      %v2803 = vunpack.c.l.bf16 %v2755
      %v2804 = vunpack.c.l.bf16 %v2756
      %v2805 = vunpack.c.l.bf16 %v2757
      %v2806 = vunpack.c.l.bf16 %v2758
      %v2807 = vunpack.c.l.bf16 %v2759
      %v2808 = vmul.f32 %v2760, %v306
      %v2809 = vmul.f32 %v2761, %v306
      %v2810 = vmul.f32 %v2762, %v306
      %v2811 = vmul.f32 %v2763, %v306
      %v2812 = vmul.f32 %v2764, %v306
      %v2813 = vmul.f32 %v2765, %v306
      %v2814 = vmul.f32 %v2766, %v306
      %v2815 = vmul.f32 %v2767, %v306
      %v2816 = vmul.f32 %v2768, %v306
      %v2817 = vmul.f32 %v2769, %v306
      %v2818 = vmul.f32 %v2770, %v306
      %v2819 = vmul.f32 %v2771, %v306
      %v2820 = vmul.f32 %v2772, %v306
      %v2821 = vmul.f32 %v2773, %v306
      %v2822 = vmul.f32 %v2774, %v306
      %v2823 = vmul.f32 %v2775, %v306
      %v2824 = vmul.f32 %v2776, %v306
      %v2825 = vmul.f32 %v2777, %v306
      %v2826 = vmul.f32 %v2778, %v306
      %v2827 = vmul.f32 %v2779, %v306
      %v2828 = vmul.f32 %v2780, %v306
      %v2829 = vmul.f32 %v2781, %v306
      %v2830 = vmul.f32 %v2782, %v306
      %v2831 = vmul.f32 %v2783, %v306
      %v2832 = vmul.f32 %v2784, %v306
      %v2833 = vmul.f32 %v2785, %v306
      %v2834 = vmul.f32 %v2786, %v306
      %v2835 = vmul.f32 %v2787, %v306
      %v2836 = vmul.f32 %v2788, %v306
      %v2837 = vmul.f32 %v2789, %v306
      %v2838 = vmul.f32 %v2790, %v306
      %v2839 = vmul.f32 %v2791, %v306
      %v2840 = vmul.f32 %v2792, %v306
      %v2841 = vmul.f32 %v2793, %v306
      %v2842 = vmul.f32 %v2794, %v306
      %v2843 = vmul.f32 %v2795, %v306
      %v2844 = vmul.f32 %v2796, %v306
      %v2845 = vmul.f32 %v2797, %v306
      %v2846 = vmul.f32 %v2798, %v306
      %v2847 = vmul.f32 %v2799, %v306
      %v2848 = vmul.f32 %v2800, %v306
      %v2849 = vmul.f32 %v2801, %v306
      %v2850 = vmul.f32 %v2802, %v306
      %v2851 = vmul.f32 %v2803, %v306
      %v2852 = vmul.f32 %v2804, %v306
      %v2853 = vmul.f32 %v2805, %v306
      %v2854 = vmul.f32 %v2806, %v306
      %v2855 = vmul.f32 %v2807, %v306
      %v2856 = vadd.f32 %v2808, %v313
      %v2857 = vadd.f32 %v2809, %v313
      %v2858 = vadd.f32 %v2810, %v313
      %v2859 = vadd.f32 %v2811, %v313
      %v2860 = vadd.f32 %v2812, %v313
      %v2861 = vadd.f32 %v2813, %v313
      %v2862 = vadd.f32 %v2814, %v313
      %v2863 = vadd.f32 %v2815, %v313
      %v2864 = vadd.f32 %v2816, %v313
      %v2865 = vadd.f32 %v2817, %v313
      %v2866 = vadd.f32 %v2818, %v313
      %v2867 = vadd.f32 %v2819, %v313
      %v2868 = vadd.f32 %v2820, %v313
      %v2869 = vadd.f32 %v2821, %v313
      %v2870 = vadd.f32 %v2822, %v313
      %v2871 = vadd.f32 %v2823, %v313
      %v2872 = vadd.f32 %v2824, %v313
      %v2873 = vadd.f32 %v2825, %v313
      %v2874 = vadd.f32 %v2826, %v313
      %v2875 = vadd.f32 %v2827, %v313
      %v2876 = vadd.f32 %v2828, %v313
      %v2877 = vadd.f32 %v2829, %v313
      %v2878 = vadd.f32 %v2830, %v313
      %v2879 = vadd.f32 %v2831, %v313
      %v2880 = vadd.f32 %v2832, %v313
      %v2881 = vadd.f32 %v2833, %v313
      %v2882 = vadd.f32 %v2834, %v313
      %v2883 = vadd.f32 %v2835, %v313
      %v2884 = vadd.f32 %v2836, %v313
      %v2885 = vadd.f32 %v2837, %v313
      %v2886 = vadd.f32 %v2838, %v313
      %v2887 = vadd.f32 %v2839, %v313
      %v2888 = vadd.f32 %v2840, %v313
      %v2889 = vadd.f32 %v2841, %v313
      %v2890 = vadd.f32 %v2842, %v313
      %v2891 = vadd.f32 %v2843, %v313
      %v2892 = vadd.f32 %v2844, %v313
      %v2893 = vadd.f32 %v2845, %v313
      %v2894 = vadd.f32 %v2846, %v313
      %v2895 = vadd.f32 %v2847, %v313
      %v2896 = vadd.f32 %v2848, %v313
      %v2897 = vadd.f32 %v2849, %v313
      %v2898 = vadd.f32 %v2850, %v313
      %v2899 = vadd.f32 %v2851, %v313
      %v2900 = vadd.f32 %v2852, %v313
      %v2901 = vadd.f32 %v2853, %v313
      %v2902 = vadd.f32 %v2854, %v313
      %v2903 = vadd.f32 %v2855, %v313
      %v2904 = vmax.f32 %v2856, 0.0
      %v2905 = vmax.f32 %v2857, 0.0
      %v2906 = vmax.f32 %v2858, 0.0
      %v2907 = vmax.f32 %v2859, 0.0
      %v2908 = vmax.f32 %v2860, 0.0
      %v2909 = vmax.f32 %v2861, 0.0
      %v2910 = vmax.f32 %v2862, 0.0
      %v2911 = vmax.f32 %v2863, 0.0
      %v2912 = vmax.f32 %v2864, 0.0
      %v2913 = vmax.f32 %v2865, 0.0
      %v2914 = vmax.f32 %v2866, 0.0
      %v2915 = vmax.f32 %v2867, 0.0
      %v2916 = vmax.f32 %v2868, 0.0
      %v2917 = vmax.f32 %v2869, 0.0
      %v2918 = vmax.f32 %v2870, 0.0
      %v2919 = vmax.f32 %v2871, 0.0
      %v2920 = vmax.f32 %v2872, 0.0
      %v2921 = vmax.f32 %v2873, 0.0
      %v2922 = vmax.f32 %v2874, 0.0
      %v2923 = vmax.f32 %v2875, 0.0
      %v2924 = vmax.f32 %v2876, 0.0
      %v2925 = vmax.f32 %v2877, 0.0
      %v2926 = vmax.f32 %v2878, 0.0
      %v2927 = vmax.f32 %v2879, 0.0
      %v2928 = vmax.f32 %v2880, 0.0
      %v2929 = vmax.f32 %v2881, 0.0
      %v2930 = vmax.f32 %v2882, 0.0
      %v2931 = vmax.f32 %v2883, 0.0
      %v2932 = vmax.f32 %v2884, 0.0
      %v2933 = vmax.f32 %v2885, 0.0
      %v2934 = vmax.f32 %v2886, 0.0
      %v2935 = vmax.f32 %v2887, 0.0
      %v2936 = vmax.f32 %v2888, 0.0
      %v2937 = vmax.f32 %v2889, 0.0
      %v2938 = vmax.f32 %v2890, 0.0
      %v2939 = vmax.f32 %v2891, 0.0
      %v2940 = vmax.f32 %v2892, 0.0
      %v2941 = vmax.f32 %v2893, 0.0
      %v2942 = vmax.f32 %v2894, 0.0
      %v2943 = vmax.f32 %v2895, 0.0
      %v2944 = vmax.f32 %v2896, 0.0
      %v2945 = vmax.f32 %v2897, 0.0
      %v2946 = vmax.f32 %v2898, 0.0
      %v2947 = vmax.f32 %v2899, 0.0
      %v2948 = vmax.f32 %v2900, 0.0
      %v2949 = vmax.f32 %v2901, 0.0
      %v2950 = vmax.f32 %v2902, 0.0
      %v2951 = vmax.f32 %v2903, 0.0
      %v2952 = vld [vmem:[%s2373 + $0x1] sm:$0xff]
      %v2953 = vld [vmem:[%s2373 + $0x9] sm:$0xff]
      %v2954 = vld [vmem:[%s2373 + $0x19] sm:$0xff]
      %v2955 = vld [vmem:[%s2373 + $0x21] sm:$0xff]
      %v2956 = vld [vmem:[%s2373 + $0x31] sm:$0xff]
      %v2957 = vld [vmem:[%s2373 + $0x39] sm:$0xff]
      %v2958 = vld [vmem:[%s2373 + $0x49] sm:$0xff]
      %v2959 = vld [vmem:[%s2373 + $0x51] sm:$0xff]
      %v2960 = vld [vmem:[%s2373 + $0x61] sm:$0xff]
      %v2961 = vld [vmem:[%s2373 + $0x69] sm:$0xff]
      %v2962 = vld [vmem:[%s2373 + $0x79] sm:$0xff]
      %v2963 = vld [vmem:[%s2373 + $0x81] sm:$0xff]
      %v2964 = vld [vmem:[%s2373 + $0x91] sm:$0xff]
      %v2965 = vld [vmem:[%s2373 + $0x99] sm:$0xff]
      %v2966 = vld [vmem:[%s2373 + $0xa9] sm:$0xff]
      %v2967 = vld [vmem:[%s2373 + $0xb1] sm:$0xff]
      %v2968 = vld [vmem:[%s2373 + $0xc1] sm:$0xff]
      %v2969 = vld [vmem:[%s2373 + $0xc9] sm:$0xff]
      %v2970 = vld [vmem:[%s2373 + $0xd9] sm:$0xff]
      %v2971 = vld [vmem:[%s2373 + $0xe1] sm:$0xff]
      %v2972 = vld [vmem:[%s2373 + $0xf1] sm:$0xff]
      %v2973 = vld [vmem:[%s2373 + $0xf9] sm:$0xff]
      %v2974 = vld [vmem:[%s2373 + $0x109] sm:$0xff]
      %v2975 = vld [vmem:[%s2373 + $0x111] sm:$0xff]
      %v2976 = vld [vmem:[%s2373 + $0x121] sm:$0xff]
      %v2977 = vld [vmem:[%s2373 + $0x129] sm:$0xff]
      %v2978 = vld [vmem:[%s2373 + $0x139] sm:$0xff]
      %v2979 = vld [vmem:[%s2373 + $0x141] sm:$0xff]
      %v2980 = vld [vmem:[%s2373 + $0x151] sm:$0xff]
      %v2981 = vld [vmem:[%s2373 + $0x159] sm:$0xff]
      %v2982 = vld [vmem:[%s2373 + $0x169] sm:$0xff]
      %v2983 = vld [vmem:[%s2373 + $0x171] sm:$0xff]
      %v3016 = vrot.slane %v2952, 7
      %v3017 = vrot.slane %v2953, 7
      %v3018 = vsel %vm715, %v3016, %v3017
      %v3019 = vrot.slane %v2954, 7
      %v3020 = vrot.slane %v2955, 7
      %v3021 = vsel %vm715, %v3019, %v3020
      %v3022 = vrot.slane %v2956, 7
      %v3023 = vrot.slane %v2957, 7
      %v3024 = vsel %vm715, %v3022, %v3023
      %v3025 = vrot.slane %v2958, 7
      %v3026 = vrot.slane %v2959, 7
      %v3027 = vsel %vm715, %v3025, %v3026
      %v3028 = vrot.slane %v2960, 7
      %v3029 = vrot.slane %v2961, 7
      %v3030 = vsel %vm715, %v3028, %v3029
      %v3031 = vrot.slane %v2962, 7
      %v3032 = vrot.slane %v2963, 7
      %v3033 = vsel %vm715, %v3031, %v3032
      %v3034 = vrot.slane %v2964, 7
      %v3035 = vrot.slane %v2965, 7
      %v3036 = vsel %vm715, %v3034, %v3035
      %v3037 = vrot.slane %v2966, 7
      %v3038 = vrot.slane %v2967, 7
      %v3039 = vsel %vm715, %v3037, %v3038
      %v3040 = vrot.slane %v2968, 7
      %v3041 = vrot.slane %v2969, 7
      %v3042 = vsel %vm715, %v3040, %v3041
      %v3043 = vrot.slane %v2970, 7
      %v3044 = vrot.slane %v2971, 7
      %v3045 = vsel %vm715, %v3043, %v3044
      %v3046 = vrot.slane %v2972, 7
      %v3047 = vrot.slane %v2973, 7
      %v3048 = vsel %vm715, %v3046, %v3047
      %v3049 = vrot.slane %v2974, 7
      %v3050 = vrot.slane %v2975, 7
      %v3051 = vsel %vm715, %v3049, %v3050
      %v3052 = vrot.slane %v2976, 7
      %v3053 = vrot.slane %v2977, 7
      %v3054 = vsel %vm715, %v3052, %v3053
      %v3055 = vrot.slane %v2978, 7
      %v3056 = vrot.slane %v2979, 7
      %v3057 = vsel %vm715, %v3055, %v3056
      %v3058 = vrot.slane %v2980, 7
      %v3059 = vrot.slane %v2981, 7
      %v3060 = vsel %vm715, %v3058, %v3059
      %v3061 = vrot.slane %v2982, 7
      %v3062 = vrot.slane %v2983, 7
      %v3063 = vsel %vm715, %v3061, %v3062
      %v3112 = vmul.f32 %v2904, %v3016
      %v3113 = vmul.f32 %v2905, %v3018
      %v3114 = vmul.f32 %v2906, %v3017
      %v3115 = vmul.f32 %v2907, %v3019
      %v3116 = vmul.f32 %v2908, %v3021
      %v3117 = vmul.f32 %v2909, %v3020
      %v3118 = vmul.f32 %v2910, %v3022
      %v3119 = vmul.f32 %v2911, %v3024
      %v3120 = vmul.f32 %v2912, %v3023
      %v3121 = vmul.f32 %v2913, %v3025
      %v3122 = vmul.f32 %v2914, %v3027
      %v3123 = vmul.f32 %v2915, %v3026
      %v3124 = vmul.f32 %v2916, %v3028
      %v3125 = vmul.f32 %v2917, %v3030
      %v3126 = vmul.f32 %v2918, %v3029
      %v3127 = vmul.f32 %v2919, %v3031
      %v3128 = vmul.f32 %v2920, %v3033
      %v3129 = vmul.f32 %v2921, %v3032
      %v3130 = vmul.f32 %v2922, %v3034
      %v3131 = vmul.f32 %v2923, %v3036
      %v3132 = vmul.f32 %v2924, %v3035
      %v3133 = vmul.f32 %v2925, %v3037
      %v3134 = vmul.f32 %v2926, %v3039
      %v3135 = vmul.f32 %v2927, %v3038
      %v3136 = vmul.f32 %v2928, %v3040
      %v3137 = vmul.f32 %v2929, %v3042
      %v3138 = vmul.f32 %v2930, %v3041
      %v3139 = vmul.f32 %v2931, %v3043
      %v3140 = vmul.f32 %v2932, %v3045
      %v3141 = vmul.f32 %v2933, %v3044
      %v3142 = vmul.f32 %v2934, %v3046
      %v3143 = vmul.f32 %v2935, %v3048
      %v3144 = vmul.f32 %v2936, %v3047
      %v3145 = vmul.f32 %v2937, %v3049
      %v3146 = vmul.f32 %v2938, %v3051
      %v3147 = vmul.f32 %v2939, %v3050
      %v3148 = vmul.f32 %v2940, %v3052
      %v3149 = vmul.f32 %v2941, %v3054
      %v3150 = vmul.f32 %v2942, %v3053
      %v3151 = vmul.f32 %v2943, %v3055
      %v3152 = vmul.f32 %v2944, %v3057
      %v3153 = vmul.f32 %v2945, %v3056
      %v3154 = vmul.f32 %v2946, %v3058
      %v3155 = vmul.f32 %v2947, %v3060
      %v3156 = vmul.f32 %v2948, %v3059
      %v3157 = vmul.f32 %v2949, %v3061
      %v3158 = vmul.f32 %v2950, %v3063
      %v3159 = vmul.f32 %v2951, %v3062
      %v3160 = vpack.c.bf16 %v3113, %v3112
      %v3161 = vpack.c.bf16 %v3114, %v3114
      %v3162 = vpack.c.bf16 %v3116, %v3115
      %v3163 = vpack.c.bf16 %v3117, %v3117
      %v3164 = vpack.c.bf16 %v3119, %v3118
      %v3165 = vpack.c.bf16 %v3120, %v3120
      %v3166 = vpack.c.bf16 %v3122, %v3121
      %v3167 = vpack.c.bf16 %v3123, %v3123
      %v3168 = vpack.c.bf16 %v3125, %v3124
      %v3169 = vpack.c.bf16 %v3126, %v3126
      %v3170 = vpack.c.bf16 %v3128, %v3127
      %v3171 = vpack.c.bf16 %v3129, %v3129
      %v3172 = vpack.c.bf16 %v3131, %v3130
      %v3173 = vpack.c.bf16 %v3132, %v3132
      %v3174 = vpack.c.bf16 %v3134, %v3133
      %v3175 = vpack.c.bf16 %v3135, %v3135
      %v3176 = vpack.c.bf16 %v3137, %v3136
      %v3177 = vpack.c.bf16 %v3138, %v3138
      %v3178 = vpack.c.bf16 %v3140, %v3139
      %v3179 = vpack.c.bf16 %v3141, %v3141
      %v3180 = vpack.c.bf16 %v3143, %v3142
      %v3181 = vpack.c.bf16 %v3144, %v3144
      %v3182 = vpack.c.bf16 %v3146, %v3145
      %v3183 = vpack.c.bf16 %v3147, %v3147
      %v3184 = vpack.c.bf16 %v3149, %v3148
      %v3185 = vpack.c.bf16 %v3150, %v3150
      %v3186 = vpack.c.bf16 %v3152, %v3151
      %v3187 = vpack.c.bf16 %v3153, %v3153
      %v3188 = vpack.c.bf16 %v3155, %v3154
      %v3189 = vpack.c.bf16 %v3156, %v3156
      %v3190 = vpack.c.bf16 %v3158, %v3157
      %v3191 = vpack.c.bf16 %v3159, %v3159
      %v3193 = vshrl.u32 %v3160, 16
      %v3195 = vshll.u32 %v3160, 16
      %v3197 = vrot.slane %v3195, 1
      %v3198 = vor.u32 %v3193, %v3197
      %v3200 = vshll.u32 %v3161, 16
      %v3202 = vrot.slane %v3200, 1
      %v3203 = vsel %vm892, %v3198, %v3202
      %v3205 = vshrl.u32 %v3162, 16
      %v3207 = vshll.u32 %v3162, 16
      %v3209 = vrot.slane %v3207, 1
      %v3210 = vor.u32 %v3205, %v3209
      %v3212 = vshll.u32 %v3163, 16
      %v3214 = vrot.slane %v3212, 1
      %v3215 = vsel %vm892, %v3210, %v3214
      %v3217 = vshrl.u32 %v3164, 16
      %v3219 = vshll.u32 %v3164, 16
      %v3221 = vrot.slane %v3219, 1
      %v3222 = vor.u32 %v3217, %v3221
      %v3224 = vshll.u32 %v3165, 16
      %v3226 = vrot.slane %v3224, 1
      %v3227 = vsel %vm892, %v3222, %v3226
      %v3229 = vshrl.u32 %v3166, 16
      %v3231 = vshll.u32 %v3166, 16
      %v3233 = vrot.slane %v3231, 1
      %v3234 = vor.u32 %v3229, %v3233
      %v3236 = vshll.u32 %v3167, 16
      %v3238 = vrot.slane %v3236, 1
      %v3239 = vsel %vm892, %v3234, %v3238
      %v3241 = vshrl.u32 %v3168, 16
      %v3243 = vshll.u32 %v3168, 16
      %v3245 = vrot.slane %v3243, 1
      %v3246 = vor.u32 %v3241, %v3245
      %v3248 = vshll.u32 %v3169, 16
      %v3250 = vrot.slane %v3248, 1
      %v3251 = vsel %vm892, %v3246, %v3250
      %v3253 = vshrl.u32 %v3170, 16
      %v3255 = vshll.u32 %v3170, 16
      %v3257 = vrot.slane %v3255, 1
      %v3258 = vor.u32 %v3253, %v3257
      %v3260 = vshll.u32 %v3171, 16
      %v3262 = vrot.slane %v3260, 1
      %v3263 = vsel %vm892, %v3258, %v3262
      %v3265 = vshrl.u32 %v3172, 16
      %v3267 = vshll.u32 %v3172, 16
      %v3269 = vrot.slane %v3267, 1
      %v3270 = vor.u32 %v3265, %v3269
      %v3272 = vshll.u32 %v3173, 16
      %v3274 = vrot.slane %v3272, 1
      %v3275 = vsel %vm892, %v3270, %v3274
      %v3277 = vshrl.u32 %v3174, 16
      %v3279 = vshll.u32 %v3174, 16
      %v3281 = vrot.slane %v3279, 1
      %v3282 = vor.u32 %v3277, %v3281
      %v3284 = vshll.u32 %v3175, 16
      %v3286 = vrot.slane %v3284, 1
      %v3287 = vsel %vm892, %v3282, %v3286
      %v3289 = vshrl.u32 %v3176, 16
      %v3291 = vshll.u32 %v3176, 16
      %v3293 = vrot.slane %v3291, 1
      %v3294 = vor.u32 %v3289, %v3293
      %v3296 = vshll.u32 %v3177, 16
      %v3298 = vrot.slane %v3296, 1
      %v3299 = vsel %vm892, %v3294, %v3298
      %v3301 = vshrl.u32 %v3178, 16
      %v3303 = vshll.u32 %v3178, 16
      %v3305 = vrot.slane %v3303, 1
      %v3306 = vor.u32 %v3301, %v3305
      %v3308 = vshll.u32 %v3179, 16
      %v3310 = vrot.slane %v3308, 1
      %v3311 = vsel %vm892, %v3306, %v3310
      %v3313 = vshrl.u32 %v3180, 16
      %v3315 = vshll.u32 %v3180, 16
      %v3317 = vrot.slane %v3315, 1
      %v3318 = vor.u32 %v3313, %v3317
      %v3320 = vshll.u32 %v3181, 16
      %v3322 = vrot.slane %v3320, 1
      %v3323 = vsel %vm892, %v3318, %v3322
      %v3325 = vshrl.u32 %v3182, 16
      %v3327 = vshll.u32 %v3182, 16
      %v3329 = vrot.slane %v3327, 1
      %v3330 = vor.u32 %v3325, %v3329
      %v3332 = vshll.u32 %v3183, 16
      %v3334 = vrot.slane %v3332, 1
      %v3335 = vsel %vm892, %v3330, %v3334
      %v3337 = vshrl.u32 %v3184, 16
      %v3339 = vshll.u32 %v3184, 16
      %v3341 = vrot.slane %v3339, 1
      %v3342 = vor.u32 %v3337, %v3341
      %v3344 = vshll.u32 %v3185, 16
      %v3346 = vrot.slane %v3344, 1
      %v3347 = vsel %vm892, %v3342, %v3346
      %v3349 = vshrl.u32 %v3186, 16
      %v3351 = vshll.u32 %v3186, 16
      %v3353 = vrot.slane %v3351, 1
      %v3354 = vor.u32 %v3349, %v3353
      %v3356 = vshll.u32 %v3187, 16
      %v3358 = vrot.slane %v3356, 1
      %v3359 = vsel %vm892, %v3354, %v3358
      %v3361 = vshrl.u32 %v3188, 16
      %v3363 = vshll.u32 %v3188, 16
      %v3365 = vrot.slane %v3363, 1
      %v3366 = vor.u32 %v3361, %v3365
      %v3368 = vshll.u32 %v3189, 16
      %v3370 = vrot.slane %v3368, 1
      %v3371 = vsel %vm892, %v3366, %v3370
      %v3373 = vshrl.u32 %v3190, 16
      %v3375 = vshll.u32 %v3190, 16
      %v3377 = vrot.slane %v3375, 1
      %v3378 = vor.u32 %v3373, %v3377
      %v3380 = vshll.u32 %v3191, 16
      %v3382 = vrot.slane %v3380, 1
      %v3383 = vsel %vm892, %v3378, %v3382
      %s3400 = scalar_lea.vmem %s1, 256
      %v3401 = vld [vmem:[%s3400] sm:$0xf]
      %v3402 = vld [vmem:[%s3400 + $0x4] sm:$0xf]
      %v3403 = vld [vmem:[%s3400 + $0x8] sm:$0xf]
      %v3404 = vld [vmem:[%s3400 + $0xc] sm:$0xf]
      %v3405 = vld [vmem:[%s3400 + $0x10] sm:$0xf]
      %v3406 = vld [vmem:[%s3400 + $0x14] sm:$0xf]
      %v3407 = vld [vmem:[%s3400 + $0x18] sm:$0xf]
      %v3408 = vld [vmem:[%s3400 + $0x1c] sm:$0xf]
      %v3409 = vld [vmem:[%s3400 + $0x20] sm:$0xf]
      %v3410 = vld [vmem:[%s3400 + $0x24] sm:$0xf]
      %v3411 = vld [vmem:[%s3400 + $0x28] sm:$0xf]
      %v3412 = vld [vmem:[%s3400 + $0x2c] sm:$0xf]
      %v3413 = vld [vmem:[%s3400 + $0x30] sm:$0xf]
      %v3414 = vld [vmem:[%s3400 + $0x34] sm:$0xf]
      %v3415 = vld [vmem:[%s3400 + $0x38] sm:$0xf]
      %v3416 = vld [vmem:[%s3400 + $0x3c] sm:$0xf]
      %v3433 = vunpack.c.l.b16 %v3401
      %v3434 = vunpack.c.l.b16 %v3402
      %v3435 = vunpack.c.l.b16 %v3403
      %v3436 = vunpack.c.l.b16 %v3404
      %v3437 = vunpack.c.l.b16 %v3405
      %v3438 = vunpack.c.l.b16 %v3406
      %v3439 = vunpack.c.l.b16 %v3407
      %v3440 = vunpack.c.l.b16 %v3408
      %v3441 = vunpack.c.l.b16 %v3409
      %v3442 = vunpack.c.l.b16 %v3410
      %v3443 = vunpack.c.l.b16 %v3411
      %v3444 = vunpack.c.l.b16 %v3412
      %v3445 = vunpack.c.l.b16 %v3413
      %v3446 = vunpack.c.l.b16 %v3414
      %v3447 = vunpack.c.l.b16 %v3415
      %v3448 = vunpack.c.l.b16 %v3416
      %v3449 = vpack.c.b16 %v3434, %v3433
      %v3450 = vpack.c.b16 %v3436, %v3435
      %v3451 = vpack.c.b16 %v3438, %v3437
      %v3452 = vpack.c.b16 %v3440, %v3439
      %v3453 = vpack.c.b16 %v3442, %v3441
      %v3454 = vpack.c.b16 %v3444, %v3443
      %v3455 = vpack.c.b16 %v3446, %v3445
      %v3456 = vpack.c.b16 %v3448, %v3447
      %3465 = vmatprep.subr.bf16.mxu0 0
      %3466 = vmatpush1.bf16.msra.mxu0 %v3449
      %3467 = vmatprep.subr.bf16.mxu0 0
      %3468 = vmatpush1.bf16.msra.mxu0 %v3450
      %3469 = vmatprep.subr.bf16.mxu0 0
      %3470 = vmatpush1.bf16.msra.mxu0 %v3451
      %3471 = vmatprep.subr.bf16.mxu0 0
      %3472 = vmatpush1.bf16.msra.mxu0 %v3452
      %3473 = vmatprep.subr.bf16.mxu0 0
      %3474 = vmatpush1.bf16.msra.mxu0 %v3453
      %3475 = vmatprep.subr.bf16.mxu0 0
      %3476 = vmatpush1.bf16.msra.mxu0 %v3454
      %3477 = vmatprep.subr.bf16.mxu0 0
      %3478 = vmatpush1.bf16.msra.mxu0 %v3455
      %3479 = vmatprep.subr.bf16.mxu0 0
      %3480 = vmatpush1.bf16.msra.mxu0 %v3456
      %3481 = vmatprep.subr.bf16.mxu0 0
      %3482 = vmatpush1.bf16.msra.mxu0 0
      %3483 = vmatprep.subr.bf16.mxu0 0
      %3484 = vmatpush1.bf16.msra.mxu0 0
      %3485 = vmatprep.subr.bf16.mxu0 0
      %3486 = vmatpush1.bf16.msra.mxu0 0
      %3487 = vmatprep.subr.bf16.mxu0 0
      %3488 = vmatpush1.bf16.msra.mxu0 0
      %3489 = vmatprep.subr.bf16.mxu0 0
      %3490 = vmatpush1.bf16.msra.mxu0 0
      %3491 = vmatprep.subr.bf16.mxu0 0
      %3492 = vmatpush1.bf16.msra.mxu0 0
      %3493 = vmatprep.subr.bf16.mxu0 0
      %3494 = vmatpush1.bf16.msra.mxu0 0
      %3495 = vmatprep.subr.bf16.mxu0 0
      %3496 = vmatpush1.bf16.msra.mxu0 0
      %3497 = vmatprep.mubr.bf16.mxu0 0
      %3498 = vmatmul.mubr.bf16.gmra.mrb[0].mxu0 %v3203
      %v3499 = vpop.f32.mrb[0].mxu0
      %v3500 = vadd.f32 0.0, %v3499
      %v3501 = vpop.f32.mrb[0].mxu0
      %v3502 = vpop.f32.mrb[0].mxu0
      %v3503 = vadd.f32 0.0, %v3502
      %v3504 = vpop.f32.mrb[0].mxu0
      %3505 = vmatprep.mubr.bf16.mxu0 0
      %3506 = vmatmul.mubr.bf16.gmra.mrb[0].mxu0 %v3215
      %v3507 = vpop.f32.mrb[0].mxu0
      %v3508 = vadd.f32 0.0, %v3507
      %v3509 = vpop.f32.mrb[0].mxu0
      %v3510 = vpop.f32.mrb[0].mxu0
      %v3511 = vadd.f32 0.0, %v3510
      %v3512 = vpop.f32.mrb[0].mxu0
      %3513 = vmatprep.mubr.bf16.mxu0 0
      %3514 = vmatmul.mubr.bf16.gmra.mrb[0].mxu0 %v3227
      %v3515 = vpop.f32.mrb[0].mxu0
      %v3516 = vadd.f32 0.0, %v3515
      %v3517 = vpop.f32.mrb[0].mxu0
      %v3518 = vpop.f32.mrb[0].mxu0
      %v3519 = vadd.f32 0.0, %v3518
      %v3520 = vpop.f32.mrb[0].mxu0
      %3521 = vmatprep.mubr.bf16.mxu0 0
      %3522 = vmatmul.mubr.bf16.gmra.mrb[0].mxu0 %v3239
      %v3523 = vpop.f32.mrb[0].mxu0
      %v3524 = vadd.f32 0.0, %v3523
      %v3525 = vpop.f32.mrb[0].mxu0
      %v3526 = vpop.f32.mrb[0].mxu0
      %v3527 = vadd.f32 0.0, %v3526
      %v3528 = vpop.f32.mrb[0].mxu0
      %3529 = vmatprep.mubr.bf16.mxu0 0
      %3530 = vmatmul.mubr.bf16.gmra.mrb[0].mxu0 %v3251
      %v3531 = vpop.f32.mrb[0].mxu0
      %v3532 = vadd.f32 0.0, %v3531
      %v3533 = vpop.f32.mrb[0].mxu0
      %v3534 = vpop.f32.mrb[0].mxu0
      %v3535 = vadd.f32 0.0, %v3534
      %v3536 = vpop.f32.mrb[0].mxu0
      %3537 = vmatprep.mubr.bf16.mxu0 0
      %3538 = vmatmul.mubr.bf16.gmra.mrb[0].mxu0 %v3263
      %v3539 = vpop.f32.mrb[0].mxu0
      %v3540 = vadd.f32 0.0, %v3539
      %v3541 = vpop.f32.mrb[0].mxu0
      %v3542 = vpop.f32.mrb[0].mxu0
      %v3543 = vadd.f32 0.0, %v3542
      %v3544 = vpop.f32.mrb[0].mxu0
      %3545 = vmatprep.mubr.bf16.mxu0 0
      %3546 = vmatmul.mubr.bf16.gmra.mrb[0].mxu0 %v3275
      %v3547 = vpop.f32.mrb[0].mxu0
      %v3548 = vadd.f32 0.0, %v3547
      %v3549 = vpop.f32.mrb[0].mxu0
      %v3550 = vpop.f32.mrb[0].mxu0
      %v3551 = vadd.f32 0.0, %v3550
      %v3552 = vpop.f32.mrb[0].mxu0
      %3553 = vmatprep.mubr.bf16.mxu0 0
      %3554 = vmatmul.mubr.bf16.gmra.mrb[0].mxu0 %v3287
      %v3555 = vpop.f32.mrb[0].mxu0
      %v3556 = vadd.f32 0.0, %v3555
      %v3557 = vpop.f32.mrb[0].mxu0
      %v3558 = vpop.f32.mrb[0].mxu0
      %v3559 = vadd.f32 0.0, %v3558
      %v3560 = vpop.f32.mrb[0].mxu0
      %3561 = vmatprep.mubr.bf16.mxu0 0
      %3562 = vmatmul.mubr.bf16.gmra.mrb[0].mxu0 %v3299
      %v3563 = vpop.f32.mrb[0].mxu0
      %v3564 = vadd.f32 0.0, %v3563
      %v3565 = vpop.f32.mrb[0].mxu0
      %v3566 = vpop.f32.mrb[0].mxu0
      %v3567 = vadd.f32 0.0, %v3566
      %v3568 = vpop.f32.mrb[0].mxu0
      %3569 = vmatprep.mubr.bf16.mxu0 0
      %3570 = vmatmul.mubr.bf16.gmra.mrb[0].mxu0 %v3311
      %v3571 = vpop.f32.mrb[0].mxu0
      %v3572 = vadd.f32 0.0, %v3571
      %v3573 = vpop.f32.mrb[0].mxu0
      %v3574 = vpop.f32.mrb[0].mxu0
      %v3575 = vadd.f32 0.0, %v3574
      %v3576 = vpop.f32.mrb[0].mxu0
      %3577 = vmatprep.mubr.bf16.mxu0 0
      %3578 = vmatmul.mubr.bf16.gmra.mrb[0].mxu0 %v3323
      %v3579 = vpop.f32.mrb[0].mxu0
      %v3580 = vadd.f32 0.0, %v3579
      %v3581 = vpop.f32.mrb[0].mxu0
      %v3582 = vpop.f32.mrb[0].mxu0
      %v3583 = vadd.f32 0.0, %v3582
      %v3584 = vpop.f32.mrb[0].mxu0
      %3585 = vmatprep.mubr.bf16.mxu0 0
      %3586 = vmatmul.mubr.bf16.gmra.mrb[0].mxu0 %v3335
      %v3587 = vpop.f32.mrb[0].mxu0
      %v3588 = vadd.f32 0.0, %v3587
      %v3589 = vpop.f32.mrb[0].mxu0
      %v3590 = vpop.f32.mrb[0].mxu0
      %v3591 = vadd.f32 0.0, %v3590
      %v3592 = vpop.f32.mrb[0].mxu0
      %3593 = vmatprep.mubr.bf16.mxu0 0
      %3594 = vmatmul.mubr.bf16.gmra.mrb[0].mxu0 %v3347
      %v3595 = vpop.f32.mrb[0].mxu0
      %v3596 = vadd.f32 0.0, %v3595
      %v3597 = vpop.f32.mrb[0].mxu0
      %v3598 = vpop.f32.mrb[0].mxu0
      %v3599 = vadd.f32 0.0, %v3598
      %v3600 = vpop.f32.mrb[0].mxu0
      %3601 = vmatprep.mubr.bf16.mxu0 0
      %3602 = vmatmul.mubr.bf16.gmra.mrb[0].mxu0 %v3359
      %v3603 = vpop.f32.mrb[0].mxu0
      %v3604 = vadd.f32 0.0, %v3603
      %v3605 = vpop.f32.mrb[0].mxu0
      %v3606 = vpop.f32.mrb[0].mxu0
      %v3607 = vadd.f32 0.0, %v3606
      %v3608 = vpop.f32.mrb[0].mxu0
      %3609 = vmatprep.mubr.bf16.mxu0 0
      %3610 = vmatmul.mubr.bf16.gmra.mrb[0].mxu0 %v3371
      %v3611 = vpop.f32.mrb[0].mxu0
      %v3612 = vadd.f32 0.0, %v3611
      %v3613 = vpop.f32.mrb[0].mxu0
      %v3614 = vpop.f32.mrb[0].mxu0
      %v3615 = vadd.f32 0.0, %v3614
      %v3616 = vpop.f32.mrb[0].mxu0
      %3617 = vmatprep.mubr.bf16.mxu0 0
      %3618 = vmatmul.mubr.bf16.gmra.mrb[0].mxu0 %v3383
      %v3619 = vpop.f32.mrb[0].mxu0
      %v3620 = vadd.f32 0.0, %v3619
      %v3621 = vpop.f32.mrb[0].mxu0
      %v3622 = vpop.f32.mrb[0].mxu0
      %v3623 = vadd.f32 0.0, %v3622
      %v3624 = vpop.f32.mrb[0].mxu0
      %3625 = vdwg.mxu0
      %v3626 = vadd.f32 %v2680, %v3500
      %v3627 = vadd.f32 %v2681, %v3503
      %v3628 = vadd.f32 %v2682, %v3508
      %v3629 = vadd.f32 %v2683, %v3511
      %v3630 = vadd.f32 %v2684, %v3516
      %v3631 = vadd.f32 %v2685, %v3519
      %v3632 = vadd.f32 %v2686, %v3524
      %v3633 = vadd.f32 %v2687, %v3527
      %v3634 = vadd.f32 %v2688, %v3532
      %v3635 = vadd.f32 %v2689, %v3535
      %v3636 = vadd.f32 %v2690, %v3540
      %v3637 = vadd.f32 %v2691, %v3543
      %v3638 = vadd.f32 %v2692, %v3548
      %v3639 = vadd.f32 %v2693, %v3551
      %v3640 = vadd.f32 %v2694, %v3556
      %v3641 = vadd.f32 %v2695, %v3559
      %v3642 = vadd.f32 %v2696, %v3564
      %v3643 = vadd.f32 %v2697, %v3567
      %v3644 = vadd.f32 %v2698, %v3572
      %v3645 = vadd.f32 %v2699, %v3575
      %v3646 = vadd.f32 %v2700, %v3580
      %v3647 = vadd.f32 %v2701, %v3583
      %v3648 = vadd.f32 %v2702, %v3588
      %v3649 = vadd.f32 %v2703, %v3591
      %v3650 = vadd.f32 %v2704, %v3596
      %v3651 = vadd.f32 %v2705, %v3599
      %v3652 = vadd.f32 %v2706, %v3604
      %v3653 = vadd.f32 %v2707, %v3607
      %v3654 = vadd.f32 %v2708, %v3612
      %v3655 = vadd.f32 %v2709, %v3615
      %v3656 = vadd.f32 %v2710, %v3620
      %v3657 = vadd.f32 %v2711, %v3623
      %v3658 = vld [vmem:[%s2212] sm:$0xe]
      %v3659 = vld [vmem:[%s2212 + $0xc] sm:$0xe]
      %v3660 = vld [vmem:[%s2212 + $0x18] sm:$0xe]
      %v3661 = vld [vmem:[%s2212 + $0x24] sm:$0xe]
      %v3662 = vld [vmem:[%s2212 + $0x30] sm:$0xe]
      %v3663 = vld [vmem:[%s2212 + $0x3c] sm:$0xe]
      %v3664 = vld [vmem:[%s2212 + $0x48] sm:$0xe]
      %v3665 = vld [vmem:[%s2212 + $0x54] sm:$0xe]
      %v3666 = vld [vmem:[%s2212 + $0x60] sm:$0xe]
      %v3667 = vld [vmem:[%s2212 + $0x6c] sm:$0xe]
      %v3668 = vld [vmem:[%s2212 + $0x78] sm:$0xe]
      %v3669 = vld [vmem:[%s2212 + $0x84] sm:$0xe]
      %v3670 = vld [vmem:[%s2212 + $0x90] sm:$0xe]
      %v3671 = vld [vmem:[%s2212 + $0x9c] sm:$0xe]
      %v3672 = vld [vmem:[%s2212 + $0xa8] sm:$0xe]
      %v3673 = vld [vmem:[%s2212 + $0xb4] sm:$0xe]
      %v3674 = vunpack.c.l.bf16 %v3658
      %v3675 = vunpack.c.l.bf16 %v3659
      %v3676 = vunpack.c.l.bf16 %v3660
      %v3677 = vunpack.c.l.bf16 %v3661
      %v3678 = vunpack.c.l.bf16 %v3662
      %v3679 = vunpack.c.l.bf16 %v3663
      %v3680 = vunpack.c.l.bf16 %v3664
      %v3681 = vunpack.c.l.bf16 %v3665
      %v3682 = vunpack.c.l.bf16 %v3666
      %v3683 = vunpack.c.l.bf16 %v3667
      %v3684 = vunpack.c.l.bf16 %v3668
      %v3685 = vunpack.c.l.bf16 %v3669
      %v3686 = vunpack.c.l.bf16 %v3670
      %v3687 = vunpack.c.l.bf16 %v3671
      %v3688 = vunpack.c.l.bf16 %v3672
      %v3689 = vunpack.c.l.bf16 %v3673
      %v3690 = vmul.f32 %v3674, %v306
      %v3691 = vmul.f32 %v3675, %v306
      %v3692 = vmul.f32 %v3676, %v306
      %v3693 = vmul.f32 %v3677, %v306
      %v3694 = vmul.f32 %v3678, %v306
      %v3695 = vmul.f32 %v3679, %v306
      %v3696 = vmul.f32 %v3680, %v306
      %v3697 = vmul.f32 %v3681, %v306
      %v3698 = vmul.f32 %v3682, %v306
      %v3699 = vmul.f32 %v3683, %v306
      %v3700 = vmul.f32 %v3684, %v306
      %v3701 = vmul.f32 %v3685, %v306
      %v3702 = vmul.f32 %v3686, %v306
      %v3703 = vmul.f32 %v3687, %v306
      %v3704 = vmul.f32 %v3688, %v306
      %v3705 = vmul.f32 %v3689, %v306
      %v3706 = vadd.f32 %v3690, %v313
      %v3707 = vadd.f32 %v3691, %v313
      %v3708 = vadd.f32 %v3692, %v313
      %v3709 = vadd.f32 %v3693, %v313
      %v3710 = vadd.f32 %v3694, %v313
      %v3711 = vadd.f32 %v3695, %v313
      %v3712 = vadd.f32 %v3696, %v313
      %v3713 = vadd.f32 %v3697, %v313
      %v3714 = vadd.f32 %v3698, %v313
      %v3715 = vadd.f32 %v3699, %v313
      %v3716 = vadd.f32 %v3700, %v313
      %v3717 = vadd.f32 %v3701, %v313
      %v3718 = vadd.f32 %v3702, %v313
      %v3719 = vadd.f32 %v3703, %v313
      %v3720 = vadd.f32 %v3704, %v313
      %v3721 = vadd.f32 %v3705, %v313
      %v3722 = vmax.f32 %v3706, 0.0
      %v3723 = vmax.f32 %v3707, 0.0
      %v3724 = vmax.f32 %v3708, 0.0
      %v3725 = vmax.f32 %v3709, 0.0
      %v3726 = vmax.f32 %v3710, 0.0
      %v3727 = vmax.f32 %v3711, 0.0
      %v3728 = vmax.f32 %v3712, 0.0
      %v3729 = vmax.f32 %v3713, 0.0
      %v3730 = vmax.f32 %v3714, 0.0
      %v3731 = vmax.f32 %v3715, 0.0
      %v3732 = vmax.f32 %v3716, 0.0
      %v3733 = vmax.f32 %v3717, 0.0
      %v3734 = vmax.f32 %v3718, 0.0
      %v3735 = vmax.f32 %v3719, 0.0
      %v3736 = vmax.f32 %v3720, 0.0
      %v3737 = vmax.f32 %v3721, 0.0
      %v3738 = vld [vmem:[%s2373 + $0x2] sm:$0xff]
      %v3739 = vld [vmem:[%s2373 + $0xa] sm:$0xff]
      %v3740 = vld [vmem:[%s2373 + $0x1a] sm:$0xff]
      %v3741 = vld [vmem:[%s2373 + $0x22] sm:$0xff]
      %v3742 = vld [vmem:[%s2373 + $0x32] sm:$0xff]
      %v3743 = vld [vmem:[%s2373 + $0x3a] sm:$0xff]
      %v3744 = vld [vmem:[%s2373 + $0x4a] sm:$0xff]
      %v3745 = vld [vmem:[%s2373 + $0x52] sm:$0xff]
      %v3746 = vld [vmem:[%s2373 + $0x62] sm:$0xff]
      %v3747 = vld [vmem:[%s2373 + $0x6a] sm:$0xff]
      %v3748 = vld [vmem:[%s2373 + $0x7a] sm:$0xff]
      %v3749 = vld [vmem:[%s2373 + $0x82] sm:$0xff]
      %v3750 = vld [vmem:[%s2373 + $0x92] sm:$0xff]
      %v3751 = vld [vmem:[%s2373 + $0x9a] sm:$0xff]
      %v3752 = vld [vmem:[%s2373 + $0xaa] sm:$0xff]
      %v3753 = vld [vmem:[%s2373 + $0xb2] sm:$0xff]
      %v3754 = vld [vmem:[%s2373 + $0xc2] sm:$0xff]
      %v3755 = vld [vmem:[%s2373 + $0xca] sm:$0xff]
      %v3756 = vld [vmem:[%s2373 + $0xda] sm:$0xff]
      %v3757 = vld [vmem:[%s2373 + $0xe2] sm:$0xff]
      %v3758 = vld [vmem:[%s2373 + $0xf2] sm:$0xff]
      %v3759 = vld [vmem:[%s2373 + $0xfa] sm:$0xff]
      %v3760 = vld [vmem:[%s2373 + $0x10a] sm:$0xff]
      %v3761 = vld [vmem:[%s2373 + $0x112] sm:$0xff]
      %v3762 = vld [vmem:[%s2373 + $0x122] sm:$0xff]
      %v3763 = vld [vmem:[%s2373 + $0x12a] sm:$0xff]
      %v3764 = vld [vmem:[%s2373 + $0x13a] sm:$0xff]
      %v3765 = vld [vmem:[%s2373 + $0x142] sm:$0xff]
      %v3766 = vld [vmem:[%s2373 + $0x152] sm:$0xff]
      %v3767 = vld [vmem:[%s2373 + $0x15a] sm:$0xff]
      %v3768 = vld [vmem:[%s2373 + $0x16a] sm:$0xff]
      %v3769 = vld [vmem:[%s2373 + $0x172] sm:$0xff]
      %v3802 = vrot.slane %v3738, 6
      %v3803 = vrot.slane %v3739, 6
      %v3804 = vsel %vm1680, %v3802, %v3803
      %v3805 = vrot.slane %v3740, 6
      %v3806 = vrot.slane %v3741, 6
      %v3807 = vsel %vm1680, %v3805, %v3806
      %v3808 = vrot.slane %v3742, 6
      %v3809 = vrot.slane %v3743, 6
      %v3810 = vsel %vm1680, %v3808, %v3809
      %v3811 = vrot.slane %v3744, 6
      %v3812 = vrot.slane %v3745, 6
      %v3813 = vsel %vm1680, %v3811, %v3812
      %v3814 = vrot.slane %v3746, 6
      %v3815 = vrot.slane %v3747, 6
      %v3816 = vsel %vm1680, %v3814, %v3815
      %v3817 = vrot.slane %v3748, 6
      %v3818 = vrot.slane %v3749, 6
      %v3819 = vsel %vm1680, %v3817, %v3818
      %v3820 = vrot.slane %v3750, 6
      %v3821 = vrot.slane %v3751, 6
      %v3822 = vsel %vm1680, %v3820, %v3821
      %v3823 = vrot.slane %v3752, 6
      %v3824 = vrot.slane %v3753, 6
      %v3825 = vsel %vm1680, %v3823, %v3824
      %v3826 = vrot.slane %v3754, 6
      %v3827 = vrot.slane %v3755, 6
      %v3828 = vsel %vm1680, %v3826, %v3827
      %v3829 = vrot.slane %v3756, 6
      %v3830 = vrot.slane %v3757, 6
      %v3831 = vsel %vm1680, %v3829, %v3830
      %v3832 = vrot.slane %v3758, 6
      %v3833 = vrot.slane %v3759, 6
      %v3834 = vsel %vm1680, %v3832, %v3833
      %v3835 = vrot.slane %v3760, 6
      %v3836 = vrot.slane %v3761, 6
      %v3837 = vsel %vm1680, %v3835, %v3836
      %v3838 = vrot.slane %v3762, 6
      %v3839 = vrot.slane %v3763, 6
      %v3840 = vsel %vm1680, %v3838, %v3839
      %v3841 = vrot.slane %v3764, 6
      %v3842 = vrot.slane %v3765, 6
      %v3843 = vsel %vm1680, %v3841, %v3842
      %v3844 = vrot.slane %v3766, 6
      %v3845 = vrot.slane %v3767, 6
      %v3846 = vsel %vm1680, %v3844, %v3845
      %v3847 = vrot.slane %v3768, 6
      %v3848 = vrot.slane %v3769, 6
      %v3849 = vsel %vm1680, %v3847, %v3848
      %v3898 = vmul.f32 %v3722, %v3802
      %v3899 = vmul.f32 %v2905, %v3804
      %v3900 = vmul.f32 %v2906, %v3803
      %v3901 = vmul.f32 %v3723, %v3805
      %v3902 = vmul.f32 %v2908, %v3807
      %v3903 = vmul.f32 %v2909, %v3806
      %v3904 = vmul.f32 %v3724, %v3808
      %v3905 = vmul.f32 %v2911, %v3810
      %v3906 = vmul.f32 %v2912, %v3809
      %v3907 = vmul.f32 %v3725, %v3811
      %v3908 = vmul.f32 %v2914, %v3813
      %v3909 = vmul.f32 %v2915, %v3812
      %v3910 = vmul.f32 %v3726, %v3814
      %v3911 = vmul.f32 %v2917, %v3816
      %v3912 = vmul.f32 %v2918, %v3815
      %v3913 = vmul.f32 %v3727, %v3817
      %v3914 = vmul.f32 %v2920, %v3819
      %v3915 = vmul.f32 %v2921, %v3818
      %v3916 = vmul.f32 %v3728, %v3820
      %v3917 = vmul.f32 %v2923, %v3822
      %v3918 = vmul.f32 %v2924, %v3821
      %v3919 = vmul.f32 %v3729, %v3823
      %v3920 = vmul.f32 %v2926, %v3825
      %v3921 = vmul.f32 %v2927, %v3824
      %v3922 = vmul.f32 %v3730, %v3826
      %v3923 = vmul.f32 %v2929, %v3828
      %v3924 = vmul.f32 %v2930, %v3827
      %v3925 = vmul.f32 %v3731, %v3829
      %v3926 = vmul.f32 %v2932, %v3831
      %v3927 = vmul.f32 %v2933, %v3830
      %v3928 = vmul.f32 %v3732, %v3832
      %v3929 = vmul.f32 %v2935, %v3834
      %v3930 = vmul.f32 %v2936, %v3833
      %v3931 = vmul.f32 %v3733, %v3835
      %v3932 = vmul.f32 %v2938, %v3837
      %v3933 = vmul.f32 %v2939, %v3836
      %v3934 = vmul.f32 %v3734, %v3838
      %v3935 = vmul.f32 %v2941, %v3840
      %v3936 = vmul.f32 %v2942, %v3839
      %v3937 = vmul.f32 %v3735, %v3841
      %v3938 = vmul.f32 %v2944, %v3843
      %v3939 = vmul.f32 %v2945, %v3842
      %v3940 = vmul.f32 %v3736, %v3844
      %v3941 = vmul.f32 %v2947, %v3846
      %v3942 = vmul.f32 %v2948, %v3845
      %v3943 = vmul.f32 %v3737, %v3847
      %v3944 = vmul.f32 %v2950, %v3849
      %v3945 = vmul.f32 %v2951, %v3848
      %v3946 = vpack.c.bf16 %v3899, %v3898
      %v3947 = vpack.c.bf16 %v3900, %v3900
      %v3948 = vpack.c.bf16 %v3902, %v3901
      %v3949 = vpack.c.bf16 %v3903, %v3903
      %v3950 = vpack.c.bf16 %v3905, %v3904
      %v3951 = vpack.c.bf16 %v3906, %v3906
      %v3952 = vpack.c.bf16 %v3908, %v3907
      %v3953 = vpack.c.bf16 %v3909, %v3909
      %v3954 = vpack.c.bf16 %v3911, %v3910
      %v3955 = vpack.c.bf16 %v3912, %v3912
      %v3956 = vpack.c.bf16 %v3914, %v3913
      %v3957 = vpack.c.bf16 %v3915, %v3915
      %v3958 = vpack.c.bf16 %v3917, %v3916
      %v3959 = vpack.c.bf16 %v3918, %v3918
      %v3960 = vpack.c.bf16 %v3920, %v3919
      %v3961 = vpack.c.bf16 %v3921, %v3921
      %v3962 = vpack.c.bf16 %v3923, %v3922
      %v3963 = vpack.c.bf16 %v3924, %v3924
      %v3964 = vpack.c.bf16 %v3926, %v3925
      %v3965 = vpack.c.bf16 %v3927, %v3927
      %v3966 = vpack.c.bf16 %v3929, %v3928
      %v3967 = vpack.c.bf16 %v3930, %v3930
      %v3968 = vpack.c.bf16 %v3932, %v3931
      %v3969 = vpack.c.bf16 %v3933, %v3933
      %v3970 = vpack.c.bf16 %v3935, %v3934
      %v3971 = vpack.c.bf16 %v3936, %v3936
      %v3972 = vpack.c.bf16 %v3938, %v3937
      %v3973 = vpack.c.bf16 %v3939, %v3939
      %v3974 = vpack.c.bf16 %v3941, %v3940
      %v3975 = vpack.c.bf16 %v3942, %v3942
      %v3976 = vpack.c.bf16 %v3944, %v3943
      %v3977 = vpack.c.bf16 %v3945, %v3945
      %v4010 = vrot.slane %v3946, 1
      %v4011 = vrot.slane %v3947, 1
      %v4012 = vsel %vm1889, %v4010, %v4011
      %v4013 = vrot.slane %v3948, 1
      %v4014 = vrot.slane %v3949, 1
      %v4015 = vsel %vm1889, %v4013, %v4014
      %v4016 = vrot.slane %v3950, 1
      %v4017 = vrot.slane %v3951, 1
      %v4018 = vsel %vm1889, %v4016, %v4017
      %v4019 = vrot.slane %v3952, 1
      %v4020 = vrot.slane %v3953, 1
      %v4021 = vsel %vm1889, %v4019, %v4020
      %v4022 = vrot.slane %v3954, 1
      %v4023 = vrot.slane %v3955, 1
      %v4024 = vsel %vm1889, %v4022, %v4023
      %v4025 = vrot.slane %v3956, 1
      %v4026 = vrot.slane %v3957, 1
      %v4027 = vsel %vm1889, %v4025, %v4026
      %v4028 = vrot.slane %v3958, 1
      %v4029 = vrot.slane %v3959, 1
      %v4030 = vsel %vm1889, %v4028, %v4029
      %v4031 = vrot.slane %v3960, 1
      %v4032 = vrot.slane %v3961, 1
      %v4033 = vsel %vm1889, %v4031, %v4032
      %v4034 = vrot.slane %v3962, 1
      %v4035 = vrot.slane %v3963, 1
      %v4036 = vsel %vm1889, %v4034, %v4035
      %v4037 = vrot.slane %v3964, 1
      %v4038 = vrot.slane %v3965, 1
      %v4039 = vsel %vm1889, %v4037, %v4038
      %v4040 = vrot.slane %v3966, 1
      %v4041 = vrot.slane %v3967, 1
      %v4042 = vsel %vm1889, %v4040, %v4041
      %v4043 = vrot.slane %v3968, 1
      %v4044 = vrot.slane %v3969, 1
      %v4045 = vsel %vm1889, %v4043, %v4044
      %v4046 = vrot.slane %v3970, 1
      %v4047 = vrot.slane %v3971, 1
      %v4048 = vsel %vm1889, %v4046, %v4047
      %v4049 = vrot.slane %v3972, 1
      %v4050 = vrot.slane %v3973, 1
      %v4051 = vsel %vm1889, %v4049, %v4050
      %v4052 = vrot.slane %v3974, 1
      %v4053 = vrot.slane %v3975, 1
      %v4054 = vsel %vm1889, %v4052, %v4053
      %v4055 = vrot.slane %v3976, 1
      %v4056 = vrot.slane %v3977, 1
      %v4057 = vsel %vm1889, %v4055, %v4056
      %s4074 = scalar_lea.vmem %s1, 320
      %v4075 = vld [vmem:[%s4074] sm:$0xf]
      %v4076 = vld [vmem:[%s4074 + $0x4] sm:$0xf]
      %v4077 = vld [vmem:[%s4074 + $0x8] sm:$0xf]
      %v4078 = vld [vmem:[%s4074 + $0xc] sm:$0xf]
      %v4079 = vld [vmem:[%s4074 + $0x10] sm:$0xf]
      %v4080 = vld [vmem:[%s4074 + $0x14] sm:$0xf]
      %v4081 = vld [vmem:[%s4074 + $0x18] sm:$0xf]
      %v4082 = vld [vmem:[%s4074 + $0x1c] sm:$0xf]
      %v4083 = vld [vmem:[%s4074 + $0x20] sm:$0xf]
      %v4084 = vld [vmem:[%s4074 + $0x24] sm:$0xf]
      %v4085 = vld [vmem:[%s4074 + $0x28] sm:$0xf]
      %v4086 = vld [vmem:[%s4074 + $0x2c] sm:$0xf]
      %v4087 = vld [vmem:[%s4074 + $0x30] sm:$0xf]
      %v4088 = vld [vmem:[%s4074 + $0x34] sm:$0xf]
      %v4089 = vld [vmem:[%s4074 + $0x38] sm:$0xf]
      %v4090 = vld [vmem:[%s4074 + $0x3c] sm:$0xf]
      %v4107 = vunpack.c.l.b16 %v4075
      %v4108 = vunpack.c.l.b16 %v4076
      %v4109 = vunpack.c.l.b16 %v4077
      %v4110 = vunpack.c.l.b16 %v4078
      %v4111 = vunpack.c.l.b16 %v4079
      %v4112 = vunpack.c.l.b16 %v4080
      %v4113 = vunpack.c.l.b16 %v4081
      %v4114 = vunpack.c.l.b16 %v4082
      %v4115 = vunpack.c.l.b16 %v4083
      %v4116 = vunpack.c.l.b16 %v4084
      %v4117 = vunpack.c.l.b16 %v4085
      %v4118 = vunpack.c.l.b16 %v4086
      %v4119 = vunpack.c.l.b16 %v4087
      %v4120 = vunpack.c.l.b16 %v4088
      %v4121 = vunpack.c.l.b16 %v4089
      %v4122 = vunpack.c.l.b16 %v4090
      %v4123 = vpack.c.b16 %v4108, %v4107
      %v4124 = vpack.c.b16 %v4110, %v4109
      %v4125 = vpack.c.b16 %v4112, %v4111
      %v4126 = vpack.c.b16 %v4114, %v4113
      %v4127 = vpack.c.b16 %v4116, %v4115
      %v4128 = vpack.c.b16 %v4118, %v4117
      %v4129 = vpack.c.b16 %v4120, %v4119
      %v4130 = vpack.c.b16 %v4122, %v4121
      %4139 = vmatprep.subr.bf16.mxu0 0
      %4140 = vmatpush1.bf16.msra.mxu0 %v4123
      %4141 = vmatprep.subr.bf16.mxu0 0
      %4142 = vmatpush1.bf16.msra.mxu0 %v4124
      %4143 = vmatprep.subr.bf16.mxu0 0
      %4144 = vmatpush1.bf16.msra.mxu0 %v4125
      %4145 = vmatprep.subr.bf16.mxu0 0
      %4146 = vmatpush1.bf16.msra.mxu0 %v4126
      %4147 = vmatprep.subr.bf16.mxu0 0
      %4148 = vmatpush1.bf16.msra.mxu0 %v4127
      %4149 = vmatprep.subr.bf16.mxu0 0
      %4150 = vmatpush1.bf16.msra.mxu0 %v4128
      %4151 = vmatprep.subr.bf16.mxu0 0
      %4152 = vmatpush1.bf16.msra.mxu0 %v4129
      %4153 = vmatprep.subr.bf16.mxu0 0
      %4154 = vmatpush1.bf16.msra.mxu0 %v4130
      %4155 = vmatprep.subr.bf16.mxu0 0
      %4156 = vmatpush1.bf16.msra.mxu0 0
      %4157 = vmatprep.subr.bf16.mxu0 0
      %4158 = vmatpush1.bf16.msra.mxu0 0
      %4159 = vmatprep.subr.bf16.mxu0 0
      %4160 = vmatpush1.bf16.msra.mxu0 0
      %4161 = vmatprep.subr.bf16.mxu0 0
      %4162 = vmatpush1.bf16.msra.mxu0 0
      %4163 = vmatprep.subr.bf16.mxu0 0
      %4164 = vmatpush1.bf16.msra.mxu0 0
      %4165 = vmatprep.subr.bf16.mxu0 0
      %4166 = vmatpush1.bf16.msra.mxu0 0
      %4167 = vmatprep.subr.bf16.mxu0 0
      %4168 = vmatpush1.bf16.msra.mxu0 0
      %4169 = vmatprep.subr.bf16.mxu0 0
      %4170 = vmatpush1.bf16.msra.mxu0 0
      %4171 = vmatprep.mubr.bf16.mxu0 0
      %4172 = vmatmul.mubr.bf16.gmra.mrb[0].mxu0 %v4012
      %v4173 = vpop.f32.mrb[0].mxu0
      %v4174 = vadd.f32 0.0, %v4173
      %v4175 = vpop.f32.mrb[0].mxu0
      %v4176 = vpop.f32.mrb[0].mxu0
      %v4177 = vadd.f32 0.0, %v4176
      %v4178 = vpop.f32.mrb[0].mxu0
      %4179 = vmatprep.mubr.bf16.mxu0 0
      %4180 = vmatmul.mubr.bf16.gmra.mrb[0].mxu0 %v4015
      %v4181 = vpop.f32.mrb[0].mxu0
      %v4182 = vadd.f32 0.0, %v4181
      %v4183 = vpop.f32.mrb[0].mxu0
      %v4184 = vpop.f32.mrb[0].mxu0
      %v4185 = vadd.f32 0.0, %v4184
      %v4186 = vpop.f32.mrb[0].mxu0
      %4187 = vmatprep.mubr.bf16.mxu0 0
      %4188 = vmatmul.mubr.bf16.gmra.mrb[0].mxu0 %v4018
      %v4189 = vpop.f32.mrb[0].mxu0
      %v4190 = vadd.f32 0.0, %v4189
      %v4191 = vpop.f32.mrb[0].mxu0
      %v4192 = vpop.f32.mrb[0].mxu0
      %v4193 = vadd.f32 0.0, %v4192
      %v4194 = vpop.f32.mrb[0].mxu0
      %4195 = vmatprep.mubr.bf16.mxu0 0
      %4196 = vmatmul.mubr.bf16.gmra.mrb[0].mxu0 %v4021
      %v4197 = vpop.f32.mrb[0].mxu0
      %v4198 = vadd.f32 0.0, %v4197
      %v4199 = vpop.f32.mrb[0].mxu0
      %v4200 = vpop.f32.mrb[0].mxu0
      %v4201 = vadd.f32 0.0, %v4200
      %v4202 = vpop.f32.mrb[0].mxu0
      %4203 = vmatprep.mubr.bf16.mxu0 0
      %4204 = vmatmul.mubr.bf16.gmra.mrb[0].mxu0 %v4024
      %v4205 = vpop.f32.mrb[0].mxu0
      %v4206 = vadd.f32 0.0, %v4205
      %v4207 = vpop.f32.mrb[0].mxu0
      %v4208 = vpop.f32.mrb[0].mxu0
      %v4209 = vadd.f32 0.0, %v4208
      %v4210 = vpop.f32.mrb[0].mxu0
      %4211 = vmatprep.mubr.bf16.mxu0 0
      %4212 = vmatmul.mubr.bf16.gmra.mrb[0].mxu0 %v4027
      %v4213 = vpop.f32.mrb[0].mxu0
      %v4214 = vadd.f32 0.0, %v4213
      %v4215 = vpop.f32.mrb[0].mxu0
      %v4216 = vpop.f32.mrb[0].mxu0
      %v4217 = vadd.f32 0.0, %v4216
      %v4218 = vpop.f32.mrb[0].mxu0
      %4219 = vmatprep.mubr.bf16.mxu0 0
      %4220 = vmatmul.mubr.bf16.gmra.mrb[0].mxu0 %v4030
      %v4221 = vpop.f32.mrb[0].mxu0
      %v4222 = vadd.f32 0.0, %v4221
      %v4223 = vpop.f32.mrb[0].mxu0
      %v4224 = vpop.f32.mrb[0].mxu0
      %v4225 = vadd.f32 0.0, %v4224
      %v4226 = vpop.f32.mrb[0].mxu0
      %4227 = vmatprep.mubr.bf16.mxu0 0
      %4228 = vmatmul.mubr.bf16.gmra.mrb[0].mxu0 %v4033
      %v4229 = vpop.f32.mrb[0].mxu0
      %v4230 = vadd.f32 0.0, %v4229
      %v4231 = vpop.f32.mrb[0].mxu0
      %v4232 = vpop.f32.mrb[0].mxu0
      %v4233 = vadd.f32 0.0, %v4232
      %v4234 = vpop.f32.mrb[0].mxu0
      %4235 = vmatprep.mubr.bf16.mxu0 0
      %4236 = vmatmul.mubr.bf16.gmra.mrb[0].mxu0 %v4036
      %v4237 = vpop.f32.mrb[0].mxu0
      %v4238 = vadd.f32 0.0, %v4237
      %v4239 = vpop.f32.mrb[0].mxu0
      %v4240 = vpop.f32.mrb[0].mxu0
      %v4241 = vadd.f32 0.0, %v4240
      %v4242 = vpop.f32.mrb[0].mxu0
      %4243 = vmatprep.mubr.bf16.mxu0 0
      %4244 = vmatmul.mubr.bf16.gmra.mrb[0].mxu0 %v4039
      %v4245 = vpop.f32.mrb[0].mxu0
      %v4246 = vadd.f32 0.0, %v4245
      %v4247 = vpop.f32.mrb[0].mxu0
      %v4248 = vpop.f32.mrb[0].mxu0
      %v4249 = vadd.f32 0.0, %v4248
      %v4250 = vpop.f32.mrb[0].mxu0
      %4251 = vmatprep.mubr.bf16.mxu0 0
      %4252 = vmatmul.mubr.bf16.gmra.mrb[0].mxu0 %v4042
      %v4253 = vpop.f32.mrb[0].mxu0
      %v4254 = vadd.f32 0.0, %v4253
      %v4255 = vpop.f32.mrb[0].mxu0
      %v4256 = vpop.f32.mrb[0].mxu0
      %v4257 = vadd.f32 0.0, %v4256
      %v4258 = vpop.f32.mrb[0].mxu0
      %4259 = vmatprep.mubr.bf16.mxu0 0
      %4260 = vmatmul.mubr.bf16.gmra.mrb[0].mxu0 %v4045
      %v4261 = vpop.f32.mrb[0].mxu0
      %v4262 = vadd.f32 0.0, %v4261
      %v4263 = vpop.f32.mrb[0].mxu0
      %v4264 = vpop.f32.mrb[0].mxu0
      %v4265 = vadd.f32 0.0, %v4264
      %v4266 = vpop.f32.mrb[0].mxu0
      %4267 = vmatprep.mubr.bf16.mxu0 0
      %4268 = vmatmul.mubr.bf16.gmra.mrb[0].mxu0 %v4048
      %v4269 = vpop.f32.mrb[0].mxu0
      %v4270 = vadd.f32 0.0, %v4269
      %v4271 = vpop.f32.mrb[0].mxu0
      %v4272 = vpop.f32.mrb[0].mxu0
      %v4273 = vadd.f32 0.0, %v4272
      %v4274 = vpop.f32.mrb[0].mxu0
      %4275 = vmatprep.mubr.bf16.mxu0 0
      %4276 = vmatmul.mubr.bf16.gmra.mrb[0].mxu0 %v4051
      %v4277 = vpop.f32.mrb[0].mxu0
      %v4278 = vadd.f32 0.0, %v4277
      %v4279 = vpop.f32.mrb[0].mxu0
      %v4280 = vpop.f32.mrb[0].mxu0
      %v4281 = vadd.f32 0.0, %v4280
      %v4282 = vpop.f32.mrb[0].mxu0
      %4283 = vmatprep.mubr.bf16.mxu0 0
      %4284 = vmatmul.mubr.bf16.gmra.mrb[0].mxu0 %v4054
      %v4285 = vpop.f32.mrb[0].mxu0
      %v4286 = vadd.f32 0.0, %v4285
      %v4287 = vpop.f32.mrb[0].mxu0
      %v4288 = vpop.f32.mrb[0].mxu0
      %v4289 = vadd.f32 0.0, %v4288
      %v4290 = vpop.f32.mrb[0].mxu0
      %4291 = vmatprep.mubr.bf16.mxu0 0
      %4292 = vmatmul.mubr.bf16.gmra.mrb[0].mxu0 %v4057
      %v4293 = vpop.f32.mrb[0].mxu0
      %v4294 = vadd.f32 0.0, %v4293
      %v4295 = vpop.f32.mrb[0].mxu0
      %v4296 = vpop.f32.mrb[0].mxu0
      %v4297 = vadd.f32 0.0, %v4296
      %v4298 = vpop.f32.mrb[0].mxu0
      %4299 = vdwg.mxu0
      %v4300 = vadd.f32 %v3626, %v4174
      %v4301 = vadd.f32 %v3627, %v4177
      %v4302 = vadd.f32 %v3628, %v4182
      %v4303 = vadd.f32 %v3629, %v4185
      %v4304 = vadd.f32 %v3630, %v4190
      %v4305 = vadd.f32 %v3631, %v4193
      %v4306 = vadd.f32 %v3632, %v4198
      %v4307 = vadd.f32 %v3633, %v4201
      %v4308 = vadd.f32 %v3634, %v4206
      %v4309 = vadd.f32 %v3635, %v4209
      %v4310 = vadd.f32 %v3636, %v4214
      %v4311 = vadd.f32 %v3637, %v4217
      %v4312 = vadd.f32 %v3638, %v4222
      %v4313 = vadd.f32 %v3639, %v4225
      %v4314 = vadd.f32 %v3640, %v4230
      %v4315 = vadd.f32 %v3641, %v4233
      %v4316 = vadd.f32 %v3642, %v4238
      %v4317 = vadd.f32 %v3643, %v4241
      %v4318 = vadd.f32 %v3644, %v4246
      %v4319 = vadd.f32 %v3645, %v4249
      %v4320 = vadd.f32 %v3646, %v4254
      %v4321 = vadd.f32 %v3647, %v4257
      %v4322 = vadd.f32 %v3648, %v4262
      %v4323 = vadd.f32 %v3649, %v4265
      %v4324 = vadd.f32 %v3650, %v4270
      %v4325 = vadd.f32 %v3651, %v4273
      %v4326 = vadd.f32 %v3652, %v4278
      %v4327 = vadd.f32 %v3653, %v4281
      %v4328 = vadd.f32 %v3654, %v4286
      %v4329 = vadd.f32 %v3655, %v4289
      %v4330 = vadd.f32 %v3656, %v4294
      %v4331 = vadd.f32 %v3657, %v4297
      %s4332 = scalar_lea.vmem %s286, 24
      %v4333 = vld [vmem:[%s4332] sm:$0xf]
      %v4334 = vld [vmem:[%s4332 + $0x4] sm:$0xf]
      %v4335 = vld [vmem:[%s4332 + $0xc] sm:$0xf]
      %v4336 = vld [vmem:[%s4332 + $0x10] sm:$0xf]
      %v4337 = vld [vmem:[%s4332 + $0x18] sm:$0xf]
      %v4338 = vld [vmem:[%s4332 + $0x1c] sm:$0xf]
      %v4339 = vld [vmem:[%s4332 + $0x24] sm:$0xf]
      %v4340 = vld [vmem:[%s4332 + $0x28] sm:$0xf]
      %v4341 = vld [vmem:[%s4332 + $0x30] sm:$0xf]
      %v4342 = vld [vmem:[%s4332 + $0x34] sm:$0xf]
      %v4343 = vld [vmem:[%s4332 + $0x3c] sm:$0xf]
      %v4344 = vld [vmem:[%s4332 + $0x40] sm:$0xf]
      %v4345 = vld [vmem:[%s4332 + $0x48] sm:$0xf]
      %v4346 = vld [vmem:[%s4332 + $0x4c] sm:$0xf]
      %v4347 = vld [vmem:[%s4332 + $0x54] sm:$0xf]
      %v4348 = vld [vmem:[%s4332 + $0x58] sm:$0xf]
      %v4349 = vld [vmem:[%s4332 + $0x60] sm:$0xf]
      %v4350 = vld [vmem:[%s4332 + $0x64] sm:$0xf]
      %v4351 = vld [vmem:[%s4332 + $0x6c] sm:$0xf]
      %v4352 = vld [vmem:[%s4332 + $0x70] sm:$0xf]
      %v4353 = vld [vmem:[%s4332 + $0x78] sm:$0xf]
      %v4354 = vld [vmem:[%s4332 + $0x7c] sm:$0xf]
      %v4355 = vld [vmem:[%s4332 + $0x84] sm:$0xf]
      %v4356 = vld [vmem:[%s4332 + $0x88] sm:$0xf]
      %v4357 = vld [vmem:[%s4332 + $0x90] sm:$0xf]
      %v4358 = vld [vmem:[%s4332 + $0x94] sm:$0xf]
      %v4359 = vld [vmem:[%s4332 + $0x9c] sm:$0xf]
      %v4360 = vld [vmem:[%s4332 + $0xa0] sm:$0xf]
      %v4361 = vld [vmem:[%s4332 + $0xa8] sm:$0xf]
      %v4362 = vld [vmem:[%s4332 + $0xac] sm:$0xf]
      %v4363 = vld [vmem:[%s4332 + $0xb4] sm:$0xf]
      %v4364 = vld [vmem:[%s4332 + $0xb8] sm:$0xf]
      %v4365 = vunpack.c.l.bf16 %v4333
      %v4366 = vunpack.c.l.bf16 %v4334
      %v4367 = vunpack.c.l.bf16 %v4335
      %v4368 = vunpack.c.l.bf16 %v4336
      %v4369 = vunpack.c.l.bf16 %v4337
      %v4370 = vunpack.c.l.bf16 %v4338
      %v4371 = vunpack.c.l.bf16 %v4339
      %v4372 = vunpack.c.l.bf16 %v4340
      %v4373 = vunpack.c.l.bf16 %v4341
      %v4374 = vunpack.c.l.bf16 %v4342
      %v4375 = vunpack.c.l.bf16 %v4343
      %v4376 = vunpack.c.l.bf16 %v4344
      %v4377 = vunpack.c.l.bf16 %v4345
      %v4378 = vunpack.c.l.bf16 %v4346
      %v4379 = vunpack.c.l.bf16 %v4347
      %v4380 = vunpack.c.l.bf16 %v4348
      %v4381 = vunpack.c.l.bf16 %v4349
      %v4382 = vunpack.c.l.bf16 %v4350
      %v4383 = vunpack.c.l.bf16 %v4351
      %v4384 = vunpack.c.l.bf16 %v4352
      %v4385 = vunpack.c.l.bf16 %v4353
      %v4386 = vunpack.c.l.bf16 %v4354
      %v4387 = vunpack.c.l.bf16 %v4355
      %v4388 = vunpack.c.l.bf16 %v4356
      %v4389 = vunpack.c.l.bf16 %v4357
      %v4390 = vunpack.c.l.bf16 %v4358
      %v4391 = vunpack.c.l.bf16 %v4359
      %v4392 = vunpack.c.l.bf16 %v4360
      %v4393 = vunpack.c.l.bf16 %v4361
      %v4394 = vunpack.c.l.bf16 %v4362
      %v4395 = vunpack.c.l.bf16 %v4363
      %v4396 = vunpack.c.l.bf16 %v4364
      %v4397 = vmul.f32 %v4365, %v306
      %v4398 = vmul.f32 %v4366, %v306
      %v4399 = vmul.f32 %v4367, %v306
      %v4400 = vmul.f32 %v4368, %v306
      %v4401 = vmul.f32 %v4369, %v306
      %v4402 = vmul.f32 %v4370, %v306
      %v4403 = vmul.f32 %v4371, %v306
      %v4404 = vmul.f32 %v4372, %v306
      %v4405 = vmul.f32 %v4373, %v306
      %v4406 = vmul.f32 %v4374, %v306
      %v4407 = vmul.f32 %v4375, %v306
      %v4408 = vmul.f32 %v4376, %v306
      %v4409 = vmul.f32 %v4377, %v306
      %v4410 = vmul.f32 %v4378, %v306
      %v4411 = vmul.f32 %v4379, %v306
      %v4412 = vmul.f32 %v4380, %v306
      %v4413 = vmul.f32 %v4381, %v306
      %v4414 = vmul.f32 %v4382, %v306
      %v4415 = vmul.f32 %v4383, %v306
      %v4416 = vmul.f32 %v4384, %v306
      %v4417 = vmul.f32 %v4385, %v306
      %v4418 = vmul.f32 %v4386, %v306
      %v4419 = vmul.f32 %v4387, %v306
      %v4420 = vmul.f32 %v4388, %v306
      %v4421 = vmul.f32 %v4389, %v306
      %v4422 = vmul.f32 %v4390, %v306
      %v4423 = vmul.f32 %v4391, %v306
      %v4424 = vmul.f32 %v4392, %v306
      %v4425 = vmul.f32 %v4393, %v306
      %v4426 = vmul.f32 %v4394, %v306
      %v4427 = vmul.f32 %v4395, %v306
      %v4428 = vmul.f32 %v4396, %v306
      %v4429 = vadd.f32 %v4397, %v313
      %v4430 = vadd.f32 %v4398, %v313
      %v4431 = vadd.f32 %v4399, %v313
      %v4432 = vadd.f32 %v4400, %v313
      %v4433 = vadd.f32 %v4401, %v313
      %v4434 = vadd.f32 %v4402, %v313
      %v4435 = vadd.f32 %v4403, %v313
      %v4436 = vadd.f32 %v4404, %v313
      %v4437 = vadd.f32 %v4405, %v313
      %v4438 = vadd.f32 %v4406, %v313
      %v4439 = vadd.f32 %v4407, %v313
      %v4440 = vadd.f32 %v4408, %v313
      %v4441 = vadd.f32 %v4409, %v313
      %v4442 = vadd.f32 %v4410, %v313
      %v4443 = vadd.f32 %v4411, %v313
      %v4444 = vadd.f32 %v4412, %v313
      %v4445 = vadd.f32 %v4413, %v313
      %v4446 = vadd.f32 %v4414, %v313
      %v4447 = vadd.f32 %v4415, %v313
      %v4448 = vadd.f32 %v4416, %v313
      %v4449 = vadd.f32 %v4417, %v313
      %v4450 = vadd.f32 %v4418, %v313
      %v4451 = vadd.f32 %v4419, %v313
      %v4452 = vadd.f32 %v4420, %v313
      %v4453 = vadd.f32 %v4421, %v313
      %v4454 = vadd.f32 %v4422, %v313
      %v4455 = vadd.f32 %v4423, %v313
      %v4456 = vadd.f32 %v4424, %v313
      %v4457 = vadd.f32 %v4425, %v313
      %v4458 = vadd.f32 %v4426, %v313
      %v4459 = vadd.f32 %v4427, %v313
      %v4460 = vadd.f32 %v4428, %v313
      %v4461 = vmax.f32 %v4429, 0.0
      %v4462 = vmax.f32 %v4430, 0.0
      %v4463 = vmax.f32 %v4431, 0.0
      %v4464 = vmax.f32 %v4432, 0.0
      %v4465 = vmax.f32 %v4433, 0.0
      %v4466 = vmax.f32 %v4434, 0.0
      %v4467 = vmax.f32 %v4435, 0.0
      %v4468 = vmax.f32 %v4436, 0.0
      %v4469 = vmax.f32 %v4437, 0.0
      %v4470 = vmax.f32 %v4438, 0.0
      %v4471 = vmax.f32 %v4439, 0.0
      %v4472 = vmax.f32 %v4440, 0.0
      %v4473 = vmax.f32 %v4441, 0.0
      %v4474 = vmax.f32 %v4442, 0.0
      %v4475 = vmax.f32 %v4443, 0.0
      %v4476 = vmax.f32 %v4444, 0.0
      %v4477 = vmax.f32 %v4445, 0.0
      %v4478 = vmax.f32 %v4446, 0.0
      %v4479 = vmax.f32 %v4447, 0.0
      %v4480 = vmax.f32 %v4448, 0.0
      %v4481 = vmax.f32 %v4449, 0.0
      %v4482 = vmax.f32 %v4450, 0.0
      %v4483 = vmax.f32 %v4451, 0.0
      %v4484 = vmax.f32 %v4452, 0.0
      %v4485 = vmax.f32 %v4453, 0.0
      %v4486 = vmax.f32 %v4454, 0.0
      %v4487 = vmax.f32 %v4455, 0.0
      %v4488 = vmax.f32 %v4456, 0.0
      %v4489 = vmax.f32 %v4457, 0.0
      %v4490 = vmax.f32 %v4458, 0.0
      %v4491 = vmax.f32 %v4459, 0.0
      %v4492 = vmax.f32 %v4460, 0.0
      %s4493 = scalar_lea.vmem %s2, 48
      %v4494 = vld [vmem:[%s4493] sm:$0xff]
      %v4495 = vld [vmem:[%s4493 + $0x8] sm:$0xff]
      %v4496 = vld [vmem:[%s4493 + $0x18] sm:$0xff]
      %v4497 = vld [vmem:[%s4493 + $0x20] sm:$0xff]
      %v4498 = vld [vmem:[%s4493 + $0x30] sm:$0xff]
      %v4499 = vld [vmem:[%s4493 + $0x38] sm:$0xff]
      %v4500 = vld [vmem:[%s4493 + $0x48] sm:$0xff]
      %v4501 = vld [vmem:[%s4493 + $0x50] sm:$0xff]
      %v4502 = vld [vmem:[%s4493 + $0x60] sm:$0xff]
      %v4503 = vld [vmem:[%s4493 + $0x68] sm:$0xff]
      %v4504 = vld [vmem:[%s4493 + $0x78] sm:$0xff]
      %v4505 = vld [vmem:[%s4493 + $0x80] sm:$0xff]
      %v4506 = vld [vmem:[%s4493 + $0x90] sm:$0xff]
      %v4507 = vld [vmem:[%s4493 + $0x98] sm:$0xff]
      %v4508 = vld [vmem:[%s4493 + $0xa8] sm:$0xff]
      %v4509 = vld [vmem:[%s4493 + $0xb0] sm:$0xff]
      %v4510 = vld [vmem:[%s4493 + $0xc0] sm:$0xff]
      %v4511 = vld [vmem:[%s4493 + $0xc8] sm:$0xff]
      %v4512 = vld [vmem:[%s4493 + $0xd8] sm:$0xff]
      %v4513 = vld [vmem:[%s4493 + $0xe0] sm:$0xff]
      %v4514 = vld [vmem:[%s4493 + $0xf0] sm:$0xff]
      %v4515 = vld [vmem:[%s4493 + $0xf8] sm:$0xff]
      %v4516 = vld [vmem:[%s4493 + $0x108] sm:$0xff]
      %v4517 = vld [vmem:[%s4493 + $0x110] sm:$0xff]
      %v4518 = vld [vmem:[%s4493 + $0x120] sm:$0xff]
      %v4519 = vld [vmem:[%s4493 + $0x128] sm:$0xff]
      %v4520 = vld [vmem:[%s4493 + $0x138] sm:$0xff]
      %v4521 = vld [vmem:[%s4493 + $0x140] sm:$0xff]
      %v4522 = vld [vmem:[%s4493 + $0x150] sm:$0xff]
      %v4523 = vld [vmem:[%s4493 + $0x158] sm:$0xff]
      %v4524 = vld [vmem:[%s4493 + $0x168] sm:$0xff]
      %v4525 = vld [vmem:[%s4493 + $0x170] sm:$0xff]
      %v4526 = vmul.f32 %v4461, %v4494
      %v4527 = vmul.f32 %v4462, %v4495
      %v4528 = vmul.f32 %v4463, %v4496
      %v4529 = vmul.f32 %v4464, %v4497
      %v4530 = vmul.f32 %v4465, %v4498
      %v4531 = vmul.f32 %v4466, %v4499
      %v4532 = vmul.f32 %v4467, %v4500
      %v4533 = vmul.f32 %v4468, %v4501
      %v4534 = vmul.f32 %v4469, %v4502
      %v4535 = vmul.f32 %v4470, %v4503
      %v4536 = vmul.f32 %v4471, %v4504
      %v4537 = vmul.f32 %v4472, %v4505
      %v4538 = vmul.f32 %v4473, %v4506
      %v4539 = vmul.f32 %v4474, %v4507
      %v4540 = vmul.f32 %v4475, %v4508
      %v4541 = vmul.f32 %v4476, %v4509
      %v4542 = vmul.f32 %v4477, %v4510
      %v4543 = vmul.f32 %v4478, %v4511
      %v4544 = vmul.f32 %v4479, %v4512
      %v4545 = vmul.f32 %v4480, %v4513
      %v4546 = vmul.f32 %v4481, %v4514
      %v4547 = vmul.f32 %v4482, %v4515
      %v4548 = vmul.f32 %v4483, %v4516
      %v4549 = vmul.f32 %v4484, %v4517
      %v4550 = vmul.f32 %v4485, %v4518
      %v4551 = vmul.f32 %v4486, %v4519
      %v4552 = vmul.f32 %v4487, %v4520
      %v4553 = vmul.f32 %v4488, %v4521
      %v4554 = vmul.f32 %v4489, %v4522
      %v4555 = vmul.f32 %v4490, %v4523
      %v4556 = vmul.f32 %v4491, %v4524
      %v4557 = vmul.f32 %v4492, %v4525
      %v4558 = vpack.c.bf16 %v4527, %v4526
      %v4559 = vpack.c.bf16 %v4529, %v4528
      %v4560 = vpack.c.bf16 %v4531, %v4530
      %v4561 = vpack.c.bf16 %v4533, %v4532
      %v4562 = vpack.c.bf16 %v4535, %v4534
      %v4563 = vpack.c.bf16 %v4537, %v4536
      %v4564 = vpack.c.bf16 %v4539, %v4538
      %v4565 = vpack.c.bf16 %v4541, %v4540
      %v4566 = vpack.c.bf16 %v4543, %v4542
      %v4567 = vpack.c.bf16 %v4545, %v4544
      %v4568 = vpack.c.bf16 %v4547, %v4546
      %v4569 = vpack.c.bf16 %v4549, %v4548
      %v4570 = vpack.c.bf16 %v4551, %v4550
      %v4571 = vpack.c.bf16 %v4553, %v4552
      %v4572 = vpack.c.bf16 %v4555, %v4554
      %v4573 = vpack.c.bf16 %v4557, %v4556
      %s4574 = scalar_lea.vmem %s1, 384
      %v4575 = vld [vmem:[%s4574] sm:$0xf]
      %v4576 = vld [vmem:[%s4574 + $0x4] sm:$0xf]
      %v4577 = vld [vmem:[%s4574 + $0x8] sm:$0xf]
      %v4578 = vld [vmem:[%s4574 + $0xc] sm:$0xf]
      %v4579 = vld [vmem:[%s4574 + $0x10] sm:$0xf]
      %v4580 = vld [vmem:[%s4574 + $0x14] sm:$0xf]
      %v4581 = vld [vmem:[%s4574 + $0x18] sm:$0xf]
      %v4582 = vld [vmem:[%s4574 + $0x1c] sm:$0xf]
      %v4583 = vld [vmem:[%s4574 + $0x20] sm:$0xf]
      %v4584 = vld [vmem:[%s4574 + $0x24] sm:$0xf]
      %v4585 = vld [vmem:[%s4574 + $0x28] sm:$0xf]
      %v4586 = vld [vmem:[%s4574 + $0x2c] sm:$0xf]
      %v4587 = vld [vmem:[%s4574 + $0x30] sm:$0xf]
      %v4588 = vld [vmem:[%s4574 + $0x34] sm:$0xf]
      %v4589 = vld [vmem:[%s4574 + $0x38] sm:$0xf]
      %v4590 = vld [vmem:[%s4574 + $0x3c] sm:$0xf]
      %v4607 = vunpack.c.l.b16 %v4575
      %v4608 = vunpack.c.l.b16 %v4576
      %v4609 = vunpack.c.l.b16 %v4577
      %v4610 = vunpack.c.l.b16 %v4578
      %v4611 = vunpack.c.l.b16 %v4579
      %v4612 = vunpack.c.l.b16 %v4580
      %v4613 = vunpack.c.l.b16 %v4581
      %v4614 = vunpack.c.l.b16 %v4582
      %v4615 = vunpack.c.l.b16 %v4583
      %v4616 = vunpack.c.l.b16 %v4584
      %v4617 = vunpack.c.l.b16 %v4585
      %v4618 = vunpack.c.l.b16 %v4586
      %v4619 = vunpack.c.l.b16 %v4587
      %v4620 = vunpack.c.l.b16 %v4588
      %v4621 = vunpack.c.l.b16 %v4589
      %v4622 = vunpack.c.l.b16 %v4590
      %v4623 = vpack.c.b16 %v4608, %v4607
      %v4624 = vpack.c.b16 %v4610, %v4609
      %v4625 = vpack.c.b16 %v4612, %v4611
      %v4626 = vpack.c.b16 %v4614, %v4613
      %v4627 = vpack.c.b16 %v4616, %v4615
      %v4628 = vpack.c.b16 %v4618, %v4617
      %v4629 = vpack.c.b16 %v4620, %v4619
      %v4630 = vpack.c.b16 %v4622, %v4621
      %4639 = vmatprep.subr.bf16.mxu0 0
      %4640 = vmatpush1.bf16.msra.mxu0 %v4623
      %4641 = vmatprep.subr.bf16.mxu0 0
      %4642 = vmatpush1.bf16.msra.mxu0 %v4624
      %4643 = vmatprep.subr.bf16.mxu0 0
      %4644 = vmatpush1.bf16.msra.mxu0 %v4625
      %4645 = vmatprep.subr.bf16.mxu0 0
      %4646 = vmatpush1.bf16.msra.mxu0 %v4626
      %4647 = vmatprep.subr.bf16.mxu0 0
      %4648 = vmatpush1.bf16.msra.mxu0 %v4627
      %4649 = vmatprep.subr.bf16.mxu0 0
      %4650 = vmatpush1.bf16.msra.mxu0 %v4628
      %4651 = vmatprep.subr.bf16.mxu0 0
      %4652 = vmatpush1.bf16.msra.mxu0 %v4629
      %4653 = vmatprep.subr.bf16.mxu0 0
      %4654 = vmatpush1.bf16.msra.mxu0 %v4630
      %4655 = vmatprep.subr.bf16.mxu0 0
      %4656 = vmatpush1.bf16.msra.mxu0 0
      %4657 = vmatprep.subr.bf16.mxu0 0
      %4658 = vmatpush1.bf16.msra.mxu0 0
      %4659 = vmatprep.subr.bf16.mxu0 0
      %4660 = vmatpush1.bf16.msra.mxu0 0
      %4661 = vmatprep.subr.bf16.mxu0 0
      %4662 = vmatpush1.bf16.msra.mxu0 0
      %4663 = vmatprep.subr.bf16.mxu0 0
      %4664 = vmatpush1.bf16.msra.mxu0 0
      %4665 = vmatprep.subr.bf16.mxu0 0
      %4666 = vmatpush1.bf16.msra.mxu0 0
      %4667 = vmatprep.subr.bf16.mxu0 0
      %4668 = vmatpush1.bf16.msra.mxu0 0
      %4669 = vmatprep.subr.bf16.mxu0 0
      %4670 = vmatpush1.bf16.msra.mxu0 0
      %4671 = vmatprep.mubr.bf16.mxu0 0
      %4672 = vmatmul.mubr.bf16.gmra.mrb[0].mxu0 %v4558
      %v4673 = vpop.f32.mrb[0].mxu0
      %v4674 = vadd.f32 0.0, %v4673
      %v4675 = vpop.f32.mrb[0].mxu0
      %v4676 = vpop.f32.mrb[0].mxu0
      %v4677 = vadd.f32 0.0, %v4676
      %v4678 = vpop.f32.mrb[0].mxu0
      %4679 = vmatprep.mubr.bf16.mxu0 0
      %4680 = vmatmul.mubr.bf16.gmra.mrb[0].mxu0 %v4559
      %v4681 = vpop.f32.mrb[0].mxu0
      %v4682 = vadd.f32 0.0, %v4681
      %v4683 = vpop.f32.mrb[0].mxu0
      %v4684 = vpop.f32.mrb[0].mxu0
      %v4685 = vadd.f32 0.0, %v4684
      %v4686 = vpop.f32.mrb[0].mxu0
      %4687 = vmatprep.mubr.bf16.mxu0 0
      %4688 = vmatmul.mubr.bf16.gmra.mrb[0].mxu0 %v4560
      %v4689 = vpop.f32.mrb[0].mxu0
      %v4690 = vadd.f32 0.0, %v4689
      %v4691 = vpop.f32.mrb[0].mxu0
      %v4692 = vpop.f32.mrb[0].mxu0
      %v4693 = vadd.f32 0.0, %v4692
      %v4694 = vpop.f32.mrb[0].mxu0
      %4695 = vmatprep.mubr.bf16.mxu0 0
      %4696 = vmatmul.mubr.bf16.gmra.mrb[0].mxu0 %v4561
      %v4697 = vpop.f32.mrb[0].mxu0
      %v4698 = vadd.f32 0.0, %v4697
      %v4699 = vpop.f32.mrb[0].mxu0
      %v4700 = vpop.f32.mrb[0].mxu0
      %v4701 = vadd.f32 0.0, %v4700
      %v4702 = vpop.f32.mrb[0].mxu0
      %4703 = vmatprep.mubr.bf16.mxu0 0
      %4704 = vmatmul.mubr.bf16.gmra.mrb[0].mxu0 %v4562
      %v4705 = vpop.f32.mrb[0].mxu0
      %v4706 = vadd.f32 0.0, %v4705
      %v4707 = vpop.f32.mrb[0].mxu0
      %v4708 = vpop.f32.mrb[0].mxu0
      %v4709 = vadd.f32 0.0, %v4708
      %v4710 = vpop.f32.mrb[0].mxu0
      %4711 = vmatprep.mubr.bf16.mxu0 0
      %4712 = vmatmul.mubr.bf16.gmra.mrb[0].mxu0 %v4563
      %v4713 = vpop.f32.mrb[0].mxu0
      %v4714 = vadd.f32 0.0, %v4713
      %v4715 = vpop.f32.mrb[0].mxu0
      %v4716 = vpop.f32.mrb[0].mxu0
      %v4717 = vadd.f32 0.0, %v4716
      %v4718 = vpop.f32.mrb[0].mxu0
      %4719 = vmatprep.mubr.bf16.mxu0 0
      %4720 = vmatmul.mubr.bf16.gmra.mrb[0].mxu0 %v4564
      %v4721 = vpop.f32.mrb[0].mxu0
      %v4722 = vadd.f32 0.0, %v4721
      %v4723 = vpop.f32.mrb[0].mxu0
      %v4724 = vpop.f32.mrb[0].mxu0
      %v4725 = vadd.f32 0.0, %v4724
      %v4726 = vpop.f32.mrb[0].mxu0
      %4727 = vmatprep.mubr.bf16.mxu0 0
      %4728 = vmatmul.mubr.bf16.gmra.mrb[0].mxu0 %v4565
      %v4729 = vpop.f32.mrb[0].mxu0
      %v4730 = vadd.f32 0.0, %v4729
      %v4731 = vpop.f32.mrb[0].mxu0
      %v4732 = vpop.f32.mrb[0].mxu0
      %v4733 = vadd.f32 0.0, %v4732
      %v4734 = vpop.f32.mrb[0].mxu0
      %4735 = vmatprep.mubr.bf16.mxu0 0
      %4736 = vmatmul.mubr.bf16.gmra.mrb[0].mxu0 %v4566
      %v4737 = vpop.f32.mrb[0].mxu0
      %v4738 = vadd.f32 0.0, %v4737
      %v4739 = vpop.f32.mrb[0].mxu0
      %v4740 = vpop.f32.mrb[0].mxu0
      %v4741 = vadd.f32 0.0, %v4740
      %v4742 = vpop.f32.mrb[0].mxu0
      %4743 = vmatprep.mubr.bf16.mxu0 0
      %4744 = vmatmul.mubr.bf16.gmra.mrb[0].mxu0 %v4567
      %v4745 = vpop.f32.mrb[0].mxu0
      %v4746 = vadd.f32 0.0, %v4745
      %v4747 = vpop.f32.mrb[0].mxu0
      %v4748 = vpop.f32.mrb[0].mxu0
      %v4749 = vadd.f32 0.0, %v4748
      %v4750 = vpop.f32.mrb[0].mxu0
      %4751 = vmatprep.mubr.bf16.mxu0 0
      %4752 = vmatmul.mubr.bf16.gmra.mrb[0].mxu0 %v4568
      %v4753 = vpop.f32.mrb[0].mxu0
      %v4754 = vadd.f32 0.0, %v4753
      %v4755 = vpop.f32.mrb[0].mxu0
      %v4756 = vpop.f32.mrb[0].mxu0
      %v4757 = vadd.f32 0.0, %v4756
      %v4758 = vpop.f32.mrb[0].mxu0
      %4759 = vmatprep.mubr.bf16.mxu0 0
      %4760 = vmatmul.mubr.bf16.gmra.mrb[0].mxu0 %v4569
      %v4761 = vpop.f32.mrb[0].mxu0
      %v4762 = vadd.f32 0.0, %v4761
      %v4763 = vpop.f32.mrb[0].mxu0
      %v4764 = vpop.f32.mrb[0].mxu0
      %v4765 = vadd.f32 0.0, %v4764
      %v4766 = vpop.f32.mrb[0].mxu0
      %4767 = vmatprep.mubr.bf16.mxu0 0
      %4768 = vmatmul.mubr.bf16.gmra.mrb[0].mxu0 %v4570
      %v4769 = vpop.f32.mrb[0].mxu0
      %v4770 = vadd.f32 0.0, %v4769
      %v4771 = vpop.f32.mrb[0].mxu0
      %v4772 = vpop.f32.mrb[0].mxu0
      %v4773 = vadd.f32 0.0, %v4772
      %v4774 = vpop.f32.mrb[0].mxu0
      %4775 = vmatprep.mubr.bf16.mxu0 0
      %4776 = vmatmul.mubr.bf16.gmra.mrb[0].mxu0 %v4571
      %v4777 = vpop.f32.mrb[0].mxu0
      %v4778 = vadd.f32 0.0, %v4777
      %v4779 = vpop.f32.mrb[0].mxu0
      %v4780 = vpop.f32.mrb[0].mxu0
      %v4781 = vadd.f32 0.0, %v4780
      %v4782 = vpop.f32.mrb[0].mxu0
      %4783 = vmatprep.mubr.bf16.mxu0 0
      %4784 = vmatmul.mubr.bf16.gmra.mrb[0].mxu0 %v4572
      %v4785 = vpop.f32.mrb[0].mxu0
      %v4786 = vadd.f32 0.0, %v4785
      %v4787 = vpop.f32.mrb[0].mxu0
      %v4788 = vpop.f32.mrb[0].mxu0
      %v4789 = vadd.f32 0.0, %v4788
      %v4790 = vpop.f32.mrb[0].mxu0
      %4791 = vmatprep.mubr.bf16.mxu0 0
      %4792 = vmatmul.mubr.bf16.gmra.mrb[0].mxu0 %v4573
      %v4793 = vpop.f32.mrb[0].mxu0
      %v4794 = vadd.f32 0.0, %v4793
      %v4795 = vpop.f32.mrb[0].mxu0
      %v4796 = vpop.f32.mrb[0].mxu0
      %v4797 = vadd.f32 0.0, %v4796
      %v4798 = vpop.f32.mrb[0].mxu0
      %4799 = vdwg.mxu0
      %v4800 = vadd.f32 %v4300, %v4674
      %v4801 = vadd.f32 %v4301, %v4677
      %v4802 = vadd.f32 %v4302, %v4682
      %v4803 = vadd.f32 %v4303, %v4685
      %v4804 = vadd.f32 %v4304, %v4690
      %v4805 = vadd.f32 %v4305, %v4693
      %v4806 = vadd.f32 %v4306, %v4698
      %v4807 = vadd.f32 %v4307, %v4701
      %v4808 = vadd.f32 %v4308, %v4706
      %v4809 = vadd.f32 %v4309, %v4709
      %v4810 = vadd.f32 %v4310, %v4714
      %v4811 = vadd.f32 %v4311, %v4717
      %v4812 = vadd.f32 %v4312, %v4722
      %v4813 = vadd.f32 %v4313, %v4725
      %v4814 = vadd.f32 %v4314, %v4730
      %v4815 = vadd.f32 %v4315, %v4733
      %v4816 = vadd.f32 %v4316, %v4738
      %v4817 = vadd.f32 %v4317, %v4741
      %v4818 = vadd.f32 %v4318, %v4746
      %v4819 = vadd.f32 %v4319, %v4749
      %v4820 = vadd.f32 %v4320, %v4754
      %v4821 = vadd.f32 %v4321, %v4757
      %v4822 = vadd.f32 %v4322, %v4762
      %v4823 = vadd.f32 %v4323, %v4765
      %v4824 = vadd.f32 %v4324, %v4770
      %v4825 = vadd.f32 %v4325, %v4773
      %v4826 = vadd.f32 %v4326, %v4778
      %v4827 = vadd.f32 %v4327, %v4781
      %v4828 = vadd.f32 %v4328, %v4786
      %v4829 = vadd.f32 %v4329, %v4789
      %v4830 = vadd.f32 %v4330, %v4794
      %v4831 = vadd.f32 %v4331, %v4797
      %v4832 = vld [vmem:[%s4332] sm:$0xf]
      %v4833 = vld [vmem:[%s4332 + $0x4] sm:$0xf]
      %v4834 = vld [vmem:[%s4332 + $0x8] sm:$0x1]
      %v4835 = vld [vmem:[%s4332 + $0xc] sm:$0xf]
      %v4836 = vld [vmem:[%s4332 + $0x10] sm:$0xf]
      %v4837 = vld [vmem:[%s4332 + $0x14] sm:$0x1]
      %v4838 = vld [vmem:[%s4332 + $0x18] sm:$0xf]
      %v4839 = vld [vmem:[%s4332 + $0x1c] sm:$0xf]
      %v4840 = vld [vmem:[%s4332 + $0x20] sm:$0x1]
      %v4841 = vld [vmem:[%s4332 + $0x24] sm:$0xf]
      %v4842 = vld [vmem:[%s4332 + $0x28] sm:$0xf]
      %v4843 = vld [vmem:[%s4332 + $0x2c] sm:$0x1]
      %v4844 = vld [vmem:[%s4332 + $0x30] sm:$0xf]
      %v4845 = vld [vmem:[%s4332 + $0x34] sm:$0xf]
      %v4846 = vld [vmem:[%s4332 + $0x38] sm:$0x1]
      %v4847 = vld [vmem:[%s4332 + $0x3c] sm:$0xf]
      %v4848 = vld [vmem:[%s4332 + $0x40] sm:$0xf]
      %v4849 = vld [vmem:[%s4332 + $0x44] sm:$0x1]
      %v4850 = vld [vmem:[%s4332 + $0x48] sm:$0xf]
      %v4851 = vld [vmem:[%s4332 + $0x4c] sm:$0xf]
      %v4852 = vld [vmem:[%s4332 + $0x50] sm:$0x1]
      %v4853 = vld [vmem:[%s4332 + $0x54] sm:$0xf]
      %v4854 = vld [vmem:[%s4332 + $0x58] sm:$0xf]
      %v4855 = vld [vmem:[%s4332 + $0x5c] sm:$0x1]
      %v4856 = vld [vmem:[%s4332 + $0x60] sm:$0xf]
      %v4857 = vld [vmem:[%s4332 + $0x64] sm:$0xf]
      %v4858 = vld [vmem:[%s4332 + $0x68] sm:$0x1]
      %v4859 = vld [vmem:[%s4332 + $0x6c] sm:$0xf]
      %v4860 = vld [vmem:[%s4332 + $0x70] sm:$0xf]
      %v4861 = vld [vmem:[%s4332 + $0x74] sm:$0x1]
      %v4862 = vld [vmem:[%s4332 + $0x78] sm:$0xf]
      %v4863 = vld [vmem:[%s4332 + $0x7c] sm:$0xf]
      %v4864 = vld [vmem:[%s4332 + $0x80] sm:$0x1]
      %v4865 = vld [vmem:[%s4332 + $0x84] sm:$0xf]
      %v4866 = vld [vmem:[%s4332 + $0x88] sm:$0xf]
      %v4867 = vld [vmem:[%s4332 + $0x8c] sm:$0x1]
      %v4868 = vld [vmem:[%s4332 + $0x90] sm:$0xf]
      %v4869 = vld [vmem:[%s4332 + $0x94] sm:$0xf]
      %v4870 = vld [vmem:[%s4332 + $0x98] sm:$0x1]
      %v4871 = vld [vmem:[%s4332 + $0x9c] sm:$0xf]
      %v4872 = vld [vmem:[%s4332 + $0xa0] sm:$0xf]
      %v4873 = vld [vmem:[%s4332 + $0xa4] sm:$0x1]
      %v4874 = vld [vmem:[%s4332 + $0xa8] sm:$0xf]
      %v4875 = vld [vmem:[%s4332 + $0xac] sm:$0xf]
      %v4876 = vld [vmem:[%s4332 + $0xb0] sm:$0x1]
      %v4877 = vld [vmem:[%s4332 + $0xb4] sm:$0xf]
      %v4878 = vld [vmem:[%s4332 + $0xb8] sm:$0xf]
      %v4879 = vld [vmem:[%s4332 + $0xbc] sm:$0x1]
      %v4880 = vunpack.c.l.bf16 %v4832
      %v4881 = vunpack.c.l.bf16 %v4833
      %v4882 = vunpack.c.l.bf16 %v4834
      %v4883 = vunpack.c.l.bf16 %v4835
      %v4884 = vunpack.c.l.bf16 %v4836
      %v4885 = vunpack.c.l.bf16 %v4837
      %v4886 = vunpack.c.l.bf16 %v4838
      %v4887 = vunpack.c.l.bf16 %v4839
      %v4888 = vunpack.c.l.bf16 %v4840
      %v4889 = vunpack.c.l.bf16 %v4841
      %v4890 = vunpack.c.l.bf16 %v4842
      %v4891 = vunpack.c.l.bf16 %v4843
      %v4892 = vunpack.c.l.bf16 %v4844
      %v4893 = vunpack.c.l.bf16 %v4845
      %v4894 = vunpack.c.l.bf16 %v4846
      %v4895 = vunpack.c.l.bf16 %v4847
      %v4896 = vunpack.c.l.bf16 %v4848
      %v4897 = vunpack.c.l.bf16 %v4849
      %v4898 = vunpack.c.l.bf16 %v4850
      %v4899 = vunpack.c.l.bf16 %v4851
      %v4900 = vunpack.c.l.bf16 %v4852
      %v4901 = vunpack.c.l.bf16 %v4853
      %v4902 = vunpack.c.l.bf16 %v4854
      %v4903 = vunpack.c.l.bf16 %v4855
      %v4904 = vunpack.c.l.bf16 %v4856
      %v4905 = vunpack.c.l.bf16 %v4857
      %v4906 = vunpack.c.l.bf16 %v4858
      %v4907 = vunpack.c.l.bf16 %v4859
      %v4908 = vunpack.c.l.bf16 %v4860
      %v4909 = vunpack.c.l.bf16 %v4861
      %v4910 = vunpack.c.l.bf16 %v4862
      %v4911 = vunpack.c.l.bf16 %v4863
      %v4912 = vunpack.c.l.bf16 %v4864
      %v4913 = vunpack.c.l.bf16 %v4865
      %v4914 = vunpack.c.l.bf16 %v4866
      %v4915 = vunpack.c.l.bf16 %v4867
      %v4916 = vunpack.c.l.bf16 %v4868
      %v4917 = vunpack.c.l.bf16 %v4869
      %v4918 = vunpack.c.l.bf16 %v4870
      %v4919 = vunpack.c.l.bf16 %v4871
      %v4920 = vunpack.c.l.bf16 %v4872
      %v4921 = vunpack.c.l.bf16 %v4873
      %v4922 = vunpack.c.l.bf16 %v4874
      %v4923 = vunpack.c.l.bf16 %v4875
      %v4924 = vunpack.c.l.bf16 %v4876
      %v4925 = vunpack.c.l.bf16 %v4877
      %v4926 = vunpack.c.l.bf16 %v4878
      %v4927 = vunpack.c.l.bf16 %v4879
      %v4928 = vmul.f32 %v4880, %v306
      %v4929 = vmul.f32 %v4881, %v306
      %v4930 = vmul.f32 %v4882, %v306
      %v4931 = vmul.f32 %v4883, %v306
      %v4932 = vmul.f32 %v4884, %v306
      %v4933 = vmul.f32 %v4885, %v306
      %v4934 = vmul.f32 %v4886, %v306
      %v4935 = vmul.f32 %v4887, %v306
      %v4936 = vmul.f32 %v4888, %v306
      %v4937 = vmul.f32 %v4889, %v306
      %v4938 = vmul.f32 %v4890, %v306
      %v4939 = vmul.f32 %v4891, %v306
      %v4940 = vmul.f32 %v4892, %v306
      %v4941 = vmul.f32 %v4893, %v306
      %v4942 = vmul.f32 %v4894, %v306
      %v4943 = vmul.f32 %v4895, %v306
      %v4944 = vmul.f32 %v4896, %v306
      %v4945 = vmul.f32 %v4897, %v306
      %v4946 = vmul.f32 %v4898, %v306
      %v4947 = vmul.f32 %v4899, %v306
      %v4948 = vmul.f32 %v4900, %v306
      %v4949 = vmul.f32 %v4901, %v306
      %v4950 = vmul.f32 %v4902, %v306
      %v4951 = vmul.f32 %v4903, %v306
      %v4952 = vmul.f32 %v4904, %v306
      %v4953 = vmul.f32 %v4905, %v306
      %v4954 = vmul.f32 %v4906, %v306
      %v4955 = vmul.f32 %v4907, %v306
      %v4956 = vmul.f32 %v4908, %v306
      %v4957 = vmul.f32 %v4909, %v306
      %v4958 = vmul.f32 %v4910, %v306
      %v4959 = vmul.f32 %v4911, %v306
      %v4960 = vmul.f32 %v4912, %v306
      %v4961 = vmul.f32 %v4913, %v306
      %v4962 = vmul.f32 %v4914, %v306
      %v4963 = vmul.f32 %v4915, %v306
      %v4964 = vmul.f32 %v4916, %v306
      %v4965 = vmul.f32 %v4917, %v306
      %v4966 = vmul.f32 %v4918, %v306
      %v4967 = vmul.f32 %v4919, %v306
      %v4968 = vmul.f32 %v4920, %v306
      %v4969 = vmul.f32 %v4921, %v306
      %v4970 = vmul.f32 %v4922, %v306
      %v4971 = vmul.f32 %v4923, %v306
      %v4972 = vmul.f32 %v4924, %v306
      %v4973 = vmul.f32 %v4925, %v306
      %v4974 = vmul.f32 %v4926, %v306
      %v4975 = vmul.f32 %v4927, %v306
      %v4976 = vadd.f32 %v4928, %v313
      %v4977 = vadd.f32 %v4929, %v313
      %v4978 = vadd.f32 %v4930, %v313
      %v4979 = vadd.f32 %v4931, %v313
      %v4980 = vadd.f32 %v4932, %v313
      %v4981 = vadd.f32 %v4933, %v313
      %v4982 = vadd.f32 %v4934, %v313
      %v4983 = vadd.f32 %v4935, %v313
      %v4984 = vadd.f32 %v4936, %v313
      %v4985 = vadd.f32 %v4937, %v313
      %v4986 = vadd.f32 %v4938, %v313
      %v4987 = vadd.f32 %v4939, %v313
      %v4988 = vadd.f32 %v4940, %v313
      %v4989 = vadd.f32 %v4941, %v313
      %v4990 = vadd.f32 %v4942, %v313
      %v4991 = vadd.f32 %v4943, %v313
      %v4992 = vadd.f32 %v4944, %v313
      %v4993 = vadd.f32 %v4945, %v313
      %v4994 = vadd.f32 %v4946, %v313
      %v4995 = vadd.f32 %v4947, %v313
      %v4996 = vadd.f32 %v4948, %v313
      %v4997 = vadd.f32 %v4949, %v313
      %v4998 = vadd.f32 %v4950, %v313
      %v4999 = vadd.f32 %v4951, %v313
      %v5000 = vadd.f32 %v4952, %v313
      %v5001 = vadd.f32 %v4953, %v313
      %v5002 = vadd.f32 %v4954, %v313
      %v5003 = vadd.f32 %v4955, %v313
      %v5004 = vadd.f32 %v4956, %v313
      %v5005 = vadd.f32 %v4957, %v313
      %v5006 = vadd.f32 %v4958, %v313
      %v5007 = vadd.f32 %v4959, %v313
      %v5008 = vadd.f32 %v4960, %v313
      %v5009 = vadd.f32 %v4961, %v313
      %v5010 = vadd.f32 %v4962, %v313
      %v5011 = vadd.f32 %v4963, %v313
      %v5012 = vadd.f32 %v4964, %v313
      %v5013 = vadd.f32 %v4965, %v313
      %v5014 = vadd.f32 %v4966, %v313
      %v5015 = vadd.f32 %v4967, %v313
      %v5016 = vadd.f32 %v4968, %v313
      %v5017 = vadd.f32 %v4969, %v313
      %v5018 = vadd.f32 %v4970, %v313
      %v5019 = vadd.f32 %v4971, %v313
      %v5020 = vadd.f32 %v4972, %v313
      %v5021 = vadd.f32 %v4973, %v313
      %v5022 = vadd.f32 %v4974, %v313
      %v5023 = vadd.f32 %v4975, %v313
      %v5024 = vmax.f32 %v4976, 0.0
      %v5025 = vmax.f32 %v4977, 0.0
      %v5026 = vmax.f32 %v4978, 0.0
      %v5027 = vmax.f32 %v4979, 0.0
      %v5028 = vmax.f32 %v4980, 0.0
      %v5029 = vmax.f32 %v4981, 0.0
      %v5030 = vmax.f32 %v4982, 0.0
      %v5031 = vmax.f32 %v4983, 0.0
      %v5032 = vmax.f32 %v4984, 0.0
      %v5033 = vmax.f32 %v4985, 0.0
      %v5034 = vmax.f32 %v4986, 0.0
      %v5035 = vmax.f32 %v4987, 0.0
      %v5036 = vmax.f32 %v4988, 0.0
      %v5037 = vmax.f32 %v4989, 0.0
      %v5038 = vmax.f32 %v4990, 0.0
      %v5039 = vmax.f32 %v4991, 0.0
      %v5040 = vmax.f32 %v4992, 0.0
      %v5041 = vmax.f32 %v4993, 0.0
      %v5042 = vmax.f32 %v4994, 0.0
      %v5043 = vmax.f32 %v4995, 0.0
      %v5044 = vmax.f32 %v4996, 0.0
      %v5045 = vmax.f32 %v4997, 0.0
      %v5046 = vmax.f32 %v4998, 0.0
      %v5047 = vmax.f32 %v4999, 0.0
      %v5048 = vmax.f32 %v5000, 0.0
      %v5049 = vmax.f32 %v5001, 0.0
      %v5050 = vmax.f32 %v5002, 0.0
      %v5051 = vmax.f32 %v5003, 0.0
      %v5052 = vmax.f32 %v5004, 0.0
      %v5053 = vmax.f32 %v5005, 0.0
      %v5054 = vmax.f32 %v5006, 0.0
      %v5055 = vmax.f32 %v5007, 0.0
      %v5056 = vmax.f32 %v5008, 0.0
      %v5057 = vmax.f32 %v5009, 0.0
      %v5058 = vmax.f32 %v5010, 0.0
      %v5059 = vmax.f32 %v5011, 0.0
      %v5060 = vmax.f32 %v5012, 0.0
      %v5061 = vmax.f32 %v5013, 0.0
      %v5062 = vmax.f32 %v5014, 0.0
      %v5063 = vmax.f32 %v5015, 0.0
      %v5064 = vmax.f32 %v5016, 0.0
      %v5065 = vmax.f32 %v5017, 0.0
      %v5066 = vmax.f32 %v5018, 0.0
      %v5067 = vmax.f32 %v5019, 0.0
      %v5068 = vmax.f32 %v5020, 0.0
      %v5069 = vmax.f32 %v5021, 0.0
      %v5070 = vmax.f32 %v5022, 0.0
      %v5071 = vmax.f32 %v5023, 0.0
      %v5072 = vld [vmem:[%s4493 + $0x1] sm:$0xff]
      %v5073 = vld [vmem:[%s4493 + $0x9] sm:$0xff]
      %v5074 = vld [vmem:[%s4493 + $0x19] sm:$0xff]
      %v5075 = vld [vmem:[%s4493 + $0x21] sm:$0xff]
      %v5076 = vld [vmem:[%s4493 + $0x31] sm:$0xff]
      %v5077 = vld [vmem:[%s4493 + $0x39] sm:$0xff]
      %v5078 = vld [vmem:[%s4493 + $0x49] sm:$0xff]
      %v5079 = vld [vmem:[%s4493 + $0x51] sm:$0xff]
      %v5080 = vld [vmem:[%s4493 + $0x61] sm:$0xff]
      %v5081 = vld [vmem:[%s4493 + $0x69] sm:$0xff]
      %v5082 = vld [vmem:[%s4493 + $0x79] sm:$0xff]
      %v5083 = vld [vmem:[%s4493 + $0x81] sm:$0xff]
      %v5084 = vld [vmem:[%s4493 + $0x91] sm:$0xff]
      %v5085 = vld [vmem:[%s4493 + $0x99] sm:$0xff]
      %v5086 = vld [vmem:[%s4493 + $0xa9] sm:$0xff]
      %v5087 = vld [vmem:[%s4493 + $0xb1] sm:$0xff]
      %v5088 = vld [vmem:[%s4493 + $0xc1] sm:$0xff]
      %v5089 = vld [vmem:[%s4493 + $0xc9] sm:$0xff]
      %v5090 = vld [vmem:[%s4493 + $0xd9] sm:$0xff]
      %v5091 = vld [vmem:[%s4493 + $0xe1] sm:$0xff]
      %v5092 = vld [vmem:[%s4493 + $0xf1] sm:$0xff]
      %v5093 = vld [vmem:[%s4493 + $0xf9] sm:$0xff]
      %v5094 = vld [vmem:[%s4493 + $0x109] sm:$0xff]
      %v5095 = vld [vmem:[%s4493 + $0x111] sm:$0xff]
      %v5096 = vld [vmem:[%s4493 + $0x121] sm:$0xff]
      %v5097 = vld [vmem:[%s4493 + $0x129] sm:$0xff]
      %v5098 = vld [vmem:[%s4493 + $0x139] sm:$0xff]
      %v5099 = vld [vmem:[%s4493 + $0x141] sm:$0xff]
      %v5100 = vld [vmem:[%s4493 + $0x151] sm:$0xff]
      %v5101 = vld [vmem:[%s4493 + $0x159] sm:$0xff]
      %v5102 = vld [vmem:[%s4493 + $0x169] sm:$0xff]
      %v5103 = vld [vmem:[%s4493 + $0x171] sm:$0xff]
      %v5136 = vrot.slane %v5072, 7
      %v5137 = vrot.slane %v5073, 7
      %v5138 = vsel %vm715, %v5136, %v5137
      %v5139 = vrot.slane %v5074, 7
      %v5140 = vrot.slane %v5075, 7
      %v5141 = vsel %vm715, %v5139, %v5140
      %v5142 = vrot.slane %v5076, 7
      %v5143 = vrot.slane %v5077, 7
      %v5144 = vsel %vm715, %v5142, %v5143
      %v5145 = vrot.slane %v5078, 7
      %v5146 = vrot.slane %v5079, 7
      %v5147 = vsel %vm715, %v5145, %v5146
      %v5148 = vrot.slane %v5080, 7
      %v5149 = vrot.slane %v5081, 7
      %v5150 = vsel %vm715, %v5148, %v5149
      %v5151 = vrot.slane %v5082, 7
      %v5152 = vrot.slane %v5083, 7
      %v5153 = vsel %vm715, %v5151, %v5152
      %v5154 = vrot.slane %v5084, 7
      %v5155 = vrot.slane %v5085, 7
      %v5156 = vsel %vm715, %v5154, %v5155
      %v5157 = vrot.slane %v5086, 7
      %v5158 = vrot.slane %v5087, 7
      %v5159 = vsel %vm715, %v5157, %v5158
      %v5160 = vrot.slane %v5088, 7
      %v5161 = vrot.slane %v5089, 7
      %v5162 = vsel %vm715, %v5160, %v5161
      %v5163 = vrot.slane %v5090, 7
      %v5164 = vrot.slane %v5091, 7
      %v5165 = vsel %vm715, %v5163, %v5164
      %v5166 = vrot.slane %v5092, 7
      %v5167 = vrot.slane %v5093, 7
      %v5168 = vsel %vm715, %v5166, %v5167
      %v5169 = vrot.slane %v5094, 7
      %v5170 = vrot.slane %v5095, 7
      %v5171 = vsel %vm715, %v5169, %v5170
      %v5172 = vrot.slane %v5096, 7
      %v5173 = vrot.slane %v5097, 7
      %v5174 = vsel %vm715, %v5172, %v5173
      %v5175 = vrot.slane %v5098, 7
      %v5176 = vrot.slane %v5099, 7
      %v5177 = vsel %vm715, %v5175, %v5176
      %v5178 = vrot.slane %v5100, 7
      %v5179 = vrot.slane %v5101, 7
      %v5180 = vsel %vm715, %v5178, %v5179
      %v5181 = vrot.slane %v5102, 7
      %v5182 = vrot.slane %v5103, 7
      %v5183 = vsel %vm715, %v5181, %v5182
      %v5232 = vmul.f32 %v5024, %v5136
      %v5233 = vmul.f32 %v5025, %v5138
      %v5234 = vmul.f32 %v5026, %v5137
      %v5235 = vmul.f32 %v5027, %v5139
      %v5236 = vmul.f32 %v5028, %v5141
      %v5237 = vmul.f32 %v5029, %v5140
      %v5238 = vmul.f32 %v5030, %v5142
      %v5239 = vmul.f32 %v5031, %v5144
      %v5240 = vmul.f32 %v5032, %v5143
      %v5241 = vmul.f32 %v5033, %v5145
      %v5242 = vmul.f32 %v5034, %v5147
      %v5243 = vmul.f32 %v5035, %v5146
      %v5244 = vmul.f32 %v5036, %v5148
      %v5245 = vmul.f32 %v5037, %v5150
      %v5246 = vmul.f32 %v5038, %v5149
      %v5247 = vmul.f32 %v5039, %v5151
      %v5248 = vmul.f32 %v5040, %v5153
      %v5249 = vmul.f32 %v5041, %v5152
      %v5250 = vmul.f32 %v5042, %v5154
      %v5251 = vmul.f32 %v5043, %v5156
      %v5252 = vmul.f32 %v5044, %v5155
      %v5253 = vmul.f32 %v5045, %v5157
      %v5254 = vmul.f32 %v5046, %v5159
      %v5255 = vmul.f32 %v5047, %v5158
      %v5256 = vmul.f32 %v5048, %v5160
      %v5257 = vmul.f32 %v5049, %v5162
      %v5258 = vmul.f32 %v5050, %v5161
      %v5259 = vmul.f32 %v5051, %v5163
      %v5260 = vmul.f32 %v5052, %v5165
      %v5261 = vmul.f32 %v5053, %v5164
      %v5262 = vmul.f32 %v5054, %v5166
      %v5263 = vmul.f32 %v5055, %v5168
      %v5264 = vmul.f32 %v5056, %v5167
      %v5265 = vmul.f32 %v5057, %v5169
      %v5266 = vmul.f32 %v5058, %v5171
      %v5267 = vmul.f32 %v5059, %v5170
      %v5268 = vmul.f32 %v5060, %v5172
      %v5269 = vmul.f32 %v5061, %v5174
      %v5270 = vmul.f32 %v5062, %v5173
      %v5271 = vmul.f32 %v5063, %v5175
      %v5272 = vmul.f32 %v5064, %v5177
      %v5273 = vmul.f32 %v5065, %v5176
      %v5274 = vmul.f32 %v5066, %v5178
      %v5275 = vmul.f32 %v5067, %v5180
      %v5276 = vmul.f32 %v5068, %v5179
      %v5277 = vmul.f32 %v5069, %v5181
      %v5278 = vmul.f32 %v5070, %v5183
      %v5279 = vmul.f32 %v5071, %v5182
      %v5280 = vpack.c.bf16 %v5233, %v5232
      %v5281 = vpack.c.bf16 %v5234, %v5234
      %v5282 = vpack.c.bf16 %v5236, %v5235
      %v5283 = vpack.c.bf16 %v5237, %v5237
      %v5284 = vpack.c.bf16 %v5239, %v5238
      %v5285 = vpack.c.bf16 %v5240, %v5240
      %v5286 = vpack.c.bf16 %v5242, %v5241
      %v5287 = vpack.c.bf16 %v5243, %v5243
      %v5288 = vpack.c.bf16 %v5245, %v5244
      %v5289 = vpack.c.bf16 %v5246, %v5246
      %v5290 = vpack.c.bf16 %v5248, %v5247
      %v5291 = vpack.c.bf16 %v5249, %v5249
      %v5292 = vpack.c.bf16 %v5251, %v5250
      %v5293 = vpack.c.bf16 %v5252, %v5252
      %v5294 = vpack.c.bf16 %v5254, %v5253
      %v5295 = vpack.c.bf16 %v5255, %v5255
      %v5296 = vpack.c.bf16 %v5257, %v5256
      %v5297 = vpack.c.bf16 %v5258, %v5258
      %v5298 = vpack.c.bf16 %v5260, %v5259
      %v5299 = vpack.c.bf16 %v5261, %v5261
      %v5300 = vpack.c.bf16 %v5263, %v5262
      %v5301 = vpack.c.bf16 %v5264, %v5264
      %v5302 = vpack.c.bf16 %v5266, %v5265
      %v5303 = vpack.c.bf16 %v5267, %v5267
      %v5304 = vpack.c.bf16 %v5269, %v5268
      %v5305 = vpack.c.bf16 %v5270, %v5270
      %v5306 = vpack.c.bf16 %v5272, %v5271
      %v5307 = vpack.c.bf16 %v5273, %v5273
      %v5308 = vpack.c.bf16 %v5275, %v5274
      %v5309 = vpack.c.bf16 %v5276, %v5276
      %v5310 = vpack.c.bf16 %v5278, %v5277
      %v5311 = vpack.c.bf16 %v5279, %v5279
      %v5313 = vshrl.u32 %v5280, 16
      %v5315 = vshll.u32 %v5280, 16
      %v5317 = vrot.slane %v5315, 1
      %v5318 = vor.u32 %v5313, %v5317
      %v5320 = vshll.u32 %v5281, 16
      %v5322 = vrot.slane %v5320, 1
      %v5323 = vsel %vm892, %v5318, %v5322
      %v5325 = vshrl.u32 %v5282, 16
      %v5327 = vshll.u32 %v5282, 16
      %v5329 = vrot.slane %v5327, 1
      %v5330 = vor.u32 %v5325, %v5329
      %v5332 = vshll.u32 %v5283, 16
      %v5334 = vrot.slane %v5332, 1
      %v5335 = vsel %vm892, %v5330, %v5334
      %v5337 = vshrl.u32 %v5284, 16
      %v5339 = vshll.u32 %v5284, 16
      %v5341 = vrot.slane %v5339, 1
      %v5342 = vor.u32 %v5337, %v5341
      %v5344 = vshll.u32 %v5285, 16
      %v5346 = vrot.slane %v5344, 1
      %v5347 = vsel %vm892, %v5342, %v5346
      %v5349 = vshrl.u32 %v5286, 16
      %v5351 = vshll.u32 %v5286, 16
      %v5353 = vrot.slane %v5351, 1
      %v5354 = vor.u32 %v5349, %v5353
      %v5356 = vshll.u32 %v5287, 16
      %v5358 = vrot.slane %v5356, 1
      %v5359 = vsel %vm892, %v5354, %v5358
      %v5361 = vshrl.u32 %v5288, 16
      %v5363 = vshll.u32 %v5288, 16
      %v5365 = vrot.slane %v5363, 1
      %v5366 = vor.u32 %v5361, %v5365
      %v5368 = vshll.u32 %v5289, 16
      %v5370 = vrot.slane %v5368, 1
      %v5371 = vsel %vm892, %v5366, %v5370
      %v5373 = vshrl.u32 %v5290, 16
      %v5375 = vshll.u32 %v5290, 16
      %v5377 = vrot.slane %v5375, 1
      %v5378 = vor.u32 %v5373, %v5377
      %v5380 = vshll.u32 %v5291, 16
      %v5382 = vrot.slane %v5380, 1
      %v5383 = vsel %vm892, %v5378, %v5382
      %v5385 = vshrl.u32 %v5292, 16
      %v5387 = vshll.u32 %v5292, 16
      %v5389 = vrot.slane %v5387, 1
      %v5390 = vor.u32 %v5385, %v5389
      %v5392 = vshll.u32 %v5293, 16
      %v5394 = vrot.slane %v5392, 1
      %v5395 = vsel %vm892, %v5390, %v5394
      %v5397 = vshrl.u32 %v5294, 16
      %v5399 = vshll.u32 %v5294, 16
      %v5401 = vrot.slane %v5399, 1
      %v5402 = vor.u32 %v5397, %v5401
      %v5404 = vshll.u32 %v5295, 16
      %v5406 = vrot.slane %v5404, 1
      %v5407 = vsel %vm892, %v5402, %v5406
      %v5409 = vshrl.u32 %v5296, 16
      %v5411 = vshll.u32 %v5296, 16
      %v5413 = vrot.slane %v5411, 1
      %v5414 = vor.u32 %v5409, %v5413
      %v5416 = vshll.u32 %v5297, 16
      %v5418 = vrot.slane %v5416, 1
      %v5419 = vsel %vm892, %v5414, %v5418
      %v5421 = vshrl.u32 %v5298, 16
      %v5423 = vshll.u32 %v5298, 16
      %v5425 = vrot.slane %v5423, 1
      %v5426 = vor.u32 %v5421, %v5425
      %v5428 = vshll.u32 %v5299, 16
      %v5430 = vrot.slane %v5428, 1
      %v5431 = vsel %vm892, %v5426, %v5430
      %v5433 = vshrl.u32 %v5300, 16
      %v5435 = vshll.u32 %v5300, 16
      %v5437 = vrot.slane %v5435, 1
      %v5438 = vor.u32 %v5433, %v5437
      %v5440 = vshll.u32 %v5301, 16
      %v5442 = vrot.slane %v5440, 1
      %v5443 = vsel %vm892, %v5438, %v5442
      %v5445 = vshrl.u32 %v5302, 16
      %v5447 = vshll.u32 %v5302, 16
      %v5449 = vrot.slane %v5447, 1
      %v5450 = vor.u32 %v5445, %v5449
      %v5452 = vshll.u32 %v5303, 16
      %v5454 = vrot.slane %v5452, 1
      %v5455 = vsel %vm892, %v5450, %v5454
      %v5457 = vshrl.u32 %v5304, 16
      %v5459 = vshll.u32 %v5304, 16
      %v5461 = vrot.slane %v5459, 1
      %v5462 = vor.u32 %v5457, %v5461
      %v5464 = vshll.u32 %v5305, 16
      %v5466 = vrot.slane %v5464, 1
      %v5467 = vsel %vm892, %v5462, %v5466
      %v5469 = vshrl.u32 %v5306, 16
      %v5471 = vshll.u32 %v5306, 16
      %v5473 = vrot.slane %v5471, 1
      %v5474 = vor.u32 %v5469, %v5473
      %v5476 = vshll.u32 %v5307, 16
      %v5478 = vrot.slane %v5476, 1
      %v5479 = vsel %vm892, %v5474, %v5478
      %v5481 = vshrl.u32 %v5308, 16
      %v5483 = vshll.u32 %v5308, 16
      %v5485 = vrot.slane %v5483, 1
      %v5486 = vor.u32 %v5481, %v5485
      %v5488 = vshll.u32 %v5309, 16
      %v5490 = vrot.slane %v5488, 1
      %v5491 = vsel %vm892, %v5486, %v5490
      %v5493 = vshrl.u32 %v5310, 16
      %v5495 = vshll.u32 %v5310, 16
      %v5497 = vrot.slane %v5495, 1
      %v5498 = vor.u32 %v5493, %v5497
      %v5500 = vshll.u32 %v5311, 16
      %v5502 = vrot.slane %v5500, 1
      %v5503 = vsel %vm892, %v5498, %v5502
      %s5520 = scalar_lea.vmem %s1, 448
      %v5521 = vld [vmem:[%s5520] sm:$0xf]
      %v5522 = vld [vmem:[%s5520 + $0x4] sm:$0xf]
      %v5523 = vld [vmem:[%s5520 + $0x8] sm:$0xf]
      %v5524 = vld [vmem:[%s5520 + $0xc] sm:$0xf]
      %v5525 = vld [vmem:[%s5520 + $0x10] sm:$0xf]
      %v5526 = vld [vmem:[%s5520 + $0x14] sm:$0xf]
      %v5527 = vld [vmem:[%s5520 + $0x18] sm:$0xf]
      %v5528 = vld [vmem:[%s5520 + $0x1c] sm:$0xf]
      %v5529 = vld [vmem:[%s5520 + $0x20] sm:$0xf]
      %v5530 = vld [vmem:[%s5520 + $0x24] sm:$0xf]
      %v5531 = vld [vmem:[%s5520 + $0x28] sm:$0xf]
      %v5532 = vld [vmem:[%s5520 + $0x2c] sm:$0xf]
      %v5533 = vld [vmem:[%s5520 + $0x30] sm:$0xf]
      %v5534 = vld [vmem:[%s5520 + $0x34] sm:$0xf]
      %v5535 = vld [vmem:[%s5520 + $0x38] sm:$0xf]
      %v5536 = vld [vmem:[%s5520 + $0x3c] sm:$0xf]
      %v5553 = vunpack.c.l.b16 %v5521
      %v5554 = vunpack.c.l.b16 %v5522
      %v5555 = vunpack.c.l.b16 %v5523
      %v5556 = vunpack.c.l.b16 %v5524
      %v5557 = vunpack.c.l.b16 %v5525
      %v5558 = vunpack.c.l.b16 %v5526
      %v5559 = vunpack.c.l.b16 %v5527
      %v5560 = vunpack.c.l.b16 %v5528
      %v5561 = vunpack.c.l.b16 %v5529
      %v5562 = vunpack.c.l.b16 %v5530
      %v5563 = vunpack.c.l.b16 %v5531
      %v5564 = vunpack.c.l.b16 %v5532
      %v5565 = vunpack.c.l.b16 %v5533
      %v5566 = vunpack.c.l.b16 %v5534
      %v5567 = vunpack.c.l.b16 %v5535
      %v5568 = vunpack.c.l.b16 %v5536
      %v5569 = vpack.c.b16 %v5554, %v5553
      %v5570 = vpack.c.b16 %v5556, %v5555
      %v5571 = vpack.c.b16 %v5558, %v5557
      %v5572 = vpack.c.b16 %v5560, %v5559
      %v5573 = vpack.c.b16 %v5562, %v5561
      %v5574 = vpack.c.b16 %v5564, %v5563
      %v5575 = vpack.c.b16 %v5566, %v5565
      %v5576 = vpack.c.b16 %v5568, %v5567
      %5585 = vmatprep.subr.bf16.mxu0 0
      %5586 = vmatpush1.bf16.msra.mxu0 %v5569
      %5587 = vmatprep.subr.bf16.mxu0 0
      %5588 = vmatpush1.bf16.msra.mxu0 %v5570
      %5589 = vmatprep.subr.bf16.mxu0 0
      %5590 = vmatpush1.bf16.msra.mxu0 %v5571
      %5591 = vmatprep.subr.bf16.mxu0 0
      %5592 = vmatpush1.bf16.msra.mxu0 %v5572
      %5593 = vmatprep.subr.bf16.mxu0 0
      %5594 = vmatpush1.bf16.msra.mxu0 %v5573
      %5595 = vmatprep.subr.bf16.mxu0 0
      %5596 = vmatpush1.bf16.msra.mxu0 %v5574
      %5597 = vmatprep.subr.bf16.mxu0 0
      %5598 = vmatpush1.bf16.msra.mxu0 %v5575
      %5599 = vmatprep.subr.bf16.mxu0 0
      %5600 = vmatpush1.bf16.msra.mxu0 %v5576
      %5601 = vmatprep.subr.bf16.mxu0 0
      %5602 = vmatpush1.bf16.msra.mxu0 0
      %5603 = vmatprep.subr.bf16.mxu0 0
      %5604 = vmatpush1.bf16.msra.mxu0 0
      %5605 = vmatprep.subr.bf16.mxu0 0
      %5606 = vmatpush1.bf16.msra.mxu0 0
      %5607 = vmatprep.subr.bf16.mxu0 0
      %5608 = vmatpush1.bf16.msra.mxu0 0
      %5609 = vmatprep.subr.bf16.mxu0 0
      %5610 = vmatpush1.bf16.msra.mxu0 0
      %5611 = vmatprep.subr.bf16.mxu0 0
      %5612 = vmatpush1.bf16.msra.mxu0 0
      %5613 = vmatprep.subr.bf16.mxu0 0
      %5614 = vmatpush1.bf16.msra.mxu0 0
      %5615 = vmatprep.subr.bf16.mxu0 0
      %5616 = vmatpush1.bf16.msra.mxu0 0
      %5617 = vmatprep.mubr.bf16.mxu0 0
      %5618 = vmatmul.mubr.bf16.gmra.mrb[0].mxu0 %v5323
      %v5619 = vpop.f32.mrb[0].mxu0
      %v5620 = vadd.f32 0.0, %v5619
      %v5621 = vpop.f32.mrb[0].mxu0
      %v5622 = vpop.f32.mrb[0].mxu0
      %v5623 = vadd.f32 0.0, %v5622
      %v5624 = vpop.f32.mrb[0].mxu0
      %5625 = vmatprep.mubr.bf16.mxu0 0
      %5626 = vmatmul.mubr.bf16.gmra.mrb[0].mxu0 %v5335
      %v5627 = vpop.f32.mrb[0].mxu0
      %v5628 = vadd.f32 0.0, %v5627
      %v5629 = vpop.f32.mrb[0].mxu0
      %v5630 = vpop.f32.mrb[0].mxu0
      %v5631 = vadd.f32 0.0, %v5630
      %v5632 = vpop.f32.mrb[0].mxu0
      %5633 = vmatprep.mubr.bf16.mxu0 0
      %5634 = vmatmul.mubr.bf16.gmra.mrb[0].mxu0 %v5347
      %v5635 = vpop.f32.mrb[0].mxu0
      %v5636 = vadd.f32 0.0, %v5635
      %v5637 = vpop.f32.mrb[0].mxu0
      %v5638 = vpop.f32.mrb[0].mxu0
      %v5639 = vadd.f32 0.0, %v5638
      %v5640 = vpop.f32.mrb[0].mxu0
      %5641 = vmatprep.mubr.bf16.mxu0 0
      %5642 = vmatmul.mubr.bf16.gmra.mrb[0].mxu0 %v5359
      %v5643 = vpop.f32.mrb[0].mxu0
      %v5644 = vadd.f32 0.0, %v5643
      %v5645 = vpop.f32.mrb[0].mxu0
      %v5646 = vpop.f32.mrb[0].mxu0
      %v5647 = vadd.f32 0.0, %v5646
      %v5648 = vpop.f32.mrb[0].mxu0
      %5649 = vmatprep.mubr.bf16.mxu0 0
      %5650 = vmatmul.mubr.bf16.gmra.mrb[0].mxu0 %v5371
      %v5651 = vpop.f32.mrb[0].mxu0
      %v5652 = vadd.f32 0.0, %v5651
      %v5653 = vpop.f32.mrb[0].mxu0
      %v5654 = vpop.f32.mrb[0].mxu0
      %v5655 = vadd.f32 0.0, %v5654
      %v5656 = vpop.f32.mrb[0].mxu0
      %5657 = vmatprep.mubr.bf16.mxu0 0
      %5658 = vmatmul.mubr.bf16.gmra.mrb[0].mxu0 %v5383
      %v5659 = vpop.f32.mrb[0].mxu0
      %v5660 = vadd.f32 0.0, %v5659
      %v5661 = vpop.f32.mrb[0].mxu0
      %v5662 = vpop.f32.mrb[0].mxu0
      %v5663 = vadd.f32 0.0, %v5662
      %v5664 = vpop.f32.mrb[0].mxu0
      %5665 = vmatprep.mubr.bf16.mxu0 0
      %5666 = vmatmul.mubr.bf16.gmra.mrb[0].mxu0 %v5395
      %v5667 = vpop.f32.mrb[0].mxu0
      %v5668 = vadd.f32 0.0, %v5667
      %v5669 = vpop.f32.mrb[0].mxu0
      %v5670 = vpop.f32.mrb[0].mxu0
      %v5671 = vadd.f32 0.0, %v5670
      %v5672 = vpop.f32.mrb[0].mxu0
      %5673 = vmatprep.mubr.bf16.mxu0 0
      %5674 = vmatmul.mubr.bf16.gmra.mrb[0].mxu0 %v5407
      %v5675 = vpop.f32.mrb[0].mxu0
      %v5676 = vadd.f32 0.0, %v5675
      %v5677 = vpop.f32.mrb[0].mxu0
      %v5678 = vpop.f32.mrb[0].mxu0
      %v5679 = vadd.f32 0.0, %v5678
      %v5680 = vpop.f32.mrb[0].mxu0
      %5681 = vmatprep.mubr.bf16.mxu0 0
      %5682 = vmatmul.mubr.bf16.gmra.mrb[0].mxu0 %v5419
      %v5683 = vpop.f32.mrb[0].mxu0
      %v5684 = vadd.f32 0.0, %v5683
      %v5685 = vpop.f32.mrb[0].mxu0
      %v5686 = vpop.f32.mrb[0].mxu0
      %v5687 = vadd.f32 0.0, %v5686
      %v5688 = vpop.f32.mrb[0].mxu0
      %5689 = vmatprep.mubr.bf16.mxu0 0
      %5690 = vmatmul.mubr.bf16.gmra.mrb[0].mxu0 %v5431
      %v5691 = vpop.f32.mrb[0].mxu0
      %v5692 = vadd.f32 0.0, %v5691
      %v5693 = vpop.f32.mrb[0].mxu0
      %v5694 = vpop.f32.mrb[0].mxu0
      %v5695 = vadd.f32 0.0, %v5694
      %v5696 = vpop.f32.mrb[0].mxu0
      %5697 = vmatprep.mubr.bf16.mxu0 0
      %5698 = vmatmul.mubr.bf16.gmra.mrb[0].mxu0 %v5443
      %v5699 = vpop.f32.mrb[0].mxu0
      %v5700 = vadd.f32 0.0, %v5699
      %v5701 = vpop.f32.mrb[0].mxu0
      %v5702 = vpop.f32.mrb[0].mxu0
      %v5703 = vadd.f32 0.0, %v5702
      %v5704 = vpop.f32.mrb[0].mxu0
      %5705 = vmatprep.mubr.bf16.mxu0 0
      %5706 = vmatmul.mubr.bf16.gmra.mrb[0].mxu0 %v5455
      %v5707 = vpop.f32.mrb[0].mxu0
      %v5708 = vadd.f32 0.0, %v5707
      %v5709 = vpop.f32.mrb[0].mxu0
      %v5710 = vpop.f32.mrb[0].mxu0
      %v5711 = vadd.f32 0.0, %v5710
      %v5712 = vpop.f32.mrb[0].mxu0
      %5713 = vmatprep.mubr.bf16.mxu0 0
      %5714 = vmatmul.mubr.bf16.gmra.mrb[0].mxu0 %v5467
      %v5715 = vpop.f32.mrb[0].mxu0
      %v5716 = vadd.f32 0.0, %v5715
      %v5717 = vpop.f32.mrb[0].mxu0
      %v5718 = vpop.f32.mrb[0].mxu0
      %v5719 = vadd.f32 0.0, %v5718
      %v5720 = vpop.f32.mrb[0].mxu0
      %5721 = vmatprep.mubr.bf16.mxu0 0
      %5722 = vmatmul.mubr.bf16.gmra.mrb[0].mxu0 %v5479
      %v5723 = vpop.f32.mrb[0].mxu0
      %v5724 = vadd.f32 0.0, %v5723
      %v5725 = vpop.f32.mrb[0].mxu0
      %v5726 = vpop.f32.mrb[0].mxu0
      %v5727 = vadd.f32 0.0, %v5726
      %v5728 = vpop.f32.mrb[0].mxu0
      %5729 = vmatprep.mubr.bf16.mxu0 0
      %5730 = vmatmul.mubr.bf16.gmra.mrb[0].mxu0 %v5491
      %v5731 = vpop.f32.mrb[0].mxu0
      %v5732 = vadd.f32 0.0, %v5731
      %v5733 = vpop.f32.mrb[0].mxu0
      %v5734 = vpop.f32.mrb[0].mxu0
      %v5735 = vadd.f32 0.0, %v5734
      %v5736 = vpop.f32.mrb[0].mxu0
      %5737 = vmatprep.mubr.bf16.mxu0 0
      %5738 = vmatmul.mubr.bf16.gmra.mrb[0].mxu0 %v5503
      %v5739 = vpop.f32.mrb[0].mxu0
      %v5740 = vadd.f32 0.0, %v5739
      %v5741 = vpop.f32.mrb[0].mxu0
      %v5742 = vpop.f32.mrb[0].mxu0
      %v5743 = vadd.f32 0.0, %v5742
      %v5744 = vpop.f32.mrb[0].mxu0
      %5745 = vdwg.mxu0
      %v5746 = vadd.f32 %v4800, %v5620
      %v5747 = vadd.f32 %v4801, %v5623
      %v5748 = vadd.f32 %v4802, %v5628
      %v5749 = vadd.f32 %v4803, %v5631
      %v5750 = vadd.f32 %v4804, %v5636
      %v5751 = vadd.f32 %v4805, %v5639
      %v5752 = vadd.f32 %v4806, %v5644
      %v5753 = vadd.f32 %v4807, %v5647
      %v5754 = vadd.f32 %v4808, %v5652
      %v5755 = vadd.f32 %v4809, %v5655
      %v5756 = vadd.f32 %v4810, %v5660
      %v5757 = vadd.f32 %v4811, %v5663
      %v5758 = vadd.f32 %v4812, %v5668
      %v5759 = vadd.f32 %v4813, %v5671
      %v5760 = vadd.f32 %v4814, %v5676
      %v5761 = vadd.f32 %v4815, %v5679
      %v5762 = vadd.f32 %v4816, %v5684
      %v5763 = vadd.f32 %v4817, %v5687
      %v5764 = vadd.f32 %v4818, %v5692
      %v5765 = vadd.f32 %v4819, %v5695
      %v5766 = vadd.f32 %v4820, %v5700
      %v5767 = vadd.f32 %v4821, %v5703
      %v5768 = vadd.f32 %v4822, %v5708
      %v5769 = vadd.f32 %v4823, %v5711
      %v5770 = vadd.f32 %v4824, %v5716
      %v5771 = vadd.f32 %v4825, %v5719
      %v5772 = vadd.f32 %v4826, %v5724
      %v5773 = vadd.f32 %v4827, %v5727
      %v5774 = vadd.f32 %v4828, %v5732
      %v5775 = vadd.f32 %v4829, %v5735
      %v5776 = vadd.f32 %v4830, %v5740
      %v5777 = vadd.f32 %v4831, %v5743
      %v5778 = vld [vmem:[%s4332] sm:$0xe]
      %v5779 = vld [vmem:[%s4332 + $0xc] sm:$0xe]
      %v5780 = vld [vmem:[%s4332 + $0x18] sm:$0xe]
      %v5781 = vld [vmem:[%s4332 + $0x24] sm:$0xe]
      %v5782 = vld [vmem:[%s4332 + $0x30] sm:$0xe]
      %v5783 = vld [vmem:[%s4332 + $0x3c] sm:$0xe]
      %v5784 = vld [vmem:[%s4332 + $0x48] sm:$0xe]
      %v5785 = vld [vmem:[%s4332 + $0x54] sm:$0xe]
      %v5786 = vld [vmem:[%s4332 + $0x60] sm:$0xe]
      %v5787 = vld [vmem:[%s4332 + $0x6c] sm:$0xe]
      %v5788 = vld [vmem:[%s4332 + $0x78] sm:$0xe]
      %v5789 = vld [vmem:[%s4332 + $0x84] sm:$0xe]
      %v5790 = vld [vmem:[%s4332 + $0x90] sm:$0xe]
      %v5791 = vld [vmem:[%s4332 + $0x9c] sm:$0xe]
      %v5792 = vld [vmem:[%s4332 + $0xa8] sm:$0xe]
      %v5793 = vld [vmem:[%s4332 + $0xb4] sm:$0xe]
      %v5794 = vunpack.c.l.bf16 %v5778
      %v5795 = vunpack.c.l.bf16 %v5779
      %v5796 = vunpack.c.l.bf16 %v5780
      %v5797 = vunpack.c.l.bf16 %v5781
      %v5798 = vunpack.c.l.bf16 %v5782
      %v5799 = vunpack.c.l.bf16 %v5783
      %v5800 = vunpack.c.l.bf16 %v5784
      %v5801 = vunpack.c.l.bf16 %v5785
      %v5802 = vunpack.c.l.bf16 %v5786
      %v5803 = vunpack.c.l.bf16 %v5787
      %v5804 = vunpack.c.l.bf16 %v5788
      %v5805 = vunpack.c.l.bf16 %v5789
      %v5806 = vunpack.c.l.bf16 %v5790
      %v5807 = vunpack.c.l.bf16 %v5791
      %v5808 = vunpack.c.l.bf16 %v5792
      %v5809 = vunpack.c.l.bf16 %v5793
      %v5810 = vmul.f32 %v5794, %v306
      %v5811 = vmul.f32 %v5795, %v306
      %v5812 = vmul.f32 %v5796, %v306
      %v5813 = vmul.f32 %v5797, %v306
      %v5814 = vmul.f32 %v5798, %v306
      %v5815 = vmul.f32 %v5799, %v306
      %v5816 = vmul.f32 %v5800, %v306
      %v5817 = vmul.f32 %v5801, %v306
      %v5818 = vmul.f32 %v5802, %v306
      %v5819 = vmul.f32 %v5803, %v306
      %v5820 = vmul.f32 %v5804, %v306
      %v5821 = vmul.f32 %v5805, %v306
      %v5822 = vmul.f32 %v5806, %v306
      %v5823 = vmul.f32 %v5807, %v306
      %v5824 = vmul.f32 %v5808, %v306
      %v5825 = vmul.f32 %v5809, %v306
      %v5826 = vadd.f32 %v5810, %v313
      %v5827 = vadd.f32 %v5811, %v313
      %v5828 = vadd.f32 %v5812, %v313
      %v5829 = vadd.f32 %v5813, %v313
      %v5830 = vadd.f32 %v5814, %v313
      %v5831 = vadd.f32 %v5815, %v313
      %v5832 = vadd.f32 %v5816, %v313
      %v5833 = vadd.f32 %v5817, %v313
      %v5834 = vadd.f32 %v5818, %v313
      %v5835 = vadd.f32 %v5819, %v313
      %v5836 = vadd.f32 %v5820, %v313
      %v5837 = vadd.f32 %v5821, %v313
      %v5838 = vadd.f32 %v5822, %v313
      %v5839 = vadd.f32 %v5823, %v313
      %v5840 = vadd.f32 %v5824, %v313
      %v5841 = vadd.f32 %v5825, %v313
      %v5842 = vmax.f32 %v5826, 0.0
      %v5843 = vmax.f32 %v5827, 0.0
      %v5844 = vmax.f32 %v5828, 0.0
      %v5845 = vmax.f32 %v5829, 0.0
      %v5846 = vmax.f32 %v5830, 0.0
      %v5847 = vmax.f32 %v5831, 0.0
      %v5848 = vmax.f32 %v5832, 0.0
      %v5849 = vmax.f32 %v5833, 0.0
      %v5850 = vmax.f32 %v5834, 0.0
      %v5851 = vmax.f32 %v5835, 0.0
      %v5852 = vmax.f32 %v5836, 0.0
      %v5853 = vmax.f32 %v5837, 0.0
      %v5854 = vmax.f32 %v5838, 0.0
      %v5855 = vmax.f32 %v5839, 0.0
      %v5856 = vmax.f32 %v5840, 0.0
      %v5857 = vmax.f32 %v5841, 0.0
      %v5858 = vld [vmem:[%s4493 + $0x2] sm:$0xff]
      %v5859 = vld [vmem:[%s4493 + $0xa] sm:$0xff]
      %v5860 = vld [vmem:[%s4493 + $0x1a] sm:$0xff]
      %v5861 = vld [vmem:[%s4493 + $0x22] sm:$0xff]
      %v5862 = vld [vmem:[%s4493 + $0x32] sm:$0xff]
      %v5863 = vld [vmem:[%s4493 + $0x3a] sm:$0xff]
      %v5864 = vld [vmem:[%s4493 + $0x4a] sm:$0xff]
      %v5865 = vld [vmem:[%s4493 + $0x52] sm:$0xff]
      %v5866 = vld [vmem:[%s4493 + $0x62] sm:$0xff]
      %v5867 = vld [vmem:[%s4493 + $0x6a] sm:$0xff]
      %v5868 = vld [vmem:[%s4493 + $0x7a] sm:$0xff]
      %v5869 = vld [vmem:[%s4493 + $0x82] sm:$0xff]
      %v5870 = vld [vmem:[%s4493 + $0x92] sm:$0xff]
      %v5871 = vld [vmem:[%s4493 + $0x9a] sm:$0xff]
      %v5872 = vld [vmem:[%s4493 + $0xaa] sm:$0xff]
      %v5873 = vld [vmem:[%s4493 + $0xb2] sm:$0xff]
      %v5874 = vld [vmem:[%s4493 + $0xc2] sm:$0xff]
      %v5875 = vld [vmem:[%s4493 + $0xca] sm:$0xff]
      %v5876 = vld [vmem:[%s4493 + $0xda] sm:$0xff]
      %v5877 = vld [vmem:[%s4493 + $0xe2] sm:$0xff]
      %v5878 = vld [vmem:[%s4493 + $0xf2] sm:$0xff]
      %v5879 = vld [vmem:[%s4493 + $0xfa] sm:$0xff]
      %v5880 = vld [vmem:[%s4493 + $0x10a] sm:$0xff]
      %v5881 = vld [vmem:[%s4493 + $0x112] sm:$0xff]
      %v5882 = vld [vmem:[%s4493 + $0x122] sm:$0xff]
      %v5883 = vld [vmem:[%s4493 + $0x12a] sm:$0xff]
      %v5884 = vld [vmem:[%s4493 + $0x13a] sm:$0xff]
      %v5885 = vld [vmem:[%s4493 + $0x142] sm:$0xff]
      %v5886 = vld [vmem:[%s4493 + $0x152] sm:$0xff]
      %v5887 = vld [vmem:[%s4493 + $0x15a] sm:$0xff]
      %v5888 = vld [vmem:[%s4493 + $0x16a] sm:$0xff]
      %v5889 = vld [vmem:[%s4493 + $0x172] sm:$0xff]
      %v5922 = vrot.slane %v5858, 6
      %v5923 = vrot.slane %v5859, 6
      %v5924 = vsel %vm1680, %v5922, %v5923
      %v5925 = vrot.slane %v5860, 6
      %v5926 = vrot.slane %v5861, 6
      %v5927 = vsel %vm1680, %v5925, %v5926
      %v5928 = vrot.slane %v5862, 6
      %v5929 = vrot.slane %v5863, 6
      %v5930 = vsel %vm1680, %v5928, %v5929
      %v5931 = vrot.slane %v5864, 6
      %v5932 = vrot.slane %v5865, 6
      %v5933 = vsel %vm1680, %v5931, %v5932
      %v5934 = vrot.slane %v5866, 6
      %v5935 = vrot.slane %v5867, 6
      %v5936 = vsel %vm1680, %v5934, %v5935
      %v5937 = vrot.slane %v5868, 6
      %v5938 = vrot.slane %v5869, 6
      %v5939 = vsel %vm1680, %v5937, %v5938
      %v5940 = vrot.slane %v5870, 6
      %v5941 = vrot.slane %v5871, 6
      %v5942 = vsel %vm1680, %v5940, %v5941
      %v5943 = vrot.slane %v5872, 6
      %v5944 = vrot.slane %v5873, 6
      %v5945 = vsel %vm1680, %v5943, %v5944
      %v5946 = vrot.slane %v5874, 6
      %v5947 = vrot.slane %v5875, 6
      %v5948 = vsel %vm1680, %v5946, %v5947
      %v5949 = vrot.slane %v5876, 6
      %v5950 = vrot.slane %v5877, 6
      %v5951 = vsel %vm1680, %v5949, %v5950
      %v5952 = vrot.slane %v5878, 6
      %v5953 = vrot.slane %v5879, 6
      %v5954 = vsel %vm1680, %v5952, %v5953
      %v5955 = vrot.slane %v5880, 6
      %v5956 = vrot.slane %v5881, 6
      %v5957 = vsel %vm1680, %v5955, %v5956
      %v5958 = vrot.slane %v5882, 6
      %v5959 = vrot.slane %v5883, 6
      %v5960 = vsel %vm1680, %v5958, %v5959
      %v5961 = vrot.slane %v5884, 6
      %v5962 = vrot.slane %v5885, 6
      %v5963 = vsel %vm1680, %v5961, %v5962
      %v5964 = vrot.slane %v5886, 6
      %v5965 = vrot.slane %v5887, 6
      %v5966 = vsel %vm1680, %v5964, %v5965
      %v5967 = vrot.slane %v5888, 6
      %v5968 = vrot.slane %v5889, 6
      %v5969 = vsel %vm1680, %v5967, %v5968
      %v6018 = vmul.f32 %v5842, %v5922
      %v6019 = vmul.f32 %v5025, %v5924
      %v6020 = vmul.f32 %v5026, %v5923
      %v6021 = vmul.f32 %v5843, %v5925
      %v6022 = vmul.f32 %v5028, %v5927
      %v6023 = vmul.f32 %v5029, %v5926
      %v6024 = vmul.f32 %v5844, %v5928
      %v6025 = vmul.f32 %v5031, %v5930
      %v6026 = vmul.f32 %v5032, %v5929
      %v6027 = vmul.f32 %v5845, %v5931
      %v6028 = vmul.f32 %v5034, %v5933
      %v6029 = vmul.f32 %v5035, %v5932
      %v6030 = vmul.f32 %v5846, %v5934
      %v6031 = vmul.f32 %v5037, %v5936
      %v6032 = vmul.f32 %v5038, %v5935
      %v6033 = vmul.f32 %v5847, %v5937
      %v6034 = vmul.f32 %v5040, %v5939
      %v6035 = vmul.f32 %v5041, %v5938
      %v6036 = vmul.f32 %v5848, %v5940
      %v6037 = vmul.f32 %v5043, %v5942
      %v6038 = vmul.f32 %v5044, %v5941
      %v6039 = vmul.f32 %v5849, %v5943
      %v6040 = vmul.f32 %v5046, %v5945
      %v6041 = vmul.f32 %v5047, %v5944
      %v6042 = vmul.f32 %v5850, %v5946
      %v6043 = vmul.f32 %v5049, %v5948
      %v6044 = vmul.f32 %v5050, %v5947
      %v6045 = vmul.f32 %v5851, %v5949
      %v6046 = vmul.f32 %v5052, %v5951
      %v6047 = vmul.f32 %v5053, %v5950
      %v6048 = vmul.f32 %v5852, %v5952
      %v6049 = vmul.f32 %v5055, %v5954
      %v6050 = vmul.f32 %v5056, %v5953
      %v6051 = vmul.f32 %v5853, %v5955
      %v6052 = vmul.f32 %v5058, %v5957
      %v6053 = vmul.f32 %v5059, %v5956
      %v6054 = vmul.f32 %v5854, %v5958
      %v6055 = vmul.f32 %v5061, %v5960
      %v6056 = vmul.f32 %v5062, %v5959
      %v6057 = vmul.f32 %v5855, %v5961
      %v6058 = vmul.f32 %v5064, %v5963
      %v6059 = vmul.f32 %v5065, %v5962
      %v6060 = vmul.f32 %v5856, %v5964
      %v6061 = vmul.f32 %v5067, %v5966
      %v6062 = vmul.f32 %v5068, %v5965
      %v6063 = vmul.f32 %v5857, %v5967
      %v6064 = vmul.f32 %v5070, %v5969
      %v6065 = vmul.f32 %v5071, %v5968
      %v6066 = vpack.c.bf16 %v6019, %v6018
      %v6067 = vpack.c.bf16 %v6020, %v6020
      %v6068 = vpack.c.bf16 %v6022, %v6021
      %v6069 = vpack.c.bf16 %v6023, %v6023
      %v6070 = vpack.c.bf16 %v6025, %v6024
      %v6071 = vpack.c.bf16 %v6026, %v6026
      %v6072 = vpack.c.bf16 %v6028, %v6027
      %v6073 = vpack.c.bf16 %v6029, %v6029
      %v6074 = vpack.c.bf16 %v6031, %v6030
      %v6075 = vpack.c.bf16 %v6032, %v6032
      %v6076 = vpack.c.bf16 %v6034, %v6033
      %v6077 = vpack.c.bf16 %v6035, %v6035
      %v6078 = vpack.c.bf16 %v6037, %v6036
      %v6079 = vpack.c.bf16 %v6038, %v6038
      %v6080 = vpack.c.bf16 %v6040, %v6039
      %v6081 = vpack.c.bf16 %v6041, %v6041
      %v6082 = vpack.c.bf16 %v6043, %v6042
      %v6083 = vpack.c.bf16 %v6044, %v6044
      %v6084 = vpack.c.bf16 %v6046, %v6045
      %v6085 = vpack.c.bf16 %v6047, %v6047
      %v6086 = vpack.c.bf16 %v6049, %v6048
      %v6087 = vpack.c.bf16 %v6050, %v6050
      %v6088 = vpack.c.bf16 %v6052, %v6051
      %v6089 = vpack.c.bf16 %v6053, %v6053
      %v6090 = vpack.c.bf16 %v6055, %v6054
      %v6091 = vpack.c.bf16 %v6056, %v6056
      %v6092 = vpack.c.bf16 %v6058, %v6057
      %v6093 = vpack.c.bf16 %v6059, %v6059
      %v6094 = vpack.c.bf16 %v6061, %v6060
      %v6095 = vpack.c.bf16 %v6062, %v6062
      %v6096 = vpack.c.bf16 %v6064, %v6063
      %v6097 = vpack.c.bf16 %v6065, %v6065
      %v6130 = vrot.slane %v6066, 1
      %v6131 = vrot.slane %v6067, 1
      %v6132 = vsel %vm1889, %v6130, %v6131
      %v6133 = vrot.slane %v6068, 1
      %v6134 = vrot.slane %v6069, 1
      %v6135 = vsel %vm1889, %v6133, %v6134
      %v6136 = vrot.slane %v6070, 1
      %v6137 = vrot.slane %v6071, 1
      %v6138 = vsel %vm1889, %v6136, %v6137
      %v6139 = vrot.slane %v6072, 1
      %v6140 = vrot.slane %v6073, 1
      %v6141 = vsel %vm1889, %v6139, %v6140
      %v6142 = vrot.slane %v6074, 1
      %v6143 = vrot.slane %v6075, 1
      %v6144 = vsel %vm1889, %v6142, %v6143
      %v6145 = vrot.slane %v6076, 1
      %v6146 = vrot.slane %v6077, 1
      %v6147 = vsel %vm1889, %v6145, %v6146
      %v6148 = vrot.slane %v6078, 1
      %v6149 = vrot.slane %v6079, 1
      %v6150 = vsel %vm1889, %v6148, %v6149
      %v6151 = vrot.slane %v6080, 1
      %v6152 = vrot.slane %v6081, 1
      %v6153 = vsel %vm1889, %v6151, %v6152
      %v6154 = vrot.slane %v6082, 1
      %v6155 = vrot.slane %v6083, 1
      %v6156 = vsel %vm1889, %v6154, %v6155
      %v6157 = vrot.slane %v6084, 1
      %v6158 = vrot.slane %v6085, 1
      %v6159 = vsel %vm1889, %v6157, %v6158
      %v6160 = vrot.slane %v6086, 1
      %v6161 = vrot.slane %v6087, 1
      %v6162 = vsel %vm1889, %v6160, %v6161
      %v6163 = vrot.slane %v6088, 1
      %v6164 = vrot.slane %v6089, 1
      %v6165 = vsel %vm1889, %v6163, %v6164
      %v6166 = vrot.slane %v6090, 1
      %v6167 = vrot.slane %v6091, 1
      %v6168 = vsel %vm1889, %v6166, %v6167
      %v6169 = vrot.slane %v6092, 1
      %v6170 = vrot.slane %v6093, 1
      %v6171 = vsel %vm1889, %v6169, %v6170
      %v6172 = vrot.slane %v6094, 1
      %v6173 = vrot.slane %v6095, 1
      %v6174 = vsel %vm1889, %v6172, %v6173
      %v6175 = vrot.slane %v6096, 1
      %v6176 = vrot.slane %v6097, 1
      %v6177 = vsel %vm1889, %v6175, %v6176
      %s6194 = scalar_lea.vmem %s1, 512
      %v6195 = vld [vmem:[%s6194] sm:$0xf]
      %v6196 = vld [vmem:[%s6194 + $0x4] sm:$0xf]
      %v6197 = vld [vmem:[%s6194 + $0x8] sm:$0xf]
      %v6198 = vld [vmem:[%s6194 + $0xc] sm:$0xf]
      %v6199 = vld [vmem:[%s6194 + $0x10] sm:$0xf]
      %v6200 = vld [vmem:[%s6194 + $0x14] sm:$0xf]
      %v6201 = vld [vmem:[%s6194 + $0x18] sm:$0xf]
      %v6202 = vld [vmem:[%s6194 + $0x1c] sm:$0xf]
      %v6203 = vld [vmem:[%s6194 + $0x20] sm:$0xf]
      %v6204 = vld [vmem:[%s6194 + $0x24] sm:$0xf]
      %v6205 = vld [vmem:[%s6194 + $0x28] sm:$0xf]
      %v6206 = vld [vmem:[%s6194 + $0x2c] sm:$0xf]
      %v6207 = vld [vmem:[%s6194 + $0x30] sm:$0xf]
      %v6208 = vld [vmem:[%s6194 + $0x34] sm:$0xf]
      %v6209 = vld [vmem:[%s6194 + $0x38] sm:$0xf]
      %v6210 = vld [vmem:[%s6194 + $0x3c] sm:$0xf]
      %v6227 = vunpack.c.l.b16 %v6195
      %v6228 = vunpack.c.l.b16 %v6196
      %v6229 = vunpack.c.l.b16 %v6197
      %v6230 = vunpack.c.l.b16 %v6198
      %v6231 = vunpack.c.l.b16 %v6199
      %v6232 = vunpack.c.l.b16 %v6200
      %v6233 = vunpack.c.l.b16 %v6201
      %v6234 = vunpack.c.l.b16 %v6202
      %v6235 = vunpack.c.l.b16 %v6203
      %v6236 = vunpack.c.l.b16 %v6204
      %v6237 = vunpack.c.l.b16 %v6205
      %v6238 = vunpack.c.l.b16 %v6206
      %v6239 = vunpack.c.l.b16 %v6207
      %v6240 = vunpack.c.l.b16 %v6208
      %v6241 = vunpack.c.l.b16 %v6209
      %v6242 = vunpack.c.l.b16 %v6210
      %v6243 = vpack.c.b16 %v6228, %v6227
      %v6244 = vpack.c.b16 %v6230, %v6229
      %v6245 = vpack.c.b16 %v6232, %v6231
      %v6246 = vpack.c.b16 %v6234, %v6233
      %v6247 = vpack.c.b16 %v6236, %v6235
      %v6248 = vpack.c.b16 %v6238, %v6237
      %v6249 = vpack.c.b16 %v6240, %v6239
      %v6250 = vpack.c.b16 %v6242, %v6241
      %6259 = vmatprep.subr.bf16.mxu0 0
      %6260 = vmatpush1.bf16.msra.mxu0 %v6243
      %6261 = vmatprep.subr.bf16.mxu0 0
      %6262 = vmatpush1.bf16.msra.mxu0 %v6244
      %6263 = vmatprep.subr.bf16.mxu0 0
      %6264 = vmatpush1.bf16.msra.mxu0 %v6245
      %6265 = vmatprep.subr.bf16.mxu0 0
      %6266 = vmatpush1.bf16.msra.mxu0 %v6246
      %6267 = vmatprep.subr.bf16.mxu0 0
      %6268 = vmatpush1.bf16.msra.mxu0 %v6247
      %6269 = vmatprep.subr.bf16.mxu0 0
      %6270 = vmatpush1.bf16.msra.mxu0 %v6248
      %6271 = vmatprep.subr.bf16.mxu0 0
      %6272 = vmatpush1.bf16.msra.mxu0 %v6249
      %6273 = vmatprep.subr.bf16.mxu0 0
      %6274 = vmatpush1.bf16.msra.mxu0 %v6250
      %6275 = vmatprep.subr.bf16.mxu0 0
      %6276 = vmatpush1.bf16.msra.mxu0 0
      %6277 = vmatprep.subr.bf16.mxu0 0
      %6278 = vmatpush1.bf16.msra.mxu0 0
      %6279 = vmatprep.subr.bf16.mxu0 0
      %6280 = vmatpush1.bf16.msra.mxu0 0
      %6281 = vmatprep.subr.bf16.mxu0 0
      %6282 = vmatpush1.bf16.msra.mxu0 0
      %6283 = vmatprep.subr.bf16.mxu0 0
      %6284 = vmatpush1.bf16.msra.mxu0 0
      %6285 = vmatprep.subr.bf16.mxu0 0
      %6286 = vmatpush1.bf16.msra.mxu0 0
      %6287 = vmatprep.subr.bf16.mxu0 0
      %6288 = vmatpush1.bf16.msra.mxu0 0
      %6289 = vmatprep.subr.bf16.mxu0 0
      %6290 = vmatpush1.bf16.msra.mxu0 0
      %6291 = vmatprep.mubr.bf16.mxu0 0
      %6292 = vmatmul.mubr.bf16.gmra.mrb[0].mxu0 %v6132
      %v6293 = vpop.f32.mrb[0].mxu0
      %v6294 = vadd.f32 0.0, %v6293
      %v6295 = vpop.f32.mrb[0].mxu0
      %v6296 = vpop.f32.mrb[0].mxu0
      %v6297 = vadd.f32 0.0, %v6296
      %v6298 = vpop.f32.mrb[0].mxu0
      %6299 = vmatprep.mubr.bf16.mxu0 0
      %6300 = vmatmul.mubr.bf16.gmra.mrb[0].mxu0 %v6135
      %v6301 = vpop.f32.mrb[0].mxu0
      %v6302 = vadd.f32 0.0, %v6301
      %v6303 = vpop.f32.mrb[0].mxu0
      %v6304 = vpop.f32.mrb[0].mxu0
      %v6305 = vadd.f32 0.0, %v6304
      %v6306 = vpop.f32.mrb[0].mxu0
      %6307 = vmatprep.mubr.bf16.mxu0 0
      %6308 = vmatmul.mubr.bf16.gmra.mrb[0].mxu0 %v6138
      %v6309 = vpop.f32.mrb[0].mxu0
      %v6310 = vadd.f32 0.0, %v6309
      %v6311 = vpop.f32.mrb[0].mxu0
      %v6312 = vpop.f32.mrb[0].mxu0
      %v6313 = vadd.f32 0.0, %v6312
      %v6314 = vpop.f32.mrb[0].mxu0
      %6315 = vmatprep.mubr.bf16.mxu0 0
      %6316 = vmatmul.mubr.bf16.gmra.mrb[0].mxu0 %v6141
      %v6317 = vpop.f32.mrb[0].mxu0
      %v6318 = vadd.f32 0.0, %v6317
      %v6319 = vpop.f32.mrb[0].mxu0
      %v6320 = vpop.f32.mrb[0].mxu0
      %v6321 = vadd.f32 0.0, %v6320
      %v6322 = vpop.f32.mrb[0].mxu0
      %6323 = vmatprep.mubr.bf16.mxu0 0
      %6324 = vmatmul.mubr.bf16.gmra.mrb[0].mxu0 %v6144
      %v6325 = vpop.f32.mrb[0].mxu0
      %v6326 = vadd.f32 0.0, %v6325
      %v6327 = vpop.f32.mrb[0].mxu0
      %v6328 = vpop.f32.mrb[0].mxu0
      %v6329 = vadd.f32 0.0, %v6328
      %v6330 = vpop.f32.mrb[0].mxu0
      %6331 = vmatprep.mubr.bf16.mxu0 0
      %6332 = vmatmul.mubr.bf16.gmra.mrb[0].mxu0 %v6147
      %v6333 = vpop.f32.mrb[0].mxu0
      %v6334 = vadd.f32 0.0, %v6333
      %v6335 = vpop.f32.mrb[0].mxu0
      %v6336 = vpop.f32.mrb[0].mxu0
      %v6337 = vadd.f32 0.0, %v6336
      %v6338 = vpop.f32.mrb[0].mxu0
      %6339 = vmatprep.mubr.bf16.mxu0 0
      %6340 = vmatmul.mubr.bf16.gmra.mrb[0].mxu0 %v6150
      %v6341 = vpop.f32.mrb[0].mxu0
      %v6342 = vadd.f32 0.0, %v6341
      %v6343 = vpop.f32.mrb[0].mxu0
      %v6344 = vpop.f32.mrb[0].mxu0
      %v6345 = vadd.f32 0.0, %v6344
      %v6346 = vpop.f32.mrb[0].mxu0
      %6347 = vmatprep.mubr.bf16.mxu0 0
      %6348 = vmatmul.mubr.bf16.gmra.mrb[0].mxu0 %v6153
      %v6349 = vpop.f32.mrb[0].mxu0
      %v6350 = vadd.f32 0.0, %v6349
      %v6351 = vpop.f32.mrb[0].mxu0
      %v6352 = vpop.f32.mrb[0].mxu0
      %v6353 = vadd.f32 0.0, %v6352
      %v6354 = vpop.f32.mrb[0].mxu0
      %6355 = vmatprep.mubr.bf16.mxu0 0
      %6356 = vmatmul.mubr.bf16.gmra.mrb[0].mxu0 %v6156
      %v6357 = vpop.f32.mrb[0].mxu0
      %v6358 = vadd.f32 0.0, %v6357
      %v6359 = vpop.f32.mrb[0].mxu0
      %v6360 = vpop.f32.mrb[0].mxu0
      %v6361 = vadd.f32 0.0, %v6360
      %v6362 = vpop.f32.mrb[0].mxu0
      %6363 = vmatprep.mubr.bf16.mxu0 0
      %6364 = vmatmul.mubr.bf16.gmra.mrb[0].mxu0 %v6159
      %v6365 = vpop.f32.mrb[0].mxu0
      %v6366 = vadd.f32 0.0, %v6365
      %v6367 = vpop.f32.mrb[0].mxu0
      %v6368 = vpop.f32.mrb[0].mxu0
      %v6369 = vadd.f32 0.0, %v6368
      %v6370 = vpop.f32.mrb[0].mxu0
      %6371 = vmatprep.mubr.bf16.mxu0 0
      %6372 = vmatmul.mubr.bf16.gmra.mrb[0].mxu0 %v6162
      %v6373 = vpop.f32.mrb[0].mxu0
      %v6374 = vadd.f32 0.0, %v6373
      %v6375 = vpop.f32.mrb[0].mxu0
      %v6376 = vpop.f32.mrb[0].mxu0
      %v6377 = vadd.f32 0.0, %v6376
      %v6378 = vpop.f32.mrb[0].mxu0
      %6379 = vmatprep.mubr.bf16.mxu0 0
      %6380 = vmatmul.mubr.bf16.gmra.mrb[0].mxu0 %v6165
      %v6381 = vpop.f32.mrb[0].mxu0
      %v6382 = vadd.f32 0.0, %v6381
      %v6383 = vpop.f32.mrb[0].mxu0
      %v6384 = vpop.f32.mrb[0].mxu0
      %v6385 = vadd.f32 0.0, %v6384
      %v6386 = vpop.f32.mrb[0].mxu0
      %6387 = vmatprep.mubr.bf16.mxu0 0
      %6388 = vmatmul.mubr.bf16.gmra.mrb[0].mxu0 %v6168
      %v6389 = vpop.f32.mrb[0].mxu0
      %v6390 = vadd.f32 0.0, %v6389
      %v6391 = vpop.f32.mrb[0].mxu0
      %v6392 = vpop.f32.mrb[0].mxu0
      %v6393 = vadd.f32 0.0, %v6392
      %v6394 = vpop.f32.mrb[0].mxu0
      %6395 = vmatprep.mubr.bf16.mxu0 0
      %6396 = vmatmul.mubr.bf16.gmra.mrb[0].mxu0 %v6171
      %v6397 = vpop.f32.mrb[0].mxu0
      %v6398 = vadd.f32 0.0, %v6397
      %v6399 = vpop.f32.mrb[0].mxu0
      %v6400 = vpop.f32.mrb[0].mxu0
      %v6401 = vadd.f32 0.0, %v6400
      %v6402 = vpop.f32.mrb[0].mxu0
      %6403 = vmatprep.mubr.bf16.mxu0 0
      %6404 = vmatmul.mubr.bf16.gmra.mrb[0].mxu0 %v6174
      %v6405 = vpop.f32.mrb[0].mxu0
      %v6406 = vadd.f32 0.0, %v6405
      %v6407 = vpop.f32.mrb[0].mxu0
      %v6408 = vpop.f32.mrb[0].mxu0
      %v6409 = vadd.f32 0.0, %v6408
      %v6410 = vpop.f32.mrb[0].mxu0
      %6411 = vmatprep.mubr.bf16.mxu0 0
      %6412 = vmatmul.mubr.bf16.gmra.mrb[0].mxu0 %v6177
      %v6413 = vpop.f32.mrb[0].mxu0
      %v6414 = vadd.f32 0.0, %v6413
      %v6415 = vpop.f32.mrb[0].mxu0
      %v6416 = vpop.f32.mrb[0].mxu0
      %v6417 = vadd.f32 0.0, %v6416
      %v6418 = vpop.f32.mrb[0].mxu0
      %6419 = vdwg.mxu0
      %v6420 = vadd.f32 %v5746, %v6294
      %v6421 = vadd.f32 %v5747, %v6297
      %v6422 = vadd.f32 %v5748, %v6302
      %v6423 = vadd.f32 %v5749, %v6305
      %v6424 = vadd.f32 %v5750, %v6310
      %v6425 = vadd.f32 %v5751, %v6313
      %v6426 = vadd.f32 %v5752, %v6318
      %v6427 = vadd.f32 %v5753, %v6321
      %v6428 = vadd.f32 %v5754, %v6326
      %v6429 = vadd.f32 %v5755, %v6329
      %v6430 = vadd.f32 %v5756, %v6334
      %v6431 = vadd.f32 %v5757, %v6337
      %v6432 = vadd.f32 %v5758, %v6342
      %v6433 = vadd.f32 %v5759, %v6345
      %v6434 = vadd.f32 %v5760, %v6350
      %v6435 = vadd.f32 %v5761, %v6353
      %v6436 = vadd.f32 %v5762, %v6358
      %v6437 = vadd.f32 %v5763, %v6361
      %v6438 = vadd.f32 %v5764, %v6366
      %v6439 = vadd.f32 %v5765, %v6369
      %v6440 = vadd.f32 %v5766, %v6374
      %v6441 = vadd.f32 %v5767, %v6377
      %v6442 = vadd.f32 %v5768, %v6382
      %v6443 = vadd.f32 %v5769, %v6385
      %v6444 = vadd.f32 %v5770, %v6390
      %v6445 = vadd.f32 %v5771, %v6393
      %v6446 = vadd.f32 %v5772, %v6398
      %v6447 = vadd.f32 %v5773, %v6401
      %v6448 = vadd.f32 %v5774, %v6406
      %v6449 = vadd.f32 %v5775, %v6409
      %v6450 = vadd.f32 %v5776, %v6414
      %v6451 = vadd.f32 %v5777, %v6417
      %v6452 = vpack.c.bf16 %v6421, %v6420
      %v6453 = vpack.c.bf16 %v6423, %v6422
      %v6454 = vpack.c.bf16 %v6425, %v6424
      %v6455 = vpack.c.bf16 %v6427, %v6426
      %v6456 = vpack.c.bf16 %v6429, %v6428
      %v6457 = vpack.c.bf16 %v6431, %v6430
      %v6458 = vpack.c.bf16 %v6433, %v6432
      %v6459 = vpack.c.bf16 %v6435, %v6434
      %v6460 = vpack.c.bf16 %v6437, %v6436
      %v6461 = vpack.c.bf16 %v6439, %v6438
      %v6462 = vpack.c.bf16 %v6441, %v6440
      %v6463 = vpack.c.bf16 %v6443, %v6442
      %v6464 = vpack.c.bf16 %v6445, %v6444
      %v6465 = vpack.c.bf16 %v6447, %v6446
      %v6466 = vpack.c.bf16 %v6449, %v6448
      %v6467 = vpack.c.bf16 %v6451, %v6450
      %v6484 = vunpack.c.l.b16 %v6452
      %v6485 = vunpack.c.h.b16 %v6452
      %v6486 = vunpack.c.l.b16 %v6453
      %v6487 = vunpack.c.h.b16 %v6453
      %v6488 = vunpack.c.l.b16 %v6454
      %v6489 = vunpack.c.h.b16 %v6454
      %v6490 = vunpack.c.l.b16 %v6455
      %v6491 = vunpack.c.h.b16 %v6455
      %v6492 = vunpack.c.l.b16 %v6456
      %v6493 = vunpack.c.h.b16 %v6456
      %v6494 = vunpack.c.l.b16 %v6457
      %v6495 = vunpack.c.h.b16 %v6457
      %v6496 = vunpack.c.l.b16 %v6458
      %v6497 = vunpack.c.h.b16 %v6458
      %v6498 = vunpack.c.l.b16 %v6459
      %v6499 = vunpack.c.h.b16 %v6459
      %v6500 = vunpack.c.l.b16 %v6460
      %v6501 = vunpack.c.h.b16 %v6460
      %v6502 = vunpack.c.l.b16 %v6461
      %v6503 = vunpack.c.h.b16 %v6461
      %v6504 = vunpack.c.l.b16 %v6462
      %v6505 = vunpack.c.h.b16 %v6462
      %v6506 = vunpack.c.l.b16 %v6463
      %v6507 = vunpack.c.h.b16 %v6463
      %v6508 = vunpack.c.l.b16 %v6464
      %v6509 = vunpack.c.h.b16 %v6464
      %v6510 = vunpack.c.l.b16 %v6465
      %v6511 = vunpack.c.h.b16 %v6465
      %v6512 = vunpack.c.l.b16 %v6466
      %v6513 = vunpack.c.h.b16 %v6466
      %v6514 = vunpack.c.l.b16 %v6467
      %v6515 = vunpack.c.h.b16 %v6467
      %v6516 = vpack.c.b16 %v6484, %v6484
      %v6517 = vpack.c.b16 %v6485, %v6485
      %v6518 = vpack.c.b16 %v6486, %v6486
      %v6519 = vpack.c.b16 %v6487, %v6487
      %v6520 = vpack.c.b16 %v6488, %v6488
      %v6521 = vpack.c.b16 %v6489, %v6489
      %v6522 = vpack.c.b16 %v6490, %v6490
      %v6523 = vpack.c.b16 %v6491, %v6491
      %v6524 = vpack.c.b16 %v6492, %v6492
      %v6525 = vpack.c.b16 %v6493, %v6493
      %v6526 = vpack.c.b16 %v6494, %v6494
      %v6527 = vpack.c.b16 %v6495, %v6495
      %v6528 = vpack.c.b16 %v6496, %v6496
      %v6529 = vpack.c.b16 %v6497, %v6497
      %v6530 = vpack.c.b16 %v6498, %v6498
      %v6531 = vpack.c.b16 %v6499, %v6499
      %v6532 = vpack.c.b16 %v6500, %v6500
      %v6533 = vpack.c.b16 %v6501, %v6501
      %v6534 = vpack.c.b16 %v6502, %v6502
      %v6535 = vpack.c.b16 %v6503, %v6503
      %v6536 = vpack.c.b16 %v6504, %v6504
      %v6537 = vpack.c.b16 %v6505, %v6505
      %v6538 = vpack.c.b16 %v6506, %v6506
      %v6539 = vpack.c.b16 %v6507, %v6507
      %v6540 = vpack.c.b16 %v6508, %v6508
      %v6541 = vpack.c.b16 %v6509, %v6509
      %v6542 = vpack.c.b16 %v6510, %v6510
      %v6543 = vpack.c.b16 %v6511, %v6511
      %v6544 = vpack.c.b16 %v6512, %v6512
      %v6545 = vpack.c.b16 %v6513, %v6513
      %v6546 = vpack.c.b16 %v6514, %v6514
      %v6547 = vpack.c.b16 %v6515, %v6515
      %6580 = vst [vmem:[%s291] sm:$0xf] %v6516
      %6581 = vst [vmem:[%s291 + $0x4] sm:$0xf] %v6517
      %6582 = vst [vmem:[%s291 + $0x8] sm:$0xf] %v6518
      %6583 = vst [vmem:[%s291 + $0xc] sm:$0xf] %v6519
      %6584 = vst [vmem:[%s291 + $0x10] sm:$0xf] %v6520
      %6585 = vst [vmem:[%s291 + $0x14] sm:$0xf] %v6521
      %6586 = vst [vmem:[%s291 + $0x18] sm:$0xf] %v6522
      %6587 = vst [vmem:[%s291 + $0x1c] sm:$0xf] %v6523
      %6588 = vst [vmem:[%s291 + $0x20] sm:$0xf] %v6524
      %6589 = vst [vmem:[%s291 + $0x24] sm:$0xf] %v6525
      %6590 = vst [vmem:[%s291 + $0x28] sm:$0xf] %v6526
      %6591 = vst [vmem:[%s291 + $0x2c] sm:$0xf] %v6527
      %6592 = vst [vmem:[%s291 + $0x30] sm:$0xf] %v6528
      %6593 = vst [vmem:[%s291 + $0x34] sm:$0xf] %v6529
      %6594 = vst [vmem:[%s291 + $0x38] sm:$0xf] %v6530
      %6595 = vst [vmem:[%s291 + $0x3c] sm:$0xf] %v6531
      %6596 = vst [vmem:[%s291 + $0x40] sm:$0xf] %v6532
      %6597 = vst [vmem:[%s291 + $0x44] sm:$0xf] %v6533
      %6598 = vst [vmem:[%s291 + $0x48] sm:$0xf] %v6534
      %6599 = vst [vmem:[%s291 + $0x4c] sm:$0xf] %v6535
      %6600 = vst [vmem:[%s291 + $0x50] sm:$0xf] %v6536
      %6601 = vst [vmem:[%s291 + $0x54] sm:$0xf] %v6537
      %6602 = vst [vmem:[%s291 + $0x58] sm:$0xf] %v6538
      %6603 = vst [vmem:[%s291 + $0x5c] sm:$0xf] %v6539
      %6604 = vst [vmem:[%s291 + $0x60] sm:$0xf] %v6540
      %6605 = vst [vmem:[%s291 + $0x64] sm:$0xf] %v6541
      %6606 = vst [vmem:[%s291 + $0x68] sm:$0xf] %v6542
      %6607 = vst [vmem:[%s291 + $0x6c] sm:$0xf] %v6543
      %6608 = vst [vmem:[%s291 + $0x70] sm:$0xf] %v6544
      %6609 = vst [vmem:[%s291 + $0x74] sm:$0xf] %v6545
      %6610 = vst [vmem:[%s291 + $0x78] sm:$0xf] %v6546
      %6611 = vst [vmem:[%s291 + $0x7c] sm:$0xf] %v6547
      %v6612 = vadd.f32 %v6420, %v6421
      %v6613 = vadd.f32 %v6612, %v6422
      %v6614 = vadd.f32 %v6613, %v6423
      %v6615 = vadd.f32 %v6614, %v6424
      %v6616 = vadd.f32 %v6615, %v6425
      %v6617 = vadd.f32 %v6616, %v6426
      %v6618 = vadd.f32 %v6617, %v6427
      %v6619 = vadd.f32 %v6618, %v6428
      %v6620 = vadd.f32 %v6619, %v6429
      %v6621 = vadd.f32 %v6620, %v6430
      %v6622 = vadd.f32 %v6621, %v6431
      %v6623 = vadd.f32 %v6622, %v6432
      %v6624 = vadd.f32 %v6623, %v6433
      %v6625 = vadd.f32 %v6624, %v6434
      %v6626 = vadd.f32 %v6625, %v6435
      %v6627 = vadd.f32 %v6626, %v6436
      %v6628 = vadd.f32 %v6627, %v6437
      %v6629 = vadd.f32 %v6628, %v6438
      %v6630 = vadd.f32 %v6629, %v6439
      %v6631 = vadd.f32 %v6630, %v6440
      %v6632 = vadd.f32 %v6631, %v6441
      %v6633 = vadd.f32 %v6632, %v6442
      %v6634 = vadd.f32 %v6633, %v6443
      %v6635 = vadd.f32 %v6634, %v6444
      %v6636 = vadd.f32 %v6635, %v6445
      %v6637 = vadd.f32 %v6636, %v6446
      %v6638 = vadd.f32 %v6637, %v6447
      %v6639 = vadd.f32 %v6638, %v6448
      %v6640 = vadd.f32 %v6639, %v6449
      %v6641 = vadd.f32 %v6640, %v6450
      %v6642 = vadd.f32 %v6641, %v6451
      %6643 = vst [vmem:[%s295] sm:$0xff] %v6642
      %v6644 = vmul.f32 %v6420, %v6420
      %v6645 = vmul.f32 %v6421, %v6421
      %v6646 = vmul.f32 %v6422, %v6422
      %v6647 = vmul.f32 %v6423, %v6423
      %v6648 = vmul.f32 %v6424, %v6424
      %v6649 = vmul.f32 %v6425, %v6425
      %v6650 = vmul.f32 %v6426, %v6426
      %v6651 = vmul.f32 %v6427, %v6427
      %v6652 = vmul.f32 %v6428, %v6428
      %v6653 = vmul.f32 %v6429, %v6429
      %v6654 = vmul.f32 %v6430, %v6430
      %v6655 = vmul.f32 %v6431, %v6431
      %v6656 = vmul.f32 %v6432, %v6432
      %v6657 = vmul.f32 %v6433, %v6433
      %v6658 = vmul.f32 %v6434, %v6434
      %v6659 = vmul.f32 %v6435, %v6435
      %v6660 = vmul.f32 %v6436, %v6436
      %v6661 = vmul.f32 %v6437, %v6437
      %v6662 = vmul.f32 %v6438, %v6438
      %v6663 = vmul.f32 %v6439, %v6439
      %v6664 = vmul.f32 %v6440, %v6440
      %v6665 = vmul.f32 %v6441, %v6441
      %v6666 = vmul.f32 %v6442, %v6442
      %v6667 = vmul.f32 %v6443, %v6443
      %v6668 = vmul.f32 %v6444, %v6444
      %v6669 = vmul.f32 %v6445, %v6445
      %v6670 = vmul.f32 %v6446, %v6446
      %v6671 = vmul.f32 %v6447, %v6447
      %v6672 = vmul.f32 %v6448, %v6448
      %v6673 = vmul.f32 %v6449, %v6449
      %v6674 = vmul.f32 %v6450, %v6450
      %v6675 = vmul.f32 %v6451, %v6451
      %v6676 = vadd.f32 %v6644, %v6645
      %v6677 = vadd.f32 %v6676, %v6646
      %v6678 = vadd.f32 %v6677, %v6647
      %v6679 = vadd.f32 %v6678, %v6648
      %v6680 = vadd.f32 %v6679, %v6649
      %v6681 = vadd.f32 %v6680, %v6650
      %v6682 = vadd.f32 %v6681, %v6651
      %v6683 = vadd.f32 %v6682, %v6652
      %v6684 = vadd.f32 %v6683, %v6653
      %v6685 = vadd.f32 %v6684, %v6654
      %v6686 = vadd.f32 %v6685, %v6655
      %v6687 = vadd.f32 %v6686, %v6656
      %v6688 = vadd.f32 %v6687, %v6657
      %v6689 = vadd.f32 %v6688, %v6658
      %v6690 = vadd.f32 %v6689, %v6659
      %v6691 = vadd.f32 %v6690, %v6660
      %v6692 = vadd.f32 %v6691, %v6661
      %v6693 = vadd.f32 %v6692, %v6662
      %v6694 = vadd.f32 %v6693, %v6663
      %v6695 = vadd.f32 %v6694, %v6664
      %v6696 = vadd.f32 %v6695, %v6665
      %v6697 = vadd.f32 %v6696, %v6666
      %v6698 = vadd.f32 %v6697, %v6667
      %v6699 = vadd.f32 %v6698, %v6668
      %v6700 = vadd.f32 %v6699, %v6669
      %v6701 = vadd.f32 %v6700, %v6670
      %v6702 = vadd.f32 %v6701, %v6671
      %v6703 = vadd.f32 %v6702, %v6672
      %v6704 = vadd.f32 %v6703, %v6673
      %v6705 = vadd.f32 %v6704, %v6674
      %v6706 = vadd.f32 %v6705, %v6675
      %6707 = vst [vmem:[%s299] sm:$0xff] %v6706
      %p6708 = scmp.lt.s32.totalorder %s19, 1
      %s6709 = scalar_select %p6708, %s19, 1
      %s6710 = smul.addr %s6709, 32
      %s6711 = smul.addr %s6710, 4
      %s6712 = scalar_lea.vmem %s5, %s6711
      %p6713 = scmp.lt.s32.totalorder %s19, 1
      %s6714 = scalar_select %p6713, %s19, 1
      %s6715 = smul.addr %s6714, 8
      %s6716 = scalar_lea.vmem %s6, %s6715
      %p6717 = scmp.lt.s32.totalorder %s19, 1
      %s6718 = scalar_select %p6717, %s19, 1
      %s6719 = smul.addr %s6718, 8
      %s6720 = scalar_lea.vmem %s7, %s6719
      // Predicated region
      $region41: #{_lambda_.5} parent=39 // pred_check
        %p6721 = pneg %p147
      $region42: #{_lambda_.5} parent=39 // pred_check_branch
        %6723 = sbr.rel (%p6721) target = $region44
      $region43: #{_lambda_.5} parent=39 // pred_region
        _
      $region44: #{_lambda_.5} parent=39 // pred_fallthru
        _
      // Predicated region
      $region45: #{_lambda_.5} parent=39 // pred_check
        %p6724 = pneg %p173
      $region46: #{_lambda_.5} parent=39 // pred_check_branch
        %6726 = sbr.rel (%p6724) target = $region48
      $region47: #{_lambda_.5} parent=39 // pred_region
        _
      $region48: #{_lambda_.5} parent=39 // pred_fallthru
        _
      // Predicated region
      $region49: #{_lambda_.5} parent=39 // pred_check
        %p6727 = pneg %p199
      $region50: #{_lambda_.5} parent=39 // pred_check_branch
        %6729 = sbr.rel (%p6727) target = $region52
      $region51: #{_lambda_.5} parent=39 // pred_region
        _
      $region52: #{_lambda_.5} parent=39 // pred_fallthru
        _
    $region40: #{_lambda_.5} parent=5 // pred_fallthru
      _
    %p6730 = scmp.le.s32.totalorder 2, %s14
    // Predicated region
    $region53: #{_lambda_.5} parent=5 // pred_check
      %p6731 = pneg %p6730
    $region54: #{_lambda_.5} parent=5 // pred_check_branch
      %6733 = sbr.rel (%p6731) target = $region56
    $region55: #{_lambda_.5} parent=5 // pred_region
      %s6734 = ssub.s32 %s14, 2
      // Predicated region
      $region57: #{_lambda_.5} parent=55 // pred_check
        %p6735 = pneg %p153
      $region58: #{_lambda_.5} parent=55 // pred_check_branch
        %6737 = sbr.rel (%p6735) target = $region60
      $region59: #{_lambda_.5} parent=55 // pred_region
        %p6738 = scmp.lt.s32.totalorder %s20, 1
        %s6739 = scalar_select %p6738, %s20, 1
        %s6740 = smul.addr %s6739, 32
        %s6741 = smul.addr %s6740, 4
        %s6742 = scalar_lea.vmem %s5, %s6741
      $region60: #{_lambda_.5} parent=55 // pred_fallthru
        _
      // Predicated region
      $region61: #{_lambda_.5} parent=55 // pred_check
        %p6743 = pneg %p179
      $region62: #{_lambda_.5} parent=55 // pred_check_branch
        %6745 = sbr.rel (%p6743) target = $region64
      $region63: #{_lambda_.5} parent=55 // pred_region
        %p6746 = scmp.lt.s32.totalorder %s20, 1
        %s6747 = scalar_select %p6746, %s20, 1
        %s6748 = smul.addr %s6747, 8
        %s6749 = scalar_lea.vmem %s6, %s6748
      $region64: #{_lambda_.5} parent=55 // pred_fallthru
        _
      // Predicated region
      $region65: #{_lambda_.5} parent=55 // pred_check
        %p6750 = pneg %p205
      $region66: #{_lambda_.5} parent=55 // pred_check_branch
        %6752 = sbr.rel (%p6750) target = $region68
      $region67: #{_lambda_.5} parent=55 // pred_region
        %p6753 = scmp.lt.s32.totalorder %s20, 1
        %s6754 = scalar_select %p6753, %s20, 1
        %s6755 = smul.addr %s6754, 8
        %s6756 = scalar_lea.vmem %s7, %s6755
      $region68: #{_lambda_.5} parent=55 // pred_fallthru
        _
    $region56: #{_lambda_.5} parent=5 // pred_fallthru
      _
  $region6: #{_lambda_.5} parent=0 // loop_footer
    %s18 = sadd.s32 1, %s14
  $region7: #{_lambda_.5} parent=0 // loop_footer_branch
    %13 = sbr.rel target = $region3
  $region8: #{_lambda_.5} parent=0 // loop_exit
    _

</llo_original>
